<compile_context>
chip_gen: v7x
topology: tpu7x:2x2x1
jax: 0.10.0
libtpu: 0.0.40
codegen_flags: <defaults>
</compile_context>

<pallas_src>
import functools

import jax
import jax.numpy as jnp
from jax.experimental import pallas as pl
from jax.experimental.pallas import tpu as pltpu


# ============================================================================
# Pallas kernels
# ============================================================================
def _conv_s1_kernel(x_ref, w_ref, b_ref, o_ref, p_ref, *, kh, kw, ho, wo, act):
    """Stride-1 conv for one (phase, batch) tile.

    x_ref : (Hs, Ws, C)        input slab, Hs = ho + kh - 1, Ws = wo + kw - 1
    w_ref : (kh*kw*C, Cout)    weight matrix, row order (dh, dw, c)
    b_ref : (1, Cout)
    o_ref : (ho*wo, Cout)
    p_ref : VMEM scratch (ho*wo, kh*kw*C) -- im2col patches built on-chip,
            never materialized in HBM.
    """
    c = x_ref.shape[-1]
    for oh in range(ho):                      # static unroll (small spatial)
        r0 = oh * wo
        for dh in range(kh):
            for dw in range(kw):
                t = dh * kw + dw
                p_ref[r0:r0 + wo, t * c:(t + 1) * c] = \
                    x_ref[oh + dh, dw:dw + wo, :]
    y = jnp.dot(p_ref[...], w_ref[...], preferred_element_type=jnp.float32)
    y = y + b_ref[...]
    if act == "relu":
        y = jnp.maximum(y, 0.0)
    elif act == "sigmoid":
        y = 1.0 / (1.0 + jnp.exp(-y))
    o_ref[...] = y.astype(o_ref.dtype)


def conv_s1_grouped(xs, wm, bm, kh, kw, ho, wo, act):
    """xs: (P,B,Hs,Ws,C), wm: (P,K,Cout), bm: (P,1,Cout) -> (P,B,ho*wo,Cout)."""
    P, B, Hs, Ws, C = xs.shape
    K, Cout = wm.shape[1], wm.shape[2]
    M = ho * wo
    kern = functools.partial(_conv_s1_kernel, kh=kh, kw=kw, ho=ho, wo=wo, act=act)
    return pl.pallas_call(
        kern,
        out_shape=jax.ShapeDtypeStruct((P, B, M, Cout), jnp.float32),
        grid_spec=pltpu.PrefetchScalarGridSpec(
            num_scalar_prefetch=0,
            grid=(P, B),
            in_specs=[
                pl.BlockSpec((None, None, Hs, Ws, C), lambda p, b: (p, b, 0, 0, 0)),
                pl.BlockSpec((None, K, Cout), lambda p, b: (p, 0, 0)),
                pl.BlockSpec((None, 1, Cout), lambda p, b: (p, 0, 0)),
            ],
            out_specs=pl.BlockSpec((None, None, M, Cout), lambda p, b: (p, b, 0, 0)),
            scratch_shapes=[pltpu.VMEM((M, K), jnp.float32)],
        ),
        compiler_params=pltpu.CompilerParams(
            dimension_semantics=("parallel", "parallel")),
    )(xs, wm, bm)


def _bottleneck_kernel(x_ref, eps_ref, w1_ref, b1_ref, wmu_ref, bmu_ref,
                       wlv_ref, blv_ref, w2_ref, b2_ref, wd_ref, bd_ref,
                       mu_ref, lv_ref, d_ref):
    """pool-out -> fc1 -> (fc_mu, fc_log_var) -> reparam -> fc2 -> dec1+ReLU."""
    h = jnp.dot(x_ref[...], w1_ref[...], preferred_element_type=jnp.float32) + b1_ref[...]
    mu = jnp.dot(h, wmu_ref[...], preferred_element_type=jnp.float32) + bmu_ref[...]
    lv = jnp.dot(h, wlv_ref[...], preferred_element_type=jnp.float32) + blv_ref[...]
    z = mu + eps_ref[...] * jnp.exp(0.5 * lv)          # reparameterization
    z = jnp.dot(z, w2_ref[...], preferred_element_type=jnp.float32) + b2_ref[...]
    d = jnp.dot(z, wd_ref[...], preferred_element_type=jnp.float32) + bd_ref[...]
    mu_ref[...] = mu
    lv_ref[...] = lv
    d_ref[...] = jnp.maximum(d, 0.0)                   # dec1's ReLU


def bottleneck_fused(xpool, eps, p):
    B = xpool.shape[0]
    L = p["fc_mu_b"].shape[0]
    cin_d, cout_d, kh, kw = p["dec1_w"].shape
    # dec1: ConvTranspose(k, s=1, p=0) on a 1x1-spatial input == dense matmul.
    wd = jnp.transpose(p["dec1_w"], (0, 2, 3, 1)).reshape(cin_d, kh * kw * cout_d)
    bd = jnp.tile(p["dec1_b"], kh * kw).reshape(1, kh * kw * cout_d)

    def row(v):
        return v.reshape(1, -1)

    vmem = pl.BlockSpec(memory_space=pltpu.MemorySpace.VMEM)
    mu, lv, d = pl.pallas_call(
        _bottleneck_kernel,
        out_shape=(jax.ShapeDtypeStruct((B, L), jnp.float32),
                   jax.ShapeDtypeStruct((B, L), jnp.float32),
                   jax.ShapeDtypeStruct((B, kh * kw * cout_d), jnp.float32)),
        in_specs=[vmem] * 12,
        out_specs=(vmem, vmem, vmem),
    )(xpool, eps,
      p["fc1_w"].T, row(p["fc1_b"]),
      p["fc_mu_w"].T, row(p["fc_mu_b"]),
      p["fc_lv_w"].T, row(p["fc_lv_b"]),
      p["fc2_w"].T, row(p["fc2_b"]),
      wd, bd)
    return mu, lv, d.reshape(B, kh, kw, cout_d)


# ============================================================================
# Conv / ConvTranspose wrappers (plain-JAX layout glue only; compute in Pallas)
# ============================================================================
def conv2d(x, w_t, b, stride, pad, act):
    """Strided Conv2d (torch weight (Cout,Cin,kh,kw)) on NHWC input, lowered to
    a stride-1 conv via space-to-depth so im2col stays on-chip."""
    B, H, W, C = x.shape
    Cout, Cin, kh, kw = w_t.shape
    ho = (H + 2 * pad - kh) // stride + 1
    wo = (W + 2 * pad - kw) // stride + 1
    # pad kernel taps up to a multiple of `stride` (zero taps contribute 0)
    khp = -(-kh // stride) * stride
    kwp = -(-kw // stride) * stride
    w4 = jnp.transpose(w_t, (2, 3, 1, 0))                       # (kh,kw,Cin,Cout)
    w4 = jnp.pad(w4, ((0, khp - kh), (0, kwp - kw), (0, 0), (0, 0)))
    need_h = stride * (ho - 1) + khp
    need_w = stride * (wo - 1) + kwp
    xp = jnp.pad(x, ((0, 0),
                     (pad, max(0, need_h - H - pad)),
                     (pad, max(0, need_w - W - pad)),
                     (0, 0)))[:, :need_h, :need_w, :]
    hs, ws = need_h // stride, need_w // stride
    xs = xp.reshape(B, hs, stride, ws, stride, C)
    xs = xs.transpose(0, 1, 3, 2, 4, 5).reshape(B, hs, ws, stride * stride * C)
    khs, kws = khp // stride, kwp // stride
    wm = w4.reshape(khs, stride, kws, stride, Cin, Cout)
    wm = wm.transpose(0, 2, 1, 3, 4, 5).reshape(khs * kws * stride * stride * Cin, Cout)
    y = conv_s1_grouped(xs[None], wm[None], b.reshape(1, 1, Cout),
                        khs, kws, ho, wo, act)[0]
    return y.reshape(B, ho, wo, Cout)


def conv_transpose2d(x, w_t, b, stride, pad, act):
    """ConvTranspose2d (torch weight (Cin,Cout,kh,kw)) on NHWC input via
    sub-pixel phase decomposition: stride*stride stride-1 convs on the
    un-dilated input, batched into one pallas_call (phase grid axis)."""
    B, Hi, Wi, C = x.shape
    Cin, Cout, kh, kw = w_t.shape
    ho = (Hi - 1) * stride - 2 * pad + kh
    wo = (Wi - 1) * stride - 2 * pad + kw
    qh = kh - 1 - pad
    qw = kw - 1 - pad
    wf = jnp.transpose(w_t[:, :, ::-1, ::-1], (2, 3, 0, 1))     # (kh,kw,Cin,Cout)

    def phase(r, k, q, n_in, n_out):
        rho = (q - r) % stride
        t = (q - r - rho) // stride
        nt = len(range(rho, k, stride))
        u = len(range(r, n_out, stride))
        pad_lo = max(0, t)
        pad_hi = max(0, u + nt - 1 - t - n_in)
        start = max(0, -t)
        return rho, nt, u, pad_lo, pad_hi, start

    slabs, wmats, dims = [], [], []
    for rh in range(stride):
        for rw in range(stride):
            rho_h, nth, uh, plh, phh, sh = phase(rh, kh, qh, Hi, ho)
            rho_w, ntw, uw, plw, phw, sw = phase(rw, kw, qw, Wi, wo)
            xp = jnp.pad(x, ((0, 0), (plh, phh), (plw, phw), (0, 0)))
            slabs.append(xp[:, sh:sh + uh + nth - 1, sw:sw + uw + ntw - 1, :])
            wmats.append(wf[rho_h::stride, rho_w::stride, :, :]
                         .reshape(nth * ntw * Cin, Cout))
            dims.append((nth, ntw, uh, uw))

    if all(d == dims[0] for d in dims):
        nth, ntw, uh, uw = dims[0]
        xs = jnp.stack(slabs, axis=0)                            # (P,B,Hs,Ws,C)
        wm = jnp.stack(wmats, axis=0)                            # (P,K,Cout)
        bm = jnp.broadcast_to(b.reshape(1, 1, Cout), (stride * stride, 1, Cout))
        y = conv_s1_grouped(xs, wm, bm, nth, ntw, uh, uw, act)   # (P,B,U,Cout)
        y = y.reshape(stride, stride, B, uh, uw, Cout)
        y = y.transpose(2, 3, 0, 4, 1, 5).reshape(B, uh * stride, uw * stride, Cout)
        return y
    # Ragged phases (odd output extent): per-phase calls + strided interleave.
    out = jnp.zeros((B, ho, wo, Cout), jnp.float32)
    i = 0
    for rh in range(stride):
        for rw in range(stride):
            nth, ntw, uh, uw = dims[i]
            yp = conv_s1_grouped(slabs[i][None], wmats[i][None],
                                 b.reshape(1, 1, Cout),
                                 nth, ntw, uh, uw, act)[0].reshape(B, uh, uw, Cout)
            out = out.at[:, rh::stride, rw::stride, :].set(yp)
            i += 1
    return out


# ============================================================================
# Parameters (deterministic; shapes follow ConvVAE.__init__)
# ============================================================================
def make_params(key, in_channels, out_channels, kernel_size, latent_size):
    oc, k = out_channels, kernel_size
    shapes = [
        ("enc1_w", (oc, in_channels, k, k)), ("enc1_b", (oc,)),
        ("enc2_w", (oc * 2, oc, k, k)), ("enc2_b", (oc * 2,)),
        ("enc3_w", (oc * 4, oc * 2, k, k)), ("enc3_b", (oc * 4,)),
        ("enc4_w", (64, oc * 4, 2, 2)), ("enc4_b", (64,)),
        ("fc1_w", (128, 64)), ("fc1_b", (128,)),
        ("fc_mu_w", (latent_size, 128)), ("fc_mu_b", (latent_size,)),
        ("fc_lv_w", (latent_size, 128)), ("fc_lv_b", (latent_size,)),
        ("fc2_w", (64, latent_size)), ("fc2_b", (64,)),
        ("dec1_w", (64, oc * 8, k, k)), ("dec1_b", (oc * 8,)),
        ("dec2_w", (oc * 8, oc * 4, k, k)), ("dec2_b", (oc * 4,)),
        ("dec3_w", (oc * 4, oc * 2, k, k)), ("dec3_b", (oc * 2,)),
        ("dec4_w", (oc * 2, in_channels, k, k)), ("dec4_b", (in_channels,)),
    ]
    keys = jax.random.split(key, len(shapes))
    return {name: 0.05 * jax.random.normal(kk, shape, jnp.float32)
            for (name, shape), kk in zip(shapes, keys)}


# ============================================================================
# Forward pass (mirrors ConvVAE.forward)
# ============================================================================
def conv_vae_forward(params, x_nchw, eps):
    x = jnp.transpose(x_nchw, (0, 2, 3, 1))                     # NCHW -> NHWC
    # encoder: Conv2d + ReLU (im2col + matmul + bias + ReLU fused in Pallas)
    x = conv2d(x, params["enc1_w"], params["enc1_b"], 2, 1, "relu")
    x = conv2d(x, params["enc2_w"], params["enc2_b"], 2, 1, "relu")
    x = conv2d(x, params["enc3_w"], params["enc3_b"], 2, 1, "relu")
    x = conv2d(x, params["enc4_w"], params["enc4_b"], 2, 0, "relu")
    # adaptive_avg_pool2d(x, 1).reshape(batch, -1)
    xpool = jnp.mean(x, axis=(1, 2))                            # (B, 64)
    # fused: fc1 -> fc_mu / fc_log_var -> reparameterize -> fc2 -> dec1+ReLU
    mu, log_var, z = bottleneck_fused(xpool, eps, params)       # z: (B,k,k,oc*8)
    # decoder: phase-decomposed ConvTranspose2d (+ReLU / Sigmoid fused)
    z = conv_transpose2d(z, params["dec2_w"], params["dec2_b"], 2, 1, "relu")
    z = conv_transpose2d(z, params["dec3_w"], params["dec3_b"], 2, 1, "relu")
    z = conv_transpose2d(z, params["dec4_w"], params["dec4_b"], 2, 3, "sigmoid")
    reconstruction = jnp.transpose(z, (0, 3, 1, 2))             # back to NCHW
    return reconstruction, mu, log_var


# ============================================================================
if __name__ == "__main__":
    # MNIST-like configuration: in_channels=3, out_channels=8, kernel_size=4,
    # latent_size=16, 28x28 images, batch=2 (decoder arithmetic closes at 28).
    IN_CH, OUT_CH, KSIZE, LATENT = 3, 8, 4, 16
    B, H, W = 2, 28, 28

    key = jax.random.PRNGKey(0)
    k_x, k_eps, k_params = jax.random.split(key, 3)

    x = jax.random.uniform(k_x, (B, IN_CH, H, W), jnp.float32)
    # TODO(synk): torch.randn_like draws eps from torch's global RNG; here we
    # pass a deterministic jax.random.normal of the same shape instead.
    eps = jax.random.normal(k_eps, (B, LATENT), jnp.float32)
    params = make_params(k_params, IN_CH, OUT_CH, KSIZE, LATENT)

    fwd = jax.jit(conv_vae_forward)
    recon, mu, log_var = fwd(params, x, eps)
    jax.block_until_ready((recon, mu, log_var))

    assert recon.shape == (B, IN_CH, H, W), recon.shape
    assert mu.shape == (B, LATENT) and log_var.shape == (B, LATENT)
    print("KERNEL_OK")
</pallas_src>

<mosaic_0001>
module attributes {stable_mosaic.version = 11 : i64} {
  func.func @_conv_s1_kernel(%arg0: i32, %arg1: i32, %arg2: memref<1x1x15x15x12xf32, #tpu.memory_space<vmem>>, %arg3: memref<1x48x8xf32, #tpu.memory_space<vmem>>, %arg4: memref<1x1x8xf32, #tpu.memory_space<vmem>>, %arg5: memref<1x1x196x8xf32, #tpu.memory_space<vmem>>, %arg6: memref<196x48xf32, #tpu.memory_space<vmem>>) attributes {dimension_semantics = [#tpu.dimension_semantics<parallel>, #tpu.dimension_semantics<parallel>], iteration_bounds = array<i64: 1, 2>, scalar_prefetch = 0 : i64, scratch_operands = 1 : i64, tpu.core_type = #tpu.core_type<tc>, window_params = [{transform_indices = @transform_0, window_bounds = array<i64: 1, 1, 15, 15, 12>}, {transform_indices = @transform_1, window_bounds = array<i64: 1, 48, 8>}, {transform_indices = @transform_2, window_bounds = array<i64: 1, 1, 8>}, {transform_indices = @transform_3, window_bounds = array<i64: 1, 1, 196, 8>}]} {
    %c0 = arith.constant 0 : index
    %c0_0 = arith.constant 0 : index
    %c0_1 = arith.constant 0 : index
    %c0_2 = arith.constant 0 : index
    %c0_3 = arith.constant 0 : index
    %0 = vector.load %arg2[%c0, %c0_0, %c0_1, %c0_2, %c0_3] : memref<1x1x15x15x12xf32, #tpu.memory_space<vmem>>, vector<1x1x1x14x12xf32>
    %1 = vector.shape_cast %0 : vector<1x1x1x14x12xf32> to vector<14x12xf32>
    %c0_4 = arith.constant 0 : index
    %c0_5 = arith.constant 0 : index
    %2 = vector.load %arg6[%c0_4, %c0_5] : memref<196x48xf32, #tpu.memory_space<vmem>>, vector<14x12xf32>
    tpu.vector_store %arg6[%c0_4, %c0_5], %1 {strides = array<i32>} : memref<196x48xf32, #tpu.memory_space<vmem>>, vector<14x12xf32>,
    %c0_6 = arith.constant 0 : index
    %c0_7 = arith.constant 0 : index
    %c0_8 = arith.constant 0 : index
    %c1 = arith.constant 1 : index
    %c0_9 = arith.constant 0 : index
    %3 = vector.load %arg2[%c0_6, %c0_7, %c0_8, %c1, %c0_9] : memref<1x1x15x15x12xf32, #tpu.memory_space<vmem>>, vector<1x1x1x14x12xf32>
    %4 = vector.shape_cast %3 : vector<1x1x1x14x12xf32> to vector<14x12xf32>
    %c0_10 = arith.constant 0 : index
    %c12 = arith.constant 12 : index
    %5 = vector.load %arg6[%c0_10, %c12] : memref<196x48xf32, #tpu.memory_space<vmem>>, vector<14x12xf32>
    tpu.vector_store %arg6[%c0_10, %c12], %4 {strides = array<i32>} : memref<196x48xf32, #tpu.memory_space<vmem>>, vector<14x12xf32>,
    %c0_11 = arith.constant 0 : index
    %c0_12 = arith.constant 0 : index
    %c1_13 = arith.constant 1 : index
    %c0_14 = arith.constant 0 : index
    %c0_15 = arith.constant 0 : index
    %6 = vector.load %arg2[%c0_11, %c0_12, %c1_13, %c0_14, %c0_15] : memref<1x1x15x15x12xf32, #tpu.memory_space<vmem>>, vector<1x1x1x14x12xf32>
    %7 = vector.shape_cast %6 : vector<1x1x1x14x12xf32> to vector<14x12xf32>
    %c0_16 = arith.constant 0 : index
    %c24 = arith.constant 24 : index
    %8 = vector.load %arg6[%c0_16, %c24] : memref<196x48xf32, #tpu.memory_space<vmem>>, vector<14x12xf32>
    tpu.vector_store %arg6[%c0_16, %c24], %7 {strides = array<i32>} : memref<196x48xf32, #tpu.memory_space<vmem>>, vector<14x12xf32>,
    %c0_17 = arith.constant 0 : index
    %c0_18 = arith.constant 0 : index
    %c1_19 = arith.constant 1 : index
    %c1_20 = arith.constant 1 : index
    %c0_21 = arith.constant 0 : index
    %9 = vector.load %arg2[%c0_17, %c0_18, %c1_19, %c1_20, %c0_21] : memref<1x1x15x15x12xf32, #tpu.memory_space<vmem>>, vector<1x1x1x14x12xf32>
    %10 = vector.shape_cast %9 : vector<1x1x1x14x12xf32> to vector<14x12xf32>
    %c0_22 = arith.constant 0 : index
    %c36 = arith.constant 36 : index
    %11 = vector.load %arg6[%c0_22, %c36] : memref<196x48xf32, #tpu.memory_space<vmem>>, vector<14x12xf32>
    tpu.vector_store %arg6[%c0_22, %c36], %10 {strides = array<i32>} : memref<196x48xf32, #tpu.memory_space<vmem>>, vector<14x12xf32>,
    %c0_23 = arith.constant 0 : index
    %c0_24 = arith.constant 0 : index
    %c1_25 = arith.constant 1 : index
    %c0_26 = arith.constant 0 : index
    %c0_27 = arith.constant 0 : index
    %12 = vector.load %arg2[%c0_23, %c0_24, %c1_25, %c0_26, %c0_27] : memref<1x1x15x15x12xf32, #tpu.memory_space<vmem>>, vector<1x1x1x14x12xf32>
    %13 = vector.shape_cast %12 : vector<1x1x1x14x12xf32> to vector<14x12xf32>
    %c14 = arith.constant 14 : index
    %c0_28 = arith.constant 0 : index
    %14 = vector.load %arg6[%c14, %c0_28] : memref<196x48xf32, #tpu.memory_space<vmem>>, vector<14x12xf32>
    tpu.vector_store %arg6[%c14, %c0_28], %13 {strides = array<i32>} : memref<196x48xf32, #tpu.memory_space<vmem>>, vector<14x12xf32>,
    %c0_29 = arith.constant 0 : index
    %c0_30 = arith.constant 0 : index
    %c1_31 = arith.constant 1 : index
    %c1_32 = arith.constant 1 : index
    %c0_33 = arith.constant 0 : index
    %15 = vector.load %arg2[%c0_29, %c0_30, %c1_31, %c1_32, %c0_33] : memref<1x1x15x15x12xf32, #tpu.memory_space<vmem>>, vector<1x1x1x14x12xf32>
    %16 = vector.shape_cast %15 : vector<1x1x1x14x12xf32> to vector<14x12xf32>
    %c14_34 = arith.constant 14 : index
    %c12_35 = arith.constant 12 : index
    %17 = vector.load %arg6[%c14_34, %c12_35] : memref<196x48xf32, #tpu.memory_space<vmem>>, vector<14x12xf32>
    tpu.vector_store %arg6[%c14_34, %c12_35], %16 {strides = array<i32>} : memref<196x48xf32, #tpu.memory_space<vmem>>, vector<14x12xf32>,
    %c0_36 = arith.constant 0 : index
    %c0_37 = arith.constant 0 : index
    %c2 = arith.constant 2 : index
    %c0_38 = arith.constant 0 : index
    %c0_39 = arith.constant 0 : index
    %18 = vector.load %arg2[%c0_36, %c0_37, %c2, %c0_38, %c0_39] : memref<1x1x15x15x12xf32, #tpu.memory_space<vmem>>, vector<1x1x1x14x12xf32>
    %19 = vector.shape_cast %18 : vector<1x1x1x14x12xf32> to vector<14x12xf32>
    %c14_40 = arith.constant 14 : index
    %c24_41 = arith.constant 24 : index
    %20 = vector.load %arg6[%c14_40, %c24_41] : memref<196x48xf32, #tpu.memory_space<vmem>>, vector<14x12xf32>
    tpu.vector_store %arg6[%c14_40, %c24_41], %19 {strides = array<i32>} : memref<196x48xf32, #tpu.memory_space<vmem>>, vector<14x12xf32>,
    %c0_42 = arith.constant 0 : index
    %c0_43 = arith.constant 0 : index
    %c2_44 = arith.constant 2 : index
    %c1_45 = arith.constant 1 : index
    %c0_46 = arith.constant 0 : index
    %21 = vector.load %arg2[%c0_42, %c0_43, %c2_44, %c1_45, %c0_46] : memref<1x1x15x15x12xf32, #tpu.memory_space<vmem>>, vector<1x1x1x14x12xf32>
    %22 = vector.shape_cast %21 : vector<1x1x1x14x12xf32> to vector<14x12xf32>
    %c14_47 = arith.constant 14 : index
    %c36_48 = arith.constant 36 : index
    %23 = vector.load %arg6[%c14_47, %c36_48] : memref<196x48xf32, #tpu.memory_space<vmem>>, vector<14x12xf32>
    tpu.vector_store %arg6[%c14_47, %c36_48], %22 {strides = array<i32>} : memref<196x48xf32, #tpu.memory_space<vmem>>, vector<14x12xf32>,
    %c0_49 = arith.constant 0 : index
    %c0_50 = arith.constant 0 : index
    %c2_51 = arith.constant 2 : index
    %c0_52 = arith.constant 0 : index
    %c0_53 = arith.constant 0 : index
    %24 = vector.load %arg2[%c0_49, %c0_50, %c2_51, %c0_52, %c0_53] : memref<1x1x15x15x12xf32, #tpu.memory_space<vmem>>, vector<1x1x1x14x12xf32>
    %25 = vector.shape_cast %24 : vector<1x1x1x14x12xf32> to vector<14x12xf32>
    %c28 = arith.constant 28 : index
    %c0_54 = arith.constant 0 : index
    %26 = vector.load %arg6[%c28, %c0_54] : memref<196x48xf32, #tpu.memory_space<vmem>>, vector<14x12xf32>
    tpu.vector_store %arg6[%c28, %c0_54], %25 {strides = array<i32>} : memref<196x48xf32, #tpu.memory_space<vmem>>, vector<14x12xf32>,
    %c0_55 = arith.constant 0 : index
    %c0_56 = arith.constant 0 : index
    %c2_57 = arith.constant 2 : index
    %c1_58 = arith.constant 1 : index
    %c0_59 = arith.constant 0 : index
    %27 = vector.load %arg2[%c0_55, %c0_56, %c2_57, %c1_58, %c0_59] : memref<1x1x15x15x12xf32, #tpu.memory_space<vmem>>, vector<1x1x1x14x12xf32>
    %28 = vector.shape_cast %27 : vector<1x1x1x14x12xf32> to vector<14x12xf32>
    %c28_60 = arith.constant 28 : index
    %c12_61 = arith.constant 12 : index
    %29 = vector.load %arg6[%c28_60, %c12_61] : memref<196x48xf32, #tpu.memory_space<vmem>>, vector<14x12xf32>
    tpu.vector_store %arg6[%c28_60, %c12_61], %28 {strides = array<i32>} : memref<196x48xf32, #tpu.memory_space<vmem>>, vector<14x12xf32>,
    %c0_62 = arith.constant 0 : index
    %c0_63 = arith.constant 0 : index
    %c3 = arith.constant 3 : index
    %c0_64 = arith.constant 0 : index
    %c0_65 = arith.constant 0 : index
    %30 = vector.load %arg2[%c0_62, %c0_63, %c3, %c0_64, %c0_65] : memref<1x1x15x15x12xf32, #tpu.memory_space<vmem>>, vector<1x1x1x14x12xf32>
    %31 = vector.shape_cast %30 : vector<1x1x1x14x12xf32> to vector<14x12xf32>
    %c28_66 = arith.constant 28 : index
    %c24_67 = arith.constant 24 : index
    %32 = vector.load %arg6[%c28_66, %c24_67] : memref<196x48xf32, #tpu.memory_space<vmem>>, vector<14x12xf32>
    tpu.vector_store %arg6[%c28_66, %c24_67], %31 {strides = array<i32>} : memref<196x48xf32, #tpu.memory_space<vmem>>, vector<14x12xf32>,
    %c0_68 = arith.constant 0 : index
    %c0_69 = arith.constant 0 : index
    %c3_70 = arith.constant 3 : index
    %c1_71 = arith.constant 1 : index
    %c0_72 = arith.constant 0 : index
    %33 = vector.load %arg2[%c0_68, %c0_69, %c3_70, %c1_71, %c0_72] : memref<1x1x15x15x12xf32, #tpu.memory_space<vmem>>, vector<1x1x1x14x12xf32>
    %34 = vector.shape_cast %33 : vector<1x1x1x14x12xf32> to vector<14x12xf32>
    %c28_73 = arith.constant 28 : index
    %c36_74 = arith.constant 36 : index
    %35 = vector.load %arg6[%c28_73, %c36_74] : memref<196x48xf32, #tpu.memory_space<vmem>>, vector<14x12xf32>
    tpu.vector_store %arg6[%c28_73, %c36_74], %34 {strides = array<i32>} : memref<196x48xf32, #tpu.memory_space<vmem>>, vector<14x12xf32>,
    %c0_75 = arith.constant 0 : index
    %c0_76 = arith.constant 0 : index
    %c3_77 = arith.constant 3 : index
    %c0_78 = arith.constant 0 : index
    %c0_79 = arith.constant 0 : index
    %36 = vector.load %arg2[%c0_75, %c0_76, %c3_77, %c0_78, %c0_79] : memref<1x1x15x15x12xf32, #tpu.memory_space<vmem>>, vector<1x1x1x14x12xf32>
    %37 = vector.shape_cast %36 : vector<1x1x1x14x12xf32> to vector<14x12xf32>
    %c42 = arith.constant 42 : index
    %c0_80 = arith.constant 0 : index
    %38 = vector.load %arg6[%c42, %c0_80] : memref<196x48xf32, #tpu.memory_space<vmem>>, vector<14x12xf32>
    tpu.vector_store %arg6[%c42, %c0_80], %37 {strides = array<i32>} : memref<196x48xf32, #tpu.memory_space<vmem>>, vector<14x12xf32>,
    %c0_81 = arith.constant 0 : index
    %c0_82 = arith.constant 0 : index
    %c3_83 = arith.constant 3 : index
    %c1_84 = arith.constant 1 : index
    %c0_85 = arith.constant 0 : index
    %39 = vector.load %arg2[%c0_81, %c0_82, %c3_83, %c1_84, %c0_85] : memref<1x1x15x15x12xf32, #tpu.memory_space<vmem>>, vector<1x1x1x14x12xf32>
    %40 = vector.shape_cast %39 : vector<1x1x1x14x12xf32> to vector<14x12xf32>
    %c42_86 = arith.constant 42 : index
    %c12_87 = arith.constant 12 : index
    %41 = vector.load %arg6[%c42_86, %c12_87] : memref<196x48xf32, #tpu.memory_space<vmem>>, vector<14x12xf32>
    tpu.vector_store %arg6[%c42_86, %c12_87], %40 {strides = array<i32>} : memref<196x48xf32, #tpu.memory_space<vmem>>, vector<14x12xf32>,
    %c0_88 = arith.constant 0 : index
    %c0_89 = arith.constant 0 : index
    %c4 = arith.constant 4 : index
    %c0_90 = arith.constant 0 : index
    %c0_91 = arith.constant 0 : index
    %42 = vector.load %arg2[%c0_88, %c0_89, %c4, %c0_90, %c0_91] : memref<1x1x15x15x12xf32, #tpu.memory_space<vmem>>, vector<1x1x1x14x12xf32>
    %43 = vector.shape_cast %42 : vector<1x1x1x14x12xf32> to vector<14x12xf32>
    %c42_92 = arith.constant 42 : index
    %c24_93 = arith.constant 24 : index
    %44 = vector.load %arg6[%c42_92, %c24_93] : memref<196x48xf32, #tpu.memory_space<vmem>>, vector<14x12xf32>
    tpu.vector_store %arg6[%c42_92, %c24_93], %43 {strides = array<i32>} : memref<196x48xf32, #tpu.memory_space<vmem>>, vector<14x12xf32>,
    %c0_94 = arith.constant 0 : index
    %c0_95 = arith.constant 0 : index
    %c4_96 = arith.constant 4 : index
    %c1_97 = arith.constant 1 : index
    %c0_98 = arith.constant 0 : index
    %45 = vector.load %arg2[%c0_94, %c0_95, %c4_96, %c1_97, %c0_98] : memref<1x1x15x15x12xf32, #tpu.memory_space<vmem>>, vector<1x1x1x14x12xf32>
    %46 = vector.shape_cast %45 : vector<1x1x1x14x12xf32> to vector<14x12xf32>
    %c42_99 = arith.constant 42 : index
    %c36_100 = arith.constant 36 : index
    %47 = vector.load %arg6[%c42_99, %c36_100] : memref<196x48xf32, #tpu.memory_space<vmem>>, vector<14x12xf32>
    tpu.vector_store %arg6[%c42_99, %c36_100], %46 {strides = array<i32>} : memref<196x48xf32, #tpu.memory_space<vmem>>, vector<14x12xf32>,
    %c0_101 = arith.constant 0 : index
    %c0_102 = arith.constant 0 : index
    %c4_103 = arith.constant 4 : index
    %c0_104 = arith.constant 0 : index
    %c0_105 = arith.constant 0 : index
    %48 = vector.load %arg2[%c0_101, %c0_102, %c4_103, %c0_104, %c0_105] : memref<1x1x15x15x12xf32, #tpu.memory_space<vmem>>, vector<1x1x1x14x12xf32>
    %49 = vector.shape_cast %48 : vector<1x1x1x14x12xf32> to vector<14x12xf32>
    %c56 = arith.constant 56 : index
    %c0_106 = arith.constant 0 : index
    %50 = vector.load %arg6[%c56, %c0_106] : memref<196x48xf32, #tpu.memory_space<vmem>>, vector<14x12xf32>
    tpu.vector_store %arg6[%c56, %c0_106], %49 {strides = array<i32>} : memref<196x48xf32, #tpu.memory_space<vmem>>, vector<14x12xf32>,
    %c0_107 = arith.constant 0 : index
    %c0_108 = arith.constant 0 : index
    %c4_109 = arith.constant 4 : index
    %c1_110 = arith.constant 1 : index
    %c0_111 = arith.constant 0 : index
    %51 = vector.load %arg2[%c0_107, %c0_108, %c4_109, %c1_110, %c0_111] : memref<1x1x15x15x12xf32, #tpu.memory_space<vmem>>, vector<1x1x1x14x12xf32>
    %52 = vector.shape_cast %51 : vector<1x1x1x14x12xf32> to vector<14x12xf32>
    %c56_112 = arith.constant 56 : index
    %c12_113 = arith.constant 12 : index
    %53 = vector.load %arg6[%c56_112, %c12_113] : memref<196x48xf32, #tpu.memory_space<vmem>>, vector<14x12xf32>
    tpu.vector_store %arg6[%c56_112, %c12_113], %52 {strides = array<i32>} : memref<196x48xf32, #tpu.memory_space<vmem>>, vector<14x12xf32>,
    %c0_114 = arith.constant 0 : index
    %c0_115 = arith.constant 0 : index
    %c5 = arith.constant 5 : index
    %c0_116 = arith.constant 0 : index
    %c0_117 = arith.constant 0 : index
    %54 = vector.load %arg2[%c0_114, %c0_115, %c5, %c0_116, %c0_117] : memref<1x1x15x15x12xf32, #tpu.memory_space<vmem>>, vector<1x1x1x14x12xf32>
    %55 = vector.shape_cast %54 : vector<1x1x1x14x12xf32> to vector<14x12xf32>
    %c56_118 = arith.constant 56 : index
    %c24_119 = arith.constant 24 : index
    %56 = vector.load %arg6[%c56_118, %c24_119] : memref<196x48xf32, #tpu.memory_space<vmem>>, vector<14x12xf32>
    tpu.vector_store %arg6[%c56_118, %c24_119], %55 {strides = array<i32>} : memref<196x48xf32, #tpu.memory_space<vmem>>, vector<14x12xf32>,
    %c0_120 = arith.constant 0 : index
    %c0_121 = arith.constant 0 : index
    %c5_122 = arith.constant 5 : index
    %c1_123 = arith.constant 1 : index
    %c0_124 = arith.constant 0 : index
    %57 = vector.load %arg2[%c0_120, %c0_121, %c5_122, %c1_123, %c0_124] : memref<1x1x15x15x12xf32, #tpu.memory_space<vmem>>, vector<1x1x1x14x12xf32>
    %58 = vector.shape_cast %57 : vector<1x1x1x14x12xf32> to vector<14x12xf32>
    %c56_125 = arith.constant 56 : index
    %c36_126 = arith.constant 36 : index
    %59 = vector.load %arg6[%c56_125, %c36_126] : memref<196x48xf32, #tpu.memory_space<vmem>>, vector<14x12xf32>
    tpu.vector_store %arg6[%c56_125, %c36_126], %58 {strides = array<i32>} : memref<196x48xf32, #tpu.memory_space<vmem>>, vector<14x12xf32>,
    %c0_127 = arith.constant 0 : index
    %c0_128 = arith.constant 0 : index
    %c5_129 = arith.constant 5 : index
    %c0_130 = arith.constant 0 : index
    %c0_131 = arith.constant 0 : index
    %60 = vector.load %arg2[%c0_127, %c0_128, %c5_129, %c0_130, %c0_131] : memref<1x1x15x15x12xf32, #tpu.memory_space<vmem>>, vector<1x1x1x14x12xf32>
    %61 = vector.shape_cast %60 : vector<1x1x1x14x12xf32> to vector<14x12xf32>
    %c70 = arith.constant 70 : index
    %c0_132 = arith.constant 0 : index
    %62 = vector.load %arg6[%c70, %c0_132] : memref<196x48xf32, #tpu.memory_space<vmem>>, vector<14x12xf32>
    tpu.vector_store %arg6[%c70, %c0_132], %61 {strides = array<i32>} : memref<196x48xf32, #tpu.memory_space<vmem>>, vector<14x12xf32>,
    %c0_133 = arith.constant 0 : index
    %c0_134 = arith.constant 0 : index
    %c5_135 = arith.constant 5 : index
    %c1_136 = arith.constant 1 : index
    %c0_137 = arith.constant 0 : index
    %63 = vector.load %arg2[%c0_133, %c0_134, %c5_135, %c1_136, %c0_137] : memref<1x1x15x15x12xf32, #tpu.memory_space<vmem>>, vector<1x1x1x14x12xf32>
    %64 = vector.shape_cast %63 : vector<1x1x1x14x12xf32> to vector<14x12xf32>
    %c70_138 = arith.constant 70 : index
    %c12_139 = arith.constant 12 : index
    %65 = vector.load %arg6[%c70_138, %c12_139] : memref<196x48xf32, #tpu.memory_space<vmem>>, vector<14x12xf32>
    tpu.vector_store %arg6[%c70_138, %c12_139], %64 {strides = array<i32>} : memref<196x48xf32, #tpu.memory_space<vmem>>, vector<14x12xf32>,
    %c0_140 = arith.constant 0 : index
    %c0_141 = arith.constant 0 : index
    %c6 = arith.constant 6 : index
    %c0_142 = arith.constant 0 : index
    %c0_143 = arith.constant 0 : index
    %66 = vector.load %arg2[%c0_140, %c0_141, %c6, %c0_142, %c0_143] : memref<1x1x15x15x12xf32, #tpu.memory_space<vmem>>, vector<1x1x1x14x12xf32>
    %67 = vector.shape_cast %66 : vector<1x1x1x14x12xf32> to vector<14x12xf32>
    %c70_144 = arith.constant 70 : index
    %c24_145 = arith.constant 24 : index
    %68 = vector.load %arg6[%c70_144, %c24_145] : memref<196x48xf32, #tpu.memory_space<vmem>>, vector<14x12xf32>
    tpu.vector_store %arg6[%c70_144, %c24_145], %67 {strides = array<i32>} : memref<196x48xf32, #tpu.memory_space<vmem>>, vector<14x12xf32>,
    %c0_146 = arith.constant 0 : index
    %c0_147 = arith.constant 0 : index
    %c6_148 = arith.constant 6 : index
    %c1_149 = arith.constant 1 : index
    %c0_150 = arith.constant 0 : index
    %69 = vector.load %arg2[%c0_146, %c0_147, %c6_148, %c1_149, %c0_150] : memref<1x1x15x15x12xf32, #tpu.memory_space<vmem>>, vector<1x1x1x14x12xf32>
    %70 = vector.shape_cast %69 : vector<1x1x1x14x12xf32> to vector<14x12xf32>
    %c70_151 = arith.constant 70 : index
    %c36_152 = arith.constant 36 : index
    %71 = vector.load %arg6[%c70_151, %c36_152] : memref<196x48xf32, #tpu.memory_space<vmem>>, vector<14x12xf32>
    tpu.vector_store %arg6[%c70_151, %c36_152], %70 {strides = array<i32>} : memref<196x48xf32, #tpu.memory_space<vmem>>, vector<14x12xf32>,
    %c0_153 = arith.constant 0 : index
    %c0_154 = arith.constant 0 : index
    %c6_155 = arith.constant 6 : index
    %c0_156 = arith.constant 0 : index
    %c0_157 = arith.constant 0 : index
    %72 = vector.load %arg2[%c0_153, %c0_154, %c6_155, %c0_156, %c0_157] : memref<1x1x15x15x12xf32, #tpu.memory_space<vmem>>, vector<1x1x1x14x12xf32>
    %73 = vector.shape_cast %72 : vector<1x1x1x14x12xf32> to vector<14x12xf32>
    %c84 = arith.constant 84 : index
    %c0_158 = arith.constant 0 : index
    %74 = vector.load %arg6[%c84, %c0_158] : memref<196x48xf32, #tpu.memory_space<vmem>>, vector<14x12xf32>
    tpu.vector_store %arg6[%c84, %c0_158], %73 {strides = array<i32>} : memref<196x48xf32, #tpu.memory_space<vmem>>, vector<14x12xf32>,
    %c0_159 = arith.constant 0 : index
    %c0_160 = arith.constant 0 : index
    %c6_161 = arith.constant 6 : index
    %c1_162 = arith.constant 1 : index
    %c0_163 = arith.constant 0 : index
    %75 = vector.load %arg2[%c0_159, %c0_160, %c6_161, %c1_162, %c0_163] : memref<1x1x15x15x12xf32, #tpu.memory_space<vmem>>, vector<1x1x1x14x12xf32>
    %76 = vector.shape_cast %75 : vector<1x1x1x14x12xf32> to vector<14x12xf32>
    %c84_164 = arith.constant 84 : index
    %c12_165 = arith.constant 12 : index
    %77 = vector.load %arg6[%c84_164, %c12_165] : memref<196x48xf32, #tpu.memory_space<vmem>>, vector<14x12xf32>
    tpu.vector_store %arg6[%c84_164, %c12_165], %76 {strides = array<i32>} : memref<196x48xf32, #tpu.memory_space<vmem>>, vector<14x12xf32>,
    %c0_166 = arith.constant 0 : index
    %c0_167 = arith.constant 0 : index
    %c7 = arith.constant 7 : index
    %c0_168 = arith.constant 0 : index
    %c0_169 = arith.constant 0 : index
    %78 = vector.load %arg2[%c0_166, %c0_167, %c7, %c0_168, %c0_169] : memref<1x1x15x15x12xf32, #tpu.memory_space<vmem>>, vector<1x1x1x14x12xf32>
    %79 = vector.shape_cast %78 : vector<1x1x1x14x12xf32> to vector<14x12xf32>
    %c84_170 = arith.constant 84 : index
    %c24_171 = arith.constant 24 : index
    %80 = vector.load %arg6[%c84_170, %c24_171] : memref<196x48xf32, #tpu.memory_space<vmem>>, vector<14x12xf32>
    tpu.vector_store %arg6[%c84_170, %c24_171], %79 {strides = array<i32>} : memref<196x48xf32, #tpu.memory_space<vmem>>, vector<14x12xf32>,
    %c0_172 = arith.constant 0 : index
    %c0_173 = arith.constant 0 : index
    %c7_174 = arith.constant 7 : index
    %c1_175 = arith.constant 1 : index
    %c0_176 = arith.constant 0 : index
    %81 = vector.load %arg2[%c0_172, %c0_173, %c7_174, %c1_175, %c0_176] : memref<1x1x15x15x12xf32, #tpu.memory_space<vmem>>, vector<1x1x1x14x12xf32>
    %82 = vector.shape_cast %81 : vector<1x1x1x14x12xf32> to vector<14x12xf32>
    %c84_177 = arith.constant 84 : index
    %c36_178 = arith.constant 36 : index
    %83 = vector.load %arg6[%c84_177, %c36_178] : memref<196x48xf32, #tpu.memory_space<vmem>>, vector<14x12xf32>
    tpu.vector_store %arg6[%c84_177, %c36_178], %82 {strides = array<i32>} : memref<196x48xf32, #tpu.memory_space<vmem>>, vector<14x12xf32>,
    %c0_179 = arith.constant 0 : index
    %c0_180 = arith.constant 0 : index
    %c7_181 = arith.constant 7 : index
    %c0_182 = arith.constant 0 : index
    %c0_183 = arith.constant 0 : index
    %84 = vector.load %arg2[%c0_179, %c0_180, %c7_181, %c0_182, %c0_183] : memref<1x1x15x15x12xf32, #tpu.memory_space<vmem>>, vector<1x1x1x14x12xf32>
    %85 = vector.shape_cast %84 : vector<1x1x1x14x12xf32> to vector<14x12xf32>
    %c98 = arith.constant 98 : index
    %c0_184 = arith.constant 0 : index
    %86 = vector.load %arg6[%c98, %c0_184] : memref<196x48xf32, #tpu.memory_space<vmem>>, vector<14x12xf32>
    tpu.vector_store %arg6[%c98, %c0_184], %85 {strides = array<i32>} : memref<196x48xf32, #tpu.memory_space<vmem>>, vector<14x12xf32>,
    %c0_185 = arith.constant 0 : index
    %c0_186 = arith.constant 0 : index
    %c7_187 = arith.constant 7 : index
    %c1_188 = arith.constant 1 : index
    %c0_189 = arith.constant 0 : index
    %87 = vector.load %arg2[%c0_185, %c0_186, %c7_187, %c1_188, %c0_189] : memref<1x1x15x15x12xf32, #tpu.memory_space<vmem>>, vector<1x1x1x14x12xf32>
    %88 = vector.shape_cast %87 : vector<1x1x1x14x12xf32> to vector<14x12xf32>
    %c98_190 = arith.constant 98 : index
    %c12_191 = arith.constant 12 : index
    %89 = vector.load %arg6[%c98_190, %c12_191] : memref<196x48xf32, #tpu.memory_space<vmem>>, vector<14x12xf32>
    tpu.vector_store %arg6[%c98_190, %c12_191], %88 {strides = array<i32>} : memref<196x48xf32, #tpu.memory_space<vmem>>, vector<14x12xf32>,
    %c0_192 = arith.constant 0 : index
    %c0_193 = arith.constant 0 : index
    %c8 = arith.constant 8 : index
    %c0_194 = arith.constant 0 : index
    %c0_195 = arith.constant 0 : index
    %90 = vector.load %arg2[%c0_192, %c0_193, %c8, %c0_194, %c0_195] : memref<1x1x15x15x12xf32, #tpu.memory_space<vmem>>, vector<1x1x1x14x12xf32>
    %91 = vector.shape_cast %90 : vector<1x1x1x14x12xf32> to vector<14x12xf32>
    %c98_196 = arith.constant 98 : index
    %c24_197 = arith.constant 24 : index
    %92 = vector.load %arg6[%c98_196, %c24_197] : memref<196x48xf32, #tpu.memory_space<vmem>>, vector<14x12xf32>
    tpu.vector_store %arg6[%c98_196, %c24_197], %91 {strides = array<i32>} : memref<196x48xf32, #tpu.memory_space<vmem>>, vector<14x12xf32>,
    %c0_198 = arith.constant 0 : index
    %c0_199 = arith.constant 0 : index
    %c8_200 = arith.constant 8 : index
    %c1_201 = arith.constant 1 : index
    %c0_202 = arith.constant 0 : index
    %93 = vector.load %arg2[%c0_198, %c0_199, %c8_200, %c1_201, %c0_202] : memref<1x1x15x15x12xf32, #tpu.memory_space<vmem>>, vector<1x1x1x14x12xf32>
    %94 = vector.shape_cast %93 : vector<1x1x1x14x12xf32> to vector<14x12xf32>
    %c98_203 = arith.constant 98 : index
    %c36_204 = arith.constant 36 : index
    %95 = vector.load %arg6[%c98_203, %c36_204] : memref<196x48xf32, #tpu.memory_space<vmem>>, vector<14x12xf32>
    tpu.vector_store %arg6[%c98_203, %c36_204], %94 {strides = array<i32>} : memref<196x48xf32, #tpu.memory_space<vmem>>, vector<14x12xf32>,
    %c0_205 = arith.constant 0 : index
    %c0_206 = arith.constant 0 : index
    %c8_207 = arith.constant 8 : index
    %c0_208 = arith.constant 0 : index
    %c0_209 = arith.constant 0 : index
    %96 = vector.load %arg2[%c0_205, %c0_206, %c8_207, %c0_208, %c0_209] : memref<1x1x15x15x12xf32, #tpu.memory_space<vmem>>, vector<1x1x1x14x12xf32>
    %97 = vector.shape_cast %96 : vector<1x1x1x14x12xf32> to vector<14x12xf32>
    %c112 = arith.constant 112 : index
    %c0_210 = arith.constant 0 : index
    %98 = vector.load %arg6[%c112, %c0_210] : memref<196x48xf32, #tpu.memory_space<vmem>>, vector<14x12xf32>
    tpu.vector_store %arg6[%c112, %c0_210], %97 {strides = array<i32>} : memref<196x48xf32, #tpu.memory_space<vmem>>, vector<14x12xf32>,
    %c0_211 = arith.constant 0 : index
    %c0_212 = arith.constant 0 : index
    %c8_213 = arith.constant 8 : index
    %c1_214 = arith.constant 1 : index
    %c0_215 = arith.constant 0 : index
    %99 = vector.load %arg2[%c0_211, %c0_212, %c8_213, %c1_214, %c0_215] : memref<1x1x15x15x12xf32, #tpu.memory_space<vmem>>, vector<1x1x1x14x12xf32>
    %100 = vector.shape_cast %99 : vector<1x1x1x14x12xf32> to vector<14x12xf32>
    %c112_216 = arith.constant 112 : index
    %c12_217 = arith.constant 12 : index
    %101 = vector.load %arg6[%c112_216, %c12_217] : memref<196x48xf32, #tpu.memory_space<vmem>>, vector<14x12xf32>
    tpu.vector_store %arg6[%c112_216, %c12_217], %100 {strides = array<i32>} : memref<196x48xf32, #tpu.memory_space<vmem>>, vector<14x12xf32>,
    %c0_218 = arith.constant 0 : index
    %c0_219 = arith.constant 0 : index
    %c9 = arith.constant 9 : index
    %c0_220 = arith.constant 0 : index
    %c0_221 = arith.constant 0 : index
    %102 = vector.load %arg2[%c0_218, %c0_219, %c9, %c0_220, %c0_221] : memref<1x1x15x15x12xf32, #tpu.memory_space<vmem>>, vector<1x1x1x14x12xf32>
    %103 = vector.shape_cast %102 : vector<1x1x1x14x12xf32> to vector<14x12xf32>
    %c112_222 = arith.constant 112 : index
    %c24_223 = arith.constant 24 : index
    %104 = vector.load %arg6[%c112_222, %c24_223] : memref<196x48xf32, #tpu.memory_space<vmem>>, vector<14x12xf32>
    tpu.vector_store %arg6[%c112_222, %c24_223], %103 {strides = array<i32>} : memref<196x48xf32, #tpu.memory_space<vmem>>, vector<14x12xf32>,
    %c0_224 = arith.constant 0 : index
    %c0_225 = arith.constant 0 : index
    %c9_226 = arith.constant 9 : index
    %c1_227 = arith.constant 1 : index
    %c0_228 = arith.constant 0 : index
    %105 = vector.load %arg2[%c0_224, %c0_225, %c9_226, %c1_227, %c0_228] : memref<1x1x15x15x12xf32, #tpu.memory_space<vmem>>, vector<1x1x1x14x12xf32>
    %106 = vector.shape_cast %105 : vector<1x1x1x14x12xf32> to vector<14x12xf32>
    %c112_229 = arith.constant 112 : index
    %c36_230 = arith.constant 36 : index
    %107 = vector.load %arg6[%c112_229, %c36_230] : memref<196x48xf32, #tpu.memory_space<vmem>>, vector<14x12xf32>
    tpu.vector_store %arg6[%c112_229, %c36_230], %106 {strides = array<i32>} : memref<196x48xf32, #tpu.memory_space<vmem>>, vector<14x12xf32>,
    %c0_231 = arith.constant 0 : index
    %c0_232 = arith.constant 0 : index
    %c9_233 = arith.constant 9 : index
    %c0_234 = arith.constant 0 : index
    %c0_235 = arith.constant 0 : index
    %108 = vector.load %arg2[%c0_231, %c0_232, %c9_233, %c0_234, %c0_235] : memref<1x1x15x15x12xf32, #tpu.memory_space<vmem>>, vector<1x1x1x14x12xf32>
    %109 = vector.shape_cast %108 : vector<1x1x1x14x12xf32> to vector<14x12xf32>
    %c126 = arith.constant 126 : index
    %c0_236 = arith.constant 0 : index
    %110 = vector.load %arg6[%c126, %c0_236] : memref<196x48xf32, #tpu.memory_space<vmem>>, vector<14x12xf32>
    tpu.vector_store %arg6[%c126, %c0_236], %109 {strides = array<i32>} : memref<196x48xf32, #tpu.memory_space<vmem>>, vector<14x12xf32>,
    %c0_237 = arith.constant 0 : index
    %c0_238 = arith.constant 0 : index
    %c9_239 = arith.constant 9 : index
    %c1_240 = arith.constant 1 : index
    %c0_241 = arith.constant 0 : index
    %111 = vector.load %arg2[%c0_237, %c0_238, %c9_239, %c1_240, %c0_241] : memref<1x1x15x15x12xf32, #tpu.memory_space<vmem>>, vector<1x1x1x14x12xf32>
    %112 = vector.shape_cast %111 : vector<1x1x1x14x12xf32> to vector<14x12xf32>
    %c126_242 = arith.constant 126 : index
    %c12_243 = arith.constant 12 : index
    %113 = vector.load %arg6[%c126_242, %c12_243] : memref<196x48xf32, #tpu.memory_space<vmem>>, vector<14x12xf32>
    tpu.vector_store %arg6[%c126_242, %c12_243], %112 {strides = array<i32>} : memref<196x48xf32, #tpu.memory_space<vmem>>, vector<14x12xf32>,
    %c0_244 = arith.constant 0 : index
    %c0_245 = arith.constant 0 : index
    %c10 = arith.constant 10 : index
    %c0_246 = arith.constant 0 : index
    %c0_247 = arith.constant 0 : index
    %114 = vector.load %arg2[%c0_244, %c0_245, %c10, %c0_246, %c0_247] : memref<1x1x15x15x12xf32, #tpu.memory_space<vmem>>, vector<1x1x1x14x12xf32>
    %115 = vector.shape_cast %114 : vector<1x1x1x14x12xf32> to vector<14x12xf32>
    %c126_248 = arith.constant 126 : index
    %c24_249 = arith.constant 24 : index
    %116 = vector.load %arg6[%c126_248, %c24_249] : memref<196x48xf32, #tpu.memory_space<vmem>>, vector<14x12xf32>
    tpu.vector_store %arg6[%c126_248, %c24_249], %115 {strides = array<i32>} : memref<196x48xf32, #tpu.memory_space<vmem>>, vector<14x12xf32>,
    %c0_250 = arith.constant 0 : index
    %c0_251 = arith.constant 0 : index
    %c10_252 = arith.constant 10 : index
    %c1_253 = arith.constant 1 : index
    %c0_254 = arith.constant 0 : index
    %117 = vector.load %arg2[%c0_250, %c0_251, %c10_252, %c1_253, %c0_254] : memref<1x1x15x15x12xf32, #tpu.memory_space<vmem>>, vector<1x1x1x14x12xf32>
    %118 = vector.shape_cast %117 : vector<1x1x1x14x12xf32> to vector<14x12xf32>
    %c126_255 = arith.constant 126 : index
    %c36_256 = arith.constant 36 : index
    %119 = vector.load %arg6[%c126_255, %c36_256] : memref<196x48xf32, #tpu.memory_space<vmem>>, vector<14x12xf32>
    tpu.vector_store %arg6[%c126_255, %c36_256], %118 {strides = array<i32>} : memref<196x48xf32, #tpu.memory_space<vmem>>, vector<14x12xf32>,
    %c0_257 = arith.constant 0 : index
    %c0_258 = arith.constant 0 : index
    %c10_259 = arith.constant 10 : index
    %c0_260 = arith.constant 0 : index
    %c0_261 = arith.constant 0 : index
    %120 = vector.load %arg2[%c0_257, %c0_258, %c10_259, %c0_260, %c0_261] : memref<1x1x15x15x12xf32, #tpu.memory_space<vmem>>, vector<1x1x1x14x12xf32>
    %121 = vector.shape_cast %120 : vector<1x1x1x14x12xf32> to vector<14x12xf32>
    %c140 = arith.constant 140 : index
    %c0_262 = arith.constant 0 : index
    %122 = vector.load %arg6[%c140, %c0_262] : memref<196x48xf32, #tpu.memory_space<vmem>>, vector<14x12xf32>
    tpu.vector_store %arg6[%c140, %c0_262], %121 {strides = array<i32>} : memref<196x48xf32, #tpu.memory_space<vmem>>, vector<14x12xf32>,
    %c0_263 = arith.constant 0 : index
    %c0_264 = arith.constant 0 : index
    %c10_265 = arith.constant 10 : index
    %c1_266 = arith.constant 1 : index
    %c0_267 = arith.constant 0 : index
    %123 = vector.load %arg2[%c0_263, %c0_264, %c10_265, %c1_266, %c0_267] : memref<1x1x15x15x12xf32, #tpu.memory_space<vmem>>, vector<1x1x1x14x12xf32>
    %124 = vector.shape_cast %123 : vector<1x1x1x14x12xf32> to vector<14x12xf32>
    %c140_268 = arith.constant 140 : index
    %c12_269 = arith.constant 12 : index
    %125 = vector.load %arg6[%c140_268, %c12_269] : memref<196x48xf32, #tpu.memory_space<vmem>>, vector<14x12xf32>
    tpu.vector_store %arg6[%c140_268, %c12_269], %124 {strides = array<i32>} : memref<196x48xf32, #tpu.memory_space<vmem>>, vector<14x12xf32>,
    %c0_270 = arith.constant 0 : index
    %c0_271 = arith.constant 0 : index
    %c11 = arith.constant 11 : index
    %c0_272 = arith.constant 0 : index
    %c0_273 = arith.constant 0 : index
    %126 = vector.load %arg2[%c0_270, %c0_271, %c11, %c0_272, %c0_273] : memref<1x1x15x15x12xf32, #tpu.memory_space<vmem>>, vector<1x1x1x14x12xf32>
    %127 = vector.shape_cast %126 : vector<1x1x1x14x12xf32> to vector<14x12xf32>
    %c140_274 = arith.constant 140 : index
    %c24_275 = arith.constant 24 : index
    %128 = vector.load %arg6[%c140_274, %c24_275] : memref<196x48xf32, #tpu.memory_space<vmem>>, vector<14x12xf32>
    tpu.vector_store %arg6[%c140_274, %c24_275], %127 {strides = array<i32>} : memref<196x48xf32, #tpu.memory_space<vmem>>, vector<14x12xf32>,
    %c0_276 = arith.constant 0 : index
    %c0_277 = arith.constant 0 : index
    %c11_278 = arith.constant 11 : index
    %c1_279 = arith.constant 1 : index
    %c0_280 = arith.constant 0 : index
    %129 = vector.load %arg2[%c0_276, %c0_277, %c11_278, %c1_279, %c0_280] : memref<1x1x15x15x12xf32, #tpu.memory_space<vmem>>, vector<1x1x1x14x12xf32>
    %130 = vector.shape_cast %129 : vector<1x1x1x14x12xf32> to vector<14x12xf32>
    %c140_281 = arith.constant 140 : index
    %c36_282 = arith.constant 36 : index
    %131 = vector.load %arg6[%c140_281, %c36_282] : memref<196x48xf32, #tpu.memory_space<vmem>>, vector<14x12xf32>
    tpu.vector_store %arg6[%c140_281, %c36_282], %130 {strides = array<i32>} : memref<196x48xf32, #tpu.memory_space<vmem>>, vector<14x12xf32>,
    %c0_283 = arith.constant 0 : index
    %c0_284 = arith.constant 0 : index
    %c11_285 = arith.constant 11 : index
    %c0_286 = arith.constant 0 : index
    %c0_287 = arith.constant 0 : index
    %132 = vector.load %arg2[%c0_283, %c0_284, %c11_285, %c0_286, %c0_287] : memref<1x1x15x15x12xf32, #tpu.memory_space<vmem>>, vector<1x1x1x14x12xf32>
    %133 = vector.shape_cast %132 : vector<1x1x1x14x12xf32> to vector<14x12xf32>
    %c154 = arith.constant 154 : index
    %c0_288 = arith.constant 0 : index
    %134 = vector.load %arg6[%c154, %c0_288] : memref<196x48xf32, #tpu.memory_space<vmem>>, vector<14x12xf32>
    tpu.vector_store %arg6[%c154, %c0_288], %133 {strides = array<i32>} : memref<196x48xf32, #tpu.memory_space<vmem>>, vector<14x12xf32>,
    %c0_289 = arith.constant 0 : index
    %c0_290 = arith.constant 0 : index
    %c11_291 = arith.constant 11 : index
    %c1_292 = arith.constant 1 : index
    %c0_293 = arith.constant 0 : index
    %135 = vector.load %arg2[%c0_289, %c0_290, %c11_291, %c1_292, %c0_293] : memref<1x1x15x15x12xf32, #tpu.memory_space<vmem>>, vector<1x1x1x14x12xf32>
    %136 = vector.shape_cast %135 : vector<1x1x1x14x12xf32> to vector<14x12xf32>
    %c154_294 = arith.constant 154 : index
    %c12_295 = arith.constant 12 : index
    %137 = vector.load %arg6[%c154_294, %c12_295] : memref<196x48xf32, #tpu.memory_space<vmem>>, vector<14x12xf32>
    tpu.vector_store %arg6[%c154_294, %c12_295], %136 {strides = array<i32>} : memref<196x48xf32, #tpu.memory_space<vmem>>, vector<14x12xf32>,
    %c0_296 = arith.constant 0 : index
    %c0_297 = arith.constant 0 : index
    %c12_298 = arith.constant 12 : index
    %c0_299 = arith.constant 0 : index
    %c0_300 = arith.constant 0 : index
    %138 = vector.load %arg2[%c0_296, %c0_297, %c12_298, %c0_299, %c0_300] : memref<1x1x15x15x12xf32, #tpu.memory_space<vmem>>, vector<1x1x1x14x12xf32>
    %139 = vector.shape_cast %138 : vector<1x1x1x14x12xf32> to vector<14x12xf32>
    %c154_301 = arith.constant 154 : index
    %c24_302 = arith.constant 24 : index
    %140 = vector.load %arg6[%c154_301, %c24_302] : memref<196x48xf32, #tpu.memory_space<vmem>>, vector<14x12xf32>
    tpu.vector_store %arg6[%c154_301, %c24_302], %139 {strides = array<i32>} : memref<196x48xf32, #tpu.memory_space<vmem>>, vector<14x12xf32>,
    %c0_303 = arith.constant 0 : index
    %c0_304 = arith.constant 0 : index
    %c12_305 = arith.constant 12 : index
    %c1_306 = arith.constant 1 : index
    %c0_307 = arith.constant 0 : index
    %141 = vector.load %arg2[%c0_303, %c0_304, %c12_305, %c1_306, %c0_307] : memref<1x1x15x15x12xf32, #tpu.memory_space<vmem>>, vector<1x1x1x14x12xf32>
    %142 = vector.shape_cast %141 : vector<1x1x1x14x12xf32> to vector<14x12xf32>
    %c154_308 = arith.constant 154 : index
    %c36_309 = arith.constant 36 : index
    %143 = vector.load %arg6[%c154_308, %c36_309] : memref<196x48xf32, #tpu.memory_space<vmem>>, vector<14x12xf32>
    tpu.vector_store %arg6[%c154_308, %c36_309], %142 {strides = array<i32>} : memref<196x48xf32, #tpu.memory_space<vmem>>, vector<14x12xf32>,
    %c0_310 = arith.constant 0 : index
    %c0_311 = arith.constant 0 : index
    %c12_312 = arith.constant 12 : index
    %c0_313 = arith.constant 0 : index
    %c0_314 = arith.constant 0 : index
    %144 = vector.load %arg2[%c0_310, %c0_311, %c12_312, %c0_313, %c0_314] : memref<1x1x15x15x12xf32, #tpu.memory_space<vmem>>, vector<1x1x1x14x12xf32>
    %145 = vector.shape_cast %144 : vector<1x1x1x14x12xf32> to vector<14x12xf32>
    %c168 = arith.constant 168 : index
    %c0_315 = arith.constant 0 : index
    %146 = vector.load %arg6[%c168, %c0_315] : memref<196x48xf32, #tpu.memory_space<vmem>>, vector<14x12xf32>
    tpu.vector_store %arg6[%c168, %c0_315], %145 {strides = array<i32>} : memref<196x48xf32, #tpu.memory_space<vmem>>, vector<14x12xf32>,
    %c0_316 = arith.constant 0 : index
    %c0_317 = arith.constant 0 : index
    %c12_318 = arith.constant 12 : index
    %c1_319 = arith.constant 1 : index
    %c0_320 = arith.constant 0 : index
    %147 = vector.load %arg2[%c0_316, %c0_317, %c12_318, %c1_319, %c0_320] : memref<1x1x15x15x12xf32, #tpu.memory_space<vmem>>, vector<1x1x1x14x12xf32>
    %148 = vector.shape_cast %147 : vector<1x1x1x14x12xf32> to vector<14x12xf32>
    %c168_321 = arith.constant 168 : index
    %c12_322 = arith.constant 12 : index
    %149 = vector.load %arg6[%c168_321, %c12_322] : memref<196x48xf32, #tpu.memory_space<vmem>>, vector<14x12xf32>
    tpu.vector_store %arg6[%c168_321, %c12_322], %148 {strides = array<i32>} : memref<196x48xf32, #tpu.memory_space<vmem>>, vector<14x12xf32>,
    %c0_323 = arith.constant 0 : index
    %c0_324 = arith.constant 0 : index
    %c13 = arith.constant 13 : index
    %c0_325 = arith.constant 0 : index
    %c0_326 = arith.constant 0 : index
    %150 = vector.load %arg2[%c0_323, %c0_324, %c13, %c0_325, %c0_326] : memref<1x1x15x15x12xf32, #tpu.memory_space<vmem>>, vector<1x1x1x14x12xf32>
    %151 = vector.shape_cast %150 : vector<1x1x1x14x12xf32> to vector<14x12xf32>
    %c168_327 = arith.constant 168 : index
    %c24_328 = arith.constant 24 : index
    %152 = vector.load %arg6[%c168_327, %c24_328] : memref<196x48xf32, #tpu.memory_space<vmem>>, vector<14x12xf32>
    tpu.vector_store %arg6[%c168_327, %c24_328], %151 {strides = array<i32>} : memref<196x48xf32, #tpu.memory_space<vmem>>, vector<14x12xf32>,
    %c0_329 = arith.constant 0 : index
    %c0_330 = arith.constant 0 : index
    %c13_331 = arith.constant 13 : index
    %c1_332 = arith.constant 1 : index
    %c0_333 = arith.constant 0 : index
    %153 = vector.load %arg2[%c0_329, %c0_330, %c13_331, %c1_332, %c0_333] : memref<1x1x15x15x12xf32, #tpu.memory_space<vmem>>, vector<1x1x1x14x12xf32>
    %154 = vector.shape_cast %153 : vector<1x1x1x14x12xf32> to vector<14x12xf32>
    %c168_334 = arith.constant 168 : index
    %c36_335 = arith.constant 36 : index
    %155 = vector.load %arg6[%c168_334, %c36_335] : memref<196x48xf32, #tpu.memory_space<vmem>>, vector<14x12xf32>
    tpu.vector_store %arg6[%c168_334, %c36_335], %154 {strides = array<i32>} : memref<196x48xf32, #tpu.memory_space<vmem>>, vector<14x12xf32>,
    %c0_336 = arith.constant 0 : index
    %c0_337 = arith.constant 0 : index
    %c13_338 = arith.constant 13 : index
    %c0_339 = arith.constant 0 : index
    %c0_340 = arith.constant 0 : index
    %156 = vector.load %arg2[%c0_336, %c0_337, %c13_338, %c0_339, %c0_340] : memref<1x1x15x15x12xf32, #tpu.memory_space<vmem>>, vector<1x1x1x14x12xf32>
    %157 = vector.shape_cast %156 : vector<1x1x1x14x12xf32> to vector<14x12xf32>
    %c182 = arith.constant 182 : index
    %c0_341 = arith.constant 0 : index
    %158 = vector.load %arg6[%c182, %c0_341] : memref<196x48xf32, #tpu.memory_space<vmem>>, vector<14x12xf32>
    tpu.vector_store %arg6[%c182, %c0_341], %157 {strides = array<i32>} : memref<196x48xf32, #tpu.memory_space<vmem>>, vector<14x12xf32>,
    %c0_342 = arith.constant 0 : index
    %c0_343 = arith.constant 0 : index
    %c13_344 = arith.constant 13 : index
    %c1_345 = arith.constant 1 : index
    %c0_346 = arith.constant 0 : index
    %159 = vector.load %arg2[%c0_342, %c0_343, %c13_344, %c1_345, %c0_346] : memref<1x1x15x15x12xf32, #tpu.memory_space<vmem>>, vector<1x1x1x14x12xf32>
    %160 = vector.shape_cast %159 : vector<1x1x1x14x12xf32> to vector<14x12xf32>
    %c182_347 = arith.constant 182 : index
    %c12_348 = arith.constant 12 : index
    %161 = vector.load %arg6[%c182_347, %c12_348] : memref<196x48xf32, #tpu.memory_space<vmem>>, vector<14x12xf32>
    tpu.vector_store %arg6[%c182_347, %c12_348], %160 {strides = array<i32>} : memref<196x48xf32, #tpu.memory_space<vmem>>, vector<14x12xf32>,
    %c0_349 = arith.constant 0 : index
    %c0_350 = arith.constant 0 : index
    %c14_351 = arith.constant 14 : index
    %c0_352 = arith.constant 0 : index
    %c0_353 = arith.constant 0 : index
    %162 = vector.load %arg2[%c0_349, %c0_350, %c14_351, %c0_352, %c0_353] : memref<1x1x15x15x12xf32, #tpu.memory_space<vmem>>, vector<1x1x1x14x12xf32>
    %163 = vector.shape_cast %162 : vector<1x1x1x14x12xf32> to vector<14x12xf32>
    %c182_354 = arith.constant 182 : index
    %c24_355 = arith.constant 24 : index
    %164 = vector.load %arg6[%c182_354, %c24_355] : memref<196x48xf32, #tpu.memory_space<vmem>>, vector<14x12xf32>
    tpu.vector_store %arg6[%c182_354, %c24_355], %163 {strides = array<i32>} : memref<196x48xf32, #tpu.memory_space<vmem>>, vector<14x12xf32>,
    %c0_356 = arith.constant 0 : index
    %c0_357 = arith.constant 0 : index
    %c14_358 = arith.constant 14 : index
    %c1_359 = arith.constant 1 : index
    %c0_360 = arith.constant 0 : index
    %165 = vector.load %arg2[%c0_356, %c0_357, %c14_358, %c1_359, %c0_360] : memref<1x1x15x15x12xf32, #tpu.memory_space<vmem>>, vector<1x1x1x14x12xf32>
    %166 = vector.shape_cast %165 : vector<1x1x1x14x12xf32> to vector<14x12xf32>
    %c182_361 = arith.constant 182 : index
    %c36_362 = arith.constant 36 : index
    %167 = vector.load %arg6[%c182_361, %c36_362] : memref<196x48xf32, #tpu.memory_space<vmem>>, vector<14x12xf32>
    tpu.vector_store %arg6[%c182_361, %c36_362], %166 {strides = array<i32>} : memref<196x48xf32, #tpu.memory_space<vmem>>, vector<14x12xf32>,
    %c0_363 = arith.constant 0 : index
    %c0_364 = arith.constant 0 : index
    %168 = vector.load %arg6[%c0_363, %c0_364] : memref<196x48xf32, #tpu.memory_space<vmem>>, vector<196x48xf32>
    %c0_365 = arith.constant 0 : index
    %c0_366 = arith.constant 0 : index
    %c0_367 = arith.constant 0 : index
    %169 = vector.load %arg3[%c0_365, %c0_366, %c0_367] : memref<1x48x8xf32, #tpu.memory_space<vmem>>, vector<1x48x8xf32>
    %170 = vector.shape_cast %169 : vector<1x48x8xf32> to vector<48x8xf32>
    %cst = arith.constant dense<0.000000e+00> : vector<196x8xf32>
    %171 = tpu.matmul %168, %170, %cst {dimension_numbers = #tpu.dot_dimension_numbers<[1], [0], [0], [1], [0, 0, 1, 1], [], []>} : vector<196x48xf32>, vector<48x8xf32>, vector<196x8xf32> -> vector<196x8xf32>
    %c0_368 = arith.constant 0 : index
    %c0_369 = arith.constant 0 : index
    %c0_370 = arith.constant 0 : index
    %172 = vector.load %arg4[%c0_368, %c0_369, %c0_370] : memref<1x1x8xf32, #tpu.memory_space<vmem>>, vector<1x1x8xf32>
    %173 = vector.shape_cast %172 : vector<1x1x8xf32> to vector<1x8xf32>
    %174 = vector.broadcast %173 : vector<1x8xf32> to vector<196x8xf32>
    %175 = arith.addf %171, %174 : vector<196x8xf32>
    %cst_371 = arith.constant 0.000000e+00 : f32
    %176 = vector.broadcast %cst_371 : f32 to vector<196x8xf32>
    %177 = arith.maximumf %175, %176 : vector<196x8xf32>
    %c0_372 = arith.constant 0 : index
    %c0_373 = arith.constant 0 : index
    %c0_374 = arith.constant 0 : index
    %c0_375 = arith.constant 0 : index
    %178 = vector.load %arg5[%c0_372, %c0_373, %c0_374, %c0_375] : memref<1x1x196x8xf32, #tpu.memory_space<vmem>>, vector<1x1x196x8xf32>
    %179 = vector.shape_cast %178 : vector<1x1x196x8xf32> to vector<196x8xf32>
    %180 = vector.shape_cast %177 : vector<196x8xf32> to vector<1x1x196x8xf32>
    tpu.vector_store %arg5[%c0_372, %c0_373, %c0_374, %c0_375], %180 {strides = array<i32>} : memref<1x1x196x8xf32, #tpu.memory_space<vmem>>, vector<1x1x196x8xf32>,
    return
  }
  func.func @transform_0(%arg0: i32, %arg1: i32) -> (i32, i32, i32, i32, i32) {
    %c0_i32 = arith.constant 0 : i32
    %c0_i32_0 = arith.constant 0 : i32
    %c0_i32_1 = arith.constant 0 : i32
    %c0_i32_2 = arith.constant 0 : i32
    return %arg0, %arg1, %c0_i32, %c0_i32_0, %c0_i32_1 : i32, i32, i32, i32, i32
  }
  func.func @transform_1(%arg0: i32, %arg1: i32) -> (i32, i32, i32) {
    %c0_i32 = arith.constant 0 : i32
    %c0_i32_0 = arith.constant 0 : i32
    %c0_i32_1 = arith.constant 0 : i32
    return %arg0, %c0_i32, %c0_i32_0 : i32, i32, i32
  }
  func.func @transform_2(%arg0: i32, %arg1: i32) -> (i32, i32, i32) {
    %c0_i32 = arith.constant 0 : i32
    %c0_i32_0 = arith.constant 0 : i32
    %c0_i32_1 = arith.constant 0 : i32
    return %arg0, %c0_i32, %c0_i32_0 : i32, i32, i32
  }
  func.func @transform_3(%arg0: i32, %arg1: i32) -> (i32, i32, i32, i32) {
    %c0_i32 = arith.constant 0 : i32
    %c0_i32_0 = arith.constant 0 : i32
    %c0_i32_1 = arith.constant 0 : i32
    return %arg0, %arg1, %c0_i32, %c0_i32_0 : i32, i32, i32, i32
  }
}

module attributes {stable_mosaic.version = 11 : i64} {
  func.func @_conv_s1_kernel(%arg0: i32, %arg1: i32, %arg2: memref<1x1x8x8x32xf32, #tpu.memory_space<vmem>>, %arg3: memref<1x128x16xf32, #tpu.memory_space<vmem>>, %arg4: memref<1x1x16xf32, #tpu.memory_space<vmem>>, %arg5: memref<1x1x49x16xf32, #tpu.memory_space<vmem>>, %arg6: memref<49x128xf32, #tpu.memory_space<vmem>>) attributes {dimension_semantics = [#tpu.dimension_semantics<parallel>, #tpu.dimension_semantics<parallel>], iteration_bounds = array<i64: 1, 2>, scalar_prefetch = 0 : i64, scratch_operands = 1 : i64, tpu.core_type = #tpu.core_type<tc>, window_params = [{transform_indices = @transform_0, window_bounds = array<i64: 1, 1, 8, 8, 32>}, {transform_indices = @transform_1, window_bounds = array<i64: 1, 128, 16>}, {transform_indices = @transform_2, window_bounds = array<i64: 1, 1, 16>}, {transform_indices = @transform_3, window_bounds = array<i64: 1, 1, 49, 16>}]} {
    %c0 = arith.constant 0 : index
    %c0_0 = arith.constant 0 : index
    %c0_1 = arith.constant 0 : index
    %c0_2 = arith.constant 0 : index
    %c0_3 = arith.constant 0 : index
    %0 = vector.load %arg2[%c0, %c0_0, %c0_1, %c0_2, %c0_3] : memref<1x1x8x8x32xf32, #tpu.memory_space<vmem>>, vector<1x1x1x7x32xf32>
    %1 = vector.shape_cast %0 : vector<1x1x1x7x32xf32> to vector<7x32xf32>
    %c0_4 = arith.constant 0 : index
    %c0_5 = arith.constant 0 : index
    %2 = vector.load %arg6[%c0_4, %c0_5] : memref<49x128xf32, #tpu.memory_space<vmem>>, vector<7x32xf32>
    tpu.vector_store %arg6[%c0_4, %c0_5], %1 {strides = array<i32>} : memref<49x128xf32, #tpu.memory_space<vmem>>, vector<7x32xf32>,
    %c0_6 = arith.constant 0 : index
    %c0_7 = arith.constant 0 : index
    %c0_8 = arith.constant 0 : index
    %c1 = arith.constant 1 : index
    %c0_9 = arith.constant 0 : index
    %3 = vector.load %arg2[%c0_6, %c0_7, %c0_8, %c1, %c0_9] : memref<1x1x8x8x32xf32, #tpu.memory_space<vmem>>, vector<1x1x1x7x32xf32>
    %4 = vector.shape_cast %3 : vector<1x1x1x7x32xf32> to vector<7x32xf32>
    %c0_10 = arith.constant 0 : index
    %c32 = arith.constant 32 : index
    %5 = vector.load %arg6[%c0_10, %c32] : memref<49x128xf32, #tpu.memory_space<vmem>>, vector<7x32xf32>
    tpu.vector_store %arg6[%c0_10, %c32], %4 {strides = array<i32>} : memref<49x128xf32, #tpu.memory_space<vmem>>, vector<7x32xf32>,
    %c0_11 = arith.constant 0 : index
    %c0_12 = arith.constant 0 : index
    %c1_13 = arith.constant 1 : index
    %c0_14 = arith.constant 0 : index
    %c0_15 = arith.constant 0 : index
    %6 = vector.load %arg2[%c0_11, %c0_12, %c1_13, %c0_14, %c0_15] : memref<1x1x8x8x32xf32, #tpu.memory_space<vmem>>, vector<1x1x1x7x32xf32>
    %7 = vector.shape_cast %6 : vector<1x1x1x7x32xf32> to vector<7x32xf32>
    %c0_16 = arith.constant 0 : index
    %c64 = arith.constant 64 : index
    %8 = vector.load %arg6[%c0_16, %c64] : memref<49x128xf32, #tpu.memory_space<vmem>>, vector<7x32xf32>
    tpu.vector_store %arg6[%c0_16, %c64], %7 {strides = array<i32>} : memref<49x128xf32, #tpu.memory_space<vmem>>, vector<7x32xf32>,
    %c0_17 = arith.constant 0 : index
    %c0_18 = arith.constant 0 : index
    %c1_19 = arith.constant 1 : index
    %c1_20 = arith.constant 1 : index
    %c0_21 = arith.constant 0 : index
    %9 = vector.load %arg2[%c0_17, %c0_18, %c1_19, %c1_20, %c0_21] : memref<1x1x8x8x32xf32, #tpu.memory_space<vmem>>, vector<1x1x1x7x32xf32>
    %10 = vector.shape_cast %9 : vector<1x1x1x7x32xf32> to vector<7x32xf32>
    %c0_22 = arith.constant 0 : index
    %c96 = arith.constant 96 : index
    %11 = vector.load %arg6[%c0_22, %c96] : memref<49x128xf32, #tpu.memory_space<vmem>>, vector<7x32xf32>
    tpu.vector_store %arg6[%c0_22, %c96], %10 {strides = array<i32>} : memref<49x128xf32, #tpu.memory_space<vmem>>, vector<7x32xf32>,
    %c0_23 = arith.constant 0 : index
    %c0_24 = arith.constant 0 : index
    %c1_25 = arith.constant 1 : index
    %c0_26 = arith.constant 0 : index
    %c0_27 = arith.constant 0 : index
    %12 = vector.load %arg2[%c0_23, %c0_24, %c1_25, %c0_26, %c0_27] : memref<1x1x8x8x32xf32, #tpu.memory_space<vmem>>, vector<1x1x1x7x32xf32>
    %13 = vector.shape_cast %12 : vector<1x1x1x7x32xf32> to vector<7x32xf32>
    %c7 = arith.constant 7 : index
    %c0_28 = arith.constant 0 : index
    %14 = vector.load %arg6[%c7, %c0_28] : memref<49x128xf32, #tpu.memory_space<vmem>>, vector<7x32xf32>
    tpu.vector_store %arg6[%c7, %c0_28], %13 {strides = array<i32>} : memref<49x128xf32, #tpu.memory_space<vmem>>, vector<7x32xf32>,
    %c0_29 = arith.constant 0 : index
    %c0_30 = arith.constant 0 : index
    %c1_31 = arith.constant 1 : index
    %c1_32 = arith.constant 1 : index
    %c0_33 = arith.constant 0 : index
    %15 = vector.load %arg2[%c0_29, %c0_30, %c1_31, %c1_32, %c0_33] : memref<1x1x8x8x32xf32, #tpu.memory_space<vmem>>, vector<1x1x1x7x32xf32>
    %16 = vector.shape_cast %15 : vector<1x1x1x7x32xf32> to vector<7x32xf32>
    %c7_34 = arith.constant 7 : index
    %c32_35 = arith.constant 32 : index
    %17 = vector.load %arg6[%c7_34, %c32_35] : memref<49x128xf32, #tpu.memory_space<vmem>>, vector<7x32xf32>
    tpu.vector_store %arg6[%c7_34, %c32_35], %16 {strides = array<i32>} : memref<49x128xf32, #tpu.memory_space<vmem>>, vector<7x32xf32>,
    %c0_36 = arith.constant 0 : index
    %c0_37 = arith.constant 0 : index
    %c2 = arith.constant 2 : index
    %c0_38 = arith.constant 0 : index
    %c0_39 = arith.constant 0 : index
    %18 = vector.load %arg2[%c0_36, %c0_37, %c2, %c0_38, %c0_39] : memref<1x1x8x8x32xf32, #tpu.memory_space<vmem>>, vector<1x1x1x7x32xf32>
    %19 = vector.shape_cast %18 : vector<1x1x1x7x32xf32> to vector<7x32xf32>
    %c7_40 = arith.constant 7 : index
    %c64_41 = arith.constant 64 : index
    %20 = vector.load %arg6[%c7_40, %c64_41] : memref<49x128xf32, #tpu.memory_space<vmem>>, vector<7x32xf32>
    tpu.vector_store %arg6[%c7_40, %c64_41], %19 {strides = array<i32>} : memref<49x128xf32, #tpu.memory_space<vmem>>, vector<7x32xf32>,
    %c0_42 = arith.constant 0 : index
    %c0_43 = arith.constant 0 : index
    %c2_44 = arith.constant 2 : index
    %c1_45 = arith.constant 1 : index
    %c0_46 = arith.constant 0 : index
    %21 = vector.load %arg2[%c0_42, %c0_43, %c2_44, %c1_45, %c0_46] : memref<1x1x8x8x32xf32, #tpu.memory_space<vmem>>, vector<1x1x1x7x32xf32>
    %22 = vector.shape_cast %21 : vector<1x1x1x7x32xf32> to vector<7x32xf32>
    %c7_47 = arith.constant 7 : index
    %c96_48 = arith.constant 96 : index
    %23 = vector.load %arg6[%c7_47, %c96_48] : memref<49x128xf32, #tpu.memory_space<vmem>>, vector<7x32xf32>
    tpu.vector_store %arg6[%c7_47, %c96_48], %22 {strides = array<i32>} : memref<49x128xf32, #tpu.memory_space<vmem>>, vector<7x32xf32>,
    %c0_49 = arith.constant 0 : index
    %c0_50 = arith.constant 0 : index
    %c2_51 = arith.constant 2 : index
    %c0_52 = arith.constant 0 : index
    %c0_53 = arith.constant 0 : index
    %24 = vector.load %arg2[%c0_49, %c0_50, %c2_51, %c0_52, %c0_53] : memref<1x1x8x8x32xf32, #tpu.memory_space<vmem>>, vector<1x1x1x7x32xf32>
    %25 = vector.shape_cast %24 : vector<1x1x1x7x32xf32> to vector<7x32xf32>
    %c14 = arith.constant 14 : index
    %c0_54 = arith.constant 0 : index
    %26 = vector.load %arg6[%c14, %c0_54] : memref<49x128xf32, #tpu.memory_space<vmem>>, vector<7x32xf32>
    tpu.vector_store %arg6[%c14, %c0_54], %25 {strides = array<i32>} : memref<49x128xf32, #tpu.memory_space<vmem>>, vector<7x32xf32>,
    %c0_55 = arith.constant 0 : index
    %c0_56 = arith.constant 0 : index
    %c2_57 = arith.constant 2 : index
    %c1_58 = arith.constant 1 : index
    %c0_59 = arith.constant 0 : index
    %27 = vector.load %arg2[%c0_55, %c0_56, %c2_57, %c1_58, %c0_59] : memref<1x1x8x8x32xf32, #tpu.memory_space<vmem>>, vector<1x1x1x7x32xf32>
    %28 = vector.shape_cast %27 : vector<1x1x1x7x32xf32> to vector<7x32xf32>
    %c14_60 = arith.constant 14 : index
    %c32_61 = arith.constant 32 : index
    %29 = vector.load %arg6[%c14_60, %c32_61] : memref<49x128xf32, #tpu.memory_space<vmem>>, vector<7x32xf32>
    tpu.vector_store %arg6[%c14_60, %c32_61], %28 {strides = array<i32>} : memref<49x128xf32, #tpu.memory_space<vmem>>, vector<7x32xf32>,
    %c0_62 = arith.constant 0 : index
    %c0_63 = arith.constant 0 : index
    %c3 = arith.constant 3 : index
    %c0_64 = arith.constant 0 : index
    %c0_65 = arith.constant 0 : index
    %30 = vector.load %arg2[%c0_62, %c0_63, %c3, %c0_64, %c0_65] : memref<1x1x8x8x32xf32, #tpu.memory_space<vmem>>, vector<1x1x1x7x32xf32>
    %31 = vector.shape_cast %30 : vector<1x1x1x7x32xf32> to vector<7x32xf32>
    %c14_66 = arith.constant 14 : index
    %c64_67 = arith.constant 64 : index
    %32 = vector.load %arg6[%c14_66, %c64_67] : memref<49x128xf32, #tpu.memory_space<vmem>>, vector<7x32xf32>
    tpu.vector_store %arg6[%c14_66, %c64_67], %31 {strides = array<i32>} : memref<49x128xf32, #tpu.memory_space<vmem>>, vector<7x32xf32>,
    %c0_68 = arith.constant 0 : index
    %c0_69 = arith.constant 0 : index
    %c3_70 = arith.constant 3 : index
    %c1_71 = arith.constant 1 : index
    %c0_72 = arith.constant 0 : index
    %33 = vector.load %arg2[%c0_68, %c0_69, %c3_70, %c1_71, %c0_72] : memref<1x1x8x8x32xf32, #tpu.memory_space<vmem>>, vector<1x1x1x7x32xf32>
    %34 = vector.shape_cast %33 : vector<1x1x1x7x32xf32> to vector<7x32xf32>
    %c14_73 = arith.constant 14 : index
    %c96_74 = arith.constant 96 : index
    %35 = vector.load %arg6[%c14_73, %c96_74] : memref<49x128xf32, #tpu.memory_space<vmem>>, vector<7x32xf32>
    tpu.vector_store %arg6[%c14_73, %c96_74], %34 {strides = array<i32>} : memref<49x128xf32, #tpu.memory_space<vmem>>, vector<7x32xf32>,
    %c0_75 = arith.constant 0 : index
    %c0_76 = arith.constant 0 : index
    %c3_77 = arith.constant 3 : index
    %c0_78 = arith.constant 0 : index
    %c0_79 = arith.constant 0 : index
    %36 = vector.load %arg2[%c0_75, %c0_76, %c3_77, %c0_78, %c0_79] : memref<1x1x8x8x32xf32, #tpu.memory_space<vmem>>, vector<1x1x1x7x32xf32>
    %37 = vector.shape_cast %36 : vector<1x1x1x7x32xf32> to vector<7x32xf32>
    %c21 = arith.constant 21 : index
    %c0_80 = arith.constant 0 : index
    %38 = vector.load %arg6[%c21, %c0_80] : memref<49x128xf32, #tpu.memory_space<vmem>>, vector<7x32xf32>
    tpu.vector_store %arg6[%c21, %c0_80], %37 {strides = array<i32>} : memref<49x128xf32, #tpu.memory_space<vmem>>, vector<7x32xf32>,
    %c0_81 = arith.constant 0 : index
    %c0_82 = arith.constant 0 : index
    %c3_83 = arith.constant 3 : index
    %c1_84 = arith.constant 1 : index
    %c0_85 = arith.constant 0 : index
    %39 = vector.load %arg2[%c0_81, %c0_82, %c3_83, %c1_84, %c0_85] : memref<1x1x8x8x32xf32, #tpu.memory_space<vmem>>, vector<1x1x1x7x32xf32>
    %40 = vector.shape_cast %39 : vector<1x1x1x7x32xf32> to vector<7x32xf32>
    %c21_86 = arith.constant 21 : index
    %c32_87 = arith.constant 32 : index
    %41 = vector.load %arg6[%c21_86, %c32_87] : memref<49x128xf32, #tpu.memory_space<vmem>>, vector<7x32xf32>
    tpu.vector_store %arg6[%c21_86, %c32_87], %40 {strides = array<i32>} : memref<49x128xf32, #tpu.memory_space<vmem>>, vector<7x32xf32>,
    %c0_88 = arith.constant 0 : index
    %c0_89 = arith.constant 0 : index
    %c4 = arith.constant 4 : index
    %c0_90 = arith.constant 0 : index
    %c0_91 = arith.constant 0 : index
    %42 = vector.load %arg2[%c0_88, %c0_89, %c4, %c0_90, %c0_91] : memref<1x1x8x8x32xf32, #tpu.memory_space<vmem>>, vector<1x1x1x7x32xf32>
    %43 = vector.shape_cast %42 : vector<1x1x1x7x32xf32> to vector<7x32xf32>
    %c21_92 = arith.constant 21 : index
    %c64_93 = arith.constant 64 : index
    %44 = vector.load %arg6[%c21_92, %c64_93] : memref<49x128xf32, #tpu.memory_space<vmem>>, vector<7x32xf32>
    tpu.vector_store %arg6[%c21_92, %c64_93], %43 {strides = array<i32>} : memref<49x128xf32, #tpu.memory_space<vmem>>, vector<7x32xf32>,
    %c0_94 = arith.constant 0 : index
    %c0_95 = arith.constant 0 : index
    %c4_96 = arith.constant 4 : index
    %c1_97 = arith.constant 1 : index
    %c0_98 = arith.constant 0 : index
    %45 = vector.load %arg2[%c0_94, %c0_95, %c4_96, %c1_97, %c0_98] : memref<1x1x8x8x32xf32, #tpu.memory_space<vmem>>, vector<1x1x1x7x32xf32>
    %46 = vector.shape_cast %45 : vector<1x1x1x7x32xf32> to vector<7x32xf32>
    %c21_99 = arith.constant 21 : index
    %c96_100 = arith.constant 96 : index
    %47 = vector.load %arg6[%c21_99, %c96_100] : memref<49x128xf32, #tpu.memory_space<vmem>>, vector<7x32xf32>
    tpu.vector_store %arg6[%c21_99, %c96_100], %46 {strides = array<i32>} : memref<49x128xf32, #tpu.memory_space<vmem>>, vector<7x32xf32>,
    %c0_101 = arith.constant 0 : index
    %c0_102 = arith.constant 0 : index
    %c4_103 = arith.constant 4 : index
    %c0_104 = arith.constant 0 : index
    %c0_105 = arith.constant 0 : index
    %48 = vector.load %arg2[%c0_101, %c0_102, %c4_103, %c0_104, %c0_105] : memref<1x1x8x8x32xf32, #tpu.memory_space<vmem>>, vector<1x1x1x7x32xf32>
    %49 = vector.shape_cast %48 : vector<1x1x1x7x32xf32> to vector<7x32xf32>
    %c28 = arith.constant 28 : index
    %c0_106 = arith.constant 0 : index
    %50 = vector.load %arg6[%c28, %c0_106] : memref<49x128xf32, #tpu.memory_space<vmem>>, vector<7x32xf32>
    tpu.vector_store %arg6[%c28, %c0_106], %49 {strides = array<i32>} : memref<49x128xf32, #tpu.memory_space<vmem>>, vector<7x32xf32>,
    %c0_107 = arith.constant 0 : index
    %c0_108 = arith.constant 0 : index
    %c4_109 = arith.constant 4 : index
    %c1_110 = arith.constant 1 : index
    %c0_111 = arith.constant 0 : index
    %51 = vector.load %arg2[%c0_107, %c0_108, %c4_109, %c1_110, %c0_111] : memref<1x1x8x8x32xf32, #tpu.memory_space<vmem>>, vector<1x1x1x7x32xf32>
    %52 = vector.shape_cast %51 : vector<1x1x1x7x32xf32> to vector<7x32xf32>
    %c28_112 = arith.constant 28 : index
    %c32_113 = arith.constant 32 : index
    %53 = vector.load %arg6[%c28_112, %c32_113] : memref<49x128xf32, #tpu.memory_space<vmem>>, vector<7x32xf32>
    tpu.vector_store %arg6[%c28_112, %c32_113], %52 {strides = array<i32>} : memref<49x128xf32, #tpu.memory_space<vmem>>, vector<7x32xf32>,
    %c0_114 = arith.constant 0 : index
    %c0_115 = arith.constant 0 : index
    %c5 = arith.constant 5 : index
    %c0_116 = arith.constant 0 : index
    %c0_117 = arith.constant 0 : index
    %54 = vector.load %arg2[%c0_114, %c0_115, %c5, %c0_116, %c0_117] : memref<1x1x8x8x32xf32, #tpu.memory_space<vmem>>, vector<1x1x1x7x32xf32>
    %55 = vector.shape_cast %54 : vector<1x1x1x7x32xf32> to vector<7x32xf32>
    %c28_118 = arith.constant 28 : index
    %c64_119 = arith.constant 64 : index
    %56 = vector.load %arg6[%c28_118, %c64_119] : memref<49x128xf32, #tpu.memory_space<vmem>>, vector<7x32xf32>
    tpu.vector_store %arg6[%c28_118, %c64_119], %55 {strides = array<i32>} : memref<49x128xf32, #tpu.memory_space<vmem>>, vector<7x32xf32>,
    %c0_120 = arith.constant 0 : index
    %c0_121 = arith.constant 0 : index
    %c5_122 = arith.constant 5 : index
    %c1_123 = arith.constant 1 : index
    %c0_124 = arith.constant 0 : index
    %57 = vector.load %arg2[%c0_120, %c0_121, %c5_122, %c1_123, %c0_124] : memref<1x1x8x8x32xf32, #tpu.memory_space<vmem>>, vector<1x1x1x7x32xf32>
    %58 = vector.shape_cast %57 : vector<1x1x1x7x32xf32> to vector<7x32xf32>
    %c28_125 = arith.constant 28 : index
    %c96_126 = arith.constant 96 : index
    %59 = vector.load %arg6[%c28_125, %c96_126] : memref<49x128xf32, #tpu.memory_space<vmem>>, vector<7x32xf32>
    tpu.vector_store %arg6[%c28_125, %c96_126], %58 {strides = array<i32>} : memref<49x128xf32, #tpu.memory_space<vmem>>, vector<7x32xf32>,
    %c0_127 = arith.constant 0 : index
    %c0_128 = arith.constant 0 : index
    %c5_129 = arith.constant 5 : index
    %c0_130 = arith.constant 0 : index
    %c0_131 = arith.constant 0 : index
    %60 = vector.load %arg2[%c0_127, %c0_128, %c5_129, %c0_130, %c0_131] : memref<1x1x8x8x32xf32, #tpu.memory_space<vmem>>, vector<1x1x1x7x32xf32>
    %61 = vector.shape_cast %60 : vector<1x1x1x7x32xf32> to vector<7x32xf32>
    %c35 = arith.constant 35 : index
    %c0_132 = arith.constant 0 : index
    %62 = vector.load %arg6[%c35, %c0_132] : memref<49x128xf32, #tpu.memory_space<vmem>>, vector<7x32xf32>
    tpu.vector_store %arg6[%c35, %c0_132], %61 {strides = array<i32>} : memref<49x128xf32, #tpu.memory_space<vmem>>, vector<7x32xf32>,
    %c0_133 = arith.constant 0 : index
    %c0_134 = arith.constant 0 : index
    %c5_135 = arith.constant 5 : index
    %c1_136 = arith.constant 1 : index
    %c0_137 = arith.constant 0 : index
    %63 = vector.load %arg2[%c0_133, %c0_134, %c5_135, %c1_136, %c0_137] : memref<1x1x8x8x32xf32, #tpu.memory_space<vmem>>, vector<1x1x1x7x32xf32>
    %64 = vector.shape_cast %63 : vector<1x1x1x7x32xf32> to vector<7x32xf32>
    %c35_138 = arith.constant 35 : index
    %c32_139 = arith.constant 32 : index
    %65 = vector.load %arg6[%c35_138, %c32_139] : memref<49x128xf32, #tpu.memory_space<vmem>>, vector<7x32xf32>
    tpu.vector_store %arg6[%c35_138, %c32_139], %64 {strides = array<i32>} : memref<49x128xf32, #tpu.memory_space<vmem>>, vector<7x32xf32>,
    %c0_140 = arith.constant 0 : index
    %c0_141 = arith.constant 0 : index
    %c6 = arith.constant 6 : index
    %c0_142 = arith.constant 0 : index
    %c0_143 = arith.constant 0 : index
    %66 = vector.load %arg2[%c0_140, %c0_141, %c6, %c0_142, %c0_143] : memref<1x1x8x8x32xf32, #tpu.memory_space<vmem>>, vector<1x1x1x7x32xf32>
    %67 = vector.shape_cast %66 : vector<1x1x1x7x32xf32> to vector<7x32xf32>
    %c35_144 = arith.constant 35 : index
    %c64_145 = arith.constant 64 : index
    %68 = vector.load %arg6[%c35_144, %c64_145] : memref<49x128xf32, #tpu.memory_space<vmem>>, vector<7x32xf32>
    tpu.vector_store %arg6[%c35_144, %c64_145], %67 {strides = array<i32>} : memref<49x128xf32, #tpu.memory_space<vmem>>, vector<7x32xf32>,
    %c0_146 = arith.constant 0 : index
    %c0_147 = arith.constant 0 : index
    %c6_148 = arith.constant 6 : index
    %c1_149 = arith.constant 1 : index
    %c0_150 = arith.constant 0 : index
    %69 = vector.load %arg2[%c0_146, %c0_147, %c6_148, %c1_149, %c0_150] : memref<1x1x8x8x32xf32, #tpu.memory_space<vmem>>, vector<1x1x1x7x32xf32>
    %70 = vector.shape_cast %69 : vector<1x1x1x7x32xf32> to vector<7x32xf32>
    %c35_151 = arith.constant 35 : index
    %c96_152 = arith.constant 96 : index
    %71 = vector.load %arg6[%c35_151, %c96_152] : memref<49x128xf32, #tpu.memory_space<vmem>>, vector<7x32xf32>
    tpu.vector_store %arg6[%c35_151, %c96_152], %70 {strides = array<i32>} : memref<49x128xf32, #tpu.memory_space<vmem>>, vector<7x32xf32>,
    %c0_153 = arith.constant 0 : index
    %c0_154 = arith.constant 0 : index
    %c6_155 = arith.constant 6 : index
    %c0_156 = arith.constant 0 : index
    %c0_157 = arith.constant 0 : index
    %72 = vector.load %arg2[%c0_153, %c0_154, %c6_155, %c0_156, %c0_157] : memref<1x1x8x8x32xf32, #tpu.memory_space<vmem>>, vector<1x1x1x7x32xf32>
    %73 = vector.shape_cast %72 : vector<1x1x1x7x32xf32> to vector<7x32xf32>
    %c42 = arith.constant 42 : index
    %c0_158 = arith.constant 0 : index
    %74 = vector.load %arg6[%c42, %c0_158] : memref<49x128xf32, #tpu.memory_space<vmem>>, vector<7x32xf32>
    tpu.vector_store %arg6[%c42, %c0_158], %73 {strides = array<i32>} : memref<49x128xf32, #tpu.memory_space<vmem>>, vector<7x32xf32>,
    %c0_159 = arith.constant 0 : index
    %c0_160 = arith.constant 0 : index
    %c6_161 = arith.constant 6 : index
    %c1_162 = arith.constant 1 : index
    %c0_163 = arith.constant 0 : index
    %75 = vector.load %arg2[%c0_159, %c0_160, %c6_161, %c1_162, %c0_163] : memref<1x1x8x8x32xf32, #tpu.memory_space<vmem>>, vector<1x1x1x7x32xf32>
    %76 = vector.shape_cast %75 : vector<1x1x1x7x32xf32> to vector<7x32xf32>
    %c42_164 = arith.constant 42 : index
    %c32_165 = arith.constant 32 : index
    %77 = vector.load %arg6[%c42_164, %c32_165] : memref<49x128xf32, #tpu.memory_space<vmem>>, vector<7x32xf32>
    tpu.vector_store %arg6[%c42_164, %c32_165], %76 {strides = array<i32>} : memref<49x128xf32, #tpu.memory_space<vmem>>, vector<7x32xf32>,
    %c0_166 = arith.constant 0 : index
    %c0_167 = arith.constant 0 : index
    %c7_168 = arith.constant 7 : index
    %c0_169 = arith.constant 0 : index
    %c0_170 = arith.constant 0 : index
    %78 = vector.load %arg2[%c0_166, %c0_167, %c7_168, %c0_169, %c0_170] : memref<1x1x8x8x32xf32, #tpu.memory_space<vmem>>, vector<1x1x1x7x32xf32>
    %79 = vector.shape_cast %78 : vector<1x1x1x7x32xf32> to vector<7x32xf32>
    %c42_171 = arith.constant 42 : index
    %c64_172 = arith.constant 64 : index
    %80 = vector.load %arg6[%c42_171, %c64_172] : memref<49x128xf32, #tpu.memory_space<vmem>>, vector<7x32xf32>
    tpu.vector_store %arg6[%c42_171, %c64_172], %79 {strides = array<i32>} : memref<49x128xf32, #tpu.memory_space<vmem>>, vector<7x32xf32>,
    %c0_173 = arith.constant 0 : index
    %c0_174 = arith.constant 0 : index
    %c7_175 = arith.constant 7 : index
    %c1_176 = arith.constant 1 : index
    %c0_177 = arith.constant 0 : index
    %81 = vector.load %arg2[%c0_173, %c0_174, %c7_175, %c1_176, %c0_177] : memref<1x1x8x8x32xf32, #tpu.memory_space<vmem>>, vector<1x1x1x7x32xf32>
    %82 = vector.shape_cast %81 : vector<1x1x1x7x32xf32> to vector<7x32xf32>
    %c42_178 = arith.constant 42 : index
    %c96_179 = arith.constant 96 : index
    %83 = vector.load %arg6[%c42_178, %c96_179] : memref<49x128xf32, #tpu.memory_space<vmem>>, vector<7x32xf32>
    tpu.vector_store %arg6[%c42_178, %c96_179], %82 {strides = array<i32>} : memref<49x128xf32, #tpu.memory_space<vmem>>, vector<7x32xf32>,
    %c0_180 = arith.constant 0 : index
    %c0_181 = arith.constant 0 : index
    %84 = vector.load %arg6[%c0_180, %c0_181] : memref<49x128xf32, #tpu.memory_space<vmem>>, vector<49x128xf32>
    %c0_182 = arith.constant 0 : index
    %c0_183 = arith.constant 0 : index
    %c0_184 = arith.constant 0 : index
    %85 = vector.load %arg3[%c0_182, %c0_183, %c0_184] : memref<1x128x16xf32, #tpu.memory_space<vmem>>, vector<1x128x16xf32>
    %86 = vector.shape_cast %85 : vector<1x128x16xf32> to vector<128x16xf32>
    %cst = arith.constant dense<0.000000e+00> : vector<49x16xf32>
    %87 = tpu.matmul %84, %86, %cst {dimension_numbers = #tpu.dot_dimension_numbers<[1], [0], [0], [1], [0, 0, 1, 1], [], []>} : vector<49x128xf32>, vector<128x16xf32>, vector<49x16xf32> -> vector<49x16xf32>
    %c0_185 = arith.constant 0 : index
    %c0_186 = arith.constant 0 : index
    %c0_187 = arith.constant 0 : index
    %88 = vector.load %arg4[%c0_185, %c0_186, %c0_187] : memref<1x1x16xf32, #tpu.memory_space<vmem>>, vector<1x1x16xf32>
    %89 = vector.shape_cast %88 : vector<1x1x16xf32> to vector<1x16xf32>
    %90 = vector.broadcast %89 : vector<1x16xf32> to vector<49x16xf32>
    %91 = arith.addf %87, %90 : vector<49x16xf32>
    %cst_188 = arith.constant 0.000000e+00 : f32
    %92 = vector.broadcast %cst_188 : f32 to vector<49x16xf32>
    %93 = arith.maximumf %91, %92 : vector<49x16xf32>
    %c0_189 = arith.constant 0 : index
    %c0_190 = arith.constant 0 : index
    %c0_191 = arith.constant 0 : index
    %c0_192 = arith.constant 0 : index
    %94 = vector.load %arg5[%c0_189, %c0_190, %c0_191, %c0_192] : memref<1x1x49x16xf32, #tpu.memory_space<vmem>>, vector<1x1x49x16xf32>
    %95 = vector.shape_cast %94 : vector<1x1x49x16xf32> to vector<49x16xf32>
    %96 = vector.shape_cast %93 : vector<49x16xf32> to vector<1x1x49x16xf32>
    tpu.vector_store %arg5[%c0_189, %c0_190, %c0_191, %c0_192], %96 {strides = array<i32>} : memref<1x1x49x16xf32, #tpu.memory_space<vmem>>, vector<1x1x49x16xf32>,
    return
  }
  func.func @transform_0(%arg0: i32, %arg1: i32) -> (i32, i32, i32, i32, i32) {
    %c0_i32 = arith.constant 0 : i32
    %c0_i32_0 = arith.constant 0 : i32
    %c0_i32_1 = arith.constant 0 : i32
    %c0_i32_2 = arith.constant 0 : i32
    return %arg0, %arg1, %c0_i32, %c0_i32_0, %c0_i32_1 : i32, i32, i32, i32, i32
  }
  func.func @transform_1(%arg0: i32, %arg1: i32) -> (i32, i32, i32) {
    %c0_i32 = arith.constant 0 : i32
    %c0_i32_0 = arith.constant 0 : i32
    %c0_i32_1 = arith.constant 0 : i32
    return %arg0, %c0_i32, %c0_i32_0 : i32, i32, i32
  }
  func.func @transform_2(%arg0: i32, %arg1: i32) -> (i32, i32, i32) {
    %c0_i32 = arith.constant 0 : i32
    %c0_i32_0 = arith.constant 0 : i32
    %c0_i32_1 = arith.constant 0 : i32
    return %arg0, %c0_i32, %c0_i32_0 : i32, i32, i32
  }
  func.func @transform_3(%arg0: i32, %arg1: i32) -> (i32, i32, i32, i32) {
    %c0_i32 = arith.constant 0 : i32
    %c0_i32_0 = arith.constant 0 : i32
    %c0_i32_1 = arith.constant 0 : i32
    return %arg0, %arg1, %c0_i32, %c0_i32_0 : i32, i32, i32, i32
  }
}

module attributes {stable_mosaic.version = 11 : i64} {
  func.func @_conv_s1_kernel(%arg0: i32, %arg1: i32, %arg2: memref<1x1x4x4x64xf32, #tpu.memory_space<vmem>>, %arg3: memref<1x256x32xf32, #tpu.memory_space<vmem>>, %arg4: memref<1x1x32xf32, #tpu.memory_space<vmem>>, %arg5: memref<1x1x9x32xf32, #tpu.memory_space<vmem>>, %arg6: memref<9x256xf32, #tpu.memory_space<vmem>>) attributes {dimension_semantics = [#tpu.dimension_semantics<parallel>, #tpu.dimension_semantics<parallel>], iteration_bounds = array<i64: 1, 2>, scalar_prefetch = 0 : i64, scratch_operands = 1 : i64, tpu.core_type = #tpu.core_type<tc>, window_params = [{transform_indices = @transform_0, window_bounds = array<i64: 1, 1, 4, 4, 64>}, {transform_indices = @transform_1, window_bounds = array<i64: 1, 256, 32>}, {transform_indices = @transform_2, window_bounds = array<i64: 1, 1, 32>}, {transform_indices = @transform_3, window_bounds = array<i64: 1, 1, 9, 32>}]} {
    %c0 = arith.constant 0 : index
    %c0_0 = arith.constant 0 : index
    %c0_1 = arith.constant 0 : index
    %c0_2 = arith.constant 0 : index
    %c0_3 = arith.constant 0 : index
    %0 = vector.load %arg2[%c0, %c0_0, %c0_1, %c0_2, %c0_3] : memref<1x1x4x4x64xf32, #tpu.memory_space<vmem>>, vector<1x1x1x3x64xf32>
    %1 = vector.shape_cast %0 : vector<1x1x1x3x64xf32> to vector<3x64xf32>
    %c0_4 = arith.constant 0 : index
    %c0_5 = arith.constant 0 : index
    %2 = vector.load %arg6[%c0_4, %c0_5] : memref<9x256xf32, #tpu.memory_space<vmem>>, vector<3x64xf32>
    tpu.vector_store %arg6[%c0_4, %c0_5], %1 {strides = array<i32>} : memref<9x256xf32, #tpu.memory_space<vmem>>, vector<3x64xf32>,
    %c0_6 = arith.constant 0 : index
    %c0_7 = arith.constant 0 : index
    %c0_8 = arith.constant 0 : index
    %c1 = arith.constant 1 : index
    %c0_9 = arith.constant 0 : index
    %3 = vector.load %arg2[%c0_6, %c0_7, %c0_8, %c1, %c0_9] : memref<1x1x4x4x64xf32, #tpu.memory_space<vmem>>, vector<1x1x1x3x64xf32>
    %4 = vector.shape_cast %3 : vector<1x1x1x3x64xf32> to vector<3x64xf32>
    %c0_10 = arith.constant 0 : index
    %c64 = arith.constant 64 : index
    %5 = vector.load %arg6[%c0_10, %c64] : memref<9x256xf32, #tpu.memory_space<vmem>>, vector<3x64xf32>
    tpu.vector_store %arg6[%c0_10, %c64], %4 {strides = array<i32>} : memref<9x256xf32, #tpu.memory_space<vmem>>, vector<3x64xf32>,
    %c0_11 = arith.constant 0 : index
    %c0_12 = arith.constant 0 : index
    %c1_13 = arith.constant 1 : index
    %c0_14 = arith.constant 0 : index
    %c0_15 = arith.constant 0 : index
    %6 = vector.load %arg2[%c0_11, %c0_12, %c1_13, %c0_14, %c0_15] : memref<1x1x4x4x64xf32, #tpu.memory_space<vmem>>, vector<1x1x1x3x64xf32>
    %7 = vector.shape_cast %6 : vector<1x1x1x3x64xf32> to vector<3x64xf32>
    %c0_16 = arith.constant 0 : index
    %c128 = arith.constant 128 : index
    %8 = vector.load %arg6[%c0_16, %c128] : memref<9x256xf32, #tpu.memory_space<vmem>>, vector<3x64xf32>
    tpu.vector_store %arg6[%c0_16, %c128], %7 {strides = array<i32>} : memref<9x256xf32, #tpu.memory_space<vmem>>, vector<3x64xf32>,
    %c0_17 = arith.constant 0 : index
    %c0_18 = arith.constant 0 : index
    %c1_19 = arith.constant 1 : index
    %c1_20 = arith.constant 1 : index
    %c0_21 = arith.constant 0 : index
    %9 = vector.load %arg2[%c0_17, %c0_18, %c1_19, %c1_20, %c0_21] : memref<1x1x4x4x64xf32, #tpu.memory_space<vmem>>, vector<1x1x1x3x64xf32>
    %10 = vector.shape_cast %9 : vector<1x1x1x3x64xf32> to vector<3x64xf32>
    %c0_22 = arith.constant 0 : index
    %c192 = arith.constant 192 : index
    %11 = vector.load %arg6[%c0_22, %c192] : memref<9x256xf32, #tpu.memory_space<vmem>>, vector<3x64xf32>
    tpu.vector_store %arg6[%c0_22, %c192], %10 {strides = array<i32>} : memref<9x256xf32, #tpu.memory_space<vmem>>, vector<3x64xf32>,
    %c0_23 = arith.constant 0 : index
    %c0_24 = arith.constant 0 : index
    %c1_25 = arith.constant 1 : index
    %c0_26 = arith.constant 0 : index
    %c0_27 = arith.constant 0 : index
    %12 = vector.load %arg2[%c0_23, %c0_24, %c1_25, %c0_26, %c0_27] : memref<1x1x4x4x64xf32, #tpu.memory_space<vmem>>, vector<1x1x1x3x64xf32>
    %13 = vector.shape_cast %12 : vector<1x1x1x3x64xf32> to vector<3x64xf32>
    %c3 = arith.constant 3 : index
    %c0_28 = arith.constant 0 : index
    %14 = vector.load %arg6[%c3, %c0_28] : memref<9x256xf32, #tpu.memory_space<vmem>>, vector<3x64xf32>
    tpu.vector_store %arg6[%c3, %c0_28], %13 {strides = array<i32>} : memref<9x256xf32, #tpu.memory_space<vmem>>, vector<3x64xf32>,
    %c0_29 = arith.constant 0 : index
    %c0_30 = arith.constant 0 : index
    %c1_31 = arith.constant 1 : index
    %c1_32 = arith.constant 1 : index
    %c0_33 = arith.constant 0 : index
    %15 = vector.load %arg2[%c0_29, %c0_30, %c1_31, %c1_32, %c0_33] : memref<1x1x4x4x64xf32, #tpu.memory_space<vmem>>, vector<1x1x1x3x64xf32>
    %16 = vector.shape_cast %15 : vector<1x1x1x3x64xf32> to vector<3x64xf32>
    %c3_34 = arith.constant 3 : index
    %c64_35 = arith.constant 64 : index
    %17 = vector.load %arg6[%c3_34, %c64_35] : memref<9x256xf32, #tpu.memory_space<vmem>>, vector<3x64xf32>
    tpu.vector_store %arg6[%c3_34, %c64_35], %16 {strides = array<i32>} : memref<9x256xf32, #tpu.memory_space<vmem>>, vector<3x64xf32>,
    %c0_36 = arith.constant 0 : index
    %c0_37 = arith.constant 0 : index
    %c2 = arith.constant 2 : index
    %c0_38 = arith.constant 0 : index
    %c0_39 = arith.constant 0 : index
    %18 = vector.load %arg2[%c0_36, %c0_37, %c2, %c0_38, %c0_39] : memref<1x1x4x4x64xf32, #tpu.memory_space<vmem>>, vector<1x1x1x3x64xf32>
    %19 = vector.shape_cast %18 : vector<1x1x1x3x64xf32> to vector<3x64xf32>
    %c3_40 = arith.constant 3 : index
    %c128_41 = arith.constant 128 : index
    %20 = vector.load %arg6[%c3_40, %c128_41] : memref<9x256xf32, #tpu.memory_space<vmem>>, vector<3x64xf32>
    tpu.vector_store %arg6[%c3_40, %c128_41], %19 {strides = array<i32>} : memref<9x256xf32, #tpu.memory_space<vmem>>, vector<3x64xf32>,
    %c0_42 = arith.constant 0 : index
    %c0_43 = arith.constant 0 : index
    %c2_44 = arith.constant 2 : index
    %c1_45 = arith.constant 1 : index
    %c0_46 = arith.constant 0 : index
    %21 = vector.load %arg2[%c0_42, %c0_43, %c2_44, %c1_45, %c0_46] : memref<1x1x4x4x64xf32, #tpu.memory_space<vmem>>, vector<1x1x1x3x64xf32>
    %22 = vector.shape_cast %21 : vector<1x1x1x3x64xf32> to vector<3x64xf32>
    %c3_47 = arith.constant 3 : index
    %c192_48 = arith.constant 192 : index
    %23 = vector.load %arg6[%c3_47, %c192_48] : memref<9x256xf32, #tpu.memory_space<vmem>>, vector<3x64xf32>
    tpu.vector_store %arg6[%c3_47, %c192_48], %22 {strides = array<i32>} : memref<9x256xf32, #tpu.memory_space<vmem>>, vector<3x64xf32>,
    %c0_49 = arith.constant 0 : index
    %c0_50 = arith.constant 0 : index
    %c2_51 = arith.constant 2 : index
    %c0_52 = arith.constant 0 : index
    %c0_53 = arith.constant 0 : index
    %24 = vector.load %arg2[%c0_49, %c0_50, %c2_51, %c0_52, %c0_53] : memref<1x1x4x4x64xf32, #tpu.memory_space<vmem>>, vector<1x1x1x3x64xf32>
    %25 = vector.shape_cast %24 : vector<1x1x1x3x64xf32> to vector<3x64xf32>
    %c6 = arith.constant 6 : index
    %c0_54 = arith.constant 0 : index
    %26 = vector.load %arg6[%c6, %c0_54] : memref<9x256xf32, #tpu.memory_space<vmem>>, vector<3x64xf32>
    tpu.vector_store %arg6[%c6, %c0_54], %25 {strides = array<i32>} : memref<9x256xf32, #tpu.memory_space<vmem>>, vector<3x64xf32>,
    %c0_55 = arith.constant 0 : index
    %c0_56 = arith.constant 0 : index
    %c2_57 = arith.constant 2 : index
    %c1_58 = arith.constant 1 : index
    %c0_59 = arith.constant 0 : index
    %27 = vector.load %arg2[%c0_55, %c0_56, %c2_57, %c1_58, %c0_59] : memref<1x1x4x4x64xf32, #tpu.memory_space<vmem>>, vector<1x1x1x3x64xf32>
    %28 = vector.shape_cast %27 : vector<1x1x1x3x64xf32> to vector<3x64xf32>
    %c6_60 = arith.constant 6 : index
    %c64_61 = arith.constant 64 : index
    %29 = vector.load %arg6[%c6_60, %c64_61] : memref<9x256xf32, #tpu.memory_space<vmem>>, vector<3x64xf32>
    tpu.vector_store %arg6[%c6_60, %c64_61], %28 {strides = array<i32>} : memref<9x256xf32, #tpu.memory_space<vmem>>, vector<3x64xf32>,
    %c0_62 = arith.constant 0 : index
    %c0_63 = arith.constant 0 : index
    %c3_64 = arith.constant 3 : index
    %c0_65 = arith.constant 0 : index
    %c0_66 = arith.constant 0 : index
    %30 = vector.load %arg2[%c0_62, %c0_63, %c3_64, %c0_65, %c0_66] : memref<1x1x4x4x64xf32, #tpu.memory_space<vmem>>, vector<1x1x1x3x64xf32>
    %31 = vector.shape_cast %30 : vector<1x1x1x3x64xf32> to vector<3x64xf32>
    %c6_67 = arith.constant 6 : index
    %c128_68 = arith.constant 128 : index
    %32 = vector.load %arg6[%c6_67, %c128_68] : memref<9x256xf32, #tpu.memory_space<vmem>>, vector<3x64xf32>
    tpu.vector_store %arg6[%c6_67, %c128_68], %31 {strides = array<i32>} : memref<9x256xf32, #tpu.memory_space<vmem>>, vector<3x64xf32>,
    %c0_69 = arith.constant 0 : index
    %c0_70 = arith.constant 0 : index
    %c3_71 = arith.constant 3 : index
    %c1_72 = arith.constant 1 : index
    %c0_73 = arith.constant 0 : index
    %33 = vector.load %arg2[%c0_69, %c0_70, %c3_71, %c1_72, %c0_73] : memref<1x1x4x4x64xf32, #tpu.memory_space<vmem>>, vector<1x1x1x3x64xf32>
    %34 = vector.shape_cast %33 : vector<1x1x1x3x64xf32> to vector<3x64xf32>
    %c6_74 = arith.constant 6 : index
    %c192_75 = arith.constant 192 : index
    %35 = vector.load %arg6[%c6_74, %c192_75] : memref<9x256xf32, #tpu.memory_space<vmem>>, vector<3x64xf32>
    tpu.vector_store %arg6[%c6_74, %c192_75], %34 {strides = array<i32>} : memref<9x256xf32, #tpu.memory_space<vmem>>, vector<3x64xf32>,
    %c0_76 = arith.constant 0 : index
    %c0_77 = arith.constant 0 : index
    %36 = vector.load %arg6[%c0_76, %c0_77] : memref<9x256xf32, #tpu.memory_space<vmem>>, vector<9x256xf32>
    %c0_78 = arith.constant 0 : index
    %c0_79 = arith.constant 0 : index
    %c0_80 = arith.constant 0 : index
    %37 = vector.load %arg3[%c0_78, %c0_79, %c0_80] : memref<1x256x32xf32, #tpu.memory_space<vmem>>, vector<1x256x32xf32>
    %38 = vector.shape_cast %37 : vector<1x256x32xf32> to vector<256x32xf32>
    %cst = arith.constant dense<0.000000e+00> : vector<9x32xf32>
    %39 = tpu.matmul %36, %38, %cst {dimension_numbers = #tpu.dot_dimension_numbers<[1], [0], [0], [1], [0, 0, 1, 1], [], []>} : vector<9x256xf32>, vector<256x32xf32>, vector<9x32xf32> -> vector<9x32xf32>
    %c0_81 = arith.constant 0 : index
    %c0_82 = arith.constant 0 : index
    %c0_83 = arith.constant 0 : index
    %40 = vector.load %arg4[%c0_81, %c0_82, %c0_83] : memref<1x1x32xf32, #tpu.memory_space<vmem>>, vector<1x1x32xf32>
    %41 = vector.shape_cast %40 : vector<1x1x32xf32> to vector<1x32xf32>
    %42 = vector.broadcast %41 : vector<1x32xf32> to vector<9x32xf32>
    %43 = arith.addf %39, %42 : vector<9x32xf32>
    %cst_84 = arith.constant 0.000000e+00 : f32
    %44 = vector.broadcast %cst_84 : f32 to vector<9x32xf32>
    %45 = arith.maximumf %43, %44 : vector<9x32xf32>
    %c0_85 = arith.constant 0 : index
    %c0_86 = arith.constant 0 : index
    %c0_87 = arith.constant 0 : index
    %c0_88 = arith.constant 0 : index
    %46 = vector.load %arg5[%c0_85, %c0_86, %c0_87, %c0_88] : memref<1x1x9x32xf32, #tpu.memory_space<vmem>>, vector<1x1x9x32xf32>
    %47 = vector.shape_cast %46 : vector<1x1x9x32xf32> to vector<9x32xf32>
    %48 = vector.shape_cast %45 : vector<9x32xf32> to vector<1x1x9x32xf32>
    tpu.vector_store %arg5[%c0_85, %c0_86, %c0_87, %c0_88], %48 {strides = array<i32>} : memref<1x1x9x32xf32, #tpu.memory_space<vmem>>, vector<1x1x9x32xf32>,
    return
  }
  func.func @transform_0(%arg0: i32, %arg1: i32) -> (i32, i32, i32, i32, i32) {
    %c0_i32 = arith.constant 0 : i32
    %c0_i32_0 = arith.constant 0 : i32
    %c0_i32_1 = arith.constant 0 : i32
    %c0_i32_2 = arith.constant 0 : i32
    return %arg0, %arg1, %c0_i32, %c0_i32_0, %c0_i32_1 : i32, i32, i32, i32, i32
  }
  func.func @transform_1(%arg0: i32, %arg1: i32) -> (i32, i32, i32) {
    %c0_i32 = arith.constant 0 : i32
    %c0_i32_0 = arith.constant 0 : i32
    %c0_i32_1 = arith.constant 0 : i32
    return %arg0, %c0_i32, %c0_i32_0 : i32, i32, i32
  }
  func.func @transform_2(%arg0: i32, %arg1: i32) -> (i32, i32, i32) {
    %c0_i32 = arith.constant 0 : i32
    %c0_i32_0 = arith.constant 0 : i32
    %c0_i32_1 = arith.constant 0 : i32
    return %arg0, %c0_i32, %c0_i32_0 : i32, i32, i32
  }
  func.func @transform_3(%arg0: i32, %arg1: i32) -> (i32, i32, i32, i32) {
    %c0_i32 = arith.constant 0 : i32
    %c0_i32_0 = arith.constant 0 : i32
    %c0_i32_1 = arith.constant 0 : i32
    return %arg0, %arg1, %c0_i32, %c0_i32_0 : i32, i32, i32, i32
  }
}

module attributes {stable_mosaic.version = 11 : i64} {
  func.func @_bottleneck_kernel(%arg0: memref<2x64xf32, #tpu.memory_space<vmem>>, %arg1: memref<2x16xf32, #tpu.memory_space<vmem>>, %arg2: memref<64x128xf32, #tpu.memory_space<vmem>>, %arg3: memref<1x128xf32, #tpu.memory_space<vmem>>, %arg4: memref<128x16xf32, #tpu.memory_space<vmem>>, %arg5: memref<1x16xf32, #tpu.memory_space<vmem>>, %arg6: memref<128x16xf32, #tpu.memory_space<vmem>>, %arg7: memref<1x16xf32, #tpu.memory_space<vmem>>, %arg8: memref<16x64xf32, #tpu.memory_space<vmem>>, %arg9: memref<1x64xf32, #tpu.memory_space<vmem>>, %arg10: memref<64x1024xf32, #tpu.memory_space<vmem>>, %arg11: memref<1x1024xf32, #tpu.memory_space<vmem>>, %arg12: memref<2x16xf32, #tpu.memory_space<vmem>>, %arg13: memref<2x16xf32, #tpu.memory_space<vmem>>, %arg14: memref<2x1024xf32, #tpu.memory_space<vmem>>) attributes {dimension_semantics = [], scalar_prefetch = 0 : i64, scratch_operands = 0 : i64, tpu.core_type = #tpu.core_type<tc>} {
    %c0 = arith.constant 0 : index
    %c0_0 = arith.constant 0 : index
    %0 = vector.load %arg0[%c0, %c0_0] : memref<2x64xf32, #tpu.memory_space<vmem>>, vector<2x64xf32>
    %c0_1 = arith.constant 0 : index
    %c0_2 = arith.constant 0 : index
    %1 = vector.load %arg2[%c0_1, %c0_2] : memref<64x128xf32, #tpu.memory_space<vmem>>, vector<64x128xf32>
    %cst = arith.constant dense<0.000000e+00> : vector<2x128xf32>
    %2 = tpu.matmul %0, %1, %cst {dimension_numbers = #tpu.dot_dimension_numbers<[1], [0], [0], [1], [0, 0, 1, 1], [], []>} : vector<2x64xf32>, vector<64x128xf32>, vector<2x128xf32> -> vector<2x128xf32>
    %c0_3 = arith.constant 0 : index
    %c0_4 = arith.constant 0 : index
    %3 = vector.load %arg3[%c0_3, %c0_4] : memref<1x128xf32, #tpu.memory_space<vmem>>, vector<1x128xf32>
    %4 = vector.broadcast %3 : vector<1x128xf32> to vector<2x128xf32>
    %5 = arith.addf %2, %4 : vector<2x128xf32>
    %c0_5 = arith.constant 0 : index
    %c0_6 = arith.constant 0 : index
    %6 = vector.load %arg4[%c0_5, %c0_6] : memref<128x16xf32, #tpu.memory_space<vmem>>, vector<128x16xf32>
    %cst_7 = arith.constant dense<0.000000e+00> : vector<2x16xf32>
    %7 = tpu.matmul %5, %6, %cst_7 {dimension_numbers = #tpu.dot_dimension_numbers<[1], [0], [0], [1], [0, 0, 1, 1], [], []>} : vector<2x128xf32>, vector<128x16xf32>, vector<2x16xf32> -> vector<2x16xf32>
    %c0_8 = arith.constant 0 : index
    %c0_9 = arith.constant 0 : index
    %8 = vector.load %arg5[%c0_8, %c0_9] : memref<1x16xf32, #tpu.memory_space<vmem>>, vector<1x16xf32>
    %9 = vector.broadcast %8 : vector<1x16xf32> to vector<2x16xf32>
    %10 = arith.addf %7, %9 : vector<2x16xf32>
    %c0_10 = arith.constant 0 : index
    %c0_11 = arith.constant 0 : index
    %11 = vector.load %arg6[%c0_10, %c0_11] : memref<128x16xf32, #tpu.memory_space<vmem>>, vector<128x16xf32>
    %cst_12 = arith.constant dense<0.000000e+00> : vector<2x16xf32>
    %12 = tpu.matmul %5, %11, %cst_12 {dimension_numbers = #tpu.dot_dimension_numbers<[1], [0], [0], [1], [0, 0, 1, 1], [], []>} : vector<2x128xf32>, vector<128x16xf32>, vector<2x16xf32> -> vector<2x16xf32>
    %c0_13 = arith.constant 0 : index
    %c0_14 = arith.constant 0 : index
    %13 = vector.load %arg7[%c0_13, %c0_14] : memref<1x16xf32, #tpu.memory_space<vmem>>, vector<1x16xf32>
    %14 = vector.broadcast %13 : vector<1x16xf32> to vector<2x16xf32>
    %15 = arith.addf %12, %14 : vector<2x16xf32>
    %c0_15 = arith.constant 0 : index
    %c0_16 = arith.constant 0 : index
    %16 = vector.load %arg1[%c0_15, %c0_16] : memref<2x16xf32, #tpu.memory_space<vmem>>, vector<2x16xf32>
    %cst_17 = arith.constant 5.000000e-01 : f32
    %17 = vector.broadcast %cst_17 : f32 to vector<2x16xf32>
    %18 = arith.mulf %17, %15 : vector<2x16xf32>
    %19 = math.exp %18 : vector<2x16xf32>
    %20 = arith.mulf %16, %19 : vector<2x16xf32>
    %21 = arith.addf %10, %20 : vector<2x16xf32>
    %c0_18 = arith.constant 0 : index
    %c0_19 = arith.constant 0 : index
    %22 = vector.load %arg8[%c0_18, %c0_19] : memref<16x64xf32, #tpu.memory_space<vmem>>, vector<16x64xf32>
    %cst_20 = arith.constant dense<0.000000e+00> : vector<2x64xf32>
    %23 = tpu.matmul %21, %22, %cst_20 {dimension_numbers = #tpu.dot_dimension_numbers<[1], [0], [0], [1], [0, 0, 1, 1], [], []>} : vector<2x16xf32>, vector<16x64xf32>, vector<2x64xf32> -> vector<2x64xf32>
    %c0_21 = arith.constant 0 : index
    %c0_22 = arith.constant 0 : index
    %24 = vector.load %arg9[%c0_21, %c0_22] : memref<1x64xf32, #tpu.memory_space<vmem>>, vector<1x64xf32>
    %25 = vector.broadcast %24 : vector<1x64xf32> to vector<2x64xf32>
    %26 = arith.addf %23, %25 : vector<2x64xf32>
    %c0_23 = arith.constant 0 : index
    %c0_24 = arith.constant 0 : index
    %27 = vector.load %arg10[%c0_23, %c0_24] : memref<64x1024xf32, #tpu.memory_space<vmem>>, vector<64x1024xf32>
    %cst_25 = arith.constant dense<0.000000e+00> : vector<2x1024xf32>
    %28 = tpu.matmul %26, %27, %cst_25 {dimension_numbers = #tpu.dot_dimension_numbers<[1], [0], [0], [1], [0, 0, 1, 1], [], []>} : vector<2x64xf32>, vector<64x1024xf32>, vector<2x1024xf32> -> vector<2x1024xf32>
    %c0_26 = arith.constant 0 : index
    %c0_27 = arith.constant 0 : index
    %29 = vector.load %arg11[%c0_26, %c0_27] : memref<1x1024xf32, #tpu.memory_space<vmem>>, vector<1x1024xf32>
    %30 = vector.broadcast %29 : vector<1x1024xf32> to vector<2x1024xf32>
    %31 = arith.addf %28, %30 : vector<2x1024xf32>
    %c0_28 = arith.constant 0 : index
    %c0_29 = arith.constant 0 : index
    %32 = vector.load %arg12[%c0_28, %c0_29] : memref<2x16xf32, #tpu.memory_space<vmem>>, vector<2x16xf32>
    tpu.vector_store %arg12[%c0_28, %c0_29], %10 {strides = array<i32>} : memref<2x16xf32, #tpu.memory_space<vmem>>, vector<2x16xf32>,
    %c0_30 = arith.constant 0 : index
    %c0_31 = arith.constant 0 : index
    %33 = vector.load %arg13[%c0_30, %c0_31] : memref<2x16xf32, #tpu.memory_space<vmem>>, vector<2x16xf32>
    tpu.vector_store %arg13[%c0_30, %c0_31], %15 {strides = array<i32>} : memref<2x16xf32, #tpu.memory_space<vmem>>, vector<2x16xf32>,
    %cst_32 = arith.constant 0.000000e+00 : f32
    %34 = vector.broadcast %cst_32 : f32 to vector<2x1024xf32>
    %35 = arith.maximumf %31, %34 : vector<2x1024xf32>
    %c0_33 = arith.constant 0 : index
    %c0_34 = arith.constant 0 : index
    %36 = vector.load %arg14[%c0_33, %c0_34] : memref<2x1024xf32, #tpu.memory_space<vmem>>, vector<2x1024xf32>
    tpu.vector_store %arg14[%c0_33, %c0_34], %35 {strides = array<i32>} : memref<2x1024xf32, #tpu.memory_space<vmem>>, vector<2x1024xf32>,
    return
  }
}

module attributes {stable_mosaic.version = 11 : i64} {
  func.func @_conv_s1_kernel(%arg0: i32, %arg1: i32, %arg2: memref<1x1x1x1x128xf32, #tpu.memory_space<vmem>>, %arg3: memref<1x128x64xf32, #tpu.memory_space<vmem>>, %arg4: memref<1x1x64xf32, #tpu.memory_space<vmem>>, %arg5: memref<1x1x1x64xf32, #tpu.memory_space<vmem>>, %arg6: memref<1x128xf32, #tpu.memory_space<vmem>>) attributes {dimension_semantics = [#tpu.dimension_semantics<parallel>, #tpu.dimension_semantics<parallel>], iteration_bounds = array<i64: 1, 2>, scalar_prefetch = 0 : i64, scratch_operands = 1 : i64, tpu.core_type = #tpu.core_type<tc>, window_params = [{transform_indices = @transform_0, window_bounds = array<i64: 1, 1, 1, 1, 128>}, {transform_indices = @transform_1, window_bounds = array<i64: 1, 128, 64>}, {transform_indices = @transform_2, window_bounds = array<i64: 1, 1, 64>}, {transform_indices = @transform_3, window_bounds = array<i64: 1, 1, 1, 64>}]} {
    %c0 = arith.constant 0 : index
    %c0_0 = arith.constant 0 : index
    %c0_1 = arith.constant 0 : index
    %c0_2 = arith.constant 0 : index
    %c0_3 = arith.constant 0 : index
    %0 = vector.load %arg2[%c0, %c0_0, %c0_1, %c0_2, %c0_3] : memref<1x1x1x1x128xf32, #tpu.memory_space<vmem>>, vector<1x1x1x1x128xf32>
    %1 = vector.shape_cast %0 : vector<1x1x1x1x128xf32> to vector<1x128xf32>
    %c0_4 = arith.constant 0 : index
    %c0_5 = arith.constant 0 : index
    %2 = vector.load %arg6[%c0_4, %c0_5] : memref<1x128xf32, #tpu.memory_space<vmem>>, vector<1x128xf32>
    tpu.vector_store %arg6[%c0_4, %c0_5], %1 {strides = array<i32>} : memref<1x128xf32, #tpu.memory_space<vmem>>, vector<1x128xf32>,
    %c0_6 = arith.constant 0 : index
    %c0_7 = arith.constant 0 : index
    %3 = vector.load %arg6[%c0_6, %c0_7] : memref<1x128xf32, #tpu.memory_space<vmem>>, vector<1x128xf32>
    %c0_8 = arith.constant 0 : index
    %c0_9 = arith.constant 0 : index
    %c0_10 = arith.constant 0 : index
    %4 = vector.load %arg3[%c0_8, %c0_9, %c0_10] : memref<1x128x64xf32, #tpu.memory_space<vmem>>, vector<1x128x64xf32>
    %5 = vector.shape_cast %4 : vector<1x128x64xf32> to vector<128x64xf32>
    %cst = arith.constant dense<0.000000e+00> : vector<1x64xf32>
    %6 = tpu.matmul %3, %5, %cst {dimension_numbers = #tpu.dot_dimension_numbers<[1], [0], [0], [1], [0, 0, 1, 1], [], []>} : vector<1x128xf32>, vector<128x64xf32>, vector<1x64xf32> -> vector<1x64xf32>
    %c0_11 = arith.constant 0 : index
    %c0_12 = arith.constant 0 : index
    %c0_13 = arith.constant 0 : index
    %7 = vector.load %arg4[%c0_11, %c0_12, %c0_13] : memref<1x1x64xf32, #tpu.memory_space<vmem>>, vector<1x1x64xf32>
    %8 = vector.shape_cast %7 : vector<1x1x64xf32> to vector<1x64xf32>
    %9 = arith.addf %6, %8 : vector<1x64xf32>
    %cst_14 = arith.constant 0.000000e+00 : f32
    %10 = vector.broadcast %cst_14 : f32 to vector<1x64xf32>
    %11 = arith.maximumf %9, %10 : vector<1x64xf32>
    %c0_15 = arith.constant 0 : index
    %c0_16 = arith.constant 0 : index
    %c0_17 = arith.constant 0 : index
    %c0_18 = arith.constant 0 : index
    %12 = vector.load %arg5[%c0_15, %c0_16, %c0_17, %c0_18] : memref<1x1x1x64xf32, #tpu.memory_space<vmem>>, vector<1x1x1x64xf32>
    %13 = vector.shape_cast %12 : vector<1x1x1x64xf32> to vector<1x64xf32>
    %14 = vector.shape_cast %11 : vector<1x64xf32> to vector<1x1x1x64xf32>
    tpu.vector_store %arg5[%c0_15, %c0_16, %c0_17, %c0_18], %14 {strides = array<i32>} : memref<1x1x1x64xf32, #tpu.memory_space<vmem>>, vector<1x1x1x64xf32>,
    return
  }
  func.func @transform_0(%arg0: i32, %arg1: i32) -> (i32, i32, i32, i32, i32) {
    %c0_i32 = arith.constant 0 : i32
    %c0_i32_0 = arith.constant 0 : i32
    %c0_i32_1 = arith.constant 0 : i32
    %c0_i32_2 = arith.constant 0 : i32
    return %arg0, %arg1, %c0_i32, %c0_i32_0, %c0_i32_1 : i32, i32, i32, i32, i32
  }
  func.func @transform_1(%arg0: i32, %arg1: i32) -> (i32, i32, i32) {
    %c0_i32 = arith.constant 0 : i32
    %c0_i32_0 = arith.constant 0 : i32
    %c0_i32_1 = arith.constant 0 : i32
    return %arg0, %c0_i32, %c0_i32_0 : i32, i32, i32
  }
  func.func @transform_2(%arg0: i32, %arg1: i32) -> (i32, i32, i32) {
    %c0_i32 = arith.constant 0 : i32
    %c0_i32_0 = arith.constant 0 : i32
    %c0_i32_1 = arith.constant 0 : i32
    return %arg0, %c0_i32, %c0_i32_0 : i32, i32, i32
  }
  func.func @transform_3(%arg0: i32, %arg1: i32) -> (i32, i32, i32, i32) {
    %c0_i32 = arith.constant 0 : i32
    %c0_i32_0 = arith.constant 0 : i32
    %c0_i32_1 = arith.constant 0 : i32
    return %arg0, %arg1, %c0_i32, %c0_i32_0 : i32, i32, i32, i32
  }
}

module attributes {stable_mosaic.version = 11 : i64} {
  func.func @_conv_s1_kernel(%arg0: i32, %arg1: i32, %arg2: memref<1x1x5x5x64xf32, #tpu.memory_space<vmem>>, %arg3: memref<1x256x32xf32, #tpu.memory_space<vmem>>, %arg4: memref<1x1x32xf32, #tpu.memory_space<vmem>>, %arg5: memref<1x1x16x32xf32, #tpu.memory_space<vmem>>, %arg6: memref<16x256xf32, #tpu.memory_space<vmem>>) attributes {dimension_semantics = [#tpu.dimension_semantics<parallel>, #tpu.dimension_semantics<parallel>], iteration_bounds = array<i64: 4, 2>, scalar_prefetch = 0 : i64, scratch_operands = 1 : i64, tpu.core_type = #tpu.core_type<tc>, window_params = [{transform_indices = @transform_0, window_bounds = array<i64: 1, 1, 5, 5, 64>}, {transform_indices = @transform_1, window_bounds = array<i64: 1, 256, 32>}, {transform_indices = @transform_2, window_bounds = array<i64: 1, 1, 32>}, {transform_indices = @transform_3, window_bounds = array<i64: 1, 1, 16, 32>}]} {
    %c0 = arith.constant 0 : index
    %c0_0 = arith.constant 0 : index
    %c0_1 = arith.constant 0 : index
    %c0_2 = arith.constant 0 : index
    %c0_3 = arith.constant 0 : index
    %0 = vector.load %arg2[%c0, %c0_0, %c0_1, %c0_2, %c0_3] : memref<1x1x5x5x64xf32, #tpu.memory_space<vmem>>, vector<1x1x1x4x64xf32>
    %1 = vector.shape_cast %0 : vector<1x1x1x4x64xf32> to vector<4x64xf32>
    %c0_4 = arith.constant 0 : index
    %c0_5 = arith.constant 0 : index
    %2 = vector.load %arg6[%c0_4, %c0_5] : memref<16x256xf32, #tpu.memory_space<vmem>>, vector<4x64xf32>
    tpu.vector_store %arg6[%c0_4, %c0_5], %1 {strides = array<i32>} : memref<16x256xf32, #tpu.memory_space<vmem>>, vector<4x64xf32>,
    %c0_6 = arith.constant 0 : index
    %c0_7 = arith.constant 0 : index
    %c0_8 = arith.constant 0 : index
    %c1 = arith.constant 1 : index
    %c0_9 = arith.constant 0 : index
    %3 = vector.load %arg2[%c0_6, %c0_7, %c0_8, %c1, %c0_9] : memref<1x1x5x5x64xf32, #tpu.memory_space<vmem>>, vector<1x1x1x4x64xf32>
    %4 = vector.shape_cast %3 : vector<1x1x1x4x64xf32> to vector<4x64xf32>
    %c0_10 = arith.constant 0 : index
    %c64 = arith.constant 64 : index
    %5 = vector.load %arg6[%c0_10, %c64] : memref<16x256xf32, #tpu.memory_space<vmem>>, vector<4x64xf32>
    tpu.vector_store %arg6[%c0_10, %c64], %4 {strides = array<i32>} : memref<16x256xf32, #tpu.memory_space<vmem>>, vector<4x64xf32>,
    %c0_11 = arith.constant 0 : index
    %c0_12 = arith.constant 0 : index
    %c1_13 = arith.constant 1 : index
    %c0_14 = arith.constant 0 : index
    %c0_15 = arith.constant 0 : index
    %6 = vector.load %arg2[%c0_11, %c0_12, %c1_13, %c0_14, %c0_15] : memref<1x1x5x5x64xf32, #tpu.memory_space<vmem>>, vector<1x1x1x4x64xf32>
    %7 = vector.shape_cast %6 : vector<1x1x1x4x64xf32> to vector<4x64xf32>
    %c0_16 = arith.constant 0 : index
    %c128 = arith.constant 128 : index
    %8 = vector.load %arg6[%c0_16, %c128] : memref<16x256xf32, #tpu.memory_space<vmem>>, vector<4x64xf32>
    tpu.vector_store %arg6[%c0_16, %c128], %7 {strides = array<i32>} : memref<16x256xf32, #tpu.memory_space<vmem>>, vector<4x64xf32>,
    %c0_17 = arith.constant 0 : index
    %c0_18 = arith.constant 0 : index
    %c1_19 = arith.constant 1 : index
    %c1_20 = arith.constant 1 : index
    %c0_21 = arith.constant 0 : index
    %9 = vector.load %arg2[%c0_17, %c0_18, %c1_19, %c1_20, %c0_21] : memref<1x1x5x5x64xf32, #tpu.memory_space<vmem>>, vector<1x1x1x4x64xf32>
    %10 = vector.shape_cast %9 : vector<1x1x1x4x64xf32> to vector<4x64xf32>
    %c0_22 = arith.constant 0 : index
    %c192 = arith.constant 192 : index
    %11 = vector.load %arg6[%c0_22, %c192] : memref<16x256xf32, #tpu.memory_space<vmem>>, vector<4x64xf32>
    tpu.vector_store %arg6[%c0_22, %c192], %10 {strides = array<i32>} : memref<16x256xf32, #tpu.memory_space<vmem>>, vector<4x64xf32>,
    %c0_23 = arith.constant 0 : index
    %c0_24 = arith.constant 0 : index
    %c1_25 = arith.constant 1 : index
    %c0_26 = arith.constant 0 : index
    %c0_27 = arith.constant 0 : index
    %12 = vector.load %arg2[%c0_23, %c0_24, %c1_25, %c0_26, %c0_27] : memref<1x1x5x5x64xf32, #tpu.memory_space<vmem>>, vector<1x1x1x4x64xf32>
    %13 = vector.shape_cast %12 : vector<1x1x1x4x64xf32> to vector<4x64xf32>
    %c4 = arith.constant 4 : index
    %c0_28 = arith.constant 0 : index
    %14 = vector.load %arg6[%c4, %c0_28] : memref<16x256xf32, #tpu.memory_space<vmem>>, vector<4x64xf32>
    tpu.vector_store %arg6[%c4, %c0_28], %13 {strides = array<i32>} : memref<16x256xf32, #tpu.memory_space<vmem>>, vector<4x64xf32>,
    %c0_29 = arith.constant 0 : index
    %c0_30 = arith.constant 0 : index
    %c1_31 = arith.constant 1 : index
    %c1_32 = arith.constant 1 : index
    %c0_33 = arith.constant 0 : index
    %15 = vector.load %arg2[%c0_29, %c0_30, %c1_31, %c1_32, %c0_33] : memref<1x1x5x5x64xf32, #tpu.memory_space<vmem>>, vector<1x1x1x4x64xf32>
    %16 = vector.shape_cast %15 : vector<1x1x1x4x64xf32> to vector<4x64xf32>
    %c4_34 = arith.constant 4 : index
    %c64_35 = arith.constant 64 : index
    %17 = vector.load %arg6[%c4_34, %c64_35] : memref<16x256xf32, #tpu.memory_space<vmem>>, vector<4x64xf32>
    tpu.vector_store %arg6[%c4_34, %c64_35], %16 {strides = array<i32>} : memref<16x256xf32, #tpu.memory_space<vmem>>, vector<4x64xf32>,
    %c0_36 = arith.constant 0 : index
    %c0_37 = arith.constant 0 : index
    %c2 = arith.constant 2 : index
    %c0_38 = arith.constant 0 : index
    %c0_39 = arith.constant 0 : index
    %18 = vector.load %arg2[%c0_36, %c0_37, %c2, %c0_38, %c0_39] : memref<1x1x5x5x64xf32, #tpu.memory_space<vmem>>, vector<1x1x1x4x64xf32>
    %19 = vector.shape_cast %18 : vector<1x1x1x4x64xf32> to vector<4x64xf32>
    %c4_40 = arith.constant 4 : index
    %c128_41 = arith.constant 128 : index
    %20 = vector.load %arg6[%c4_40, %c128_41] : memref<16x256xf32, #tpu.memory_space<vmem>>, vector<4x64xf32>
    tpu.vector_store %arg6[%c4_40, %c128_41], %19 {strides = array<i32>} : memref<16x256xf32, #tpu.memory_space<vmem>>, vector<4x64xf32>,
    %c0_42 = arith.constant 0 : index
    %c0_43 = arith.constant 0 : index
    %c2_44 = arith.constant 2 : index
    %c1_45 = arith.constant 1 : index
    %c0_46 = arith.constant 0 : index
    %21 = vector.load %arg2[%c0_42, %c0_43, %c2_44, %c1_45, %c0_46] : memref<1x1x5x5x64xf32, #tpu.memory_space<vmem>>, vector<1x1x1x4x64xf32>
    %22 = vector.shape_cast %21 : vector<1x1x1x4x64xf32> to vector<4x64xf32>
    %c4_47 = arith.constant 4 : index
    %c192_48 = arith.constant 192 : index
    %23 = vector.load %arg6[%c4_47, %c192_48] : memref<16x256xf32, #tpu.memory_space<vmem>>, vector<4x64xf32>
    tpu.vector_store %arg6[%c4_47, %c192_48], %22 {strides = array<i32>} : memref<16x256xf32, #tpu.memory_space<vmem>>, vector<4x64xf32>,
    %c0_49 = arith.constant 0 : index
    %c0_50 = arith.constant 0 : index
    %c2_51 = arith.constant 2 : index
    %c0_52 = arith.constant 0 : index
    %c0_53 = arith.constant 0 : index
    %24 = vector.load %arg2[%c0_49, %c0_50, %c2_51, %c0_52, %c0_53] : memref<1x1x5x5x64xf32, #tpu.memory_space<vmem>>, vector<1x1x1x4x64xf32>
    %25 = vector.shape_cast %24 : vector<1x1x1x4x64xf32> to vector<4x64xf32>
    %c8 = arith.constant 8 : index
    %c0_54 = arith.constant 0 : index
    %26 = vector.load %arg6[%c8, %c0_54] : memref<16x256xf32, #tpu.memory_space<vmem>>, vector<4x64xf32>
    tpu.vector_store %arg6[%c8, %c0_54], %25 {strides = array<i32>} : memref<16x256xf32, #tpu.memory_space<vmem>>, vector<4x64xf32>,
    %c0_55 = arith.constant 0 : index
    %c0_56 = arith.constant 0 : index
    %c2_57 = arith.constant 2 : index
    %c1_58 = arith.constant 1 : index
    %c0_59 = arith.constant 0 : index
    %27 = vector.load %arg2[%c0_55, %c0_56, %c2_57, %c1_58, %c0_59] : memref<1x1x5x5x64xf32, #tpu.memory_space<vmem>>, vector<1x1x1x4x64xf32>
    %28 = vector.shape_cast %27 : vector<1x1x1x4x64xf32> to vector<4x64xf32>
    %c8_60 = arith.constant 8 : index
    %c64_61 = arith.constant 64 : index
    %29 = vector.load %arg6[%c8_60, %c64_61] : memref<16x256xf32, #tpu.memory_space<vmem>>, vector<4x64xf32>
    tpu.vector_store %arg6[%c8_60, %c64_61], %28 {strides = array<i32>} : memref<16x256xf32, #tpu.memory_space<vmem>>, vector<4x64xf32>,
    %c0_62 = arith.constant 0 : index
    %c0_63 = arith.constant 0 : index
    %c3 = arith.constant 3 : index
    %c0_64 = arith.constant 0 : index
    %c0_65 = arith.constant 0 : index
    %30 = vector.load %arg2[%c0_62, %c0_63, %c3, %c0_64, %c0_65] : memref<1x1x5x5x64xf32, #tpu.memory_space<vmem>>, vector<1x1x1x4x64xf32>
    %31 = vector.shape_cast %30 : vector<1x1x1x4x64xf32> to vector<4x64xf32>
    %c8_66 = arith.constant 8 : index
    %c128_67 = arith.constant 128 : index
    %32 = vector.load %arg6[%c8_66, %c128_67] : memref<16x256xf32, #tpu.memory_space<vmem>>, vector<4x64xf32>
    tpu.vector_store %arg6[%c8_66, %c128_67], %31 {strides = array<i32>} : memref<16x256xf32, #tpu.memory_space<vmem>>, vector<4x64xf32>,
    %c0_68 = arith.constant 0 : index
    %c0_69 = arith.constant 0 : index
    %c3_70 = arith.constant 3 : index
    %c1_71 = arith.constant 1 : index
    %c0_72 = arith.constant 0 : index
    %33 = vector.load %arg2[%c0_68, %c0_69, %c3_70, %c1_71, %c0_72] : memref<1x1x5x5x64xf32, #tpu.memory_space<vmem>>, vector<1x1x1x4x64xf32>
    %34 = vector.shape_cast %33 : vector<1x1x1x4x64xf32> to vector<4x64xf32>
    %c8_73 = arith.constant 8 : index
    %c192_74 = arith.constant 192 : index
    %35 = vector.load %arg6[%c8_73, %c192_74] : memref<16x256xf32, #tpu.memory_space<vmem>>, vector<4x64xf32>
    tpu.vector_store %arg6[%c8_73, %c192_74], %34 {strides = array<i32>} : memref<16x256xf32, #tpu.memory_space<vmem>>, vector<4x64xf32>,
    %c0_75 = arith.constant 0 : index
    %c0_76 = arith.constant 0 : index
    %c3_77 = arith.constant 3 : index
    %c0_78 = arith.constant 0 : index
    %c0_79 = arith.constant 0 : index
    %36 = vector.load %arg2[%c0_75, %c0_76, %c3_77, %c0_78, %c0_79] : memref<1x1x5x5x64xf32, #tpu.memory_space<vmem>>, vector<1x1x1x4x64xf32>
    %37 = vector.shape_cast %36 : vector<1x1x1x4x64xf32> to vector<4x64xf32>
    %c12 = arith.constant 12 : index
    %c0_80 = arith.constant 0 : index
    %38 = vector.load %arg6[%c12, %c0_80] : memref<16x256xf32, #tpu.memory_space<vmem>>, vector<4x64xf32>
    tpu.vector_store %arg6[%c12, %c0_80], %37 {strides = array<i32>} : memref<16x256xf32, #tpu.memory_space<vmem>>, vector<4x64xf32>,
    %c0_81 = arith.constant 0 : index
    %c0_82 = arith.constant 0 : index
    %c3_83 = arith.constant 3 : index
    %c1_84 = arith.constant 1 : index
    %c0_85 = arith.constant 0 : index
    %39 = vector.load %arg2[%c0_81, %c0_82, %c3_83, %c1_84, %c0_85] : memref<1x1x5x5x64xf32, #tpu.memory_space<vmem>>, vector<1x1x1x4x64xf32>
    %40 = vector.shape_cast %39 : vector<1x1x1x4x64xf32> to vector<4x64xf32>
    %c12_86 = arith.constant 12 : index
    %c64_87 = arith.constant 64 : index
    %41 = vector.load %arg6[%c12_86, %c64_87] : memref<16x256xf32, #tpu.memory_space<vmem>>, vector<4x64xf32>
    tpu.vector_store %arg6[%c12_86, %c64_87], %40 {strides = array<i32>} : memref<16x256xf32, #tpu.memory_space<vmem>>, vector<4x64xf32>,
    %c0_88 = arith.constant 0 : index
    %c0_89 = arith.constant 0 : index
    %c4_90 = arith.constant 4 : index
    %c0_91 = arith.constant 0 : index
    %c0_92 = arith.constant 0 : index
    %42 = vector.load %arg2[%c0_88, %c0_89, %c4_90, %c0_91, %c0_92] : memref<1x1x5x5x64xf32, #tpu.memory_space<vmem>>, vector<1x1x1x4x64xf32>
    %43 = vector.shape_cast %42 : vector<1x1x1x4x64xf32> to vector<4x64xf32>
    %c12_93 = arith.constant 12 : index
    %c128_94 = arith.constant 128 : index
    %44 = vector.load %arg6[%c12_93, %c128_94] : memref<16x256xf32, #tpu.memory_space<vmem>>, vector<4x64xf32>
    tpu.vector_store %arg6[%c12_93, %c128_94], %43 {strides = array<i32>} : memref<16x256xf32, #tpu.memory_space<vmem>>, vector<4x64xf32>,
    %c0_95 = arith.constant 0 : index
    %c0_96 = arith.constant 0 : index
    %c4_97 = arith.constant 4 : index
    %c1_98 = arith.constant 1 : index
    %c0_99 = arith.constant 0 : index
    %45 = vector.load %arg2[%c0_95, %c0_96, %c4_97, %c1_98, %c0_99] : memref<1x1x5x5x64xf32, #tpu.memory_space<vmem>>, vector<1x1x1x4x64xf32>
    %46 = vector.shape_cast %45 : vector<1x1x1x4x64xf32> to vector<4x64xf32>
    %c12_100 = arith.constant 12 : index
    %c192_101 = arith.constant 192 : index
    %47 = vector.load %arg6[%c12_100, %c192_101] : memref<16x256xf32, #tpu.memory_space<vmem>>, vector<4x64xf32>
    tpu.vector_store %arg6[%c12_100, %c192_101], %46 {strides = array<i32>} : memref<16x256xf32, #tpu.memory_space<vmem>>, vector<4x64xf32>,
    %c0_102 = arith.constant 0 : index
    %c0_103 = arith.constant 0 : index
    %48 = vector.load %arg6[%c0_102, %c0_103] : memref<16x256xf32, #tpu.memory_space<vmem>>, vector<16x256xf32>
    %c0_104 = arith.constant 0 : index
    %c0_105 = arith.constant 0 : index
    %c0_106 = arith.constant 0 : index
    %49 = vector.load %arg3[%c0_104, %c0_105, %c0_106] : memref<1x256x32xf32, #tpu.memory_space<vmem>>, vector<1x256x32xf32>
    %50 = vector.shape_cast %49 : vector<1x256x32xf32> to vector<256x32xf32>
    %cst = arith.constant dense<0.000000e+00> : vector<16x32xf32>
    %51 = tpu.matmul %48, %50, %cst {dimension_numbers = #tpu.dot_dimension_numbers<[1], [0], [0], [1], [0, 0, 1, 1], [], []>} : vector<16x256xf32>, vector<256x32xf32>, vector<16x32xf32> -> vector<16x32xf32>
    %c0_107 = arith.constant 0 : index
    %c0_108 = arith.constant 0 : index
    %c0_109 = arith.constant 0 : index
    %52 = vector.load %arg4[%c0_107, %c0_108, %c0_109] : memref<1x1x32xf32, #tpu.memory_space<vmem>>, vector<1x1x32xf32>
    %53 = vector.shape_cast %52 : vector<1x1x32xf32> to vector<1x32xf32>
    %54 = vector.broadcast %53 : vector<1x32xf32> to vector<16x32xf32>
    %55 = arith.addf %51, %54 : vector<16x32xf32>
    %cst_110 = arith.constant 0.000000e+00 : f32
    %56 = vector.broadcast %cst_110 : f32 to vector<16x32xf32>
    %57 = arith.maximumf %55, %56 : vector<16x32xf32>
    %c0_111 = arith.constant 0 : index
    %c0_112 = arith.constant 0 : index
    %c0_113 = arith.constant 0 : index
    %c0_114 = arith.constant 0 : index
    %58 = vector.load %arg5[%c0_111, %c0_112, %c0_113, %c0_114] : memref<1x1x16x32xf32, #tpu.memory_space<vmem>>, vector<1x1x16x32xf32>
    %59 = vector.shape_cast %58 : vector<1x1x16x32xf32> to vector<16x32xf32>
    %60 = vector.shape_cast %57 : vector<16x32xf32> to vector<1x1x16x32xf32>
    tpu.vector_store %arg5[%c0_111, %c0_112, %c0_113, %c0_114], %60 {strides = array<i32>} : memref<1x1x16x32xf32, #tpu.memory_space<vmem>>, vector<1x1x16x32xf32>,
    return
  }
  func.func @transform_0(%arg0: i32, %arg1: i32) -> (i32, i32, i32, i32, i32) {
    %c0_i32 = arith.constant 0 : i32
    %c0_i32_0 = arith.constant 0 : i32
    %c0_i32_1 = arith.constant 0 : i32
    %c0_i32_2 = arith.constant 0 : i32
    return %arg0, %arg1, %c0_i32, %c0_i32_0, %c0_i32_1 : i32, i32, i32, i32, i32
  }
  func.func @transform_1(%arg0: i32, %arg1: i32) -> (i32, i32, i32) {
    %c0_i32 = arith.constant 0 : i32
    %c0_i32_0 = arith.constant 0 : i32
    %c0_i32_1 = arith.constant 0 : i32
    return %arg0, %c0_i32, %c0_i32_0 : i32, i32, i32
  }
  func.func @transform_2(%arg0: i32, %arg1: i32) -> (i32, i32, i32) {
    %c0_i32 = arith.constant 0 : i32
    %c0_i32_0 = arith.constant 0 : i32
    %c0_i32_1 = arith.constant 0 : i32
    return %arg0, %c0_i32, %c0_i32_0 : i32, i32, i32
  }
  func.func @transform_3(%arg0: i32, %arg1: i32) -> (i32, i32, i32, i32) {
    %c0_i32 = arith.constant 0 : i32
    %c0_i32_0 = arith.constant 0 : i32
    %c0_i32_1 = arith.constant 0 : i32
    return %arg0, %arg1, %c0_i32, %c0_i32_0 : i32, i32, i32, i32
  }
}

module attributes {stable_mosaic.version = 11 : i64} {
  func.func @_conv_s1_kernel(%arg0: i32, %arg1: i32, %arg2: memref<1x1x9x9x32xf32, #tpu.memory_space<vmem>>, %arg3: memref<1x128x16xf32, #tpu.memory_space<vmem>>, %arg4: memref<1x1x16xf32, #tpu.memory_space<vmem>>, %arg5: memref<1x1x64x16xf32, #tpu.memory_space<vmem>>, %arg6: memref<64x128xf32, #tpu.memory_space<vmem>>) attributes {dimension_semantics = [#tpu.dimension_semantics<parallel>, #tpu.dimension_semantics<parallel>], iteration_bounds = array<i64: 4, 2>, scalar_prefetch = 0 : i64, scratch_operands = 1 : i64, tpu.core_type = #tpu.core_type<tc>, window_params = [{transform_indices = @transform_0, window_bounds = array<i64: 1, 1, 9, 9, 32>}, {transform_indices = @transform_1, window_bounds = array<i64: 1, 128, 16>}, {transform_indices = @transform_2, window_bounds = array<i64: 1, 1, 16>}, {transform_indices = @transform_3, window_bounds = array<i64: 1, 1, 64, 16>}]} {
    %c0 = arith.constant 0 : index
    %c0_0 = arith.constant 0 : index
    %c0_1 = arith.constant 0 : index
    %c0_2 = arith.constant 0 : index
    %c0_3 = arith.constant 0 : index
    %0 = vector.load %arg2[%c0, %c0_0, %c0_1, %c0_2, %c0_3] : memref<1x1x9x9x32xf32, #tpu.memory_space<vmem>>, vector<1x1x1x8x32xf32>
    %1 = vector.shape_cast %0 : vector<1x1x1x8x32xf32> to vector<8x32xf32>
    %c0_4 = arith.constant 0 : index
    %c0_5 = arith.constant 0 : index
    %2 = vector.load %arg6[%c0_4, %c0_5] : memref<64x128xf32, #tpu.memory_space<vmem>>, vector<8x32xf32>
    tpu.vector_store %arg6[%c0_4, %c0_5], %1 {strides = array<i32>} : memref<64x128xf32, #tpu.memory_space<vmem>>, vector<8x32xf32>,
    %c0_6 = arith.constant 0 : index
    %c0_7 = arith.constant 0 : index
    %c0_8 = arith.constant 0 : index
    %c1 = arith.constant 1 : index
    %c0_9 = arith.constant 0 : index
    %3 = vector.load %arg2[%c0_6, %c0_7, %c0_8, %c1, %c0_9] : memref<1x1x9x9x32xf32, #tpu.memory_space<vmem>>, vector<1x1x1x8x32xf32>
    %4 = vector.shape_cast %3 : vector<1x1x1x8x32xf32> to vector<8x32xf32>
    %c0_10 = arith.constant 0 : index
    %c32 = arith.constant 32 : index
    %5 = vector.load %arg6[%c0_10, %c32] : memref<64x128xf32, #tpu.memory_space<vmem>>, vector<8x32xf32>
    tpu.vector_store %arg6[%c0_10, %c32], %4 {strides = array<i32>} : memref<64x128xf32, #tpu.memory_space<vmem>>, vector<8x32xf32>,
    %c0_11 = arith.constant 0 : index
    %c0_12 = arith.constant 0 : index
    %c1_13 = arith.constant 1 : index
    %c0_14 = arith.constant 0 : index
    %c0_15 = arith.constant 0 : index
    %6 = vector.load %arg2[%c0_11, %c0_12, %c1_13, %c0_14, %c0_15] : memref<1x1x9x9x32xf32, #tpu.memory_space<vmem>>, vector<1x1x1x8x32xf32>
    %7 = vector.shape_cast %6 : vector<1x1x1x8x32xf32> to vector<8x32xf32>
    %c0_16 = arith.constant 0 : index
    %c64 = arith.constant 64 : index
    %8 = vector.load %arg6[%c0_16, %c64] : memref<64x128xf32, #tpu.memory_space<vmem>>, vector<8x32xf32>
    tpu.vector_store %arg6[%c0_16, %c64], %7 {strides = array<i32>} : memref<64x128xf32, #tpu.memory_space<vmem>>, vector<8x32xf32>,
    %c0_17 = arith.constant 0 : index
    %c0_18 = arith.constant 0 : index
    %c1_19 = arith.constant 1 : index
    %c1_20 = arith.constant 1 : index
    %c0_21 = arith.constant 0 : index
    %9 = vector.load %arg2[%c0_17, %c0_18, %c1_19, %c1_20, %c0_21] : memref<1x1x9x9x32xf32, #tpu.memory_space<vmem>>, vector<1x1x1x8x32xf32>
    %10 = vector.shape_cast %9 : vector<1x1x1x8x32xf32> to vector<8x32xf32>
    %c0_22 = arith.constant 0 : index
    %c96 = arith.constant 96 : index
    %11 = vector.load %arg6[%c0_22, %c96] : memref<64x128xf32, #tpu.memory_space<vmem>>, vector<8x32xf32>
    tpu.vector_store %arg6[%c0_22, %c96], %10 {strides = array<i32>} : memref<64x128xf32, #tpu.memory_space<vmem>>, vector<8x32xf32>,
    %c0_23 = arith.constant 0 : index
    %c0_24 = arith.constant 0 : index
    %c1_25 = arith.constant 1 : index
    %c0_26 = arith.constant 0 : index
    %c0_27 = arith.constant 0 : index
    %12 = vector.load %arg2[%c0_23, %c0_24, %c1_25, %c0_26, %c0_27] : memref<1x1x9x9x32xf32, #tpu.memory_space<vmem>>, vector<1x1x1x8x32xf32>
    %13 = vector.shape_cast %12 : vector<1x1x1x8x32xf32> to vector<8x32xf32>
    %c8 = arith.constant 8 : index
    %c0_28 = arith.constant 0 : index
    %14 = vector.load %arg6[%c8, %c0_28] : memref<64x128xf32, #tpu.memory_space<vmem>>, vector<8x32xf32>
    tpu.vector_store %arg6[%c8, %c0_28], %13 {strides = array<i32>} : memref<64x128xf32, #tpu.memory_space<vmem>>, vector<8x32xf32>,
    %c0_29 = arith.constant 0 : index
    %c0_30 = arith.constant 0 : index
    %c1_31 = arith.constant 1 : index
    %c1_32 = arith.constant 1 : index
    %c0_33 = arith.constant 0 : index
    %15 = vector.load %arg2[%c0_29, %c0_30, %c1_31, %c1_32, %c0_33] : memref<1x1x9x9x32xf32, #tpu.memory_space<vmem>>, vector<1x1x1x8x32xf32>
    %16 = vector.shape_cast %15 : vector<1x1x1x8x32xf32> to vector<8x32xf32>
    %c8_34 = arith.constant 8 : index
    %c32_35 = arith.constant 32 : index
    %17 = vector.load %arg6[%c8_34, %c32_35] : memref<64x128xf32, #tpu.memory_space<vmem>>, vector<8x32xf32>
    tpu.vector_store %arg6[%c8_34, %c32_35], %16 {strides = array<i32>} : memref<64x128xf32, #tpu.memory_space<vmem>>, vector<8x32xf32>,
    %c0_36 = arith.constant 0 : index
    %c0_37 = arith.constant 0 : index
    %c2 = arith.constant 2 : index
    %c0_38 = arith.constant 0 : index
    %c0_39 = arith.constant 0 : index
    %18 = vector.load %arg2[%c0_36, %c0_37, %c2, %c0_38, %c0_39] : memref<1x1x9x9x32xf32, #tpu.memory_space<vmem>>, vector<1x1x1x8x32xf32>
    %19 = vector.shape_cast %18 : vector<1x1x1x8x32xf32> to vector<8x32xf32>
    %c8_40 = arith.constant 8 : index
    %c64_41 = arith.constant 64 : index
    %20 = vector.load %arg6[%c8_40, %c64_41] : memref<64x128xf32, #tpu.memory_space<vmem>>, vector<8x32xf32>
    tpu.vector_store %arg6[%c8_40, %c64_41], %19 {strides = array<i32>} : memref<64x128xf32, #tpu.memory_space<vmem>>, vector<8x32xf32>,
    %c0_42 = arith.constant 0 : index
    %c0_43 = arith.constant 0 : index
    %c2_44 = arith.constant 2 : index
    %c1_45 = arith.constant 1 : index
    %c0_46 = arith.constant 0 : index
    %21 = vector.load %arg2[%c0_42, %c0_43, %c2_44, %c1_45, %c0_46] : memref<1x1x9x9x32xf32, #tpu.memory_space<vmem>>, vector<1x1x1x8x32xf32>
    %22 = vector.shape_cast %21 : vector<1x1x1x8x32xf32> to vector<8x32xf32>
    %c8_47 = arith.constant 8 : index
    %c96_48 = arith.constant 96 : index
    %23 = vector.load %arg6[%c8_47, %c96_48] : memref<64x128xf32, #tpu.memory_space<vmem>>, vector<8x32xf32>
    tpu.vector_store %arg6[%c8_47, %c96_48], %22 {strides = array<i32>} : memref<64x128xf32, #tpu.memory_space<vmem>>, vector<8x32xf32>,
    %c0_49 = arith.constant 0 : index
    %c0_50 = arith.constant 0 : index
    %c2_51 = arith.constant 2 : index
    %c0_52 = arith.constant 0 : index
    %c0_53 = arith.constant 0 : index
    %24 = vector.load %arg2[%c0_49, %c0_50, %c2_51, %c0_52, %c0_53] : memref<1x1x9x9x32xf32, #tpu.memory_space<vmem>>, vector<1x1x1x8x32xf32>
    %25 = vector.shape_cast %24 : vector<1x1x1x8x32xf32> to vector<8x32xf32>
    %c16 = arith.constant 16 : index
    %c0_54 = arith.constant 0 : index
    %26 = vector.load %arg6[%c16, %c0_54] : memref<64x128xf32, #tpu.memory_space<vmem>>, vector<8x32xf32>
    tpu.vector_store %arg6[%c16, %c0_54], %25 {strides = array<i32>} : memref<64x128xf32, #tpu.memory_space<vmem>>, vector<8x32xf32>,
    %c0_55 = arith.constant 0 : index
    %c0_56 = arith.constant 0 : index
    %c2_57 = arith.constant 2 : index
    %c1_58 = arith.constant 1 : index
    %c0_59 = arith.constant 0 : index
    %27 = vector.load %arg2[%c0_55, %c0_56, %c2_57, %c1_58, %c0_59] : memref<1x1x9x9x32xf32, #tpu.memory_space<vmem>>, vector<1x1x1x8x32xf32>
    %28 = vector.shape_cast %27 : vector<1x1x1x8x32xf32> to vector<8x32xf32>
    %c16_60 = arith.constant 16 : index
    %c32_61 = arith.constant 32 : index
    %29 = vector.load %arg6[%c16_60, %c32_61] : memref<64x128xf32, #tpu.memory_space<vmem>>, vector<8x32xf32>
    tpu.vector_store %arg6[%c16_60, %c32_61], %28 {strides = array<i32>} : memref<64x128xf32, #tpu.memory_space<vmem>>, vector<8x32xf32>,
    %c0_62 = arith.constant 0 : index
    %c0_63 = arith.constant 0 : index
    %c3 = arith.constant 3 : index
    %c0_64 = arith.constant 0 : index
    %c0_65 = arith.constant 0 : index
    %30 = vector.load %arg2[%c0_62, %c0_63, %c3, %c0_64, %c0_65] : memref<1x1x9x9x32xf32, #tpu.memory_space<vmem>>, vector<1x1x1x8x32xf32>
    %31 = vector.shape_cast %30 : vector<1x1x1x8x32xf32> to vector<8x32xf32>
    %c16_66 = arith.constant 16 : index
    %c64_67 = arith.constant 64 : index
    %32 = vector.load %arg6[%c16_66, %c64_67] : memref<64x128xf32, #tpu.memory_space<vmem>>, vector<8x32xf32>
    tpu.vector_store %arg6[%c16_66, %c64_67], %31 {strides = array<i32>} : memref<64x128xf32, #tpu.memory_space<vmem>>, vector<8x32xf32>,
    %c0_68 = arith.constant 0 : index
    %c0_69 = arith.constant 0 : index
    %c3_70 = arith.constant 3 : index
    %c1_71 = arith.constant 1 : index
    %c0_72 = arith.constant 0 : index
    %33 = vector.load %arg2[%c0_68, %c0_69, %c3_70, %c1_71, %c0_72] : memref<1x1x9x9x32xf32, #tpu.memory_space<vmem>>, vector<1x1x1x8x32xf32>
    %34 = vector.shape_cast %33 : vector<1x1x1x8x32xf32> to vector<8x32xf32>
    %c16_73 = arith.constant 16 : index
    %c96_74 = arith.constant 96 : index
    %35 = vector.load %arg6[%c16_73, %c96_74] : memref<64x128xf32, #tpu.memory_space<vmem>>, vector<8x32xf32>
    tpu.vector_store %arg6[%c16_73, %c96_74], %34 {strides = array<i32>} : memref<64x128xf32, #tpu.memory_space<vmem>>, vector<8x32xf32>,
    %c0_75 = arith.constant 0 : index
    %c0_76 = arith.constant 0 : index
    %c3_77 = arith.constant 3 : index
    %c0_78 = arith.constant 0 : index
    %c0_79 = arith.constant 0 : index
    %36 = vector.load %arg2[%c0_75, %c0_76, %c3_77, %c0_78, %c0_79] : memref<1x1x9x9x32xf32, #tpu.memory_space<vmem>>, vector<1x1x1x8x32xf32>
    %37 = vector.shape_cast %36 : vector<1x1x1x8x32xf32> to vector<8x32xf32>
    %c24 = arith.constant 24 : index
    %c0_80 = arith.constant 0 : index
    %38 = vector.load %arg6[%c24, %c0_80] : memref<64x128xf32, #tpu.memory_space<vmem>>, vector<8x32xf32>
    tpu.vector_store %arg6[%c24, %c0_80], %37 {strides = array<i32>} : memref<64x128xf32, #tpu.memory_space<vmem>>, vector<8x32xf32>,
    %c0_81 = arith.constant 0 : index
    %c0_82 = arith.constant 0 : index
    %c3_83 = arith.constant 3 : index
    %c1_84 = arith.constant 1 : index
    %c0_85 = arith.constant 0 : index
    %39 = vector.load %arg2[%c0_81, %c0_82, %c3_83, %c1_84, %c0_85] : memref<1x1x9x9x32xf32, #tpu.memory_space<vmem>>, vector<1x1x1x8x32xf32>
    %40 = vector.shape_cast %39 : vector<1x1x1x8x32xf32> to vector<8x32xf32>
    %c24_86 = arith.constant 24 : index
    %c32_87 = arith.constant 32 : index
    %41 = vector.load %arg6[%c24_86, %c32_87] : memref<64x128xf32, #tpu.memory_space<vmem>>, vector<8x32xf32>
    tpu.vector_store %arg6[%c24_86, %c32_87], %40 {strides = array<i32>} : memref<64x128xf32, #tpu.memory_space<vmem>>, vector<8x32xf32>,
    %c0_88 = arith.constant 0 : index
    %c0_89 = arith.constant 0 : index
    %c4 = arith.constant 4 : index
    %c0_90 = arith.constant 0 : index
    %c0_91 = arith.constant 0 : index
    %42 = vector.load %arg2[%c0_88, %c0_89, %c4, %c0_90, %c0_91] : memref<1x1x9x9x32xf32, #tpu.memory_space<vmem>>, vector<1x1x1x8x32xf32>
    %43 = vector.shape_cast %42 : vector<1x1x1x8x32xf32> to vector<8x32xf32>
    %c24_92 = arith.constant 24 : index
    %c64_93 = arith.constant 64 : index
    %44 = vector.load %arg6[%c24_92, %c64_93] : memref<64x128xf32, #tpu.memory_space<vmem>>, vector<8x32xf32>
    tpu.vector_store %arg6[%c24_92, %c64_93], %43 {strides = array<i32>} : memref<64x128xf32, #tpu.memory_space<vmem>>, vector<8x32xf32>,
    %c0_94 = arith.constant 0 : index
    %c0_95 = arith.constant 0 : index
    %c4_96 = arith.constant 4 : index
    %c1_97 = arith.constant 1 : index
    %c0_98 = arith.constant 0 : index
    %45 = vector.load %arg2[%c0_94, %c0_95, %c4_96, %c1_97, %c0_98] : memref<1x1x9x9x32xf32, #tpu.memory_space<vmem>>, vector<1x1x1x8x32xf32>
    %46 = vector.shape_cast %45 : vector<1x1x1x8x32xf32> to vector<8x32xf32>
    %c24_99 = arith.constant 24 : index
    %c96_100 = arith.constant 96 : index
    %47 = vector.load %arg6[%c24_99, %c96_100] : memref<64x128xf32, #tpu.memory_space<vmem>>, vector<8x32xf32>
    tpu.vector_store %arg6[%c24_99, %c96_100], %46 {strides = array<i32>} : memref<64x128xf32, #tpu.memory_space<vmem>>, vector<8x32xf32>,
    %c0_101 = arith.constant 0 : index
    %c0_102 = arith.constant 0 : index
    %c4_103 = arith.constant 4 : index
    %c0_104 = arith.constant 0 : index
    %c0_105 = arith.constant 0 : index
    %48 = vector.load %arg2[%c0_101, %c0_102, %c4_103, %c0_104, %c0_105] : memref<1x1x9x9x32xf32, #tpu.memory_space<vmem>>, vector<1x1x1x8x32xf32>
    %49 = vector.shape_cast %48 : vector<1x1x1x8x32xf32> to vector<8x32xf32>
    %c32_106 = arith.constant 32 : index
    %c0_107 = arith.constant 0 : index
    %50 = vector.load %arg6[%c32_106, %c0_107] : memref<64x128xf32, #tpu.memory_space<vmem>>, vector<8x32xf32>
    tpu.vector_store %arg6[%c32_106, %c0_107], %49 {strides = array<i32>} : memref<64x128xf32, #tpu.memory_space<vmem>>, vector<8x32xf32>,
    %c0_108 = arith.constant 0 : index
    %c0_109 = arith.constant 0 : index
    %c4_110 = arith.constant 4 : index
    %c1_111 = arith.constant 1 : index
    %c0_112 = arith.constant 0 : index
    %51 = vector.load %arg2[%c0_108, %c0_109, %c4_110, %c1_111, %c0_112] : memref<1x1x9x9x32xf32, #tpu.memory_space<vmem>>, vector<1x1x1x8x32xf32>
    %52 = vector.shape_cast %51 : vector<1x1x1x8x32xf32> to vector<8x32xf32>
    %c32_113 = arith.constant 32 : index
    %c32_114 = arith.constant 32 : index
    %53 = vector.load %arg6[%c32_113, %c32_114] : memref<64x128xf32, #tpu.memory_space<vmem>>, vector<8x32xf32>
    tpu.vector_store %arg6[%c32_113, %c32_114], %52 {strides = array<i32>} : memref<64x128xf32, #tpu.memory_space<vmem>>, vector<8x32xf32>,
    %c0_115 = arith.constant 0 : index
    %c0_116 = arith.constant 0 : index
    %c5 = arith.constant 5 : index
    %c0_117 = arith.constant 0 : index
    %c0_118 = arith.constant 0 : index
    %54 = vector.load %arg2[%c0_115, %c0_116, %c5, %c0_117, %c0_118] : memref<1x1x9x9x32xf32, #tpu.memory_space<vmem>>, vector<1x1x1x8x32xf32>
    %55 = vector.shape_cast %54 : vector<1x1x1x8x32xf32> to vector<8x32xf32>
    %c32_119 = arith.constant 32 : index
    %c64_120 = arith.constant 64 : index
    %56 = vector.load %arg6[%c32_119, %c64_120] : memref<64x128xf32, #tpu.memory_space<vmem>>, vector<8x32xf32>
    tpu.vector_store %arg6[%c32_119, %c64_120], %55 {strides = array<i32>} : memref<64x128xf32, #tpu.memory_space<vmem>>, vector<8x32xf32>,
    %c0_121 = arith.constant 0 : index
    %c0_122 = arith.constant 0 : index
    %c5_123 = arith.constant 5 : index
    %c1_124 = arith.constant 1 : index
    %c0_125 = arith.constant 0 : index
    %57 = vector.load %arg2[%c0_121, %c0_122, %c5_123, %c1_124, %c0_125] : memref<1x1x9x9x32xf32, #tpu.memory_space<vmem>>, vector<1x1x1x8x32xf32>
    %58 = vector.shape_cast %57 : vector<1x1x1x8x32xf32> to vector<8x32xf32>
    %c32_126 = arith.constant 32 : index
    %c96_127 = arith.constant 96 : index
    %59 = vector.load %arg6[%c32_126, %c96_127] : memref<64x128xf32, #tpu.memory_space<vmem>>, vector<8x32xf32>
    tpu.vector_store %arg6[%c32_126, %c96_127], %58 {strides = array<i32>} : memref<64x128xf32, #tpu.memory_space<vmem>>, vector<8x32xf32>,
    %c0_128 = arith.constant 0 : index
    %c0_129 = arith.constant 0 : index
    %c5_130 = arith.constant 5 : index
    %c0_131 = arith.constant 0 : index
    %c0_132 = arith.constant 0 : index
    %60 = vector.load %arg2[%c0_128, %c0_129, %c5_130, %c0_131, %c0_132] : memref<1x1x9x9x32xf32, #tpu.memory_space<vmem>>, vector<1x1x1x8x32xf32>
    %61 = vector.shape_cast %60 : vector<1x1x1x8x32xf32> to vector<8x32xf32>
    %c40 = arith.constant 40 : index
    %c0_133 = arith.constant 0 : index
    %62 = vector.load %arg6[%c40, %c0_133] : memref<64x128xf32, #tpu.memory_space<vmem>>, vector<8x32xf32>
    tpu.vector_store %arg6[%c40, %c0_133], %61 {strides = array<i32>} : memref<64x128xf32, #tpu.memory_space<vmem>>, vector<8x32xf32>,
    %c0_134 = arith.constant 0 : index
    %c0_135 = arith.constant 0 : index
    %c5_136 = arith.constant 5 : index
    %c1_137 = arith.constant 1 : index
    %c0_138 = arith.constant 0 : index
    %63 = vector.load %arg2[%c0_134, %c0_135, %c5_136, %c1_137, %c0_138] : memref<1x1x9x9x32xf32, #tpu.memory_space<vmem>>, vector<1x1x1x8x32xf32>
    %64 = vector.shape_cast %63 : vector<1x1x1x8x32xf32> to vector<8x32xf32>
    %c40_139 = arith.constant 40 : index
    %c32_140 = arith.constant 32 : index
    %65 = vector.load %arg6[%c40_139, %c32_140] : memref<64x128xf32, #tpu.memory_space<vmem>>, vector<8x32xf32>
    tpu.vector_store %arg6[%c40_139, %c32_140], %64 {strides = array<i32>} : memref<64x128xf32, #tpu.memory_space<vmem>>, vector<8x32xf32>,
    %c0_141 = arith.constant 0 : index
    %c0_142 = arith.constant 0 : index
    %c6 = arith.constant 6 : index
    %c0_143 = arith.constant 0 : index
    %c0_144 = arith.constant 0 : index
    %66 = vector.load %arg2[%c0_141, %c0_142, %c6, %c0_143, %c0_144] : memref<1x1x9x9x32xf32, #tpu.memory_space<vmem>>, vector<1x1x1x8x32xf32>
    %67 = vector.shape_cast %66 : vector<1x1x1x8x32xf32> to vector<8x32xf32>
    %c40_145 = arith.constant 40 : index
    %c64_146 = arith.constant 64 : index
    %68 = vector.load %arg6[%c40_145, %c64_146] : memref<64x128xf32, #tpu.memory_space<vmem>>, vector<8x32xf32>
    tpu.vector_store %arg6[%c40_145, %c64_146], %67 {strides = array<i32>} : memref<64x128xf32, #tpu.memory_space<vmem>>, vector<8x32xf32>,
    %c0_147 = arith.constant 0 : index
    %c0_148 = arith.constant 0 : index
    %c6_149 = arith.constant 6 : index
    %c1_150 = arith.constant 1 : index
    %c0_151 = arith.constant 0 : index
    %69 = vector.load %arg2[%c0_147, %c0_148, %c6_149, %c1_150, %c0_151] : memref<1x1x9x9x32xf32, #tpu.memory_space<vmem>>, vector<1x1x1x8x32xf32>
    %70 = vector.shape_cast %69 : vector<1x1x1x8x32xf32> to vector<8x32xf32>
    %c40_152 = arith.constant 40 : index
    %c96_153 = arith.constant 96 : index
    %71 = vector.load %arg6[%c40_152, %c96_153] : memref<64x128xf32, #tpu.memory_space<vmem>>, vector<8x32xf32>
    tpu.vector_store %arg6[%c40_152, %c96_153], %70 {strides = array<i32>} : memref<64x128xf32, #tpu.memory_space<vmem>>, vector<8x32xf32>,
    %c0_154 = arith.constant 0 : index
    %c0_155 = arith.constant 0 : index
    %c6_156 = arith.constant 6 : index
    %c0_157 = arith.constant 0 : index
    %c0_158 = arith.constant 0 : index
    %72 = vector.load %arg2[%c0_154, %c0_155, %c6_156, %c0_157, %c0_158] : memref<1x1x9x9x32xf32, #tpu.memory_space<vmem>>, vector<1x1x1x8x32xf32>
    %73 = vector.shape_cast %72 : vector<1x1x1x8x32xf32> to vector<8x32xf32>
    %c48 = arith.constant 48 : index
    %c0_159 = arith.constant 0 : index
    %74 = vector.load %arg6[%c48, %c0_159] : memref<64x128xf32, #tpu.memory_space<vmem>>, vector<8x32xf32>
    tpu.vector_store %arg6[%c48, %c0_159], %73 {strides = array<i32>} : memref<64x128xf32, #tpu.memory_space<vmem>>, vector<8x32xf32>,
    %c0_160 = arith.constant 0 : index
    %c0_161 = arith.constant 0 : index
    %c6_162 = arith.constant 6 : index
    %c1_163 = arith.constant 1 : index
    %c0_164 = arith.constant 0 : index
    %75 = vector.load %arg2[%c0_160, %c0_161, %c6_162, %c1_163, %c0_164] : memref<1x1x9x9x32xf32, #tpu.memory_space<vmem>>, vector<1x1x1x8x32xf32>
    %76 = vector.shape_cast %75 : vector<1x1x1x8x32xf32> to vector<8x32xf32>
    %c48_165 = arith.constant 48 : index
    %c32_166 = arith.constant 32 : index
    %77 = vector.load %arg6[%c48_165, %c32_166] : memref<64x128xf32, #tpu.memory_space<vmem>>, vector<8x32xf32>
    tpu.vector_store %arg6[%c48_165, %c32_166], %76 {strides = array<i32>} : memref<64x128xf32, #tpu.memory_space<vmem>>, vector<8x32xf32>,
    %c0_167 = arith.constant 0 : index
    %c0_168 = arith.constant 0 : index
    %c7 = arith.constant 7 : index
    %c0_169 = arith.constant 0 : index
    %c0_170 = arith.constant 0 : index
    %78 = vector.load %arg2[%c0_167, %c0_168, %c7, %c0_169, %c0_170] : memref<1x1x9x9x32xf32, #tpu.memory_space<vmem>>, vector<1x1x1x8x32xf32>
    %79 = vector.shape_cast %78 : vector<1x1x1x8x32xf32> to vector<8x32xf32>
    %c48_171 = arith.constant 48 : index
    %c64_172 = arith.constant 64 : index
    %80 = vector.load %arg6[%c48_171, %c64_172] : memref<64x128xf32, #tpu.memory_space<vmem>>, vector<8x32xf32>
    tpu.vector_store %arg6[%c48_171, %c64_172], %79 {strides = array<i32>} : memref<64x128xf32, #tpu.memory_space<vmem>>, vector<8x32xf32>,
    %c0_173 = arith.constant 0 : index
    %c0_174 = arith.constant 0 : index
    %c7_175 = arith.constant 7 : index
    %c1_176 = arith.constant 1 : index
    %c0_177 = arith.constant 0 : index
    %81 = vector.load %arg2[%c0_173, %c0_174, %c7_175, %c1_176, %c0_177] : memref<1x1x9x9x32xf32, #tpu.memory_space<vmem>>, vector<1x1x1x8x32xf32>
    %82 = vector.shape_cast %81 : vector<1x1x1x8x32xf32> to vector<8x32xf32>
    %c48_178 = arith.constant 48 : index
    %c96_179 = arith.constant 96 : index
    %83 = vector.load %arg6[%c48_178, %c96_179] : memref<64x128xf32, #tpu.memory_space<vmem>>, vector<8x32xf32>
    tpu.vector_store %arg6[%c48_178, %c96_179], %82 {strides = array<i32>} : memref<64x128xf32, #tpu.memory_space<vmem>>, vector<8x32xf32>,
    %c0_180 = arith.constant 0 : index
    %c0_181 = arith.constant 0 : index
    %c7_182 = arith.constant 7 : index
    %c0_183 = arith.constant 0 : index
    %c0_184 = arith.constant 0 : index
    %84 = vector.load %arg2[%c0_180, %c0_181, %c7_182, %c0_183, %c0_184] : memref<1x1x9x9x32xf32, #tpu.memory_space<vmem>>, vector<1x1x1x8x32xf32>
    %85 = vector.shape_cast %84 : vector<1x1x1x8x32xf32> to vector<8x32xf32>
    %c56 = arith.constant 56 : index
    %c0_185 = arith.constant 0 : index
    %86 = vector.load %arg6[%c56, %c0_185] : memref<64x128xf32, #tpu.memory_space<vmem>>, vector<8x32xf32>
    tpu.vector_store %arg6[%c56, %c0_185], %85 {strides = array<i32>} : memref<64x128xf32, #tpu.memory_space<vmem>>, vector<8x32xf32>,
    %c0_186 = arith.constant 0 : index
    %c0_187 = arith.constant 0 : index
    %c7_188 = arith.constant 7 : index
    %c1_189 = arith.constant 1 : index
    %c0_190 = arith.constant 0 : index
    %87 = vector.load %arg2[%c0_186, %c0_187, %c7_188, %c1_189, %c0_190] : memref<1x1x9x9x32xf32, #tpu.memory_space<vmem>>, vector<1x1x1x8x32xf32>
    %88 = vector.shape_cast %87 : vector<1x1x1x8x32xf32> to vector<8x32xf32>
    %c56_191 = arith.constant 56 : index
    %c32_192 = arith.constant 32 : index
    %89 = vector.load %arg6[%c56_191, %c32_192] : memref<64x128xf32, #tpu.memory_space<vmem>>, vector<8x32xf32>
    tpu.vector_store %arg6[%c56_191, %c32_192], %88 {strides = array<i32>} : memref<64x128xf32, #tpu.memory_space<vmem>>, vector<8x32xf32>,
    %c0_193 = arith.constant 0 : index
    %c0_194 = arith.constant 0 : index
    %c8_195 = arith.constant 8 : index
    %c0_196 = arith.constant 0 : index
    %c0_197 = arith.constant 0 : index
    %90 = vector.load %arg2[%c0_193, %c0_194, %c8_195, %c0_196, %c0_197] : memref<1x1x9x9x32xf32, #tpu.memory_space<vmem>>, vector<1x1x1x8x32xf32>
    %91 = vector.shape_cast %90 : vector<1x1x1x8x32xf32> to vector<8x32xf32>
    %c56_198 = arith.constant 56 : index
    %c64_199 = arith.constant 64 : index
    %92 = vector.load %arg6[%c56_198, %c64_199] : memref<64x128xf32, #tpu.memory_space<vmem>>, vector<8x32xf32>
    tpu.vector_store %arg6[%c56_198, %c64_199], %91 {strides = array<i32>} : memref<64x128xf32, #tpu.memory_space<vmem>>, vector<8x32xf32>,
    %c0_200 = arith.constant 0 : index
    %c0_201 = arith.constant 0 : index
    %c8_202 = arith.constant 8 : index
    %c1_203 = arith.constant 1 : index
    %c0_204 = arith.constant 0 : index
    %93 = vector.load %arg2[%c0_200, %c0_201, %c8_202, %c1_203, %c0_204] : memref<1x1x9x9x32xf32, #tpu.memory_space<vmem>>, vector<1x1x1x8x32xf32>
    %94 = vector.shape_cast %93 : vector<1x1x1x8x32xf32> to vector<8x32xf32>
    %c56_205 = arith.constant 56 : index
    %c96_206 = arith.constant 96 : index
    %95 = vector.load %arg6[%c56_205, %c96_206] : memref<64x128xf32, #tpu.memory_space<vmem>>, vector<8x32xf32>
    tpu.vector_store %arg6[%c56_205, %c96_206], %94 {strides = array<i32>} : memref<64x128xf32, #tpu.memory_space<vmem>>, vector<8x32xf32>,
    %c0_207 = arith.constant 0 : index
    %c0_208 = arith.constant 0 : index
    %96 = vector.load %arg6[%c0_207, %c0_208] : memref<64x128xf32, #tpu.memory_space<vmem>>, vector<64x128xf32>
    %c0_209 = arith.constant 0 : index
    %c0_210 = arith.constant 0 : index
    %c0_211 = arith.constant 0 : index
    %97 = vector.load %arg3[%c0_209, %c0_210, %c0_211] : memref<1x128x16xf32, #tpu.memory_space<vmem>>, vector<1x128x16xf32>
    %98 = vector.shape_cast %97 : vector<1x128x16xf32> to vector<128x16xf32>
    %cst = arith.constant dense<0.000000e+00> : vector<64x16xf32>
    %99 = tpu.matmul %96, %98, %cst {dimension_numbers = #tpu.dot_dimension_numbers<[1], [0], [0], [1], [0, 0, 1, 1], [], []>} : vector<64x128xf32>, vector<128x16xf32>, vector<64x16xf32> -> vector<64x16xf32>
    %c0_212 = arith.constant 0 : index
    %c0_213 = arith.constant 0 : index
    %c0_214 = arith.constant 0 : index
    %100 = vector.load %arg4[%c0_212, %c0_213, %c0_214] : memref<1x1x16xf32, #tpu.memory_space<vmem>>, vector<1x1x16xf32>
    %101 = vector.shape_cast %100 : vector<1x1x16xf32> to vector<1x16xf32>
    %102 = vector.broadcast %101 : vector<1x16xf32> to vector<64x16xf32>
    %103 = arith.addf %99, %102 : vector<64x16xf32>
    %cst_215 = arith.constant 0.000000e+00 : f32
    %104 = vector.broadcast %cst_215 : f32 to vector<64x16xf32>
    %105 = arith.maximumf %103, %104 : vector<64x16xf32>
    %c0_216 = arith.constant 0 : index
    %c0_217 = arith.constant 0 : index
    %c0_218 = arith.constant 0 : index
    %c0_219 = arith.constant 0 : index
    %106 = vector.load %arg5[%c0_216, %c0_217, %c0_218, %c0_219] : memref<1x1x64x16xf32, #tpu.memory_space<vmem>>, vector<1x1x64x16xf32>
    %107 = vector.shape_cast %106 : vector<1x1x64x16xf32> to vector<64x16xf32>
    %108 = vector.shape_cast %105 : vector<64x16xf32> to vector<1x1x64x16xf32>
    tpu.vector_store %arg5[%c0_216, %c0_217, %c0_218, %c0_219], %108 {strides = array<i32>} : memref<1x1x64x16xf32, #tpu.memory_space<vmem>>, vector<1x1x64x16xf32>,
    return
  }
  func.func @transform_0(%arg0: i32, %arg1: i32) -> (i32, i32, i32, i32, i32) {
    %c0_i32 = arith.constant 0 : i32
    %c0_i32_0 = arith.constant 0 : i32
    %c0_i32_1 = arith.constant 0 : i32
    %c0_i32_2 = arith.constant 0 : i32
    return %arg0, %arg1, %c0_i32, %c0_i32_0, %c0_i32_1 : i32, i32, i32, i32, i32
  }
  func.func @transform_1(%arg0: i32, %arg1: i32) -> (i32, i32, i32) {
    %c0_i32 = arith.constant 0 : i32
    %c0_i32_0 = arith.constant 0 : i32
    %c0_i32_1 = arith.constant 0 : i32
    return %arg0, %c0_i32, %c0_i32_0 : i32, i32, i32
  }
  func.func @transform_2(%arg0: i32, %arg1: i32) -> (i32, i32, i32) {
    %c0_i32 = arith.constant 0 : i32
    %c0_i32_0 = arith.constant 0 : i32
    %c0_i32_1 = arith.constant 0 : i32
    return %arg0, %c0_i32, %c0_i32_0 : i32, i32, i32
  }
  func.func @transform_3(%arg0: i32, %arg1: i32) -> (i32, i32, i32, i32) {
    %c0_i32 = arith.constant 0 : i32
    %c0_i32_0 = arith.constant 0 : i32
    %c0_i32_1 = arith.constant 0 : i32
    return %arg0, %arg1, %c0_i32, %c0_i32_0 : i32, i32, i32, i32
  }
}

module attributes {stable_mosaic.version = 11 : i64} {
  func.func @_conv_s1_kernel(%arg0: i32, %arg1: i32, %arg2: memref<1x1x15x15x16xf32, #tpu.memory_space<vmem>>, %arg3: memref<1x64x3xf32, #tpu.memory_space<vmem>>, %arg4: memref<1x1x3xf32, #tpu.memory_space<vmem>>, %arg5: memref<1x1x196x3xf32, #tpu.memory_space<vmem>>, %arg6: memref<196x64xf32, #tpu.memory_space<vmem>>) attributes {dimension_semantics = [#tpu.dimension_semantics<parallel>, #tpu.dimension_semantics<parallel>], iteration_bounds = array<i64: 4, 2>, scalar_prefetch = 0 : i64, scratch_operands = 1 : i64, tpu.core_type = #tpu.core_type<tc>, window_params = [{transform_indices = @transform_0, window_bounds = array<i64: 1, 1, 15, 15, 16>}, {transform_indices = @transform_1, window_bounds = array<i64: 1, 64, 3>}, {transform_indices = @transform_2, window_bounds = array<i64: 1, 1, 3>}, {transform_indices = @transform_3, window_bounds = array<i64: 1, 1, 196, 3>}]} {
    %c0 = arith.constant 0 : index
    %c0_0 = arith.constant 0 : index
    %c0_1 = arith.constant 0 : index
    %c0_2 = arith.constant 0 : index
    %c0_3 = arith.constant 0 : index
    %0 = vector.load %arg2[%c0, %c0_0, %c0_1, %c0_2, %c0_3] : memref<1x1x15x15x16xf32, #tpu.memory_space<vmem>>, vector<1x1x1x14x16xf32>
    %1 = vector.shape_cast %0 : vector<1x1x1x14x16xf32> to vector<14x16xf32>
    %c0_4 = arith.constant 0 : index
    %c0_5 = arith.constant 0 : index
    %2 = vector.load %arg6[%c0_4, %c0_5] : memref<196x64xf32, #tpu.memory_space<vmem>>, vector<14x16xf32>
    tpu.vector_store %arg6[%c0_4, %c0_5], %1 {strides = array<i32>} : memref<196x64xf32, #tpu.memory_space<vmem>>, vector<14x16xf32>,
    %c0_6 = arith.constant 0 : index
    %c0_7 = arith.constant 0 : index
    %c0_8 = arith.constant 0 : index
    %c1 = arith.constant 1 : index
    %c0_9 = arith.constant 0 : index
    %3 = vector.load %arg2[%c0_6, %c0_7, %c0_8, %c1, %c0_9] : memref<1x1x15x15x16xf32, #tpu.memory_space<vmem>>, vector<1x1x1x14x16xf32>
    %4 = vector.shape_cast %3 : vector<1x1x1x14x16xf32> to vector<14x16xf32>
    %c0_10 = arith.constant 0 : index
    %c16 = arith.constant 16 : index
    %5 = vector.load %arg6[%c0_10, %c16] : memref<196x64xf32, #tpu.memory_space<vmem>>, vector<14x16xf32>
    tpu.vector_store %arg6[%c0_10, %c16], %4 {strides = array<i32>} : memref<196x64xf32, #tpu.memory_space<vmem>>, vector<14x16xf32>,
    %c0_11 = arith.constant 0 : index
    %c0_12 = arith.constant 0 : index
    %c1_13 = arith.constant 1 : index
    %c0_14 = arith.constant 0 : index
    %c0_15 = arith.constant 0 : index
    %6 = vector.load %arg2[%c0_11, %c0_12, %c1_13, %c0_14, %c0_15] : memref<1x1x15x15x16xf32, #tpu.memory_space<vmem>>, vector<1x1x1x14x16xf32>
    %7 = vector.shape_cast %6 : vector<1x1x1x14x16xf32> to vector<14x16xf32>
    %c0_16 = arith.constant 0 : index
    %c32 = arith.constant 32 : index
    %8 = vector.load %arg6[%c0_16, %c32] : memref<196x64xf32, #tpu.memory_space<vmem>>, vector<14x16xf32>
    tpu.vector_store %arg6[%c0_16, %c32], %7 {strides = array<i32>} : memref<196x64xf32, #tpu.memory_space<vmem>>, vector<14x16xf32>,
    %c0_17 = arith.constant 0 : index
    %c0_18 = arith.constant 0 : index
    %c1_19 = arith.constant 1 : index
    %c1_20 = arith.constant 1 : index
    %c0_21 = arith.constant 0 : index
    %9 = vector.load %arg2[%c0_17, %c0_18, %c1_19, %c1_20, %c0_21] : memref<1x1x15x15x16xf32, #tpu.memory_space<vmem>>, vector<1x1x1x14x16xf32>
    %10 = vector.shape_cast %9 : vector<1x1x1x14x16xf32> to vector<14x16xf32>
    %c0_22 = arith.constant 0 : index
    %c48 = arith.constant 48 : index
    %11 = vector.load %arg6[%c0_22, %c48] : memref<196x64xf32, #tpu.memory_space<vmem>>, vector<14x16xf32>
    tpu.vector_store %arg6[%c0_22, %c48], %10 {strides = array<i32>} : memref<196x64xf32, #tpu.memory_space<vmem>>, vector<14x16xf32>,
    %c0_23 = arith.constant 0 : index
    %c0_24 = arith.constant 0 : index
    %c1_25 = arith.constant 1 : index
    %c0_26 = arith.constant 0 : index
    %c0_27 = arith.constant 0 : index
    %12 = vector.load %arg2[%c0_23, %c0_24, %c1_25, %c0_26, %c0_27] : memref<1x1x15x15x16xf32, #tpu.memory_space<vmem>>, vector<1x1x1x14x16xf32>
    %13 = vector.shape_cast %12 : vector<1x1x1x14x16xf32> to vector<14x16xf32>
    %c14 = arith.constant 14 : index
    %c0_28 = arith.constant 0 : index
    %14 = vector.load %arg6[%c14, %c0_28] : memref<196x64xf32, #tpu.memory_space<vmem>>, vector<14x16xf32>
    tpu.vector_store %arg6[%c14, %c0_28], %13 {strides = array<i32>} : memref<196x64xf32, #tpu.memory_space<vmem>>, vector<14x16xf32>,
    %c0_29 = arith.constant 0 : index
    %c0_30 = arith.constant 0 : index
    %c1_31 = arith.constant 1 : index
    %c1_32 = arith.constant 1 : index
    %c0_33 = arith.constant 0 : index
    %15 = vector.load %arg2[%c0_29, %c0_30, %c1_31, %c1_32, %c0_33] : memref<1x1x15x15x16xf32, #tpu.memory_space<vmem>>, vector<1x1x1x14x16xf32>
    %16 = vector.shape_cast %15 : vector<1x1x1x14x16xf32> to vector<14x16xf32>
    %c14_34 = arith.constant 14 : index
    %c16_35 = arith.constant 16 : index
    %17 = vector.load %arg6[%c14_34, %c16_35] : memref<196x64xf32, #tpu.memory_space<vmem>>, vector<14x16xf32>
    tpu.vector_store %arg6[%c14_34, %c16_35], %16 {strides = array<i32>} : memref<196x64xf32, #tpu.memory_space<vmem>>, vector<14x16xf32>,
    %c0_36 = arith.constant 0 : index
    %c0_37 = arith.constant 0 : index
    %c2 = arith.constant 2 : index
    %c0_38 = arith.constant 0 : index
    %c0_39 = arith.constant 0 : index
    %18 = vector.load %arg2[%c0_36, %c0_37, %c2, %c0_38, %c0_39] : memref<1x1x15x15x16xf32, #tpu.memory_space<vmem>>, vector<1x1x1x14x16xf32>
    %19 = vector.shape_cast %18 : vector<1x1x1x14x16xf32> to vector<14x16xf32>
    %c14_40 = arith.constant 14 : index
    %c32_41 = arith.constant 32 : index
    %20 = vector.load %arg6[%c14_40, %c32_41] : memref<196x64xf32, #tpu.memory_space<vmem>>, vector<14x16xf32>
    tpu.vector_store %arg6[%c14_40, %c32_41], %19 {strides = array<i32>} : memref<196x64xf32, #tpu.memory_space<vmem>>, vector<14x16xf32>,
    %c0_42 = arith.constant 0 : index
    %c0_43 = arith.constant 0 : index
    %c2_44 = arith.constant 2 : index
    %c1_45 = arith.constant 1 : index
    %c0_46 = arith.constant 0 : index
    %21 = vector.load %arg2[%c0_42, %c0_43, %c2_44, %c1_45, %c0_46] : memref<1x1x15x15x16xf32, #tpu.memory_space<vmem>>, vector<1x1x1x14x16xf32>
    %22 = vector.shape_cast %21 : vector<1x1x1x14x16xf32> to vector<14x16xf32>
    %c14_47 = arith.constant 14 : index
    %c48_48 = arith.constant 48 : index
    %23 = vector.load %arg6[%c14_47, %c48_48] : memref<196x64xf32, #tpu.memory_space<vmem>>, vector<14x16xf32>
    tpu.vector_store %arg6[%c14_47, %c48_48], %22 {strides = array<i32>} : memref<196x64xf32, #tpu.memory_space<vmem>>, vector<14x16xf32>,
    %c0_49 = arith.constant 0 : index
    %c0_50 = arith.constant 0 : index
    %c2_51 = arith.constant 2 : index
    %c0_52 = arith.constant 0 : index
    %c0_53 = arith.constant 0 : index
    %24 = vector.load %arg2[%c0_49, %c0_50, %c2_51, %c0_52, %c0_53] : memref<1x1x15x15x16xf32, #tpu.memory_space<vmem>>, vector<1x1x1x14x16xf32>
    %25 = vector.shape_cast %24 : vector<1x1x1x14x16xf32> to vector<14x16xf32>
    %c28 = arith.constant 28 : index
    %c0_54 = arith.constant 0 : index
    %26 = vector.load %arg6[%c28, %c0_54] : memref<196x64xf32, #tpu.memory_space<vmem>>, vector<14x16xf32>
    tpu.vector_store %arg6[%c28, %c0_54], %25 {strides = array<i32>} : memref<196x64xf32, #tpu.memory_space<vmem>>, vector<14x16xf32>,
    %c0_55 = arith.constant 0 : index
    %c0_56 = arith.constant 0 : index
    %c2_57 = arith.constant 2 : index
    %c1_58 = arith.constant 1 : index
    %c0_59 = arith.constant 0 : index
    %27 = vector.load %arg2[%c0_55, %c0_56, %c2_57, %c1_58, %c0_59] : memref<1x1x15x15x16xf32, #tpu.memory_space<vmem>>, vector<1x1x1x14x16xf32>
    %28 = vector.shape_cast %27 : vector<1x1x1x14x16xf32> to vector<14x16xf32>
    %c28_60 = arith.constant 28 : index
    %c16_61 = arith.constant 16 : index
    %29 = vector.load %arg6[%c28_60, %c16_61] : memref<196x64xf32, #tpu.memory_space<vmem>>, vector<14x16xf32>
    tpu.vector_store %arg6[%c28_60, %c16_61], %28 {strides = array<i32>} : memref<196x64xf32, #tpu.memory_space<vmem>>, vector<14x16xf32>,
    %c0_62 = arith.constant 0 : index
    %c0_63 = arith.constant 0 : index
    %c3 = arith.constant 3 : index
    %c0_64 = arith.constant 0 : index
    %c0_65 = arith.constant 0 : index
    %30 = vector.load %arg2[%c0_62, %c0_63, %c3, %c0_64, %c0_65] : memref<1x1x15x15x16xf32, #tpu.memory_space<vmem>>, vector<1x1x1x14x16xf32>
    %31 = vector.shape_cast %30 : vector<1x1x1x14x16xf32> to vector<14x16xf32>
    %c28_66 = arith.constant 28 : index
    %c32_67 = arith.constant 32 : index
    %32 = vector.load %arg6[%c28_66, %c32_67] : memref<196x64xf32, #tpu.memory_space<vmem>>, vector<14x16xf32>
    tpu.vector_store %arg6[%c28_66, %c32_67], %31 {strides = array<i32>} : memref<196x64xf32, #tpu.memory_space<vmem>>, vector<14x16xf32>,
    %c0_68 = arith.constant 0 : index
    %c0_69 = arith.constant 0 : index
    %c3_70 = arith.constant 3 : index
    %c1_71 = arith.constant 1 : index
    %c0_72 = arith.constant 0 : index
    %33 = vector.load %arg2[%c0_68, %c0_69, %c3_70, %c1_71, %c0_72] : memref<1x1x15x15x16xf32, #tpu.memory_space<vmem>>, vector<1x1x1x14x16xf32>
    %34 = vector.shape_cast %33 : vector<1x1x1x14x16xf32> to vector<14x16xf32>
    %c28_73 = arith.constant 28 : index
    %c48_74 = arith.constant 48 : index
    %35 = vector.load %arg6[%c28_73, %c48_74] : memref<196x64xf32, #tpu.memory_space<vmem>>, vector<14x16xf32>
    tpu.vector_store %arg6[%c28_73, %c48_74], %34 {strides = array<i32>} : memref<196x64xf32, #tpu.memory_space<vmem>>, vector<14x16xf32>,
    %c0_75 = arith.constant 0 : index
    %c0_76 = arith.constant 0 : index
    %c3_77 = arith.constant 3 : index
    %c0_78 = arith.constant 0 : index
    %c0_79 = arith.constant 0 : index
    %36 = vector.load %arg2[%c0_75, %c0_76, %c3_77, %c0_78, %c0_79] : memref<1x1x15x15x16xf32, #tpu.memory_space<vmem>>, vector<1x1x1x14x16xf32>
    %37 = vector.shape_cast %36 : vector<1x1x1x14x16xf32> to vector<14x16xf32>
    %c42 = arith.constant 42 : index
    %c0_80 = arith.constant 0 : index
    %38 = vector.load %arg6[%c42, %c0_80] : memref<196x64xf32, #tpu.memory_space<vmem>>, vector<14x16xf32>
    tpu.vector_store %arg6[%c42, %c0_80], %37 {strides = array<i32>} : memref<196x64xf32, #tpu.memory_space<vmem>>, vector<14x16xf32>,
    %c0_81 = arith.constant 0 : index
    %c0_82 = arith.constant 0 : index
    %c3_83 = arith.constant 3 : index
    %c1_84 = arith.constant 1 : index
    %c0_85 = arith.constant 0 : index
    %39 = vector.load %arg2[%c0_81, %c0_82, %c3_83, %c1_84, %c0_85] : memref<1x1x15x15x16xf32, #tpu.memory_space<vmem>>, vector<1x1x1x14x16xf32>
    %40 = vector.shape_cast %39 : vector<1x1x1x14x16xf32> to vector<14x16xf32>
    %c42_86 = arith.constant 42 : index
    %c16_87 = arith.constant 16 : index
    %41 = vector.load %arg6[%c42_86, %c16_87] : memref<196x64xf32, #tpu.memory_space<vmem>>, vector<14x16xf32>
    tpu.vector_store %arg6[%c42_86, %c16_87], %40 {strides = array<i32>} : memref<196x64xf32, #tpu.memory_space<vmem>>, vector<14x16xf32>,
    %c0_88 = arith.constant 0 : index
    %c0_89 = arith.constant 0 : index
    %c4 = arith.constant 4 : index
    %c0_90 = arith.constant 0 : index
    %c0_91 = arith.constant 0 : index
    %42 = vector.load %arg2[%c0_88, %c0_89, %c4, %c0_90, %c0_91] : memref<1x1x15x15x16xf32, #tpu.memory_space<vmem>>, vector<1x1x1x14x16xf32>
    %43 = vector.shape_cast %42 : vector<1x1x1x14x16xf32> to vector<14x16xf32>
    %c42_92 = arith.constant 42 : index
    %c32_93 = arith.constant 32 : index
    %44 = vector.load %arg6[%c42_92, %c32_93] : memref<196x64xf32, #tpu.memory_space<vmem>>, vector<14x16xf32>
    tpu.vector_store %arg6[%c42_92, %c32_93], %43 {strides = array<i32>} : memref<196x64xf32, #tpu.memory_space<vmem>>, vector<14x16xf32>,
    %c0_94 = arith.constant 0 : index
    %c0_95 = arith.constant 0 : index
    %c4_96 = arith.constant 4 : index
    %c1_97 = arith.constant 1 : index
    %c0_98 = arith.constant 0 : index
    %45 = vector.load %arg2[%c0_94, %c0_95, %c4_96, %c1_97, %c0_98] : memref<1x1x15x15x16xf32, #tpu.memory_space<vmem>>, vector<1x1x1x14x16xf32>
    %46 = vector.shape_cast %45 : vector<1x1x1x14x16xf32> to vector<14x16xf32>
    %c42_99 = arith.constant 42 : index
    %c48_100 = arith.constant 48 : index
    %47 = vector.load %arg6[%c42_99, %c48_100] : memref<196x64xf32, #tpu.memory_space<vmem>>, vector<14x16xf32>
    tpu.vector_store %arg6[%c42_99, %c48_100], %46 {strides = array<i32>} : memref<196x64xf32, #tpu.memory_space<vmem>>, vector<14x16xf32>,
    %c0_101 = arith.constant 0 : index
    %c0_102 = arith.constant 0 : index
    %c4_103 = arith.constant 4 : index
    %c0_104 = arith.constant 0 : index
    %c0_105 = arith.constant 0 : index
    %48 = vector.load %arg2[%c0_101, %c0_102, %c4_103, %c0_104, %c0_105] : memref<1x1x15x15x16xf32, #tpu.memory_space<vmem>>, vector<1x1x1x14x16xf32>
    %49 = vector.shape_cast %48 : vector<1x1x1x14x16xf32> to vector<14x16xf32>
    %c56 = arith.constant 56 : index
    %c0_106 = arith.constant 0 : index
    %50 = vector.load %arg6[%c56, %c0_106] : memref<196x64xf32, #tpu.memory_space<vmem>>, vector<14x16xf32>
    tpu.vector_store %arg6[%c56, %c0_106], %49 {strides = array<i32>} : memref<196x64xf32, #tpu.memory_space<vmem>>, vector<14x16xf32>,
    %c0_107 = arith.constant 0 : index
    %c0_108 = arith.constant 0 : index
    %c4_109 = arith.constant 4 : index
    %c1_110 = arith.constant 1 : index
    %c0_111 = arith.constant 0 : index
    %51 = vector.load %arg2[%c0_107, %c0_108, %c4_109, %c1_110, %c0_111] : memref<1x1x15x15x16xf32, #tpu.memory_space<vmem>>, vector<1x1x1x14x16xf32>
    %52 = vector.shape_cast %51 : vector<1x1x1x14x16xf32> to vector<14x16xf32>
    %c56_112 = arith.constant 56 : index
    %c16_113 = arith.constant 16 : index
    %53 = vector.load %arg6[%c56_112, %c16_113] : memref<196x64xf32, #tpu.memory_space<vmem>>, vector<14x16xf32>
    tpu.vector_store %arg6[%c56_112, %c16_113], %52 {strides = array<i32>} : memref<196x64xf32, #tpu.memory_space<vmem>>, vector<14x16xf32>,
    %c0_114 = arith.constant 0 : index
    %c0_115 = arith.constant 0 : index
    %c5 = arith.constant 5 : index
    %c0_116 = arith.constant 0 : index
    %c0_117 = arith.constant 0 : index
    %54 = vector.load %arg2[%c0_114, %c0_115, %c5, %c0_116, %c0_117] : memref<1x1x15x15x16xf32, #tpu.memory_space<vmem>>, vector<1x1x1x14x16xf32>
    %55 = vector.shape_cast %54 : vector<1x1x1x14x16xf32> to vector<14x16xf32>
    %c56_118 = arith.constant 56 : index
    %c32_119 = arith.constant 32 : index
    %56 = vector.load %arg6[%c56_118, %c32_119] : memref<196x64xf32, #tpu.memory_space<vmem>>, vector<14x16xf32>
    tpu.vector_store %arg6[%c56_118, %c32_119], %55 {strides = array<i32>} : memref<196x64xf32, #tpu.memory_space<vmem>>, vector<14x16xf32>,
    %c0_120 = arith.constant 0 : index
    %c0_121 = arith.constant 0 : index
    %c5_122 = arith.constant 5 : index
    %c1_123 = arith.constant 1 : index
    %c0_124 = arith.constant 0 : index
    %57 = vector.load %arg2[%c0_120, %c0_121, %c5_122, %c1_123, %c0_124] : memref<1x1x15x15x16xf32, #tpu.memory_space<vmem>>, vector<1x1x1x14x16xf32>
    %58 = vector.shape_cast %57 : vector<1x1x1x14x16xf32> to vector<14x16xf32>
    %c56_125 = arith.constant 56 : index
    %c48_126 = arith.constant 48 : index
    %59 = vector.load %arg6[%c56_125, %c48_126] : memref<196x64xf32, #tpu.memory_space<vmem>>, vector<14x16xf32>
    tpu.vector_store %arg6[%c56_125, %c48_126], %58 {strides = array<i32>} : memref<196x64xf32, #tpu.memory_space<vmem>>, vector<14x16xf32>,
    %c0_127 = arith.constant 0 : index
    %c0_128 = arith.constant 0 : index
    %c5_129 = arith.constant 5 : index
    %c0_130 = arith.constant 0 : index
    %c0_131 = arith.constant 0 : index
    %60 = vector.load %arg2[%c0_127, %c0_128, %c5_129, %c0_130, %c0_131] : memref<1x1x15x15x16xf32, #tpu.memory_space<vmem>>, vector<1x1x1x14x16xf32>
    %61 = vector.shape_cast %60 : vector<1x1x1x14x16xf32> to vector<14x16xf32>
    %c70 = arith.constant 70 : index
    %c0_132 = arith.constant 0 : index
    %62 = vector.load %arg6[%c70, %c0_132] : memref<196x64xf32, #tpu.memory_space<vmem>>, vector<14x16xf32>
    tpu.vector_store %arg6[%c70, %c0_132], %61 {strides = array<i32>} : memref<196x64xf32, #tpu.memory_space<vmem>>, vector<14x16xf32>,
    %c0_133 = arith.constant 0 : index
    %c0_134 = arith.constant 0 : index
    %c5_135 = arith.constant 5 : index
    %c1_136 = arith.constant 1 : index
    %c0_137 = arith.constant 0 : index
    %63 = vector.load %arg2[%c0_133, %c0_134, %c5_135, %c1_136, %c0_137] : memref<1x1x15x15x16xf32, #tpu.memory_space<vmem>>, vector<1x1x1x14x16xf32>
    %64 = vector.shape_cast %63 : vector<1x1x1x14x16xf32> to vector<14x16xf32>
    %c70_138 = arith.constant 70 : index
    %c16_139 = arith.constant 16 : index
    %65 = vector.load %arg6[%c70_138, %c16_139] : memref<196x64xf32, #tpu.memory_space<vmem>>, vector<14x16xf32>
    tpu.vector_store %arg6[%c70_138, %c16_139], %64 {strides = array<i32>} : memref<196x64xf32, #tpu.memory_space<vmem>>, vector<14x16xf32>,
    %c0_140 = arith.constant 0 : index
    %c0_141 = arith.constant 0 : index
    %c6 = arith.constant 6 : index
    %c0_142 = arith.constant 0 : index
    %c0_143 = arith.constant 0 : index
    %66 = vector.load %arg2[%c0_140, %c0_141, %c6, %c0_142, %c0_143] : memref<1x1x15x15x16xf32, #tpu.memory_space<vmem>>, vector<1x1x1x14x16xf32>
    %67 = vector.shape_cast %66 : vector<1x1x1x14x16xf32> to vector<14x16xf32>
    %c70_144 = arith.constant 70 : index
    %c32_145 = arith.constant 32 : index
    %68 = vector.load %arg6[%c70_144, %c32_145] : memref<196x64xf32, #tpu.memory_space<vmem>>, vector<14x16xf32>
    tpu.vector_store %arg6[%c70_144, %c32_145], %67 {strides = array<i32>} : memref<196x64xf32, #tpu.memory_space<vmem>>, vector<14x16xf32>,
    %c0_146 = arith.constant 0 : index
    %c0_147 = arith.constant 0 : index
    %c6_148 = arith.constant 6 : index
    %c1_149 = arith.constant 1 : index
    %c0_150 = arith.constant 0 : index
    %69 = vector.load %arg2[%c0_146, %c0_147, %c6_148, %c1_149, %c0_150] : memref<1x1x15x15x16xf32, #tpu.memory_space<vmem>>, vector<1x1x1x14x16xf32>
    %70 = vector.shape_cast %69 : vector<1x1x1x14x16xf32> to vector<14x16xf32>
    %c70_151 = arith.constant 70 : index
    %c48_152 = arith.constant 48 : index
    %71 = vector.load %arg6[%c70_151, %c48_152] : memref<196x64xf32, #tpu.memory_space<vmem>>, vector<14x16xf32>
    tpu.vector_store %arg6[%c70_151, %c48_152], %70 {strides = array<i32>} : memref<196x64xf32, #tpu.memory_space<vmem>>, vector<14x16xf32>,
    %c0_153 = arith.constant 0 : index
    %c0_154 = arith.constant 0 : index
    %c6_155 = arith.constant 6 : index
    %c0_156 = arith.constant 0 : index
    %c0_157 = arith.constant 0 : index
    %72 = vector.load %arg2[%c0_153, %c0_154, %c6_155, %c0_156, %c0_157] : memref<1x1x15x15x16xf32, #tpu.memory_space<vmem>>, vector<1x1x1x14x16xf32>
    %73 = vector.shape_cast %72 : vector<1x1x1x14x16xf32> to vector<14x16xf32>
    %c84 = arith.constant 84 : index
    %c0_158 = arith.constant 0 : index
    %74 = vector.load %arg6[%c84, %c0_158] : memref<196x64xf32, #tpu.memory_space<vmem>>, vector<14x16xf32>
    tpu.vector_store %arg6[%c84, %c0_158], %73 {strides = array<i32>} : memref<196x64xf32, #tpu.memory_space<vmem>>, vector<14x16xf32>,
    %c0_159 = arith.constant 0 : index
    %c0_160 = arith.constant 0 : index
    %c6_161 = arith.constant 6 : index
    %c1_162 = arith.constant 1 : index
    %c0_163 = arith.constant 0 : index
    %75 = vector.load %arg2[%c0_159, %c0_160, %c6_161, %c1_162, %c0_163] : memref<1x1x15x15x16xf32, #tpu.memory_space<vmem>>, vector<1x1x1x14x16xf32>
    %76 = vector.shape_cast %75 : vector<1x1x1x14x16xf32> to vector<14x16xf32>
    %c84_164 = arith.constant 84 : index
    %c16_165 = arith.constant 16 : index
    %77 = vector.load %arg6[%c84_164, %c16_165] : memref<196x64xf32, #tpu.memory_space<vmem>>, vector<14x16xf32>
    tpu.vector_store %arg6[%c84_164, %c16_165], %76 {strides = array<i32>} : memref<196x64xf32, #tpu.memory_space<vmem>>, vector<14x16xf32>,
    %c0_166 = arith.constant 0 : index
    %c0_167 = arith.constant 0 : index
    %c7 = arith.constant 7 : index
    %c0_168 = arith.constant 0 : index
    %c0_169 = arith.constant 0 : index
    %78 = vector.load %arg2[%c0_166, %c0_167, %c7, %c0_168, %c0_169] : memref<1x1x15x15x16xf32, #tpu.memory_space<vmem>>, vector<1x1x1x14x16xf32>
    %79 = vector.shape_cast %78 : vector<1x1x1x14x16xf32> to vector<14x16xf32>
    %c84_170 = arith.constant 84 : index
    %c32_171 = arith.constant 32 : index
    %80 = vector.load %arg6[%c84_170, %c32_171] : memref<196x64xf32, #tpu.memory_space<vmem>>, vector<14x16xf32>
    tpu.vector_store %arg6[%c84_170, %c32_171], %79 {strides = array<i32>} : memref<196x64xf32, #tpu.memory_space<vmem>>, vector<14x16xf32>,
    %c0_172 = arith.constant 0 : index
    %c0_173 = arith.constant 0 : index
    %c7_174 = arith.constant 7 : index
    %c1_175 = arith.constant 1 : index
    %c0_176 = arith.constant 0 : index
    %81 = vector.load %arg2[%c0_172, %c0_173, %c7_174, %c1_175, %c0_176] : memref<1x1x15x15x16xf32, #tpu.memory_space<vmem>>, vector<1x1x1x14x16xf32>
    %82 = vector.shape_cast %81 : vector<1x1x1x14x16xf32> to vector<14x16xf32>
    %c84_177 = arith.constant 84 : index
    %c48_178 = arith.constant 48 : index
    %83 = vector.load %arg6[%c84_177, %c48_178] : memref<196x64xf32, #tpu.memory_space<vmem>>, vector<14x16xf32>
    tpu.vector_store %arg6[%c84_177, %c48_178], %82 {strides = array<i32>} : memref<196x64xf32, #tpu.memory_space<vmem>>, vector<14x16xf32>,
    %c0_179 = arith.constant 0 : index
    %c0_180 = arith.constant 0 : index
    %c7_181 = arith.constant 7 : index
    %c0_182 = arith.constant 0 : index
    %c0_183 = arith.constant 0 : index
    %84 = vector.load %arg2[%c0_179, %c0_180, %c7_181, %c0_182, %c0_183] : memref<1x1x15x15x16xf32, #tpu.memory_space<vmem>>, vector<1x1x1x14x16xf32>
    %85 = vector.shape_cast %84 : vector<1x1x1x14x16xf32> to vector<14x16xf32>
    %c98 = arith.constant 98 : index
    %c0_184 = arith.constant 0 : index
    %86 = vector.load %arg6[%c98, %c0_184] : memref<196x64xf32, #tpu.memory_space<vmem>>, vector<14x16xf32>
    tpu.vector_store %arg6[%c98, %c0_184], %85 {strides = array<i32>} : memref<196x64xf32, #tpu.memory_space<vmem>>, vector<14x16xf32>,
    %c0_185 = arith.constant 0 : index
    %c0_186 = arith.constant 0 : index
    %c7_187 = arith.constant 7 : index
    %c1_188 = arith.constant 1 : index
    %c0_189 = arith.constant 0 : index
    %87 = vector.load %arg2[%c0_185, %c0_186, %c7_187, %c1_188, %c0_189] : memref<1x1x15x15x16xf32, #tpu.memory_space<vmem>>, vector<1x1x1x14x16xf32>
    %88 = vector.shape_cast %87 : vector<1x1x1x14x16xf32> to vector<14x16xf32>
    %c98_190 = arith.constant 98 : index
    %c16_191 = arith.constant 16 : index
    %89 = vector.load %arg6[%c98_190, %c16_191] : memref<196x64xf32, #tpu.memory_space<vmem>>, vector<14x16xf32>
    tpu.vector_store %arg6[%c98_190, %c16_191], %88 {strides = array<i32>} : memref<196x64xf32, #tpu.memory_space<vmem>>, vector<14x16xf32>,
    %c0_192 = arith.constant 0 : index
    %c0_193 = arith.constant 0 : index
    %c8 = arith.constant 8 : index
    %c0_194 = arith.constant 0 : index
    %c0_195 = arith.constant 0 : index
    %90 = vector.load %arg2[%c0_192, %c0_193, %c8, %c0_194, %c0_195] : memref<1x1x15x15x16xf32, #tpu.memory_space<vmem>>, vector<1x1x1x14x16xf32>
    %91 = vector.shape_cast %90 : vector<1x1x1x14x16xf32> to vector<14x16xf32>
    %c98_196 = arith.constant 98 : index
    %c32_197 = arith.constant 32 : index
    %92 = vector.load %arg6[%c98_196, %c32_197] : memref<196x64xf32, #tpu.memory_space<vmem>>, vector<14x16xf32>
    tpu.vector_store %arg6[%c98_196, %c32_197], %91 {strides = array<i32>} : memref<196x64xf32, #tpu.memory_space<vmem>>, vector<14x16xf32>,
    %c0_198 = arith.constant 0 : index
    %c0_199 = arith.constant 0 : index
    %c8_200 = arith.constant 8 : index
    %c1_201 = arith.constant 1 : index
    %c0_202 = arith.constant 0 : index
    %93 = vector.load %arg2[%c0_198, %c0_199, %c8_200, %c1_201, %c0_202] : memref<1x1x15x15x16xf32, #tpu.memory_space<vmem>>, vector<1x1x1x14x16xf32>
    %94 = vector.shape_cast %93 : vector<1x1x1x14x16xf32> to vector<14x16xf32>
    %c98_203 = arith.constant 98 : index
    %c48_204 = arith.constant 48 : index
    %95 = vector.load %arg6[%c98_203, %c48_204] : memref<196x64xf32, #tpu.memory_space<vmem>>, vector<14x16xf32>
    tpu.vector_store %arg6[%c98_203, %c48_204], %94 {strides = array<i32>} : memref<196x64xf32, #tpu.memory_space<vmem>>, vector<14x16xf32>,
    %c0_205 = arith.constant 0 : index
    %c0_206 = arith.constant 0 : index
    %c8_207 = arith.constant 8 : index
    %c0_208 = arith.constant 0 : index
    %c0_209 = arith.constant 0 : index
    %96 = vector.load %arg2[%c0_205, %c0_206, %c8_207, %c0_208, %c0_209] : memref<1x1x15x15x16xf32, #tpu.memory_space<vmem>>, vector<1x1x1x14x16xf32>
    %97 = vector.shape_cast %96 : vector<1x1x1x14x16xf32> to vector<14x16xf32>
    %c112 = arith.constant 112 : index
    %c0_210 = arith.constant 0 : index
    %98 = vector.load %arg6[%c112, %c0_210] : memref<196x64xf32, #tpu.memory_space<vmem>>, vector<14x16xf32>
    tpu.vector_store %arg6[%c112, %c0_210], %97 {strides = array<i32>} : memref<196x64xf32, #tpu.memory_space<vmem>>, vector<14x16xf32>,
    %c0_211 = arith.constant 0 : index
    %c0_212 = arith.constant 0 : index
    %c8_213 = arith.constant 8 : index
    %c1_214 = arith.constant 1 : index
    %c0_215 = arith.constant 0 : index
    %99 = vector.load %arg2[%c0_211, %c0_212, %c8_213, %c1_214, %c0_215] : memref<1x1x15x15x16xf32, #tpu.memory_space<vmem>>, vector<1x1x1x14x16xf32>
    %100 = vector.shape_cast %99 : vector<1x1x1x14x16xf32> to vector<14x16xf32>
    %c112_216 = arith.constant 112 : index
    %c16_217 = arith.constant 16 : index
    %101 = vector.load %arg6[%c112_216, %c16_217] : memref<196x64xf32, #tpu.memory_space<vmem>>, vector<14x16xf32>
    tpu.vector_store %arg6[%c112_216, %c16_217], %100 {strides = array<i32>} : memref<196x64xf32, #tpu.memory_space<vmem>>, vector<14x16xf32>,
    %c0_218 = arith.constant 0 : index
    %c0_219 = arith.constant 0 : index
    %c9 = arith.constant 9 : index
    %c0_220 = arith.constant 0 : index
    %c0_221 = arith.constant 0 : index
    %102 = vector.load %arg2[%c0_218, %c0_219, %c9, %c0_220, %c0_221] : memref<1x1x15x15x16xf32, #tpu.memory_space<vmem>>, vector<1x1x1x14x16xf32>
    %103 = vector.shape_cast %102 : vector<1x1x1x14x16xf32> to vector<14x16xf32>
    %c112_222 = arith.constant 112 : index
    %c32_223 = arith.constant 32 : index
    %104 = vector.load %arg6[%c112_222, %c32_223] : memref<196x64xf32, #tpu.memory_space<vmem>>, vector<14x16xf32>
    tpu.vector_store %arg6[%c112_222, %c32_223], %103 {strides = array<i32>} : memref<196x64xf32, #tpu.memory_space<vmem>>, vector<14x16xf32>,
    %c0_224 = arith.constant 0 : index
    %c0_225 = arith.constant 0 : index
    %c9_226 = arith.constant 9 : index
    %c1_227 = arith.constant 1 : index
    %c0_228 = arith.constant 0 : index
    %105 = vector.load %arg2[%c0_224, %c0_225, %c9_226, %c1_227, %c0_228] : memref<1x1x15x15x16xf32, #tpu.memory_space<vmem>>, vector<1x1x1x14x16xf32>
    %106 = vector.shape_cast %105 : vector<1x1x1x14x16xf32> to vector<14x16xf32>
    %c112_229 = arith.constant 112 : index
    %c48_230 = arith.constant 48 : index
    %107 = vector.load %arg6[%c112_229, %c48_230] : memref<196x64xf32, #tpu.memory_space<vmem>>, vector<14x16xf32>
    tpu.vector_store %arg6[%c112_229, %c48_230], %106 {strides = array<i32>} : memref<196x64xf32, #tpu.memory_space<vmem>>, vector<14x16xf32>,
    %c0_231 = arith.constant 0 : index
    %c0_232 = arith.constant 0 : index
    %c9_233 = arith.constant 9 : index
    %c0_234 = arith.constant 0 : index
    %c0_235 = arith.constant 0 : index
    %108 = vector.load %arg2[%c0_231, %c0_232, %c9_233, %c0_234, %c0_235] : memref<1x1x15x15x16xf32, #tpu.memory_space<vmem>>, vector<1x1x1x14x16xf32>
    %109 = vector.shape_cast %108 : vector<1x1x1x14x16xf32> to vector<14x16xf32>
    %c126 = arith.constant 126 : index
    %c0_236 = arith.constant 0 : index
    %110 = vector.load %arg6[%c126, %c0_236] : memref<196x64xf32, #tpu.memory_space<vmem>>, vector<14x16xf32>
    tpu.vector_store %arg6[%c126, %c0_236], %109 {strides = array<i32>} : memref<196x64xf32, #tpu.memory_space<vmem>>, vector<14x16xf32>,
    %c0_237 = arith.constant 0 : index
    %c0_238 = arith.constant 0 : index
    %c9_239 = arith.constant 9 : index
    %c1_240 = arith.constant 1 : index
    %c0_241 = arith.constant 0 : index
    %111 = vector.load %arg2[%c0_237, %c0_238, %c9_239, %c1_240, %c0_241] : memref<1x1x15x15x16xf32, #tpu.memory_space<vmem>>, vector<1x1x1x14x16xf32>
    %112 = vector.shape_cast %111 : vector<1x1x1x14x16xf32> to vector<14x16xf32>
    %c126_242 = arith.constant 126 : index
    %c16_243 = arith.constant 16 : index
    %113 = vector.load %arg6[%c126_242, %c16_243] : memref<196x64xf32, #tpu.memory_space<vmem>>, vector<14x16xf32>
    tpu.vector_store %arg6[%c126_242, %c16_243], %112 {strides = array<i32>} : memref<196x64xf32, #tpu.memory_space<vmem>>, vector<14x16xf32>,
    %c0_244 = arith.constant 0 : index
    %c0_245 = arith.constant 0 : index
    %c10 = arith.constant 10 : index
    %c0_246 = arith.constant 0 : index
    %c0_247 = arith.constant 0 : index
    %114 = vector.load %arg2[%c0_244, %c0_245, %c10, %c0_246, %c0_247] : memref<1x1x15x15x16xf32, #tpu.memory_space<vmem>>, vector<1x1x1x14x16xf32>
    %115 = vector.shape_cast %114 : vector<1x1x1x14x16xf32> to vector<14x16xf32>
    %c126_248 = arith.constant 126 : index
    %c32_249 = arith.constant 32 : index
    %116 = vector.load %arg6[%c126_248, %c32_249] : memref<196x64xf32, #tpu.memory_space<vmem>>, vector<14x16xf32>
    tpu.vector_store %arg6[%c126_248, %c32_249], %115 {strides = array<i32>} : memref<196x64xf32, #tpu.memory_space<vmem>>, vector<14x16xf32>,
    %c0_250 = arith.constant 0 : index
    %c0_251 = arith.constant 0 : index
    %c10_252 = arith.constant 10 : index
    %c1_253 = arith.constant 1 : index
    %c0_254 = arith.constant 0 : index
    %117 = vector.load %arg2[%c0_250, %c0_251, %c10_252, %c1_253, %c0_254] : memref<1x1x15x15x16xf32, #tpu.memory_space<vmem>>, vector<1x1x1x14x16xf32>
    %118 = vector.shape_cast %117 : vector<1x1x1x14x16xf32> to vector<14x16xf32>
    %c126_255 = arith.constant 126 : index
    %c48_256 = arith.constant 48 : index
    %119 = vector.load %arg6[%c126_255, %c48_256] : memref<196x64xf32, #tpu.memory_space<vmem>>, vector<14x16xf32>
    tpu.vector_store %arg6[%c126_255, %c48_256], %118 {strides = array<i32>} : memref<196x64xf32, #tpu.memory_space<vmem>>, vector<14x16xf32>,
    %c0_257 = arith.constant 0 : index
    %c0_258 = arith.constant 0 : index
    %c10_259 = arith.constant 10 : index
    %c0_260 = arith.constant 0 : index
    %c0_261 = arith.constant 0 : index
    %120 = vector.load %arg2[%c0_257, %c0_258, %c10_259, %c0_260, %c0_261] : memref<1x1x15x15x16xf32, #tpu.memory_space<vmem>>, vector<1x1x1x14x16xf32>
    %121 = vector.shape_cast %120 : vector<1x1x1x14x16xf32> to vector<14x16xf32>
    %c140 = arith.constant 140 : index
    %c0_262 = arith.constant 0 : index
    %122 = vector.load %arg6[%c140, %c0_262] : memref<196x64xf32, #tpu.memory_space<vmem>>, vector<14x16xf32>
    tpu.vector_store %arg6[%c140, %c0_262], %121 {strides = array<i32>} : memref<196x64xf32, #tpu.memory_space<vmem>>, vector<14x16xf32>,
    %c0_263 = arith.constant 0 : index
    %c0_264 = arith.constant 0 : index
    %c10_265 = arith.constant 10 : index
    %c1_266 = arith.constant 1 : index
    %c0_267 = arith.constant 0 : index
    %123 = vector.load %arg2[%c0_263, %c0_264, %c10_265, %c1_266, %c0_267] : memref<1x1x15x15x16xf32, #tpu.memory_space<vmem>>, vector<1x1x1x14x16xf32>
    %124 = vector.shape_cast %123 : vector<1x1x1x14x16xf32> to vector<14x16xf32>
    %c140_268 = arith.constant 140 : index
    %c16_269 = arith.constant 16 : index
    %125 = vector.load %arg6[%c140_268, %c16_269] : memref<196x64xf32, #tpu.memory_space<vmem>>, vector<14x16xf32>
    tpu.vector_store %arg6[%c140_268, %c16_269], %124 {strides = array<i32>} : memref<196x64xf32, #tpu.memory_space<vmem>>, vector<14x16xf32>,
    %c0_270 = arith.constant 0 : index
    %c0_271 = arith.constant 0 : index
    %c11 = arith.constant 11 : index
    %c0_272 = arith.constant 0 : index
    %c0_273 = arith.constant 0 : index
    %126 = vector.load %arg2[%c0_270, %c0_271, %c11, %c0_272, %c0_273] : memref<1x1x15x15x16xf32, #tpu.memory_space<vmem>>, vector<1x1x1x14x16xf32>
    %127 = vector.shape_cast %126 : vector<1x1x1x14x16xf32> to vector<14x16xf32>
    %c140_274 = arith.constant 140 : index
    %c32_275 = arith.constant 32 : index
    %128 = vector.load %arg6[%c140_274, %c32_275] : memref<196x64xf32, #tpu.memory_space<vmem>>, vector<14x16xf32>
    tpu.vector_store %arg6[%c140_274, %c32_275], %127 {strides = array<i32>} : memref<196x64xf32, #tpu.memory_space<vmem>>, vector<14x16xf32>,
    %c0_276 = arith.constant 0 : index
    %c0_277 = arith.constant 0 : index
    %c11_278 = arith.constant 11 : index
    %c1_279 = arith.constant 1 : index
    %c0_280 = arith.constant 0 : index
    %129 = vector.load %arg2[%c0_276, %c0_277, %c11_278, %c1_279, %c0_280] : memref<1x1x15x15x16xf32, #tpu.memory_space<vmem>>, vector<1x1x1x14x16xf32>
    %130 = vector.shape_cast %129 : vector<1x1x1x14x16xf32> to vector<14x16xf32>
    %c140_281 = arith.constant 140 : index
    %c48_282 = arith.constant 48 : index
    %131 = vector.load %arg6[%c140_281, %c48_282] : memref<196x64xf32, #tpu.memory_space<vmem>>, vector<14x16xf32>
    tpu.vector_store %arg6[%c140_281, %c48_282], %130 {strides = array<i32>} : memref<196x64xf32, #tpu.memory_space<vmem>>, vector<14x16xf32>,
    %c0_283 = arith.constant 0 : index
    %c0_284 = arith.constant 0 : index
    %c11_285 = arith.constant 11 : index
    %c0_286 = arith.constant 0 : index
    %c0_287 = arith.constant 0 : index
    %132 = vector.load %arg2[%c0_283, %c0_284, %c11_285, %c0_286, %c0_287] : memref<1x1x15x15x16xf32, #tpu.memory_space<vmem>>, vector<1x1x1x14x16xf32>
    %133 = vector.shape_cast %132 : vector<1x1x1x14x16xf32> to vector<14x16xf32>
    %c154 = arith.constant 154 : index
    %c0_288 = arith.constant 0 : index
    %134 = vector.load %arg6[%c154, %c0_288] : memref<196x64xf32, #tpu.memory_space<vmem>>, vector<14x16xf32>
    tpu.vector_store %arg6[%c154, %c0_288], %133 {strides = array<i32>} : memref<196x64xf32, #tpu.memory_space<vmem>>, vector<14x16xf32>,
    %c0_289 = arith.constant 0 : index
    %c0_290 = arith.constant 0 : index
    %c11_291 = arith.constant 11 : index
    %c1_292 = arith.constant 1 : index
    %c0_293 = arith.constant 0 : index
    %135 = vector.load %arg2[%c0_289, %c0_290, %c11_291, %c1_292, %c0_293] : memref<1x1x15x15x16xf32, #tpu.memory_space<vmem>>, vector<1x1x1x14x16xf32>
    %136 = vector.shape_cast %135 : vector<1x1x1x14x16xf32> to vector<14x16xf32>
    %c154_294 = arith.constant 154 : index
    %c16_295 = arith.constant 16 : index
    %137 = vector.load %arg6[%c154_294, %c16_295] : memref<196x64xf32, #tpu.memory_space<vmem>>, vector<14x16xf32>
    tpu.vector_store %arg6[%c154_294, %c16_295], %136 {strides = array<i32>} : memref<196x64xf32, #tpu.memory_space<vmem>>, vector<14x16xf32>,
    %c0_296 = arith.constant 0 : index
    %c0_297 = arith.constant 0 : index
    %c12 = arith.constant 12 : index
    %c0_298 = arith.constant 0 : index
    %c0_299 = arith.constant 0 : index
    %138 = vector.load %arg2[%c0_296, %c0_297, %c12, %c0_298, %c0_299] : memref<1x1x15x15x16xf32, #tpu.memory_space<vmem>>, vector<1x1x1x14x16xf32>
    %139 = vector.shape_cast %138 : vector<1x1x1x14x16xf32> to vector<14x16xf32>
    %c154_300 = arith.constant 154 : index
    %c32_301 = arith.constant 32 : index
    %140 = vector.load %arg6[%c154_300, %c32_301] : memref<196x64xf32, #tpu.memory_space<vmem>>, vector<14x16xf32>
    tpu.vector_store %arg6[%c154_300, %c32_301], %139 {strides = array<i32>} : memref<196x64xf32, #tpu.memory_space<vmem>>, vector<14x16xf32>,
    %c0_302 = arith.constant 0 : index
    %c0_303 = arith.constant 0 : index
    %c12_304 = arith.constant 12 : index
    %c1_305 = arith.constant 1 : index
    %c0_306 = arith.constant 0 : index
    %141 = vector.load %arg2[%c0_302, %c0_303, %c12_304, %c1_305, %c0_306] : memref<1x1x15x15x16xf32, #tpu.memory_space<vmem>>, vector<1x1x1x14x16xf32>
    %142 = vector.shape_cast %141 : vector<1x1x1x14x16xf32> to vector<14x16xf32>
    %c154_307 = arith.constant 154 : index
    %c48_308 = arith.constant 48 : index
    %143 = vector.load %arg6[%c154_307, %c48_308] : memref<196x64xf32, #tpu.memory_space<vmem>>, vector<14x16xf32>
    tpu.vector_store %arg6[%c154_307, %c48_308], %142 {strides = array<i32>} : memref<196x64xf32, #tpu.memory_space<vmem>>, vector<14x16xf32>,
    %c0_309 = arith.constant 0 : index
    %c0_310 = arith.constant 0 : index
    %c12_311 = arith.constant 12 : index
    %c0_312 = arith.constant 0 : index
    %c0_313 = arith.constant 0 : index
    %144 = vector.load %arg2[%c0_309, %c0_310, %c12_311, %c0_312, %c0_313] : memref<1x1x15x15x16xf32, #tpu.memory_space<vmem>>, vector<1x1x1x14x16xf32>
    %145 = vector.shape_cast %144 : vector<1x1x1x14x16xf32> to vector<14x16xf32>
    %c168 = arith.constant 168 : index
    %c0_314 = arith.constant 0 : index
    %146 = vector.load %arg6[%c168, %c0_314] : memref<196x64xf32, #tpu.memory_space<vmem>>, vector<14x16xf32>
    tpu.vector_store %arg6[%c168, %c0_314], %145 {strides = array<i32>} : memref<196x64xf32, #tpu.memory_space<vmem>>, vector<14x16xf32>,
    %c0_315 = arith.constant 0 : index
    %c0_316 = arith.constant 0 : index
    %c12_317 = arith.constant 12 : index
    %c1_318 = arith.constant 1 : index
    %c0_319 = arith.constant 0 : index
    %147 = vector.load %arg2[%c0_315, %c0_316, %c12_317, %c1_318, %c0_319] : memref<1x1x15x15x16xf32, #tpu.memory_space<vmem>>, vector<1x1x1x14x16xf32>
    %148 = vector.shape_cast %147 : vector<1x1x1x14x16xf32> to vector<14x16xf32>
    %c168_320 = arith.constant 168 : index
    %c16_321 = arith.constant 16 : index
    %149 = vector.load %arg6[%c168_320, %c16_321] : memref<196x64xf32, #tpu.memory_space<vmem>>, vector<14x16xf32>
    tpu.vector_store %arg6[%c168_320, %c16_321], %148 {strides = array<i32>} : memref<196x64xf32, #tpu.memory_space<vmem>>, vector<14x16xf32>,
    %c0_322 = arith.constant 0 : index
    %c0_323 = arith.constant 0 : index
    %c13 = arith.constant 13 : index
    %c0_324 = arith.constant 0 : index
    %c0_325 = arith.constant 0 : index
    %150 = vector.load %arg2[%c0_322, %c0_323, %c13, %c0_324, %c0_325] : memref<1x1x15x15x16xf32, #tpu.memory_space<vmem>>, vector<1x1x1x14x16xf32>
    %151 = vector.shape_cast %150 : vector<1x1x1x14x16xf32> to vector<14x16xf32>
    %c168_326 = arith.constant 168 : index
    %c32_327 = arith.constant 32 : index
    %152 = vector.load %arg6[%c168_326, %c32_327] : memref<196x64xf32, #tpu.memory_space<vmem>>, vector<14x16xf32>
    tpu.vector_store %arg6[%c168_326, %c32_327], %151 {strides = array<i32>} : memref<196x64xf32, #tpu.memory_space<vmem>>, vector<14x16xf32>,
    %c0_328 = arith.constant 0 : index
    %c0_329 = arith.constant 0 : index
    %c13_330 = arith.constant 13 : index
    %c1_331 = arith.constant 1 : index
    %c0_332 = arith.constant 0 : index
    %153 = vector.load %arg2[%c0_328, %c0_329, %c13_330, %c1_331, %c0_332] : memref<1x1x15x15x16xf32, #tpu.memory_space<vmem>>, vector<1x1x1x14x16xf32>
    %154 = vector.shape_cast %153 : vector<1x1x1x14x16xf32> to vector<14x16xf32>
    %c168_333 = arith.constant 168 : index
    %c48_334 = arith.constant 48 : index
    %155 = vector.load %arg6[%c168_333, %c48_334] : memref<196x64xf32, #tpu.memory_space<vmem>>, vector<14x16xf32>
    tpu.vector_store %arg6[%c168_333, %c48_334], %154 {strides = array<i32>} : memref<196x64xf32, #tpu.memory_space<vmem>>, vector<14x16xf32>,
    %c0_335 = arith.constant 0 : index
    %c0_336 = arith.constant 0 : index
    %c13_337 = arith.constant 13 : index
    %c0_338 = arith.constant 0 : index
    %c0_339 = arith.constant 0 : index
    %156 = vector.load %arg2[%c0_335, %c0_336, %c13_337, %c0_338, %c0_339] : memref<1x1x15x15x16xf32, #tpu.memory_space<vmem>>, vector<1x1x1x14x16xf32>
    %157 = vector.shape_cast %156 : vector<1x1x1x14x16xf32> to vector<14x16xf32>
    %c182 = arith.constant 182 : index
    %c0_340 = arith.constant 0 : index
    %158 = vector.load %arg6[%c182, %c0_340] : memref<196x64xf32, #tpu.memory_space<vmem>>, vector<14x16xf32>
    tpu.vector_store %arg6[%c182, %c0_340], %157 {strides = array<i32>} : memref<196x64xf32, #tpu.memory_space<vmem>>, vector<14x16xf32>,
    %c0_341 = arith.constant 0 : index
    %c0_342 = arith.constant 0 : index
    %c13_343 = arith.constant 13 : index
    %c1_344 = arith.constant 1 : index
    %c0_345 = arith.constant 0 : index
    %159 = vector.load %arg2[%c0_341, %c0_342, %c13_343, %c1_344, %c0_345] : memref<1x1x15x15x16xf32, #tpu.memory_space<vmem>>, vector<1x1x1x14x16xf32>
    %160 = vector.shape_cast %159 : vector<1x1x1x14x16xf32> to vector<14x16xf32>
    %c182_346 = arith.constant 182 : index
    %c16_347 = arith.constant 16 : index
    %161 = vector.load %arg6[%c182_346, %c16_347] : memref<196x64xf32, #tpu.memory_space<vmem>>, vector<14x16xf32>
    tpu.vector_store %arg6[%c182_346, %c16_347], %160 {strides = array<i32>} : memref<196x64xf32, #tpu.memory_space<vmem>>, vector<14x16xf32>,
    %c0_348 = arith.constant 0 : index
    %c0_349 = arith.constant 0 : index
    %c14_350 = arith.constant 14 : index
    %c0_351 = arith.constant 0 : index
    %c0_352 = arith.constant 0 : index
    %162 = vector.load %arg2[%c0_348, %c0_349, %c14_350, %c0_351, %c0_352] : memref<1x1x15x15x16xf32, #tpu.memory_space<vmem>>, vector<1x1x1x14x16xf32>
    %163 = vector.shape_cast %162 : vector<1x1x1x14x16xf32> to vector<14x16xf32>
    %c182_353 = arith.constant 182 : index
    %c32_354 = arith.constant 32 : index
    %164 = vector.load %arg6[%c182_353, %c32_354] : memref<196x64xf32, #tpu.memory_space<vmem>>, vector<14x16xf32>
    tpu.vector_store %arg6[%c182_353, %c32_354], %163 {strides = array<i32>} : memref<196x64xf32, #tpu.memory_space<vmem>>, vector<14x16xf32>,
    %c0_355 = arith.constant 0 : index
    %c0_356 = arith.constant 0 : index
    %c14_357 = arith.constant 14 : index
    %c1_358 = arith.constant 1 : index
    %c0_359 = arith.constant 0 : index
    %165 = vector.load %arg2[%c0_355, %c0_356, %c14_357, %c1_358, %c0_359] : memref<1x1x15x15x16xf32, #tpu.memory_space<vmem>>, vector<1x1x1x14x16xf32>
    %166 = vector.shape_cast %165 : vector<1x1x1x14x16xf32> to vector<14x16xf32>
    %c182_360 = arith.constant 182 : index
    %c48_361 = arith.constant 48 : index
    %167 = vector.load %arg6[%c182_360, %c48_361] : memref<196x64xf32, #tpu.memory_space<vmem>>, vector<14x16xf32>
    tpu.vector_store %arg6[%c182_360, %c48_361], %166 {strides = array<i32>} : memref<196x64xf32, #tpu.memory_space<vmem>>, vector<14x16xf32>,
    %c0_362 = arith.constant 0 : index
    %c0_363 = arith.constant 0 : index
    %168 = vector.load %arg6[%c0_362, %c0_363] : memref<196x64xf32, #tpu.memory_space<vmem>>, vector<196x64xf32>
    %c0_364 = arith.constant 0 : index
    %c0_365 = arith.constant 0 : index
    %c0_366 = arith.constant 0 : index
    %169 = vector.load %arg3[%c0_364, %c0_365, %c0_366] : memref<1x64x3xf32, #tpu.memory_space<vmem>>, vector<1x64x3xf32>
    %170 = vector.shape_cast %169 : vector<1x64x3xf32> to vector<64x3xf32>
    %cst = arith.constant dense<0.000000e+00> : vector<196x3xf32>
    %171 = tpu.matmul %168, %170, %cst {dimension_numbers = #tpu.dot_dimension_numbers<[1], [0], [0], [1], [0, 0, 1, 1], [], []>} : vector<196x64xf32>, vector<64x3xf32>, vector<196x3xf32> -> vector<196x3xf32>
    %c0_367 = arith.constant 0 : index
    %c0_368 = arith.constant 0 : index
    %c0_369 = arith.constant 0 : index
    %172 = vector.load %arg4[%c0_367, %c0_368, %c0_369] : memref<1x1x3xf32, #tpu.memory_space<vmem>>, vector<1x1x3xf32>
    %173 = vector.shape_cast %172 : vector<1x1x3xf32> to vector<1x3xf32>
    %174 = vector.broadcast %173 : vector<1x3xf32> to vector<196x3xf32>
    %175 = arith.addf %171, %174 : vector<196x3xf32>
    %cst_370 = arith.constant 0.000000e+00 : f32
    %176 = vector.broadcast %cst_370 : f32 to vector<196x3xf32>
    %177 = arith.subf %176, %175 : vector<196x3xf32>
    %178 = math.exp %177 : vector<196x3xf32>
    %cst_371 = arith.constant 1.000000e+00 : f32
    %179 = vector.broadcast %cst_371 : f32 to vector<196x3xf32>
    %180 = arith.addf %179, %178 : vector<196x3xf32>
    %cst_372 = arith.constant 1.000000e+00 : f32
    %181 = vector.broadcast %cst_372 : f32 to vector<196x3xf32>
    %182 = arith.divf %181, %180 : vector<196x3xf32>
    %c0_373 = arith.constant 0 : index
    %c0_374 = arith.constant 0 : index
    %c0_375 = arith.constant 0 : index
    %c0_376 = arith.constant 0 : index
    %183 = vector.load %arg5[%c0_373, %c0_374, %c0_375, %c0_376] : memref<1x1x196x3xf32, #tpu.memory_space<vmem>>, vector<1x1x196x3xf32>
    %184 = vector.shape_cast %183 : vector<1x1x196x3xf32> to vector<196x3xf32>
    %185 = vector.shape_cast %182 : vector<196x3xf32> to vector<1x1x196x3xf32>
    tpu.vector_store %arg5[%c0_373, %c0_374, %c0_375, %c0_376], %185 {strides = array<i32>} : memref<1x1x196x3xf32, #tpu.memory_space<vmem>>, vector<1x1x196x3xf32>,
    return
  }
  func.func @transform_0(%arg0: i32, %arg1: i32) -> (i32, i32, i32, i32, i32) {
    %c0_i32 = arith.constant 0 : i32
    %c0_i32_0 = arith.constant 0 : i32
    %c0_i32_1 = arith.constant 0 : i32
    %c0_i32_2 = arith.constant 0 : i32
    return %arg0, %arg1, %c0_i32, %c0_i32_0, %c0_i32_1 : i32, i32, i32, i32, i32
  }
  func.func @transform_1(%arg0: i32, %arg1: i32) -> (i32, i32, i32) {
    %c0_i32 = arith.constant 0 : i32
    %c0_i32_0 = arith.constant 0 : i32
    %c0_i32_1 = arith.constant 0 : i32
    return %arg0, %c0_i32, %c0_i32_0 : i32, i32, i32
  }
  func.func @transform_2(%arg0: i32, %arg1: i32) -> (i32, i32, i32) {
    %c0_i32 = arith.constant 0 : i32
    %c0_i32_0 = arith.constant 0 : i32
    %c0_i32_1 = arith.constant 0 : i32
    return %arg0, %c0_i32, %c0_i32_0 : i32, i32, i32
  }
  func.func @transform_3(%arg0: i32, %arg1: i32) -> (i32, i32, i32, i32) {
    %c0_i32 = arith.constant 0 : i32
    %c0_i32_0 = arith.constant 0 : i32
    %c0_i32_1 = arith.constant 0 : i32
    return %arg0, %arg1, %c0_i32, %c0_i32_0 : i32, i32, i32, i32
  }
}

</mosaic_0001>

<llo_original>
// kernel: conv_vae_forward.8
$region0: #{conv_vae_forward.8}
  #allocation0 [shape = 'u32[]', space=smem, size = 0x4, offset = 0x4, fixed_abs, tag = 'smem constant byte address 0x4 - core index']
  #allocation1 [shape = 'u32[144,128]{1,0:T(1,128)}', space=vmem, size = 0x12000, scoped, tag = 'internal scratch']
  #allocation2 [shape = 'f32[196,48]{1,0:T(8,128)}', space=vmem, size = 0x19000, scoped, tag = 'scratch operand']
  %s0 = inlined_call_operand.vmem [shape: f32[1,2,15,15,12], index: 0, kind: input, shape index: {}]
  %s1 = inlined_call_operand.vmem [shape: f32[1,48,8], index: 1, kind: input, shape index: {}]
  %s2 = inlined_call_operand.vmem [shape: f32[1,1,8], index: 2, kind: input, shape index: {}]
  %s3 = inlined_call_operand.vmem [shape: f32[1,2,196,8], index: 3, kind: output, shape index: {}]
  %s4 = sld [smem:[#allocation0]]
  $region45: #{conv_vae_forward.8} parent=0
    _
  %s6 = ssub.s32 1, %s4
  %s7 = scalar_select 0, %s6, %s4
  loop: start=0, step=1, limit=4
  $region2: #{conv_vae_forward.8} parent=0 // loop_pre_header
    _
  $region3: #{conv_vae_forward.8} parent=0 // loop_header
    %s9 = sphi 0, %s13
    %p10 = scmp.ge.s32.totalorder %s9, 4
    %s16 = sphi 0, %s28
    %s17 = sphi 0, %s24
    %s18 = sphi 0, %s16
    %s19 = sphi 0, %s17
    %s20 = sphi 0, %s18
    %s21 = sphi 0, %s19
    %s33 = sphi 0, %s35
    %s36 = sphi 0, %s33
    %s37 = sphi 0, %s36
    %s53 = sphi 0, %s37
    %s59 = sphi 0, %s61
    %s62 = sphi 0, %s59
    %s63 = sphi 0, %s62
    %s79 = sphi 0, %s63
    %s85 = sphi 0, %s87
    %s88 = sphi 0, %s85
    %s89 = sphi 0, %s88
    %s105 = sphi 0, %s89
    %s113 = sphi 0, %s115
    %s116 = sphi 0, %s113
    %s117 = sphi 0, %s116
    %s133 = sphi 0, %s117
  $region4: #{conv_vae_forward.8} parent=0 // loop_header_branch
    %12 = sbr.rel (%p10) target = $region8
  $region5: #{conv_vae_forward.8} parent=0 // loop_body
    %s14 = ssub.s32 %s9, 1
    %s15 = ssub.s32 %s9, 2
    %s22 = sadd.s32 1, %s17
    %p23 = scmp.ge.s32.totalorder %s22, 2
    %s24 = scalar_select %p23, 0, %s22
    %s25 = sadd.s32 1, %s16
    %s26 = scalar_select %p23, %s25, %s16
    %p27 = scmp.ge.s32.totalorder %s26, 1
    %s28 = scalar_select %p27, 0, %s26
    %s29 = ssub.s32 %s16, %s28
    %s30 = ssub.s32 %s17, %s24
    %s31 = sor.u32 %s29, %s30
    %p32 = scmp.eq.s32.totalorder %s31, 0
    %s34 = sadd.s32 %s33, 1
    %s35 = scalar_select %p32, %s33, %s34
    %p38 = pneg %p32
    %p39 = scmp.eq.s32.totalorder %s9, 1
    %p40 = por %p38, %p39
    %p41 = scmp.ne.s32.totalorder %s33, %s36
    %p42 = scmp.eq.s32.totalorder %s9, 0
    %p43 = por %p41, %p42
    %p44 = scmp.ne.s32.totalorder %s33, %s36
    %p45 = scmp.eq.s32.totalorder %s14, 1
    %p46 = por %p44, %p45
    %p47 = scmp.ne.s32.totalorder %s36, %s37
    %p48 = scmp.eq.s32.totalorder %s14, 0
    %p49 = por %p47, %p48
    %p50 = scmp.ne.s32.totalorder %s36, %s37
    %p51 = scmp.eq.s32.totalorder %s15, 1
    %p52 = por %p50, %p51
    %p54 = scmp.ne.s32.totalorder %s37, %s53
    %p55 = scmp.eq.s32.totalorder %s15, 0
    %p56 = por %p54, %p55
    %s57 = ssub.s32 %s16, %s28
    %p58 = scmp.eq.s32.totalorder %s57, 0
    %s60 = sadd.s32 %s59, 1
    %s61 = scalar_select %p58, %s59, %s60
    %p64 = pneg %p58
    %p65 = scmp.eq.s32.totalorder %s9, 1
    %p66 = por %p64, %p65
    %p67 = scmp.ne.s32.totalorder %s59, %s62
    %p68 = scmp.eq.s32.totalorder %s9, 0
    %p69 = por %p67, %p68
    %p70 = scmp.ne.s32.totalorder %s59, %s62
    %p71 = scmp.eq.s32.totalorder %s14, 1
    %p72 = por %p70, %p71
    %p73 = scmp.ne.s32.totalorder %s62, %s63
    %p74 = scmp.eq.s32.totalorder %s14, 0
    %p75 = por %p73, %p74
    %p76 = scmp.ne.s32.totalorder %s62, %s63
    %p77 = scmp.eq.s32.totalorder %s15, 1
    %p78 = por %p76, %p77
    %p80 = scmp.ne.s32.totalorder %s63, %s79
    %p81 = scmp.eq.s32.totalorder %s15, 0
    %p82 = por %p80, %p81
    %s83 = ssub.s32 %s16, %s28
    %p84 = scmp.eq.s32.totalorder %s83, 0
    %s86 = sadd.s32 %s85, 1
    %s87 = scalar_select %p84, %s85, %s86
    %p90 = pneg %p84
    %p91 = scmp.eq.s32.totalorder %s9, 1
    %p92 = por %p90, %p91
    %p93 = scmp.ne.s32.totalorder %s85, %s88
    %p94 = scmp.eq.s32.totalorder %s9, 0
    %p95 = por %p93, %p94
    %p96 = scmp.ne.s32.totalorder %s85, %s88
    %p97 = scmp.eq.s32.totalorder %s14, 1
    %p98 = por %p96, %p97
    %p99 = scmp.ne.s32.totalorder %s88, %s89
    %p100 = scmp.eq.s32.totalorder %s14, 0
    %p101 = por %p99, %p100
    %p102 = scmp.ne.s32.totalorder %s88, %s89
    %p103 = scmp.eq.s32.totalorder %s15, 1
    %p104 = por %p102, %p103
    %p106 = scmp.ne.s32.totalorder %s89, %s105
    %p107 = scmp.eq.s32.totalorder %s15, 0
    %p108 = por %p106, %p107
    %s109 = ssub.s32 %s16, %s28
    %s110 = ssub.s32 %s17, %s24
    %s111 = sor.u32 %s109, %s110
    %p112 = scmp.eq.s32.totalorder %s111, 0
    %s114 = sadd.s32 %s113, 1
    %s115 = scalar_select %p112, %s113, %s114
    %p118 = pneg %p112
    %p119 = scmp.eq.s32.totalorder %s9, 1
    %p120 = por %p118, %p119
    %p121 = scmp.ne.s32.totalorder %s113, %s116
    %p122 = scmp.eq.s32.totalorder %s9, 0
    %p123 = por %p121, %p122
    %p124 = scmp.ne.s32.totalorder %s113, %s116
    %p125 = scmp.eq.s32.totalorder %s14, 1
    %p126 = por %p124, %p125
    %p127 = scmp.ne.s32.totalorder %s116, %s117
    %p128 = scmp.eq.s32.totalorder %s14, 0
    %p129 = por %p127, %p128
    %p130 = scmp.ne.s32.totalorder %s116, %s117
    %p131 = scmp.eq.s32.totalorder %s15, 1
    %p132 = por %p130, %p131
    %p134 = scmp.ne.s32.totalorder %s117, %s133
    %p135 = scmp.eq.s32.totalorder %s15, 0
    %p136 = por %p134, %p135
    %p137 = scmp.le.s32.totalorder 1, %s9
    %p138 = scmp.lt.s32.totalorder %s9, 3
    %p139 = pnand %p137, %p138
    %p140 = pneg %p139
    // Predicated region
    $region9: #{conv_vae_forward.8} parent=5 // pred_check
      _
    $region10: #{conv_vae_forward.8} parent=5 // pred_check_branch
      %142 = sbr.rel (%p139) target = $region12
    $region11: #{conv_vae_forward.8} parent=5 // pred_region
      %s143 = ssub.s32 %s9, 1
      // Predicated region
      $region13: #{conv_vae_forward.8} parent=11 // pred_check
        %p144 = pneg %p75
      $region14: #{conv_vae_forward.8} parent=11 // pred_check_branch
        %146 = sbr.rel (%p144) target = $region16
      $region15: #{conv_vae_forward.8} parent=11 // pred_region
        %p147 = scmp.lt.s32.totalorder %s18, 0
        %s148 = scalar_select %p147, %s18, 0
        %s149 = smul.addr %s148, 6
        %s150 = smul.addr %s149, 8
        %s151 = scalar_lea.vmem %s1, %s150
      $region16: #{conv_vae_forward.8} parent=11 // pred_fallthru
        _
      // Predicated region
      $region17: #{conv_vae_forward.8} parent=11 // pred_check
        %p152 = pneg %p101
      $region18: #{conv_vae_forward.8} parent=11 // pred_check_branch
        %154 = sbr.rel (%p152) target = $region20
      $region19: #{conv_vae_forward.8} parent=11 // pred_region
        %p155 = scmp.lt.s32.totalorder %s18, 0
        %s156 = scalar_select %p155, %s18, 0
        %s157 = scalar_lea.vmem %s2, %s156
      $region20: #{conv_vae_forward.8} parent=11 // pred_fallthru
        _
    $region12: #{conv_vae_forward.8} parent=5 // pred_fallthru
      _
    %p158 = scmp.lt.s32.totalorder %s9, 2
    // Predicated region
    $region21: #{conv_vae_forward.8} parent=5 // pred_check
      %p159 = pneg %p158
    $region22: #{conv_vae_forward.8} parent=5 // pred_check_branch
      %161 = sbr.rel (%p159) target = $region24
    $region23: #{conv_vae_forward.8} parent=5 // pred_region
      // Predicated region
      $region25: #{conv_vae_forward.8} parent=23 // pred_check
        %p162 = pneg %p43
      $region26: #{conv_vae_forward.8} parent=23 // pred_check_branch
        %164 = sbr.rel (%p162) target = $region28
      $region27: #{conv_vae_forward.8} parent=23 // pred_region
        %p165 = scmp.lt.s32.totalorder %s16, 0
        %s166 = scalar_select %p165, %s16, 0
        %p167 = scmp.lt.s32.totalorder %s17, 1
        %s168 = scalar_select %p167, %s17, 1
        %s169 = smul.addr %s168, 30
        %s170 = smul.addr %s166, 60
        %s171 = sadd.s32 %s169, %s170
        %s172 = smul.addr %s171, 8
        %s173 = scalar_lea.vmem %s0, %s172
      $region28: #{conv_vae_forward.8} parent=23 // pred_fallthru
        _
    $region24: #{conv_vae_forward.8} parent=5 // pred_fallthru
      _
    %p174 = scmp.le.s32.totalorder 1, %s9
    %p175 = scmp.lt.s32.totalorder %s9, 3
    %p176 = pnand %p174, %p175
    %p177 = pneg %p176
    // Predicated region
    $region29: #{conv_vae_forward.8} parent=5 // pred_check
      _
    $region30: #{conv_vae_forward.8} parent=5 // pred_check_branch
      %179 = sbr.rel (%p176) target = $region32
    $region31: #{conv_vae_forward.8} parent=5 // pred_region
      %s180 = ssub.s32 %s9, 1
      %p181 = scmp.lt.s32.totalorder %s18, 0
      %s182 = scalar_select %p181, %s18, 0
      %p183 = scmp.lt.s32.totalorder %s19, 1
      %s184 = scalar_select %p183, %s19, 1
      %s185 = smul.addr %s184, 30
      %s186 = smul.addr %s182, 60
      %s187 = sadd.s32 %s185, %s186
      %s188 = smul.addr %s187, 8
      %s189 = scalar_lea.vmem %s0, %s188
      %p190 = pneg %p49
      %p191 = pneg %p46
      %p192 = scmp.lt.s32.totalorder %s18, 0
      %s193 = scalar_select %p192, %s18, 0
      %s194 = smul.addr %s193, 6
      %s195 = smul.addr %s194, 8
      %s196 = scalar_lea.vmem %s1, %s195
      %p197 = pneg %p75
      %p198 = pneg %p72
      %p199 = scmp.lt.s32.totalorder %s18, 0
      %s200 = scalar_select %p199, %s18, 0
      %s201 = scalar_lea.vmem %s2, %s200
      %p202 = pneg %p101
      %p203 = pneg %p98
      %p204 = pneg %p129
      %p205 = pneg %p126
      %p206 = scmp.lt.s32.totalorder %s18, 0
      %s207 = scalar_select %p206, %s18, 0
      %p208 = scmp.lt.s32.totalorder %s19, 1
      %s209 = scalar_select %p208, %s19, 1
      %s210 = smul.addr %s209, 25
      %s211 = smul.addr %s207, 50
      %s212 = sadd.s32 %s210, %s211
      %s213 = smul.addr %s212, 8
      %s214 = scalar_lea.vmem %s3, %s213
      %p215 = scmp.lt.s32.totalorder %s18, 0
      %s216 = scalar_select %p215, %s18, 0
      %p217 = scmp.lt.s32.totalorder %s19, 1
      %s218 = scalar_select %p217, %s19, 1
      %s219 = smul.addr %s218, 30
      %s220 = smul.addr %s216, 60
      %s221 = sadd.s32 %s219, %s220
      %s222 = smul.addr %s221, 8
      %s223 = scalar_lea.vmem %s0, %s222
      %p224 = scmp.lt.s32.totalorder %s18, 0
      %s225 = scalar_select %p224, %s18, 0
      %s226 = smul.addr %s225, 6
      %s227 = smul.addr %s226, 8
      %s228 = scalar_lea.vmem %s1, %s227
      %p229 = scmp.lt.s32.totalorder %s18, 0
      %s230 = scalar_select %p229, %s18, 0
      %s231 = scalar_lea.vmem %s2, %s230
      %p232 = scmp.lt.s32.totalorder %s18, 0
      %s233 = scalar_select %p232, %s18, 0
      %p234 = scmp.lt.s32.totalorder %s19, 1
      %s235 = scalar_select %p234, %s19, 1
      %s236 = smul.addr %s235, 25
      %s237 = smul.addr %s233, 50
      %s238 = sadd.s32 %s236, %s237
      %s239 = smul.addr %s238, 8
      %s240 = scalar_lea.vmem %s3, %s239
      %v241 = vld [vmem:[%s223] sm:$0xff]
      %v242 = vld [vmem:[%s223 + $0x8] sm:$0x3f]
      %vm243 = vcmask 97280
      %244 = vst.msk [vmem:[#allocation2] sm:$0xff] %vm243, %v241
      %vm245 = vcmask 95232
      %246 = vst.msk [vmem:[#allocation2 + $0x8] sm:$0x3f] %vm245, %v242
      %v247 = vld [vmem:[%s223 + $0x1] sm:$0xff]
      %v248 = vld [vmem:[%s223 + $0x9] sm:$0x3f]
      %251 = vrot.lane.b32.xlu0 %v247, 12
      %v252 = vpop.permute.xlu0 %251
      %253 = vrot.lane.b32.xlu0 %v248, 12
      %v254 = vpop.permute.xlu0 %253
      %vm257 = vcmask 195680
      %258 = vst.msk [vmem:[#allocation2] sm:$0xff] %vm257, %v252
      %vm259 = vcmask 193632
      %260 = vst.msk [vmem:[#allocation2 + $0x8] sm:$0x3f] %vm259, %v254
      %s261 = scalar_lea.vmem %s223, 16
      %v262 = vld [vmem:[%s261] sm:$0xff]
      %v263 = vld [vmem:[%s261 + $0x8] sm:$0x3f]
      %266 = vrot.lane.b32.xlu0 %v262, 24
      %v267 = vpop.permute.xlu0 %266
      %268 = vrot.lane.b32.xlu0 %v263, 24
      %v269 = vpop.permute.xlu0 %268
      %vm272 = vcmask 294080
      %273 = vst.msk [vmem:[#allocation2] sm:$0xff] %vm272, %v267
      %vm274 = vcmask 292032
      %275 = vst.msk [vmem:[#allocation2 + $0x8] sm:$0x3f] %vm274, %v269
      %v276 = vld [vmem:[%s261 + $0x1] sm:$0xff]
      %v277 = vld [vmem:[%s261 + $0x9] sm:$0x3f]
      %280 = vrot.lane.b32.xlu0 %v276, 36
      %v281 = vpop.permute.xlu0 %280
      %282 = vrot.lane.b32.xlu0 %v277, 36
      %v283 = vpop.permute.xlu0 %282
      %vm286 = vcmask 392480
      %287 = vst.msk [vmem:[#allocation2] sm:$0xff] %vm286, %v281
      %vm288 = vcmask 390432
      %289 = vst.msk [vmem:[#allocation2 + $0x8] sm:$0x3f] %vm288, %v283
      %v290 = vld [vmem:[%s261] sm:$0xff]
      %v291 = vld [vmem:[%s261 + $0x8] sm:$0x3f]
      %292 = vst.msk [vmem:[#allocation2 + $0xe] sm:$0xff] %vm243, %v290
      %293 = vst.msk [vmem:[#allocation2 + $0x16] sm:$0x3f] %vm245, %v291
      %v294 = vld [vmem:[%s261 + $0x1] sm:$0xff]
      %v295 = vld [vmem:[%s261 + $0x9] sm:$0x3f]
      %298 = vrot.lane.b32.xlu0 %v294, 12
      %v299 = vpop.permute.xlu0 %298
      %300 = vrot.lane.b32.xlu0 %v295, 12
      %v301 = vpop.permute.xlu0 %300
      %304 = vst.msk [vmem:[#allocation2 + $0xe] sm:$0xff] %vm257, %v299
      %305 = vst.msk [vmem:[#allocation2 + $0x16] sm:$0x3f] %vm259, %v301
      %s306 = scalar_lea.vmem %s223, 32
      %v307 = vld [vmem:[%s306] sm:$0xff]
      %v308 = vld [vmem:[%s306 + $0x8] sm:$0x3f]
      %311 = vrot.lane.b32.xlu0 %v307, 24
      %v312 = vpop.permute.xlu0 %311
      %313 = vrot.lane.b32.xlu0 %v308, 24
      %v314 = vpop.permute.xlu0 %313
      %317 = vst.msk [vmem:[#allocation2 + $0xe] sm:$0xff] %vm272, %v312
      %318 = vst.msk [vmem:[#allocation2 + $0x16] sm:$0x3f] %vm274, %v314
      %v319 = vld [vmem:[%s306 + $0x1] sm:$0xff]
      %v320 = vld [vmem:[%s306 + $0x9] sm:$0x3f]
      %323 = vrot.lane.b32.xlu0 %v319, 36
      %v324 = vpop.permute.xlu0 %323
      %325 = vrot.lane.b32.xlu0 %v320, 36
      %v326 = vpop.permute.xlu0 %325
      %329 = vst.msk [vmem:[#allocation2 + $0xe] sm:$0xff] %vm286, %v324
      %330 = vst.msk [vmem:[#allocation2 + $0x16] sm:$0x3f] %vm288, %v326
      %v331 = vld [vmem:[%s306] sm:$0xff]
      %v332 = vld [vmem:[%s306 + $0x8] sm:$0x3f]
      %333 = vst.msk [vmem:[#allocation2 + $0x1c] sm:$0xff] %vm243, %v331
      %334 = vst.msk [vmem:[#allocation2 + $0x24] sm:$0x3f] %vm245, %v332
      %v335 = vld [vmem:[%s306 + $0x1] sm:$0xff]
      %v336 = vld [vmem:[%s306 + $0x9] sm:$0x3f]
      %339 = vrot.lane.b32.xlu0 %v335, 12
      %v340 = vpop.permute.xlu0 %339
      %341 = vrot.lane.b32.xlu0 %v336, 12
      %v342 = vpop.permute.xlu0 %341
      %345 = vst.msk [vmem:[#allocation2 + $0x1c] sm:$0xff] %vm257, %v340
      %346 = vst.msk [vmem:[#allocation2 + $0x24] sm:$0x3f] %vm259, %v342
      %s347 = scalar_lea.vmem %s223, 48
      %v348 = vld [vmem:[%s347] sm:$0xff]
      %v349 = vld [vmem:[%s347 + $0x8] sm:$0x3f]
      %352 = vrot.lane.b32.xlu0 %v348, 24
      %v353 = vpop.permute.xlu0 %352
      %354 = vrot.lane.b32.xlu0 %v349, 24
      %v355 = vpop.permute.xlu0 %354
      %358 = vst.msk [vmem:[#allocation2 + $0x1c] sm:$0xff] %vm272, %v353
      %359 = vst.msk [vmem:[#allocation2 + $0x24] sm:$0x3f] %vm274, %v355
      %v360 = vld [vmem:[%s347 + $0x1] sm:$0xff]
      %v361 = vld [vmem:[%s347 + $0x9] sm:$0x3f]
      %364 = vrot.lane.b32.xlu0 %v360, 36
      %v365 = vpop.permute.xlu0 %364
      %366 = vrot.lane.b32.xlu0 %v361, 36
      %v367 = vpop.permute.xlu0 %366
      %370 = vst.msk [vmem:[#allocation2 + $0x1c] sm:$0xff] %vm286, %v365
      %371 = vst.msk [vmem:[#allocation2 + $0x24] sm:$0x3f] %vm288, %v367
      %v372 = vld [vmem:[%s347] sm:$0xff]
      %v373 = vld [vmem:[%s347 + $0x8] sm:$0x3f]
      %374 = vst.msk [vmem:[#allocation2 + $0x2a] sm:$0xff] %vm243, %v372
      %375 = vst.msk [vmem:[#allocation2 + $0x32] sm:$0x3f] %vm245, %v373
      %v376 = vld [vmem:[%s347 + $0x1] sm:$0xff]
      %v377 = vld [vmem:[%s347 + $0x9] sm:$0x3f]
      %380 = vrot.lane.b32.xlu0 %v376, 12
      %v381 = vpop.permute.xlu0 %380
      %382 = vrot.lane.b32.xlu0 %v377, 12
      %v383 = vpop.permute.xlu0 %382
      %386 = vst.msk [vmem:[#allocation2 + $0x2a] sm:$0xff] %vm257, %v381
      %387 = vst.msk [vmem:[#allocation2 + $0x32] sm:$0x3f] %vm259, %v383
      %s388 = scalar_lea.vmem %s223, 64
      %v389 = vld [vmem:[%s388] sm:$0xff]
      %v390 = vld [vmem:[%s388 + $0x8] sm:$0x3f]
      %393 = vrot.lane.b32.xlu0 %v389, 24
      %v394 = vpop.permute.xlu0 %393
      %395 = vrot.lane.b32.xlu0 %v390, 24
      %v396 = vpop.permute.xlu0 %395
      %399 = vst.msk [vmem:[#allocation2 + $0x2a] sm:$0xff] %vm272, %v394
      %400 = vst.msk [vmem:[#allocation2 + $0x32] sm:$0x3f] %vm274, %v396
      %v401 = vld [vmem:[%s388 + $0x1] sm:$0xff]
      %v402 = vld [vmem:[%s388 + $0x9] sm:$0x3f]
      %405 = vrot.lane.b32.xlu0 %v401, 36
      %v406 = vpop.permute.xlu0 %405
      %407 = vrot.lane.b32.xlu0 %v402, 36
      %v408 = vpop.permute.xlu0 %407
      %411 = vst.msk [vmem:[#allocation2 + $0x2a] sm:$0xff] %vm286, %v406
      %412 = vst.msk [vmem:[#allocation2 + $0x32] sm:$0x3f] %vm288, %v408
      %v413 = vld [vmem:[%s388] sm:$0xff]
      %v414 = vld [vmem:[%s388 + $0x8] sm:$0x3f]
      %415 = vst.msk [vmem:[#allocation2 + $0x38] sm:$0xff] %vm243, %v413
      %416 = vst.msk [vmem:[#allocation2 + $0x40] sm:$0x3f] %vm245, %v414
      %v417 = vld [vmem:[%s388 + $0x1] sm:$0xff]
      %v418 = vld [vmem:[%s388 + $0x9] sm:$0x3f]
      %421 = vrot.lane.b32.xlu0 %v417, 12
      %v422 = vpop.permute.xlu0 %421
      %423 = vrot.lane.b32.xlu0 %v418, 12
      %v424 = vpop.permute.xlu0 %423
      %427 = vst.msk [vmem:[#allocation2 + $0x38] sm:$0xff] %vm257, %v422
      %428 = vst.msk [vmem:[#allocation2 + $0x40] sm:$0x3f] %vm259, %v424
      %s429 = scalar_lea.vmem %s223, 80
      %v430 = vld [vmem:[%s429] sm:$0xff]
      %v431 = vld [vmem:[%s429 + $0x8] sm:$0x3f]
      %434 = vrot.lane.b32.xlu0 %v430, 24
      %v435 = vpop.permute.xlu0 %434
      %436 = vrot.lane.b32.xlu0 %v431, 24
      %v437 = vpop.permute.xlu0 %436
      %440 = vst.msk [vmem:[#allocation2 + $0x38] sm:$0xff] %vm272, %v435
      %441 = vst.msk [vmem:[#allocation2 + $0x40] sm:$0x3f] %vm274, %v437
      %v442 = vld [vmem:[%s429 + $0x1] sm:$0xff]
      %v443 = vld [vmem:[%s429 + $0x9] sm:$0x3f]
      %446 = vrot.lane.b32.xlu0 %v442, 36
      %v447 = vpop.permute.xlu0 %446
      %448 = vrot.lane.b32.xlu0 %v443, 36
      %v449 = vpop.permute.xlu0 %448
      %452 = vst.msk [vmem:[#allocation2 + $0x38] sm:$0xff] %vm286, %v447
      %453 = vst.msk [vmem:[#allocation2 + $0x40] sm:$0x3f] %vm288, %v449
      %v454 = vld [vmem:[%s429] sm:$0xff]
      %v455 = vld [vmem:[%s429 + $0x8] sm:$0x3f]
      %456 = vst.msk [vmem:[#allocation2 + $0x46] sm:$0xff] %vm243, %v454
      %457 = vst.msk [vmem:[#allocation2 + $0x4e] sm:$0x3f] %vm245, %v455
      %v458 = vld [vmem:[%s429 + $0x1] sm:$0xff]
      %v459 = vld [vmem:[%s429 + $0x9] sm:$0x3f]
      %462 = vrot.lane.b32.xlu0 %v458, 12
      %v463 = vpop.permute.xlu0 %462
      %464 = vrot.lane.b32.xlu0 %v459, 12
      %v465 = vpop.permute.xlu0 %464
      %468 = vst.msk [vmem:[#allocation2 + $0x46] sm:$0xff] %vm257, %v463
      %469 = vst.msk [vmem:[#allocation2 + $0x4e] sm:$0x3f] %vm259, %v465
      %s470 = scalar_lea.vmem %s223, 96
      %v471 = vld [vmem:[%s470] sm:$0xff]
      %v472 = vld [vmem:[%s470 + $0x8] sm:$0x3f]
      %475 = vrot.lane.b32.xlu0 %v471, 24
      %v476 = vpop.permute.xlu0 %475
      %477 = vrot.lane.b32.xlu0 %v472, 24
      %v478 = vpop.permute.xlu0 %477
      %481 = vst.msk [vmem:[#allocation2 + $0x46] sm:$0xff] %vm272, %v476
      %482 = vst.msk [vmem:[#allocation2 + $0x4e] sm:$0x3f] %vm274, %v478
      %v483 = vld [vmem:[%s470 + $0x1] sm:$0xff]
      %v484 = vld [vmem:[%s470 + $0x9] sm:$0x3f]
      %487 = vrot.lane.b32.xlu0 %v483, 36
      %v488 = vpop.permute.xlu0 %487
      %489 = vrot.lane.b32.xlu0 %v484, 36
      %v490 = vpop.permute.xlu0 %489
      %493 = vst.msk [vmem:[#allocation2 + $0x46] sm:$0xff] %vm286, %v488
      %494 = vst.msk [vmem:[#allocation2 + $0x4e] sm:$0x3f] %vm288, %v490
      %v495 = vld [vmem:[%s470] sm:$0xff]
      %v496 = vld [vmem:[%s470 + $0x8] sm:$0x3f]
      %497 = vst.msk [vmem:[#allocation2 + $0x54] sm:$0xff] %vm243, %v495
      %498 = vst.msk [vmem:[#allocation2 + $0x5c] sm:$0x3f] %vm245, %v496
      %v499 = vld [vmem:[%s470 + $0x1] sm:$0xff]
      %v500 = vld [vmem:[%s470 + $0x9] sm:$0x3f]
      %503 = vrot.lane.b32.xlu0 %v499, 12
      %v504 = vpop.permute.xlu0 %503
      %505 = vrot.lane.b32.xlu0 %v500, 12
      %v506 = vpop.permute.xlu0 %505
      %509 = vst.msk [vmem:[#allocation2 + $0x54] sm:$0xff] %vm257, %v504
      %510 = vst.msk [vmem:[#allocation2 + $0x5c] sm:$0x3f] %vm259, %v506
      %s511 = scalar_lea.vmem %s223, 112
      %v512 = vld [vmem:[%s511] sm:$0xff]
      %v513 = vld [vmem:[%s511 + $0x8] sm:$0x3f]
      %516 = vrot.lane.b32.xlu0 %v512, 24
      %v517 = vpop.permute.xlu0 %516
      %518 = vrot.lane.b32.xlu0 %v513, 24
      %v519 = vpop.permute.xlu0 %518
      %522 = vst.msk [vmem:[#allocation2 + $0x54] sm:$0xff] %vm272, %v517
      %523 = vst.msk [vmem:[#allocation2 + $0x5c] sm:$0x3f] %vm274, %v519
      %v524 = vld [vmem:[%s511 + $0x1] sm:$0xff]
      %v525 = vld [vmem:[%s511 + $0x9] sm:$0x3f]
      %528 = vrot.lane.b32.xlu0 %v524, 36
      %v529 = vpop.permute.xlu0 %528
      %530 = vrot.lane.b32.xlu0 %v525, 36
      %v531 = vpop.permute.xlu0 %530
      %534 = vst.msk [vmem:[#allocation2 + $0x54] sm:$0xff] %vm286, %v529
      %535 = vst.msk [vmem:[#allocation2 + $0x5c] sm:$0x3f] %vm288, %v531
      %v536 = vld [vmem:[%s511] sm:$0xff]
      %v537 = vld [vmem:[%s511 + $0x8] sm:$0x3f]
      %538 = vst.msk [vmem:[#allocation2 + $0x62] sm:$0xff] %vm243, %v536
      %539 = vst.msk [vmem:[#allocation2 + $0x6a] sm:$0x3f] %vm245, %v537
      %v540 = vld [vmem:[%s511 + $0x1] sm:$0xff]
      %v541 = vld [vmem:[%s511 + $0x9] sm:$0x3f]
      %544 = vrot.lane.b32.xlu0 %v540, 12
      %v545 = vpop.permute.xlu0 %544
      %546 = vrot.lane.b32.xlu0 %v541, 12
      %v547 = vpop.permute.xlu0 %546
      %550 = vst.msk [vmem:[#allocation2 + $0x62] sm:$0xff] %vm257, %v545
      %551 = vst.msk [vmem:[#allocation2 + $0x6a] sm:$0x3f] %vm259, %v547
      %s552 = scalar_lea.vmem %s223, 128
      %v553 = vld [vmem:[%s552] sm:$0xff]
      %v554 = vld [vmem:[%s552 + $0x8] sm:$0x3f]
      %557 = vrot.lane.b32.xlu0 %v553, 24
      %v558 = vpop.permute.xlu0 %557
      %559 = vrot.lane.b32.xlu0 %v554, 24
      %v560 = vpop.permute.xlu0 %559
      %563 = vst.msk [vmem:[#allocation2 + $0x62] sm:$0xff] %vm272, %v558
      %564 = vst.msk [vmem:[#allocation2 + $0x6a] sm:$0x3f] %vm274, %v560
      %v565 = vld [vmem:[%s552 + $0x1] sm:$0xff]
      %v566 = vld [vmem:[%s552 + $0x9] sm:$0x3f]
      %569 = vrot.lane.b32.xlu0 %v565, 36
      %v570 = vpop.permute.xlu0 %569
      %571 = vrot.lane.b32.xlu0 %v566, 36
      %v572 = vpop.permute.xlu0 %571
      %575 = vst.msk [vmem:[#allocation2 + $0x62] sm:$0xff] %vm286, %v570
      %576 = vst.msk [vmem:[#allocation2 + $0x6a] sm:$0x3f] %vm288, %v572
      %v577 = vld [vmem:[%s552] sm:$0xff]
      %v578 = vld [vmem:[%s552 + $0x8] sm:$0x3f]
      %579 = vst.msk [vmem:[#allocation2 + $0x70] sm:$0xff] %vm243, %v577
      %580 = vst.msk [vmem:[#allocation2 + $0x78] sm:$0x3f] %vm245, %v578
      %v581 = vld [vmem:[%s552 + $0x1] sm:$0xff]
      %v582 = vld [vmem:[%s552 + $0x9] sm:$0x3f]
      %585 = vrot.lane.b32.xlu0 %v581, 12
      %v586 = vpop.permute.xlu0 %585
      %587 = vrot.lane.b32.xlu0 %v582, 12
      %v588 = vpop.permute.xlu0 %587
      %591 = vst.msk [vmem:[#allocation2 + $0x70] sm:$0xff] %vm257, %v586
      %592 = vst.msk [vmem:[#allocation2 + $0x78] sm:$0x3f] %vm259, %v588
      %s593 = scalar_lea.vmem %s223, 144
      %v594 = vld [vmem:[%s593] sm:$0xff]
      %v595 = vld [vmem:[%s593 + $0x8] sm:$0x3f]
      %598 = vrot.lane.b32.xlu0 %v594, 24
      %v599 = vpop.permute.xlu0 %598
      %600 = vrot.lane.b32.xlu0 %v595, 24
      %v601 = vpop.permute.xlu0 %600
      %604 = vst.msk [vmem:[#allocation2 + $0x70] sm:$0xff] %vm272, %v599
      %605 = vst.msk [vmem:[#allocation2 + $0x78] sm:$0x3f] %vm274, %v601
      %v606 = vld [vmem:[%s593 + $0x1] sm:$0xff]
      %v607 = vld [vmem:[%s593 + $0x9] sm:$0x3f]
      %610 = vrot.lane.b32.xlu0 %v606, 36
      %v611 = vpop.permute.xlu0 %610
      %612 = vrot.lane.b32.xlu0 %v607, 36
      %v613 = vpop.permute.xlu0 %612
      %616 = vst.msk [vmem:[#allocation2 + $0x70] sm:$0xff] %vm286, %v611
      %617 = vst.msk [vmem:[#allocation2 + $0x78] sm:$0x3f] %vm288, %v613
      %v618 = vld [vmem:[%s593] sm:$0xff]
      %v619 = vld [vmem:[%s593 + $0x8] sm:$0x3f]
      %620 = vst.msk [vmem:[#allocation2 + $0x7e] sm:$0xff] %vm243, %v618
      %621 = vst.msk [vmem:[#allocation2 + $0x86] sm:$0x3f] %vm245, %v619
      %v622 = vld [vmem:[%s593 + $0x1] sm:$0xff]
      %v623 = vld [vmem:[%s593 + $0x9] sm:$0x3f]
      %626 = vrot.lane.b32.xlu0 %v622, 12
      %v627 = vpop.permute.xlu0 %626
      %628 = vrot.lane.b32.xlu0 %v623, 12
      %v629 = vpop.permute.xlu0 %628
      %632 = vst.msk [vmem:[#allocation2 + $0x7e] sm:$0xff] %vm257, %v627
      %633 = vst.msk [vmem:[#allocation2 + $0x86] sm:$0x3f] %vm259, %v629
      %s634 = scalar_lea.vmem %s223, 160
      %v635 = vld [vmem:[%s634] sm:$0xff]
      %v636 = vld [vmem:[%s634 + $0x8] sm:$0x3f]
      %639 = vrot.lane.b32.xlu0 %v635, 24
      %v640 = vpop.permute.xlu0 %639
      %641 = vrot.lane.b32.xlu0 %v636, 24
      %v642 = vpop.permute.xlu0 %641
      %645 = vst.msk [vmem:[#allocation2 + $0x7e] sm:$0xff] %vm272, %v640
      %646 = vst.msk [vmem:[#allocation2 + $0x86] sm:$0x3f] %vm274, %v642
      %v647 = vld [vmem:[%s634 + $0x1] sm:$0xff]
      %v648 = vld [vmem:[%s634 + $0x9] sm:$0x3f]
      %651 = vrot.lane.b32.xlu0 %v647, 36
      %v652 = vpop.permute.xlu0 %651
      %653 = vrot.lane.b32.xlu0 %v648, 36
      %v654 = vpop.permute.xlu0 %653
      %657 = vst.msk [vmem:[#allocation2 + $0x7e] sm:$0xff] %vm286, %v652
      %658 = vst.msk [vmem:[#allocation2 + $0x86] sm:$0x3f] %vm288, %v654
      %v659 = vld [vmem:[%s634] sm:$0xff]
      %v660 = vld [vmem:[%s634 + $0x8] sm:$0x3f]
      %661 = vst.msk [vmem:[#allocation2 + $0x8c] sm:$0xff] %vm243, %v659
      %662 = vst.msk [vmem:[#allocation2 + $0x94] sm:$0x3f] %vm245, %v660
      %v663 = vld [vmem:[%s634 + $0x1] sm:$0xff]
      %v664 = vld [vmem:[%s634 + $0x9] sm:$0x3f]
      %667 = vrot.lane.b32.xlu0 %v663, 12
      %v668 = vpop.permute.xlu0 %667
      %669 = vrot.lane.b32.xlu0 %v664, 12
      %v670 = vpop.permute.xlu0 %669
      %673 = vst.msk [vmem:[#allocation2 + $0x8c] sm:$0xff] %vm257, %v668
      %674 = vst.msk [vmem:[#allocation2 + $0x94] sm:$0x3f] %vm259, %v670
      %s675 = scalar_lea.vmem %s223, 176
      %v676 = vld [vmem:[%s675] sm:$0xff]
      %v677 = vld [vmem:[%s675 + $0x8] sm:$0x3f]
      %680 = vrot.lane.b32.xlu0 %v676, 24
      %v681 = vpop.permute.xlu0 %680
      %682 = vrot.lane.b32.xlu0 %v677, 24
      %v683 = vpop.permute.xlu0 %682
      %686 = vst.msk [vmem:[#allocation2 + $0x8c] sm:$0xff] %vm272, %v681
      %687 = vst.msk [vmem:[#allocation2 + $0x94] sm:$0x3f] %vm274, %v683
      %v688 = vld [vmem:[%s675 + $0x1] sm:$0xff]
      %v689 = vld [vmem:[%s675 + $0x9] sm:$0x3f]
      %692 = vrot.lane.b32.xlu0 %v688, 36
      %v693 = vpop.permute.xlu0 %692
      %694 = vrot.lane.b32.xlu0 %v689, 36
      %v695 = vpop.permute.xlu0 %694
      %698 = vst.msk [vmem:[#allocation2 + $0x8c] sm:$0xff] %vm286, %v693
      %699 = vst.msk [vmem:[#allocation2 + $0x94] sm:$0x3f] %vm288, %v695
      %v700 = vld [vmem:[%s675] sm:$0xff]
      %v701 = vld [vmem:[%s675 + $0x8] sm:$0x3f]
      %702 = vst.msk [vmem:[#allocation2 + $0x9a] sm:$0xff] %vm243, %v700
      %703 = vst.msk [vmem:[#allocation2 + $0xa2] sm:$0x3f] %vm245, %v701
      %v704 = vld [vmem:[%s675 + $0x1] sm:$0xff]
      %v705 = vld [vmem:[%s675 + $0x9] sm:$0x3f]
      %708 = vrot.lane.b32.xlu0 %v704, 12
      %v709 = vpop.permute.xlu0 %708
      %710 = vrot.lane.b32.xlu0 %v705, 12
      %v711 = vpop.permute.xlu0 %710
      %714 = vst.msk [vmem:[#allocation2 + $0x9a] sm:$0xff] %vm257, %v709
      %715 = vst.msk [vmem:[#allocation2 + $0xa2] sm:$0x3f] %vm259, %v711
      %s716 = scalar_lea.vmem %s223, 192
      %v717 = vld [vmem:[%s716] sm:$0xff]
      %v718 = vld [vmem:[%s716 + $0x8] sm:$0x3f]
      %721 = vrot.lane.b32.xlu0 %v717, 24
      %v722 = vpop.permute.xlu0 %721
      %723 = vrot.lane.b32.xlu0 %v718, 24
      %v724 = vpop.permute.xlu0 %723
      %727 = vst.msk [vmem:[#allocation2 + $0x9a] sm:$0xff] %vm272, %v722
      %728 = vst.msk [vmem:[#allocation2 + $0xa2] sm:$0x3f] %vm274, %v724
      %v729 = vld [vmem:[%s716 + $0x1] sm:$0xff]
      %v730 = vld [vmem:[%s716 + $0x9] sm:$0x3f]
      %733 = vrot.lane.b32.xlu0 %v729, 36
      %v734 = vpop.permute.xlu0 %733
      %735 = vrot.lane.b32.xlu0 %v730, 36
      %v736 = vpop.permute.xlu0 %735
      %739 = vst.msk [vmem:[#allocation2 + $0x9a] sm:$0xff] %vm286, %v734
      %740 = vst.msk [vmem:[#allocation2 + $0xa2] sm:$0x3f] %vm288, %v736
      %v741 = vld [vmem:[%s716] sm:$0xff]
      %v742 = vld [vmem:[%s716 + $0x8] sm:$0x3f]
      %743 = vst.msk [vmem:[#allocation2 + $0xa8] sm:$0xff] %vm243, %v741
      %744 = vst.msk [vmem:[#allocation2 + $0xb0] sm:$0x3f] %vm245, %v742
      %v745 = vld [vmem:[%s716 + $0x1] sm:$0xff]
      %v746 = vld [vmem:[%s716 + $0x9] sm:$0x3f]
      %749 = vrot.lane.b32.xlu0 %v745, 12
      %v750 = vpop.permute.xlu0 %749
      %751 = vrot.lane.b32.xlu0 %v746, 12
      %v752 = vpop.permute.xlu0 %751
      %755 = vst.msk [vmem:[#allocation2 + $0xa8] sm:$0xff] %vm257, %v750
      %756 = vst.msk [vmem:[#allocation2 + $0xb0] sm:$0x3f] %vm259, %v752
      %s757 = scalar_lea.vmem %s223, 208
      %v758 = vld [vmem:[%s757] sm:$0xff]
      %v759 = vld [vmem:[%s757 + $0x8] sm:$0x3f]
      %762 = vrot.lane.b32.xlu0 %v758, 24
      %v763 = vpop.permute.xlu0 %762
      %764 = vrot.lane.b32.xlu0 %v759, 24
      %v765 = vpop.permute.xlu0 %764
      %768 = vst.msk [vmem:[#allocation2 + $0xa8] sm:$0xff] %vm272, %v763
      %769 = vst.msk [vmem:[#allocation2 + $0xb0] sm:$0x3f] %vm274, %v765
      %v770 = vld [vmem:[%s757 + $0x1] sm:$0xff]
      %v771 = vld [vmem:[%s757 + $0x9] sm:$0x3f]
      %774 = vrot.lane.b32.xlu0 %v770, 36
      %v775 = vpop.permute.xlu0 %774
      %776 = vrot.lane.b32.xlu0 %v771, 36
      %v777 = vpop.permute.xlu0 %776
      %780 = vst.msk [vmem:[#allocation2 + $0xa8] sm:$0xff] %vm286, %v775
      %781 = vst.msk [vmem:[#allocation2 + $0xb0] sm:$0x3f] %vm288, %v777
      %v782 = vld [vmem:[%s757] sm:$0xff]
      %v783 = vld [vmem:[%s757 + $0x8] sm:$0x3f]
      %784 = vst.msk [vmem:[#allocation2 + $0xb6] sm:$0xff] %vm243, %v782
      %785 = vst.msk [vmem:[#allocation2 + $0xbe] sm:$0x3f] %vm245, %v783
      %v786 = vld [vmem:[%s757 + $0x1] sm:$0xff]
      %v787 = vld [vmem:[%s757 + $0x9] sm:$0x3f]
      %790 = vrot.lane.b32.xlu0 %v786, 12
      %v791 = vpop.permute.xlu0 %790
      %792 = vrot.lane.b32.xlu0 %v787, 12
      %v793 = vpop.permute.xlu0 %792
      %796 = vst.msk [vmem:[#allocation2 + $0xb6] sm:$0xff] %vm257, %v791
      %797 = vst.msk [vmem:[#allocation2 + $0xbe] sm:$0x3f] %vm259, %v793
      %s798 = scalar_lea.vmem %s223, 224
      %v799 = vld [vmem:[%s798] sm:$0xff]
      %v800 = vld [vmem:[%s798 + $0x8] sm:$0x3f]
      %803 = vrot.lane.b32.xlu0 %v799, 24
      %v804 = vpop.permute.xlu0 %803
      %805 = vrot.lane.b32.xlu0 %v800, 24
      %v806 = vpop.permute.xlu0 %805
      %809 = vst.msk [vmem:[#allocation2 + $0xb6] sm:$0xff] %vm272, %v804
      %810 = vst.msk [vmem:[#allocation2 + $0xbe] sm:$0x3f] %vm274, %v806
      %v811 = vld [vmem:[%s798 + $0x1] sm:$0xff]
      %v812 = vld [vmem:[%s798 + $0x9] sm:$0x3f]
      %815 = vrot.lane.b32.xlu0 %v811, 36
      %v816 = vpop.permute.xlu0 %815
      %817 = vrot.lane.b32.xlu0 %v812, 36
      %v818 = vpop.permute.xlu0 %817
      %821 = vst.msk [vmem:[#allocation2 + $0xb6] sm:$0xff] %vm286, %v816
      %822 = vst.msk [vmem:[#allocation2 + $0xbe] sm:$0x3f] %vm288, %v818
      %v823 = vld [vmem:[#allocation2] sm:$0xff]
      %v824 = vld [vmem:[#allocation2 + $0x8] sm:$0xff]
      %v825 = vld [vmem:[#allocation2 + $0x10] sm:$0xff]
      %v826 = vld [vmem:[#allocation2 + $0x18] sm:$0xff]
      %v827 = vld [vmem:[#allocation2 + $0x20] sm:$0xff]
      %v828 = vld [vmem:[#allocation2 + $0x28] sm:$0xff]
      %v829 = vld [vmem:[#allocation2 + $0x30] sm:$0xff]
      %v830 = vld [vmem:[#allocation2 + $0x38] sm:$0xff]
      %v831 = vld [vmem:[#allocation2 + $0x40] sm:$0xff]
      %v832 = vld [vmem:[#allocation2 + $0x48] sm:$0xff]
      %v833 = vld [vmem:[#allocation2 + $0x50] sm:$0xff]
      %v834 = vld [vmem:[#allocation2 + $0x58] sm:$0xff]
      %v835 = vld [vmem:[#allocation2 + $0x60] sm:$0xff]
      %v836 = vld [vmem:[#allocation2 + $0x68] sm:$0xff]
      %v837 = vld [vmem:[#allocation2 + $0x70] sm:$0xff]
      %v838 = vld [vmem:[#allocation2 + $0x78] sm:$0xff]
      %v839 = vld [vmem:[#allocation2 + $0x80] sm:$0xff]
      %v840 = vld [vmem:[#allocation2 + $0x88] sm:$0xff]
      %v841 = vld [vmem:[#allocation2 + $0x90] sm:$0xff]
      %v842 = vld [vmem:[#allocation2 + $0x98] sm:$0xff]
      %v843 = vld [vmem:[#allocation2 + $0xa0] sm:$0xff]
      %v844 = vld [vmem:[#allocation2 + $0xa8] sm:$0xff]
      %v845 = vld [vmem:[#allocation2 + $0xb0] sm:$0xff]
      %v846 = vld [vmem:[#allocation2 + $0xb8] sm:$0xff]
      %v847 = vld [vmem:[#allocation2 + $0xc0] sm:$0xf]
      %v848 = vld [vmem:[%s228] sm:$0xff]
      %v849 = vld [vmem:[%s228 + $0x8] sm:$0xff]
      %v850 = vld [vmem:[%s228 + $0x10] sm:$0xff]
      %v851 = vld [vmem:[%s228 + $0x18] sm:$0xff]
      %v852 = vld [vmem:[%s228 + $0x20] sm:$0xff]
      %v853 = vld [vmem:[%s228 + $0x28] sm:$0xff]
      %v854 = vld [vmem:[%s231] sm:$0x1]
      %v856 = vlaneseq
      %v857 = vshrl.u32 %v856, 7
      %v858 = vsub.s32 0, %v857
      %v859 = vrot.slane %v854, %v858
      %vm861 = vcmask 392192
      %v863 = vsel %vm861, %v823, 0
      %v866 = vsel %vm861, %v824, 0
      %v869 = vsel %vm861, %v825, 0
      %v872 = vsel %vm861, %v826, 0
      %v875 = vsel %vm861, %v827, 0
      %v878 = vsel %vm861, %v828, 0
      %v881 = vsel %vm861, %v829, 0
      %v884 = vsel %vm861, %v830, 0
      %v887 = vsel %vm861, %v831, 0
      %v890 = vsel %vm861, %v832, 0
      %v893 = vsel %vm861, %v833, 0
      %v896 = vsel %vm861, %v834, 0
      %v899 = vsel %vm861, %v835, 0
      %v902 = vsel %vm861, %v836, 0
      %v905 = vsel %vm861, %v837, 0
      %v908 = vsel %vm861, %v838, 0
      %v911 = vsel %vm861, %v839, 0
      %v914 = vsel %vm861, %v840, 0
      %v917 = vsel %vm861, %v841, 0
      %v920 = vsel %vm861, %v842, 0
      %v923 = vsel %vm861, %v843, 0
      %v926 = vsel %vm861, %v844, 0
      %v929 = vsel %vm861, %v845, 0
      %v932 = vsel %vm861, %v846, 0
      %v935 = vsel %vm861, %v847, 0
      %937 = vmatprep.subr.mxu0 0.0
      %938 = vmatpush1.msra.mxu0 %v848
      %939 = vmatprep.subr.mxu0 0.0
      %940 = vmatpush1.msra.mxu0 %v849
      %941 = vmatprep.subr.mxu0 0.0
      %942 = vmatpush1.msra.mxu0 %v850
      %943 = vmatprep.subr.mxu0 0.0
      %944 = vmatpush1.msra.mxu0 %v851
      %945 = vmatprep.subr.mxu0 0.0
      %946 = vmatpush1.msra.mxu0 %v852
      %947 = vmatprep.subr.mxu0 0.0
      %948 = vmatpush1.msra.mxu0 %v853
      %949 = vmatprep.subr.mxu0 0.0
      %950 = vmatpush1.msra.mxu0 0.0
      %951 = vmatprep.subr.mxu0 0.0
      %952 = vmatpush1.msra.mxu0 0.0
      %953 = vmatprep.subr.mxu0 0.0
      %954 = vmatpush1.msra.mxu0 0.0
      %955 = vmatprep.subr.mxu0 0.0
      %956 = vmatpush1.msra.mxu0 0.0
      %957 = vmatprep.subr.mxu0 0.0
      %958 = vmatpush1.msra.mxu0 0.0
      %959 = vmatprep.subr.mxu0 0.0
      %960 = vmatpush1.msra.mxu0 0.0
      %961 = vmatprep.subr.mxu0 0.0
      %962 = vmatpush1.msra.mxu0 0.0
      %963 = vmatprep.subr.mxu0 0.0
      %964 = vmatpush1.msra.mxu0 0.0
      %965 = vmatprep.subr.mxu0 0.0
      %966 = vmatpush1.msra.mxu0 0.0
      %967 = vmatprep.subr.mxu0 0.0
      %968 = vmatpush1.msra.mxu0 0.0
      %969 = vmatprep.subr.mxu0 0.0
      %970 = vmatpush1.msra.mxu0 0.0
      %971 = vmatprep.subr.mxu0 0.0
      %972 = vmatpush1.msra.mxu0 0.0
      %973 = vmatprep.subr.mxu0 0.0
      %974 = vmatpush1.msra.mxu0 0.0
      %975 = vmatprep.subr.mxu0 0.0
      %976 = vmatpush1.msra.mxu0 0.0
      %977 = vmatprep.subr.mxu0 0.0
      %978 = vmatpush1.msra.mxu0 0.0
      %979 = vmatprep.subr.mxu0 0.0
      %980 = vmatpush1.msra.mxu0 0.0
      %981 = vmatprep.subr.mxu0 0.0
      %982 = vmatpush1.msra.mxu0 0.0
      %983 = vmatprep.subr.mxu0 0.0
      %984 = vmatpush1.msra.mxu0 0.0
      %985 = vmatprep.subr.mxu0 0.0
      %986 = vmatpush1.msra.mxu0 0.0
      %987 = vmatprep.subr.mxu0 0.0
      %988 = vmatpush1.msra.mxu0 0.0
      %989 = vmatprep.subr.mxu0 0.0
      %990 = vmatpush1.msra.mxu0 0.0
      %991 = vmatprep.subr.mxu0 0.0
      %992 = vmatpush1.msra.mxu0 0.0
      %993 = vmatprep.subr.mxu0 0.0
      %994 = vmatpush1.msra.mxu0 0.0
      %995 = vmatprep.subr.mxu0 0.0
      %996 = vmatpush1.msra.mxu0 0.0
      %997 = vmatprep.subr.mxu0 0.0
      %998 = vmatpush1.msra.mxu0 0.0
      %999 = vmatprep.subr.mxu0 0.0
      %1000 = vmatpush1.msra.mxu0 0.0
      %1001 = vmatprep.mubr.f32.mxu0 0.0
      %1002 = vmatmul.mubr.f32.gmra.mrb[0].mxu0 %v863
      %v1003 = vpop.f32.mrb[0].mxu0
      %v1004 = vadd.f32 %v859, %v1003
      %v1005 = vpop.f32.mrb[0].mxu0
      %1006 = vmatprep.mubr.f32.mxu0 0.0
      %1007 = vmatmul.mubr.f32.gmra.mrb[0].mxu0 %v866
      %v1008 = vpop.f32.mrb[0].mxu0
      %v1009 = vadd.f32 %v859, %v1008
      %v1010 = vpop.f32.mrb[0].mxu0
      %1011 = vmatprep.mubr.f32.mxu0 0.0
      %1012 = vmatmul.mubr.f32.gmra.mrb[0].mxu0 %v869
      %v1013 = vpop.f32.mrb[0].mxu0
      %v1014 = vadd.f32 %v859, %v1013
      %v1015 = vpop.f32.mrb[0].mxu0
      %1016 = vmatprep.mubr.f32.mxu0 0.0
      %1017 = vmatmul.mubr.f32.gmra.mrb[0].mxu0 %v872
      %v1018 = vpop.f32.mrb[0].mxu0
      %v1019 = vadd.f32 %v859, %v1018
      %v1020 = vpop.f32.mrb[0].mxu0
      %1021 = vmatprep.mubr.f32.mxu0 0.0
      %1022 = vmatmul.mubr.f32.gmra.mrb[0].mxu0 %v875
      %v1023 = vpop.f32.mrb[0].mxu0
      %v1024 = vadd.f32 %v859, %v1023
      %v1025 = vpop.f32.mrb[0].mxu0
      %1026 = vmatprep.mubr.f32.mxu0 0.0
      %1027 = vmatmul.mubr.f32.gmra.mrb[0].mxu0 %v878
      %v1028 = vpop.f32.mrb[0].mxu0
      %v1029 = vadd.f32 %v859, %v1028
      %v1030 = vpop.f32.mrb[0].mxu0
      %1031 = vmatprep.mubr.f32.mxu0 0.0
      %1032 = vmatmul.mubr.f32.gmra.mrb[0].mxu0 %v881
      %v1033 = vpop.f32.mrb[0].mxu0
      %v1034 = vadd.f32 %v859, %v1033
      %v1035 = vpop.f32.mrb[0].mxu0
      %1036 = vmatprep.mubr.f32.mxu0 0.0
      %1037 = vmatmul.mubr.f32.gmra.mrb[0].mxu0 %v884
      %v1038 = vpop.f32.mrb[0].mxu0
      %v1039 = vadd.f32 %v859, %v1038
      %v1040 = vpop.f32.mrb[0].mxu0
      %1041 = vmatprep.mubr.f32.mxu0 0.0
      %1042 = vmatmul.mubr.f32.gmra.mrb[0].mxu0 %v887
      %v1043 = vpop.f32.mrb[0].mxu0
      %v1044 = vadd.f32 %v859, %v1043
      %v1045 = vpop.f32.mrb[0].mxu0
      %1046 = vmatprep.mubr.f32.mxu0 0.0
      %1047 = vmatmul.mubr.f32.gmra.mrb[0].mxu0 %v890
      %v1048 = vpop.f32.mrb[0].mxu0
      %v1049 = vadd.f32 %v859, %v1048
      %v1050 = vpop.f32.mrb[0].mxu0
      %1051 = vmatprep.mubr.f32.mxu0 0.0
      %1052 = vmatmul.mubr.f32.gmra.mrb[0].mxu0 %v893
      %v1053 = vpop.f32.mrb[0].mxu0
      %v1054 = vadd.f32 %v859, %v1053
      %v1055 = vpop.f32.mrb[0].mxu0
      %1056 = vmatprep.mubr.f32.mxu0 0.0
      %1057 = vmatmul.mubr.f32.gmra.mrb[0].mxu0 %v896
      %v1058 = vpop.f32.mrb[0].mxu0
      %v1059 = vadd.f32 %v859, %v1058
      %v1060 = vpop.f32.mrb[0].mxu0
      %1061 = vmatprep.mubr.f32.mxu0 0.0
      %1062 = vmatmul.mubr.f32.gmra.mrb[0].mxu0 %v899
      %v1063 = vpop.f32.mrb[0].mxu0
      %v1064 = vadd.f32 %v859, %v1063
      %v1065 = vpop.f32.mrb[0].mxu0
      %1066 = vmatprep.mubr.f32.mxu0 0.0
      %1067 = vmatmul.mubr.f32.gmra.mrb[0].mxu0 %v902
      %v1068 = vpop.f32.mrb[0].mxu0
      %v1069 = vadd.f32 %v859, %v1068
      %v1070 = vpop.f32.mrb[0].mxu0
      %1071 = vmatprep.mubr.f32.mxu0 0.0
      %1072 = vmatmul.mubr.f32.gmra.mrb[0].mxu0 %v905
      %v1073 = vpop.f32.mrb[0].mxu0
      %v1074 = vadd.f32 %v859, %v1073
      %v1075 = vpop.f32.mrb[0].mxu0
      %1076 = vmatprep.mubr.f32.mxu0 0.0
      %1077 = vmatmul.mubr.f32.gmra.mrb[0].mxu0 %v908
      %v1078 = vpop.f32.mrb[0].mxu0
      %v1079 = vadd.f32 %v859, %v1078
      %v1080 = vpop.f32.mrb[0].mxu0
      %1081 = vmatprep.mubr.f32.mxu0 0.0
      %1082 = vmatmul.mubr.f32.gmra.mrb[0].mxu0 %v911
      %v1083 = vpop.f32.mrb[0].mxu0
      %v1084 = vadd.f32 %v859, %v1083
      %v1085 = vpop.f32.mrb[0].mxu0
      %1086 = vmatprep.mubr.f32.mxu0 0.0
      %1087 = vmatmul.mubr.f32.gmra.mrb[0].mxu0 %v914
      %v1088 = vpop.f32.mrb[0].mxu0
      %v1089 = vadd.f32 %v859, %v1088
      %v1090 = vpop.f32.mrb[0].mxu0
      %1091 = vmatprep.mubr.f32.mxu0 0.0
      %1092 = vmatmul.mubr.f32.gmra.mrb[0].mxu0 %v917
      %v1093 = vpop.f32.mrb[0].mxu0
      %v1094 = vadd.f32 %v859, %v1093
      %v1095 = vpop.f32.mrb[0].mxu0
      %1096 = vmatprep.mubr.f32.mxu0 0.0
      %1097 = vmatmul.mubr.f32.gmra.mrb[0].mxu0 %v920
      %v1098 = vpop.f32.mrb[0].mxu0
      %v1099 = vadd.f32 %v859, %v1098
      %v1100 = vpop.f32.mrb[0].mxu0
      %1101 = vmatprep.mubr.f32.mxu0 0.0
      %1102 = vmatmul.mubr.f32.gmra.mrb[0].mxu0 %v923
      %v1103 = vpop.f32.mrb[0].mxu0
      %v1104 = vadd.f32 %v859, %v1103
      %v1105 = vpop.f32.mrb[0].mxu0
      %1106 = vmatprep.mubr.f32.mxu0 0.0
      %1107 = vmatmul.mubr.f32.gmra.mrb[0].mxu0 %v926
      %v1108 = vpop.f32.mrb[0].mxu0
      %v1109 = vadd.f32 %v859, %v1108
      %v1110 = vpop.f32.mrb[0].mxu0
      %1111 = vmatprep.mubr.f32.mxu0 0.0
      %1112 = vmatmul.mubr.f32.gmra.mrb[0].mxu0 %v929
      %v1113 = vpop.f32.mrb[0].mxu0
      %v1114 = vadd.f32 %v859, %v1113
      %v1115 = vpop.f32.mrb[0].mxu0
      %1116 = vmatprep.mubr.f32.mxu0 0.0
      %1117 = vmatmul.mubr.f32.gmra.mrb[0].mxu0 %v932
      %v1118 = vpop.f32.mrb[0].mxu0
      %v1119 = vadd.f32 %v859, %v1118
      %v1120 = vpop.f32.mrb[0].mxu0
      %1121 = vmatprep.mubr.f32.mxu0 0.0
      %1122 = vmatmul.mubr.f32.gmra.mrb[0].mxu0 %v935
      %v1123 = vpop.f32.mrb[0].mxu0
      %v1124 = vadd.f32 %v859, %v1123
      %v1125 = vpop.f32.mrb[0].mxu0
      %1126 = vdwg.mxu0
      %v1127 = vmax.f32 %v1004, 0.0
      %v1128 = vmax.f32 %v1009, 0.0
      %v1129 = vmax.f32 %v1014, 0.0
      %v1130 = vmax.f32 %v1019, 0.0
      %v1131 = vmax.f32 %v1024, 0.0
      %v1132 = vmax.f32 %v1029, 0.0
      %v1133 = vmax.f32 %v1034, 0.0
      %v1134 = vmax.f32 %v1039, 0.0
      %v1135 = vmax.f32 %v1044, 0.0
      %v1136 = vmax.f32 %v1049, 0.0
      %v1137 = vmax.f32 %v1054, 0.0
      %v1138 = vmax.f32 %v1059, 0.0
      %v1139 = vmax.f32 %v1064, 0.0
      %v1140 = vmax.f32 %v1069, 0.0
      %v1141 = vmax.f32 %v1074, 0.0
      %v1142 = vmax.f32 %v1079, 0.0
      %v1143 = vmax.f32 %v1084, 0.0
      %v1144 = vmax.f32 %v1089, 0.0
      %v1145 = vmax.f32 %v1094, 0.0
      %v1146 = vmax.f32 %v1099, 0.0
      %v1147 = vmax.f32 %v1104, 0.0
      %v1148 = vmax.f32 %v1109, 0.0
      %v1149 = vmax.f32 %v1114, 0.0
      %v1150 = vmax.f32 %v1119, 0.0
      %v1151 = vmax.f32 %v1124, 0.0
      %vm1152 = vcmask 64512
      %1153 = vst.msk [vmem:[%s240] sm:$0xff] %vm1152, %v1127
      %1154 = vst.msk [vmem:[%s240 + $0x8] sm:$0xff] %vm1152, %v1128
      %1155 = vst.msk [vmem:[%s240 + $0x10] sm:$0xff] %vm1152, %v1129
      %1156 = vst.msk [vmem:[%s240 + $0x18] sm:$0xff] %vm1152, %v1130
      %1157 = vst.msk [vmem:[%s240 + $0x20] sm:$0xff] %vm1152, %v1131
      %1158 = vst.msk [vmem:[%s240 + $0x28] sm:$0xff] %vm1152, %v1132
      %1159 = vst.msk [vmem:[%s240 + $0x30] sm:$0xff] %vm1152, %v1133
      %1160 = vst.msk [vmem:[%s240 + $0x38] sm:$0xff] %vm1152, %v1134
      %1161 = vst.msk [vmem:[%s240 + $0x40] sm:$0xff] %vm1152, %v1135
      %1162 = vst.msk [vmem:[%s240 + $0x48] sm:$0xff] %vm1152, %v1136
      %1163 = vst.msk [vmem:[%s240 + $0x50] sm:$0xff] %vm1152, %v1137
      %1164 = vst.msk [vmem:[%s240 + $0x58] sm:$0xff] %vm1152, %v1138
      %1165 = vst.msk [vmem:[%s240 + $0x60] sm:$0xff] %vm1152, %v1139
      %1166 = vst.msk [vmem:[%s240 + $0x68] sm:$0xff] %vm1152, %v1140
      %1167 = vst.msk [vmem:[%s240 + $0x70] sm:$0xff] %vm1152, %v1141
      %1168 = vst.msk [vmem:[%s240 + $0x78] sm:$0xff] %vm1152, %v1142
      %1169 = vst.msk [vmem:[%s240 + $0x80] sm:$0xff] %vm1152, %v1143
      %1170 = vst.msk [vmem:[%s240 + $0x88] sm:$0xff] %vm1152, %v1144
      %1171 = vst.msk [vmem:[%s240 + $0x90] sm:$0xff] %vm1152, %v1145
      %1172 = vst.msk [vmem:[%s240 + $0x98] sm:$0xff] %vm1152, %v1146
      %1173 = vst.msk [vmem:[%s240 + $0xa0] sm:$0xff] %vm1152, %v1147
      %1174 = vst.msk [vmem:[%s240 + $0xa8] sm:$0xff] %vm1152, %v1148
      %1175 = vst.msk [vmem:[%s240 + $0xb0] sm:$0xff] %vm1152, %v1149
      %1176 = vst.msk [vmem:[%s240 + $0xb8] sm:$0xff] %vm1152, %v1150
      %vm1177 = vcmask 60416
      %1178 = vst.msk [vmem:[%s240 + $0xc0] sm:$0xf] %vm1177, %v1151
      %p1179 = scmp.lt.s32.totalorder %s18, 0
      %s1180 = scalar_select %p1179, %s18, 0
      %p1181 = scmp.lt.s32.totalorder %s19, 1
      %s1182 = scalar_select %p1181, %s19, 1
      %s1183 = smul.addr %s1182, 25
      %s1184 = smul.addr %s1180, 50
      %s1185 = sadd.s32 %s1183, %s1184
      %s1186 = smul.addr %s1185, 8
      %s1187 = scalar_lea.vmem %s3, %s1186
      // Predicated region
      $region33: #{conv_vae_forward.8} parent=31 // pred_check
        %p1188 = pneg %p126
      $region34: #{conv_vae_forward.8} parent=31 // pred_check_branch
        %1190 = sbr.rel (%p1188) target = $region36
      $region35: #{conv_vae_forward.8} parent=31 // pred_region
        _
      $region36: #{conv_vae_forward.8} parent=31 // pred_fallthru
        _
    $region32: #{conv_vae_forward.8} parent=5 // pred_fallthru
      _
    %p1191 = scmp.le.s32.totalorder 2, %s9
    // Predicated region
    $region37: #{conv_vae_forward.8} parent=5 // pred_check
      %p1192 = pneg %p1191
    $region38: #{conv_vae_forward.8} parent=5 // pred_check_branch
      %1194 = sbr.rel (%p1192) target = $region40
    $region39: #{conv_vae_forward.8} parent=5 // pred_region
      %s1195 = ssub.s32 %s9, 2
      // Predicated region
      $region41: #{conv_vae_forward.8} parent=39 // pred_check
        %p1196 = pneg %p132
      $region42: #{conv_vae_forward.8} parent=39 // pred_check_branch
        %1198 = sbr.rel (%p1196) target = $region44
      $region43: #{conv_vae_forward.8} parent=39 // pred_region
        %p1199 = scmp.lt.s32.totalorder %s20, 0
        %s1200 = scalar_select %p1199, %s20, 0
        %p1201 = scmp.lt.s32.totalorder %s21, 1
        %s1202 = scalar_select %p1201, %s21, 1
        %s1203 = smul.addr %s1202, 25
        %s1204 = smul.addr %s1200, 50
        %s1205 = sadd.s32 %s1203, %s1204
        %s1206 = smul.addr %s1205, 8
        %s1207 = scalar_lea.vmem %s3, %s1206
      $region44: #{conv_vae_forward.8} parent=39 // pred_fallthru
        _
    $region40: #{conv_vae_forward.8} parent=5 // pred_fallthru
      _
  $region6: #{conv_vae_forward.8} parent=0 // loop_footer
    %s13 = sadd.s32 1, %s9
  $region7: #{conv_vae_forward.8} parent=0 // loop_footer_branch
    %8 = sbr.rel target = $region3
  $region8: #{conv_vae_forward.8} parent=0 // loop_exit
    _

// kernel: conv_vae_forward.9
$region0: #{conv_vae_forward.9}
  #allocation0 [shape = 'u32[]', space=smem, size = 0x4, offset = 0x4, fixed_abs, tag = 'smem constant byte address 0x4 - core index']
  #allocation1 [shape = 'u32[144,128]{1,0:T(1,128)}', space=vmem, size = 0x12000, scoped, tag = 'internal scratch']
  #allocation2 [shape = 'f32[49,128]{1,0:T(8,128)}', space=vmem, size = 0x7000, scoped, tag = 'scratch operand']
  %s0 = inlined_call_operand.vmem [shape: f32[1,2,8,8,32], index: 0, kind: input, shape index: {}]
  %s1 = inlined_call_operand.vmem [shape: f32[1,128,16], index: 1, kind: input, shape index: {}]
  %s2 = inlined_call_operand.vmem [shape: f32[1,1,16], index: 2, kind: input, shape index: {}]
  %s3 = inlined_call_operand.vmem [shape: f32[1,2,49,16], index: 3, kind: output, shape index: {}]
  %s4 = sld [smem:[#allocation0]]
  $region45: #{conv_vae_forward.9} parent=0
    _
  %s6 = ssub.s32 1, %s4
  %s7 = scalar_select 0, %s6, %s4
  loop: start=0, step=1, limit=4
  $region2: #{conv_vae_forward.9} parent=0 // loop_pre_header
    _
  $region3: #{conv_vae_forward.9} parent=0 // loop_header
    %s9 = sphi 0, %s13
    %p10 = scmp.ge.s32.totalorder %s9, 4
    %s16 = sphi 0, %s28
    %s17 = sphi 0, %s24
    %s18 = sphi 0, %s16
    %s19 = sphi 0, %s17
    %s20 = sphi 0, %s18
    %s21 = sphi 0, %s19
    %s33 = sphi 0, %s35
    %s36 = sphi 0, %s33
    %s37 = sphi 0, %s36
    %s53 = sphi 0, %s37
    %s59 = sphi 0, %s61
    %s62 = sphi 0, %s59
    %s63 = sphi 0, %s62
    %s79 = sphi 0, %s63
    %s85 = sphi 0, %s87
    %s88 = sphi 0, %s85
    %s89 = sphi 0, %s88
    %s105 = sphi 0, %s89
    %s113 = sphi 0, %s115
    %s116 = sphi 0, %s113
    %s117 = sphi 0, %s116
    %s133 = sphi 0, %s117
  $region4: #{conv_vae_forward.9} parent=0 // loop_header_branch
    %12 = sbr.rel (%p10) target = $region8
  $region5: #{conv_vae_forward.9} parent=0 // loop_body
    %s14 = ssub.s32 %s9, 1
    %s15 = ssub.s32 %s9, 2
    %s22 = sadd.s32 1, %s17
    %p23 = scmp.ge.s32.totalorder %s22, 2
    %s24 = scalar_select %p23, 0, %s22
    %s25 = sadd.s32 1, %s16
    %s26 = scalar_select %p23, %s25, %s16
    %p27 = scmp.ge.s32.totalorder %s26, 1
    %s28 = scalar_select %p27, 0, %s26
    %s29 = ssub.s32 %s16, %s28
    %s30 = ssub.s32 %s17, %s24
    %s31 = sor.u32 %s29, %s30
    %p32 = scmp.eq.s32.totalorder %s31, 0
    %s34 = sadd.s32 %s33, 1
    %s35 = scalar_select %p32, %s33, %s34
    %p38 = pneg %p32
    %p39 = scmp.eq.s32.totalorder %s9, 1
    %p40 = por %p38, %p39
    %p41 = scmp.ne.s32.totalorder %s33, %s36
    %p42 = scmp.eq.s32.totalorder %s9, 0
    %p43 = por %p41, %p42
    %p44 = scmp.ne.s32.totalorder %s33, %s36
    %p45 = scmp.eq.s32.totalorder %s14, 1
    %p46 = por %p44, %p45
    %p47 = scmp.ne.s32.totalorder %s36, %s37
    %p48 = scmp.eq.s32.totalorder %s14, 0
    %p49 = por %p47, %p48
    %p50 = scmp.ne.s32.totalorder %s36, %s37
    %p51 = scmp.eq.s32.totalorder %s15, 1
    %p52 = por %p50, %p51
    %p54 = scmp.ne.s32.totalorder %s37, %s53
    %p55 = scmp.eq.s32.totalorder %s15, 0
    %p56 = por %p54, %p55
    %s57 = ssub.s32 %s16, %s28
    %p58 = scmp.eq.s32.totalorder %s57, 0
    %s60 = sadd.s32 %s59, 1
    %s61 = scalar_select %p58, %s59, %s60
    %p64 = pneg %p58
    %p65 = scmp.eq.s32.totalorder %s9, 1
    %p66 = por %p64, %p65
    %p67 = scmp.ne.s32.totalorder %s59, %s62
    %p68 = scmp.eq.s32.totalorder %s9, 0
    %p69 = por %p67, %p68
    %p70 = scmp.ne.s32.totalorder %s59, %s62
    %p71 = scmp.eq.s32.totalorder %s14, 1
    %p72 = por %p70, %p71
    %p73 = scmp.ne.s32.totalorder %s62, %s63
    %p74 = scmp.eq.s32.totalorder %s14, 0
    %p75 = por %p73, %p74
    %p76 = scmp.ne.s32.totalorder %s62, %s63
    %p77 = scmp.eq.s32.totalorder %s15, 1
    %p78 = por %p76, %p77
    %p80 = scmp.ne.s32.totalorder %s63, %s79
    %p81 = scmp.eq.s32.totalorder %s15, 0
    %p82 = por %p80, %p81
    %s83 = ssub.s32 %s16, %s28
    %p84 = scmp.eq.s32.totalorder %s83, 0
    %s86 = sadd.s32 %s85, 1
    %s87 = scalar_select %p84, %s85, %s86
    %p90 = pneg %p84
    %p91 = scmp.eq.s32.totalorder %s9, 1
    %p92 = por %p90, %p91
    %p93 = scmp.ne.s32.totalorder %s85, %s88
    %p94 = scmp.eq.s32.totalorder %s9, 0
    %p95 = por %p93, %p94
    %p96 = scmp.ne.s32.totalorder %s85, %s88
    %p97 = scmp.eq.s32.totalorder %s14, 1
    %p98 = por %p96, %p97
    %p99 = scmp.ne.s32.totalorder %s88, %s89
    %p100 = scmp.eq.s32.totalorder %s14, 0
    %p101 = por %p99, %p100
    %p102 = scmp.ne.s32.totalorder %s88, %s89
    %p103 = scmp.eq.s32.totalorder %s15, 1
    %p104 = por %p102, %p103
    %p106 = scmp.ne.s32.totalorder %s89, %s105
    %p107 = scmp.eq.s32.totalorder %s15, 0
    %p108 = por %p106, %p107
    %s109 = ssub.s32 %s16, %s28
    %s110 = ssub.s32 %s17, %s24
    %s111 = sor.u32 %s109, %s110
    %p112 = scmp.eq.s32.totalorder %s111, 0
    %s114 = sadd.s32 %s113, 1
    %s115 = scalar_select %p112, %s113, %s114
    %p118 = pneg %p112
    %p119 = scmp.eq.s32.totalorder %s9, 1
    %p120 = por %p118, %p119
    %p121 = scmp.ne.s32.totalorder %s113, %s116
    %p122 = scmp.eq.s32.totalorder %s9, 0
    %p123 = por %p121, %p122
    %p124 = scmp.ne.s32.totalorder %s113, %s116
    %p125 = scmp.eq.s32.totalorder %s14, 1
    %p126 = por %p124, %p125
    %p127 = scmp.ne.s32.totalorder %s116, %s117
    %p128 = scmp.eq.s32.totalorder %s14, 0
    %p129 = por %p127, %p128
    %p130 = scmp.ne.s32.totalorder %s116, %s117
    %p131 = scmp.eq.s32.totalorder %s15, 1
    %p132 = por %p130, %p131
    %p134 = scmp.ne.s32.totalorder %s117, %s133
    %p135 = scmp.eq.s32.totalorder %s15, 0
    %p136 = por %p134, %p135
    %p137 = scmp.le.s32.totalorder 1, %s9
    %p138 = scmp.lt.s32.totalorder %s9, 3
    %p139 = pnand %p137, %p138
    %p140 = pneg %p139
    // Predicated region
    $region9: #{conv_vae_forward.9} parent=5 // pred_check
      _
    $region10: #{conv_vae_forward.9} parent=5 // pred_check_branch
      %142 = sbr.rel (%p139) target = $region12
    $region11: #{conv_vae_forward.9} parent=5 // pred_region
      %s143 = ssub.s32 %s9, 1
      // Predicated region
      $region13: #{conv_vae_forward.9} parent=11 // pred_check
        %p144 = pneg %p75
      $region14: #{conv_vae_forward.9} parent=11 // pred_check_branch
        %146 = sbr.rel (%p144) target = $region16
      $region15: #{conv_vae_forward.9} parent=11 // pred_region
        %p147 = scmp.lt.s32.totalorder %s18, 0
        %s148 = scalar_select %p147, %s18, 0
        %s149 = smul.addr %s148, 16
        %s150 = smul.addr %s149, 8
        %s151 = scalar_lea.vmem %s1, %s150
      $region16: #{conv_vae_forward.9} parent=11 // pred_fallthru
        _
      // Predicated region
      $region17: #{conv_vae_forward.9} parent=11 // pred_check
        %p152 = pneg %p101
      $region18: #{conv_vae_forward.9} parent=11 // pred_check_branch
        %154 = sbr.rel (%p152) target = $region20
      $region19: #{conv_vae_forward.9} parent=11 // pred_region
        %p155 = scmp.lt.s32.totalorder %s18, 0
        %s156 = scalar_select %p155, %s18, 0
        %s157 = scalar_lea.vmem %s2, %s156
      $region20: #{conv_vae_forward.9} parent=11 // pred_fallthru
        _
    $region12: #{conv_vae_forward.9} parent=5 // pred_fallthru
      _
    %p158 = scmp.lt.s32.totalorder %s9, 2
    // Predicated region
    $region21: #{conv_vae_forward.9} parent=5 // pred_check
      %p159 = pneg %p158
    $region22: #{conv_vae_forward.9} parent=5 // pred_check_branch
      %161 = sbr.rel (%p159) target = $region24
    $region23: #{conv_vae_forward.9} parent=5 // pred_region
      // Predicated region
      $region25: #{conv_vae_forward.9} parent=23 // pred_check
        %p162 = pneg %p43
      $region26: #{conv_vae_forward.9} parent=23 // pred_check_branch
        %164 = sbr.rel (%p162) target = $region28
      $region27: #{conv_vae_forward.9} parent=23 // pred_region
        %p165 = scmp.lt.s32.totalorder %s16, 0
        %s166 = scalar_select %p165, %s16, 0
        %p167 = scmp.lt.s32.totalorder %s17, 1
        %s168 = scalar_select %p167, %s17, 1
        %s169 = smul.addr %s168, 8
        %s170 = smul.addr %s166, 16
        %s171 = sadd.s32 %s169, %s170
        %s172 = smul.addr %s171, 8
        %s173 = scalar_lea.vmem %s0, %s172
      $region28: #{conv_vae_forward.9} parent=23 // pred_fallthru
        _
    $region24: #{conv_vae_forward.9} parent=5 // pred_fallthru
      _
    %p174 = scmp.le.s32.totalorder 1, %s9
    %p175 = scmp.lt.s32.totalorder %s9, 3
    %p176 = pnand %p174, %p175
    %p177 = pneg %p176
    // Predicated region
    $region29: #{conv_vae_forward.9} parent=5 // pred_check
      _
    $region30: #{conv_vae_forward.9} parent=5 // pred_check_branch
      %179 = sbr.rel (%p176) target = $region32
    $region31: #{conv_vae_forward.9} parent=5 // pred_region
      %s180 = ssub.s32 %s9, 1
      %p181 = scmp.lt.s32.totalorder %s18, 0
      %s182 = scalar_select %p181, %s18, 0
      %p183 = scmp.lt.s32.totalorder %s19, 1
      %s184 = scalar_select %p183, %s19, 1
      %s185 = smul.addr %s184, 8
      %s186 = smul.addr %s182, 16
      %s187 = sadd.s32 %s185, %s186
      %s188 = smul.addr %s187, 8
      %s189 = scalar_lea.vmem %s0, %s188
      %p190 = pneg %p49
      %p191 = pneg %p46
      %p192 = scmp.lt.s32.totalorder %s18, 0
      %s193 = scalar_select %p192, %s18, 0
      %s194 = smul.addr %s193, 16
      %s195 = smul.addr %s194, 8
      %s196 = scalar_lea.vmem %s1, %s195
      %p197 = pneg %p75
      %p198 = pneg %p72
      %p199 = scmp.lt.s32.totalorder %s18, 0
      %s200 = scalar_select %p199, %s18, 0
      %s201 = scalar_lea.vmem %s2, %s200
      %p202 = pneg %p101
      %p203 = pneg %p98
      %p204 = pneg %p129
      %p205 = pneg %p126
      %p206 = scmp.lt.s32.totalorder %s18, 0
      %s207 = scalar_select %p206, %s18, 0
      %p208 = scmp.lt.s32.totalorder %s19, 1
      %s209 = scalar_select %p208, %s19, 1
      %s210 = smul.addr %s209, 7
      %s211 = smul.addr %s207, 14
      %s212 = sadd.s32 %s210, %s211
      %s213 = smul.addr %s212, 8
      %s214 = scalar_lea.vmem %s3, %s213
      %p215 = scmp.lt.s32.totalorder %s18, 0
      %s216 = scalar_select %p215, %s18, 0
      %p217 = scmp.lt.s32.totalorder %s19, 1
      %s218 = scalar_select %p217, %s19, 1
      %s219 = smul.addr %s218, 8
      %s220 = smul.addr %s216, 16
      %s221 = sadd.s32 %s219, %s220
      %s222 = smul.addr %s221, 8
      %s223 = scalar_lea.vmem %s0, %s222
      %p224 = scmp.lt.s32.totalorder %s18, 0
      %s225 = scalar_select %p224, %s18, 0
      %s226 = smul.addr %s225, 16
      %s227 = smul.addr %s226, 8
      %s228 = scalar_lea.vmem %s1, %s227
      %p229 = scmp.lt.s32.totalorder %s18, 0
      %s230 = scalar_select %p229, %s18, 0
      %s231 = scalar_lea.vmem %s2, %s230
      %p232 = scmp.lt.s32.totalorder %s18, 0
      %s233 = scalar_select %p232, %s18, 0
      %p234 = scmp.lt.s32.totalorder %s19, 1
      %s235 = scalar_select %p234, %s19, 1
      %s236 = smul.addr %s235, 7
      %s237 = smul.addr %s233, 14
      %s238 = sadd.s32 %s236, %s237
      %s239 = smul.addr %s238, 8
      %s240 = scalar_lea.vmem %s3, %s239
      %v241 = vld [vmem:[%s223] sm:$0x7f]
      %vm242 = vcmask 260096
      %243 = vst.msk [vmem:[#allocation2] sm:$0x7f] %vm242, %v241
      %v244 = vld [vmem:[%s223 + $0x1] sm:$0x7f]
      %246 = vrot.lane.b32.xlu0 %v244, 32
      %v247 = vpop.permute.xlu0 %246
      %vm249 = vcmask 522496
      %250 = vst.msk [vmem:[#allocation2] sm:$0x7f] %vm249, %v247
      %s251 = scalar_lea.vmem %s223, 8
      %v252 = vld [vmem:[%s251] sm:$0x7f]
      %254 = vrot.lane.b32.xlu0 %v252, 64
      %v255 = vpop.permute.xlu0 %254
      %vm257 = vcmask 784896
      %258 = vst.msk [vmem:[#allocation2] sm:$0x7f] %vm257, %v255
      %v259 = vld [vmem:[%s251 + $0x1] sm:$0x7f]
      %261 = vrot.lane.b32.xlu0 %v259, 96
      %v262 = vpop.permute.xlu0 %261
      %vm264 = vcmask 1047296
      %265 = vst.msk [vmem:[#allocation2] sm:$0x7f] %vm264, %v262
      %v266 = vld [vmem:[%s251] sm:$0x7f]
      %267 = vst.msk [vmem:[#allocation2 + $0x7] sm:$0x7f] %vm242, %v266
      %v268 = vld [vmem:[%s251 + $0x1] sm:$0x7f]
      %270 = vrot.lane.b32.xlu0 %v268, 32
      %v271 = vpop.permute.xlu0 %270
      %273 = vst.msk [vmem:[#allocation2 + $0x7] sm:$0x7f] %vm249, %v271
      %s274 = scalar_lea.vmem %s223, 16
      %v275 = vld [vmem:[%s274] sm:$0x7f]
      %277 = vrot.lane.b32.xlu0 %v275, 64
      %v278 = vpop.permute.xlu0 %277
      %280 = vst.msk [vmem:[#allocation2 + $0x7] sm:$0x7f] %vm257, %v278
      %v281 = vld [vmem:[%s274 + $0x1] sm:$0x7f]
      %283 = vrot.lane.b32.xlu0 %v281, 96
      %v284 = vpop.permute.xlu0 %283
      %286 = vst.msk [vmem:[#allocation2 + $0x7] sm:$0x7f] %vm264, %v284
      %v287 = vld [vmem:[%s274] sm:$0x7f]
      %288 = vst.msk [vmem:[#allocation2 + $0xe] sm:$0x7f] %vm242, %v287
      %v289 = vld [vmem:[%s274 + $0x1] sm:$0x7f]
      %291 = vrot.lane.b32.xlu0 %v289, 32
      %v292 = vpop.permute.xlu0 %291
      %294 = vst.msk [vmem:[#allocation2 + $0xe] sm:$0x7f] %vm249, %v292
      %s295 = scalar_lea.vmem %s223, 24
      %v296 = vld [vmem:[%s295] sm:$0x7f]
      %298 = vrot.lane.b32.xlu0 %v296, 64
      %v299 = vpop.permute.xlu0 %298
      %301 = vst.msk [vmem:[#allocation2 + $0xe] sm:$0x7f] %vm257, %v299
      %v302 = vld [vmem:[%s295 + $0x1] sm:$0x7f]
      %304 = vrot.lane.b32.xlu0 %v302, 96
      %v305 = vpop.permute.xlu0 %304
      %307 = vst.msk [vmem:[#allocation2 + $0xe] sm:$0x7f] %vm264, %v305
      %v308 = vld [vmem:[%s295] sm:$0x7f]
      %309 = vst.msk [vmem:[#allocation2 + $0x15] sm:$0x7f] %vm242, %v308
      %v310 = vld [vmem:[%s295 + $0x1] sm:$0x7f]
      %312 = vrot.lane.b32.xlu0 %v310, 32
      %v313 = vpop.permute.xlu0 %312
      %315 = vst.msk [vmem:[#allocation2 + $0x15] sm:$0x7f] %vm249, %v313
      %s316 = scalar_lea.vmem %s223, 32
      %v317 = vld [vmem:[%s316] sm:$0x7f]
      %319 = vrot.lane.b32.xlu0 %v317, 64
      %v320 = vpop.permute.xlu0 %319
      %322 = vst.msk [vmem:[#allocation2 + $0x15] sm:$0x7f] %vm257, %v320
      %v323 = vld [vmem:[%s316 + $0x1] sm:$0x7f]
      %325 = vrot.lane.b32.xlu0 %v323, 96
      %v326 = vpop.permute.xlu0 %325
      %328 = vst.msk [vmem:[#allocation2 + $0x15] sm:$0x7f] %vm264, %v326
      %v329 = vld [vmem:[%s316] sm:$0x7f]
      %330 = vst.msk [vmem:[#allocation2 + $0x1c] sm:$0x7f] %vm242, %v329
      %v331 = vld [vmem:[%s316 + $0x1] sm:$0x7f]
      %333 = vrot.lane.b32.xlu0 %v331, 32
      %v334 = vpop.permute.xlu0 %333
      %336 = vst.msk [vmem:[#allocation2 + $0x1c] sm:$0x7f] %vm249, %v334
      %s337 = scalar_lea.vmem %s223, 40
      %v338 = vld [vmem:[%s337] sm:$0x7f]
      %340 = vrot.lane.b32.xlu0 %v338, 64
      %v341 = vpop.permute.xlu0 %340
      %343 = vst.msk [vmem:[#allocation2 + $0x1c] sm:$0x7f] %vm257, %v341
      %v344 = vld [vmem:[%s337 + $0x1] sm:$0x7f]
      %346 = vrot.lane.b32.xlu0 %v344, 96
      %v347 = vpop.permute.xlu0 %346
      %349 = vst.msk [vmem:[#allocation2 + $0x1c] sm:$0x7f] %vm264, %v347
      %v350 = vld [vmem:[%s337] sm:$0x7f]
      %351 = vst.msk [vmem:[#allocation2 + $0x23] sm:$0x7f] %vm242, %v350
      %v352 = vld [vmem:[%s337 + $0x1] sm:$0x7f]
      %354 = vrot.lane.b32.xlu0 %v352, 32
      %v355 = vpop.permute.xlu0 %354
      %357 = vst.msk [vmem:[#allocation2 + $0x23] sm:$0x7f] %vm249, %v355
      %s358 = scalar_lea.vmem %s223, 48
      %v359 = vld [vmem:[%s358] sm:$0x7f]
      %361 = vrot.lane.b32.xlu0 %v359, 64
      %v362 = vpop.permute.xlu0 %361
      %364 = vst.msk [vmem:[#allocation2 + $0x23] sm:$0x7f] %vm257, %v362
      %v365 = vld [vmem:[%s358 + $0x1] sm:$0x7f]
      %367 = vrot.lane.b32.xlu0 %v365, 96
      %v368 = vpop.permute.xlu0 %367
      %370 = vst.msk [vmem:[#allocation2 + $0x23] sm:$0x7f] %vm264, %v368
      %v371 = vld [vmem:[%s358] sm:$0x7f]
      %372 = vst.msk [vmem:[#allocation2 + $0x2a] sm:$0x7f] %vm242, %v371
      %v373 = vld [vmem:[%s358 + $0x1] sm:$0x7f]
      %375 = vrot.lane.b32.xlu0 %v373, 32
      %v376 = vpop.permute.xlu0 %375
      %378 = vst.msk [vmem:[#allocation2 + $0x2a] sm:$0x7f] %vm249, %v376
      %s379 = scalar_lea.vmem %s223, 56
      %v380 = vld [vmem:[%s379] sm:$0x7f]
      %382 = vrot.lane.b32.xlu0 %v380, 64
      %v383 = vpop.permute.xlu0 %382
      %385 = vst.msk [vmem:[#allocation2 + $0x2a] sm:$0x7f] %vm257, %v383
      %v386 = vld [vmem:[%s379 + $0x1] sm:$0x7f]
      %388 = vrot.lane.b32.xlu0 %v386, 96
      %v389 = vpop.permute.xlu0 %388
      %391 = vst.msk [vmem:[#allocation2 + $0x2a] sm:$0x7f] %vm264, %v389
      %v392 = vld [vmem:[#allocation2] sm:$0xff]
      %v393 = vld [vmem:[#allocation2 + $0x8] sm:$0xff]
      %v394 = vld [vmem:[#allocation2 + $0x10] sm:$0xff]
      %v395 = vld [vmem:[#allocation2 + $0x18] sm:$0xff]
      %v396 = vld [vmem:[#allocation2 + $0x20] sm:$0xff]
      %v397 = vld [vmem:[#allocation2 + $0x28] sm:$0xff]
      %v398 = vld [vmem:[#allocation2 + $0x30] sm:$0x1]
      %v399 = vld [vmem:[%s228] sm:$0xff]
      %v400 = vld [vmem:[%s228 + $0x8] sm:$0xff]
      %v401 = vld [vmem:[%s228 + $0x10] sm:$0xff]
      %v402 = vld [vmem:[%s228 + $0x18] sm:$0xff]
      %v403 = vld [vmem:[%s228 + $0x20] sm:$0xff]
      %v404 = vld [vmem:[%s228 + $0x28] sm:$0xff]
      %v405 = vld [vmem:[%s228 + $0x30] sm:$0xff]
      %v406 = vld [vmem:[%s228 + $0x38] sm:$0xff]
      %v407 = vld [vmem:[%s228 + $0x40] sm:$0xff]
      %v408 = vld [vmem:[%s228 + $0x48] sm:$0xff]
      %v409 = vld [vmem:[%s228 + $0x50] sm:$0xff]
      %v410 = vld [vmem:[%s228 + $0x58] sm:$0xff]
      %v411 = vld [vmem:[%s228 + $0x60] sm:$0xff]
      %v412 = vld [vmem:[%s228 + $0x68] sm:$0xff]
      %v413 = vld [vmem:[%s228 + $0x70] sm:$0xff]
      %v414 = vld [vmem:[%s228 + $0x78] sm:$0xff]
      %v415 = vld [vmem:[%s231] sm:$0x1]
      %v417 = vlaneseq
      %v418 = vshrl.u32 %v417, 7
      %v419 = vsub.s32 0, %v418
      %v420 = vrot.slane %v415, %v419
      %422 = vmatprep.subr.mxu0 0.0
      %423 = vmatpush1.msra.mxu0 %v399
      %424 = vmatprep.subr.mxu0 0.0
      %425 = vmatpush1.msra.mxu0 %v400
      %426 = vmatprep.subr.mxu0 0.0
      %427 = vmatpush1.msra.mxu0 %v401
      %428 = vmatprep.subr.mxu0 0.0
      %429 = vmatpush1.msra.mxu0 %v402
      %430 = vmatprep.subr.mxu0 0.0
      %431 = vmatpush1.msra.mxu0 %v403
      %432 = vmatprep.subr.mxu0 0.0
      %433 = vmatpush1.msra.mxu0 %v404
      %434 = vmatprep.subr.mxu0 0.0
      %435 = vmatpush1.msra.mxu0 %v405
      %436 = vmatprep.subr.mxu0 0.0
      %437 = vmatpush1.msra.mxu0 %v406
      %438 = vmatprep.subr.mxu0 0.0
      %439 = vmatpush1.msra.mxu0 %v407
      %440 = vmatprep.subr.mxu0 0.0
      %441 = vmatpush1.msra.mxu0 %v408
      %442 = vmatprep.subr.mxu0 0.0
      %443 = vmatpush1.msra.mxu0 %v409
      %444 = vmatprep.subr.mxu0 0.0
      %445 = vmatpush1.msra.mxu0 %v410
      %446 = vmatprep.subr.mxu0 0.0
      %447 = vmatpush1.msra.mxu0 %v411
      %448 = vmatprep.subr.mxu0 0.0
      %449 = vmatpush1.msra.mxu0 %v412
      %450 = vmatprep.subr.mxu0 0.0
      %451 = vmatpush1.msra.mxu0 %v413
      %452 = vmatprep.subr.mxu0 0.0
      %453 = vmatpush1.msra.mxu0 %v414
      %454 = vmatprep.subr.mxu0 0.0
      %455 = vmatpush1.msra.mxu0 0.0
      %456 = vmatprep.subr.mxu0 0.0
      %457 = vmatpush1.msra.mxu0 0.0
      %458 = vmatprep.subr.mxu0 0.0
      %459 = vmatpush1.msra.mxu0 0.0
      %460 = vmatprep.subr.mxu0 0.0
      %461 = vmatpush1.msra.mxu0 0.0
      %462 = vmatprep.subr.mxu0 0.0
      %463 = vmatpush1.msra.mxu0 0.0
      %464 = vmatprep.subr.mxu0 0.0
      %465 = vmatpush1.msra.mxu0 0.0
      %466 = vmatprep.subr.mxu0 0.0
      %467 = vmatpush1.msra.mxu0 0.0
      %468 = vmatprep.subr.mxu0 0.0
      %469 = vmatpush1.msra.mxu0 0.0
      %470 = vmatprep.subr.mxu0 0.0
      %471 = vmatpush1.msra.mxu0 0.0
      %472 = vmatprep.subr.mxu0 0.0
      %473 = vmatpush1.msra.mxu0 0.0
      %474 = vmatprep.subr.mxu0 0.0
      %475 = vmatpush1.msra.mxu0 0.0
      %476 = vmatprep.subr.mxu0 0.0
      %477 = vmatpush1.msra.mxu0 0.0
      %478 = vmatprep.subr.mxu0 0.0
      %479 = vmatpush1.msra.mxu0 0.0
      %480 = vmatprep.subr.mxu0 0.0
      %481 = vmatpush1.msra.mxu0 0.0
      %482 = vmatprep.subr.mxu0 0.0
      %483 = vmatpush1.msra.mxu0 0.0
      %484 = vmatprep.subr.mxu0 0.0
      %485 = vmatpush1.msra.mxu0 0.0
      %486 = vmatprep.mubr.f32.mxu0 0.0
      %487 = vmatmul.mubr.f32.gmra.mrb[0].mxu0 %v392
      %v488 = vpop.f32.mrb[0].mxu0
      %v489 = vadd.f32 %v420, %v488
      %v490 = vpop.f32.mrb[0].mxu0
      %491 = vmatprep.mubr.f32.mxu0 0.0
      %492 = vmatmul.mubr.f32.gmra.mrb[0].mxu0 %v393
      %v493 = vpop.f32.mrb[0].mxu0
      %v494 = vadd.f32 %v420, %v493
      %v495 = vpop.f32.mrb[0].mxu0
      %496 = vmatprep.mubr.f32.mxu0 0.0
      %497 = vmatmul.mubr.f32.gmra.mrb[0].mxu0 %v394
      %v498 = vpop.f32.mrb[0].mxu0
      %v499 = vadd.f32 %v420, %v498
      %v500 = vpop.f32.mrb[0].mxu0
      %501 = vmatprep.mubr.f32.mxu0 0.0
      %502 = vmatmul.mubr.f32.gmra.mrb[0].mxu0 %v395
      %v503 = vpop.f32.mrb[0].mxu0
      %v504 = vadd.f32 %v420, %v503
      %v505 = vpop.f32.mrb[0].mxu0
      %506 = vmatprep.mubr.f32.mxu0 0.0
      %507 = vmatmul.mubr.f32.gmra.mrb[0].mxu0 %v396
      %v508 = vpop.f32.mrb[0].mxu0
      %v509 = vadd.f32 %v420, %v508
      %v510 = vpop.f32.mrb[0].mxu0
      %511 = vmatprep.mubr.f32.mxu0 0.0
      %512 = vmatmul.mubr.f32.gmra.mrb[0].mxu0 %v397
      %v513 = vpop.f32.mrb[0].mxu0
      %v514 = vadd.f32 %v420, %v513
      %v515 = vpop.f32.mrb[0].mxu0
      %516 = vmatprep.mubr.f32.mxu0 0.0
      %517 = vmatmul.mubr.f32.gmra.mrb[0].mxu0 %v398
      %v518 = vpop.f32.mrb[0].mxu0
      %v519 = vadd.f32 %v420, %v518
      %v520 = vpop.f32.mrb[0].mxu0
      %521 = vdwg.mxu0
      %v522 = vmax.f32 %v489, 0.0
      %v523 = vmax.f32 %v494, 0.0
      %v524 = vmax.f32 %v499, 0.0
      %v525 = vmax.f32 %v504, 0.0
      %v526 = vmax.f32 %v509, 0.0
      %v527 = vmax.f32 %v514, 0.0
      %v528 = vmax.f32 %v519, 0.0
      %vm529 = vcmask 130048
      %530 = vst.msk [vmem:[%s240] sm:$0xff] %vm529, %v522
      %531 = vst.msk [vmem:[%s240 + $0x8] sm:$0xff] %vm529, %v523
      %532 = vst.msk [vmem:[%s240 + $0x10] sm:$0xff] %vm529, %v524
      %533 = vst.msk [vmem:[%s240 + $0x18] sm:$0xff] %vm529, %v525
      %534 = vst.msk [vmem:[%s240 + $0x20] sm:$0xff] %vm529, %v526
      %535 = vst.msk [vmem:[%s240 + $0x28] sm:$0xff] %vm529, %v527
      %vm536 = vcmask 122880
      %537 = vst.msk [vmem:[%s240 + $0x30] sm:$0x1] %vm536, %v528
      %p538 = scmp.lt.s32.totalorder %s18, 0
      %s539 = scalar_select %p538, %s18, 0
      %p540 = scmp.lt.s32.totalorder %s19, 1
      %s541 = scalar_select %p540, %s19, 1
      %s542 = smul.addr %s541, 7
      %s543 = smul.addr %s539, 14
      %s544 = sadd.s32 %s542, %s543
      %s545 = smul.addr %s544, 8
      %s546 = scalar_lea.vmem %s3, %s545
      // Predicated region
      $region33: #{conv_vae_forward.9} parent=31 // pred_check
        %p547 = pneg %p126
      $region34: #{conv_vae_forward.9} parent=31 // pred_check_branch
        %549 = sbr.rel (%p547) target = $region36
      $region35: #{conv_vae_forward.9} parent=31 // pred_region
        _
      $region36: #{conv_vae_forward.9} parent=31 // pred_fallthru
        _
    $region32: #{conv_vae_forward.9} parent=5 // pred_fallthru
      _
    %p550 = scmp.le.s32.totalorder 2, %s9
    // Predicated region
    $region37: #{conv_vae_forward.9} parent=5 // pred_check
      %p551 = pneg %p550
    $region38: #{conv_vae_forward.9} parent=5 // pred_check_branch
      %553 = sbr.rel (%p551) target = $region40
    $region39: #{conv_vae_forward.9} parent=5 // pred_region
      %s554 = ssub.s32 %s9, 2
      // Predicated region
      $region41: #{conv_vae_forward.9} parent=39 // pred_check
        %p555 = pneg %p132
      $region42: #{conv_vae_forward.9} parent=39 // pred_check_branch
        %557 = sbr.rel (%p555) target = $region44
      $region43: #{conv_vae_forward.9} parent=39 // pred_region
        %p558 = scmp.lt.s32.totalorder %s20, 0
        %s559 = scalar_select %p558, %s20, 0
        %p560 = scmp.lt.s32.totalorder %s21, 1
        %s561 = scalar_select %p560, %s21, 1
        %s562 = smul.addr %s561, 7
        %s563 = smul.addr %s559, 14
        %s564 = sadd.s32 %s562, %s563
        %s565 = smul.addr %s564, 8
        %s566 = scalar_lea.vmem %s3, %s565
      $region44: #{conv_vae_forward.9} parent=39 // pred_fallthru
        _
    $region40: #{conv_vae_forward.9} parent=5 // pred_fallthru
      _
  $region6: #{conv_vae_forward.9} parent=0 // loop_footer
    %s13 = sadd.s32 1, %s9
  $region7: #{conv_vae_forward.9} parent=0 // loop_footer_branch
    %8 = sbr.rel target = $region3
  $region8: #{conv_vae_forward.9} parent=0 // loop_exit
    _

// kernel: tile.8
$region0: #{tile.8}
  #allocation0 [shape = 's32[1]{0}', space=sflag, size = 0x4, scoped, tag = 'scoped memory for tile.8']
  %s0 = inlined_call_operand.vmem [shape: f32[64], index: 0, kind: input, shape index: {}]
  %s1 = inlined_call_operand.vmem [shape: f32[16,64], index: 1, kind: output, shape index: {}]
  // Predicated region
  $region2: #{tile.8} parent=0 // pred_check
    _
  $region3: #{tile.8} parent=0 // pred_check_branch
    %3 = sbr.rel (0) target = $region5
  $region4: #{tile.8} parent=0 // pred_region
    _
  $region5: #{tile.8} parent=0 // pred_fallthru
    _
  %v4 = vld [vmem:[%s0] ss:$0 sm:$0xff]
  %5 = vst [vmem:[%s1] sm:$0xff] %v4
  %s6 = scalar_lea.vmem %s1, 8
  %7 = vst [vmem:[%s6] sm:$0xff] %v4

// kernel: tile.9
$region0: #{tile.9}
  %s0 = inlined_call_operand.vmem [shape: f32[16,64], index: 0, kind: input, shape index: {}]
  %s1 = inlined_call_operand.vmem [shape: f32[1,1024], index: 1, kind: output, shape index: {}]
  $region1: #{tile.9} parent=0
    #allocation0 [shape = 'u8[32768]{0}', space=vmem, size = 0x8000, scoped, tag = 'scoped mem for output reshape']
    %v2 = vld [vmem:[%s0] ss:$2 sm:$0xff]
    %vm3 = vcmask 523264
    %4 = vst.msk [vmem:[#allocation0] ss:$8 sm:$0xf] %vm3, %v2
    %5 = vst.msk [vmem:[#allocation0] ss:$8 sm:$0xf0] %vm3, %v2
    %s6 = scalar_lea.vmem %s0, 1
    %v7 = vld [vmem:[%s6] ss:$2 sm:$0xff]
    %8 = vrot.lane.b32.xlu0 %v7, 64
    %v9 = vpop.permute.xlu0 %8
    %vm10 = vcmask 1048064
    %11 = vst.msk [vmem:[#allocation0] ss:$8 sm:$0xf] %vm10, %v9
    %12 = vst.msk [vmem:[#allocation0] ss:$8 sm:$0xf0] %vm10, %v9
    %s14 = sshllo.u32 0, 1
    %v16 = vld [vmem:[#allocation0] sm:%s14]
    %s17 = sshllo.u32 0, 1
    %18 = vst [vmem:[%s1] sm:%s17] %v16
    %s19 = scalar_lea.vmem [#allocation0], 8
    %v20 = vld [vmem:[%s19] sm:%s14]
    %s21 = sshllo.u32 0, 1
    %s22 = scalar_lea.vmem %s1, 1
    %23 = vst [vmem:[%s22] sm:%s21] %v20
    %s24 = scalar_lea.vmem [#allocation0], 16
    %v25 = vld [vmem:[%s24] sm:%s14]
    %s26 = sshllo.u32 0, 1
    %s27 = smul.addr 1, 2
    %s28 = scalar_lea.vmem %s1, %s27
    %29 = vst [vmem:[%s28] sm:%s26] %v25
    %s30 = scalar_lea.vmem [#allocation0], 24
    %v31 = vld [vmem:[%s30] sm:%s14]
    %s32 = sshllo.u32 0, 1
    %s33 = smul.addr 1, 3
    %s34 = scalar_lea.vmem %s1, %s33
    %35 = vst [vmem:[%s34] sm:%s32] %v31
    %s36 = scalar_lea.vmem [#allocation0], 32
    %v37 = vld [vmem:[%s36] sm:%s14]
    %s38 = sshllo.u32 0, 1
    %s39 = smul.addr 1, 4
    %s40 = scalar_lea.vmem %s1, %s39
    %41 = vst [vmem:[%s40] sm:%s38] %v37
    %s42 = scalar_lea.vmem [#allocation0], 40
    %v43 = vld [vmem:[%s42] sm:%s14]
    %s44 = sshllo.u32 0, 1
    %s45 = smul.addr 1, 5
    %s46 = scalar_lea.vmem %s1, %s45
    %47 = vst [vmem:[%s46] sm:%s44] %v43
    %s48 = scalar_lea.vmem [#allocation0], 48
    %v49 = vld [vmem:[%s48] sm:%s14]
    %s50 = sshllo.u32 0, 1
    %s51 = smul.addr 1, 6
    %s52 = scalar_lea.vmem %s1, %s51
    %53 = vst [vmem:[%s52] sm:%s50] %v49
    %s54 = scalar_lea.vmem [#allocation0], 56
    %v55 = vld [vmem:[%s54] sm:%s14]
    %s56 = sshllo.u32 0, 1
    %s57 = smul.addr 1, 7
    %s58 = scalar_lea.vmem %s1, %s57
    %59 = vst [vmem:[%s58] sm:%s56] %v55

// kernel: conv_vae_forward.10
$region0: #{conv_vae_forward.10}
  #allocation0 [shape = 'u32[]', space=smem, size = 0x4, offset = 0x4, fixed_abs, tag = 'smem constant byte address 0x4 - core index']
  #allocation1 [shape = 'u32[144,128]{1,0:T(1,128)}', space=vmem, size = 0x12000, scoped, tag = 'internal scratch']
  #allocation2 [shape = 'f32[9,256]{1,0:T(8,128)}', space=vmem, size = 0x4000, scoped, tag = 'scratch operand']
  %s0 = inlined_call_operand.vmem [shape: f32[1,2,4,4,64], index: 0, kind: input, shape index: {}]
  %s1 = inlined_call_operand.vmem [shape: f32[1,256,32], index: 1, kind: input, shape index: {}]
  %s2 = inlined_call_operand.vmem [shape: f32[1,1,32], index: 2, kind: input, shape index: {}]
  %s3 = inlined_call_operand.vmem [shape: f32[1,2,9,32], index: 3, kind: output, shape index: {}]
  %s4 = sld [smem:[#allocation0]]
  $region45: #{conv_vae_forward.10} parent=0
    _
  %s6 = ssub.s32 1, %s4
  %s7 = scalar_select 0, %s6, %s4
  loop: start=0, step=1, limit=4
  $region2: #{conv_vae_forward.10} parent=0 // loop_pre_header
    _
  $region3: #{conv_vae_forward.10} parent=0 // loop_header
    %s9 = sphi 0, %s13
    %p10 = scmp.ge.s32.totalorder %s9, 4
    %s16 = sphi 0, %s28
    %s17 = sphi 0, %s24
    %s18 = sphi 0, %s16
    %s19 = sphi 0, %s17
    %s20 = sphi 0, %s18
    %s21 = sphi 0, %s19
    %s33 = sphi 0, %s35
    %s36 = sphi 0, %s33
    %s37 = sphi 0, %s36
    %s53 = sphi 0, %s37
    %s59 = sphi 0, %s61
    %s62 = sphi 0, %s59
    %s63 = sphi 0, %s62
    %s79 = sphi 0, %s63
    %s85 = sphi 0, %s87
    %s88 = sphi 0, %s85
    %s89 = sphi 0, %s88
    %s105 = sphi 0, %s89
    %s113 = sphi 0, %s115
    %s116 = sphi 0, %s113
    %s117 = sphi 0, %s116
    %s133 = sphi 0, %s117
  $region4: #{conv_vae_forward.10} parent=0 // loop_header_branch
    %12 = sbr.rel (%p10) target = $region8
  $region5: #{conv_vae_forward.10} parent=0 // loop_body
    %s14 = ssub.s32 %s9, 1
    %s15 = ssub.s32 %s9, 2
    %s22 = sadd.s32 1, %s17
    %p23 = scmp.ge.s32.totalorder %s22, 2
    %s24 = scalar_select %p23, 0, %s22
    %s25 = sadd.s32 1, %s16
    %s26 = scalar_select %p23, %s25, %s16
    %p27 = scmp.ge.s32.totalorder %s26, 1
    %s28 = scalar_select %p27, 0, %s26
    %s29 = ssub.s32 %s16, %s28
    %s30 = ssub.s32 %s17, %s24
    %s31 = sor.u32 %s29, %s30
    %p32 = scmp.eq.s32.totalorder %s31, 0
    %s34 = sadd.s32 %s33, 1
    %s35 = scalar_select %p32, %s33, %s34
    %p38 = pneg %p32
    %p39 = scmp.eq.s32.totalorder %s9, 1
    %p40 = por %p38, %p39
    %p41 = scmp.ne.s32.totalorder %s33, %s36
    %p42 = scmp.eq.s32.totalorder %s9, 0
    %p43 = por %p41, %p42
    %p44 = scmp.ne.s32.totalorder %s33, %s36
    %p45 = scmp.eq.s32.totalorder %s14, 1
    %p46 = por %p44, %p45
    %p47 = scmp.ne.s32.totalorder %s36, %s37
    %p48 = scmp.eq.s32.totalorder %s14, 0
    %p49 = por %p47, %p48
    %p50 = scmp.ne.s32.totalorder %s36, %s37
    %p51 = scmp.eq.s32.totalorder %s15, 1
    %p52 = por %p50, %p51
    %p54 = scmp.ne.s32.totalorder %s37, %s53
    %p55 = scmp.eq.s32.totalorder %s15, 0
    %p56 = por %p54, %p55
    %s57 = ssub.s32 %s16, %s28
    %p58 = scmp.eq.s32.totalorder %s57, 0
    %s60 = sadd.s32 %s59, 1
    %s61 = scalar_select %p58, %s59, %s60
    %p64 = pneg %p58
    %p65 = scmp.eq.s32.totalorder %s9, 1
    %p66 = por %p64, %p65
    %p67 = scmp.ne.s32.totalorder %s59, %s62
    %p68 = scmp.eq.s32.totalorder %s9, 0
    %p69 = por %p67, %p68
    %p70 = scmp.ne.s32.totalorder %s59, %s62
    %p71 = scmp.eq.s32.totalorder %s14, 1
    %p72 = por %p70, %p71
    %p73 = scmp.ne.s32.totalorder %s62, %s63
    %p74 = scmp.eq.s32.totalorder %s14, 0
    %p75 = por %p73, %p74
    %p76 = scmp.ne.s32.totalorder %s62, %s63
    %p77 = scmp.eq.s32.totalorder %s15, 1
    %p78 = por %p76, %p77
    %p80 = scmp.ne.s32.totalorder %s63, %s79
    %p81 = scmp.eq.s32.totalorder %s15, 0
    %p82 = por %p80, %p81
    %s83 = ssub.s32 %s16, %s28
    %p84 = scmp.eq.s32.totalorder %s83, 0
    %s86 = sadd.s32 %s85, 1
    %s87 = scalar_select %p84, %s85, %s86
    %p90 = pneg %p84
    %p91 = scmp.eq.s32.totalorder %s9, 1
    %p92 = por %p90, %p91
    %p93 = scmp.ne.s32.totalorder %s85, %s88
    %p94 = scmp.eq.s32.totalorder %s9, 0
    %p95 = por %p93, %p94
    %p96 = scmp.ne.s32.totalorder %s85, %s88
    %p97 = scmp.eq.s32.totalorder %s14, 1
    %p98 = por %p96, %p97
    %p99 = scmp.ne.s32.totalorder %s88, %s89
    %p100 = scmp.eq.s32.totalorder %s14, 0
    %p101 = por %p99, %p100
    %p102 = scmp.ne.s32.totalorder %s88, %s89
    %p103 = scmp.eq.s32.totalorder %s15, 1
    %p104 = por %p102, %p103
    %p106 = scmp.ne.s32.totalorder %s89, %s105
    %p107 = scmp.eq.s32.totalorder %s15, 0
    %p108 = por %p106, %p107
    %s109 = ssub.s32 %s16, %s28
    %s110 = ssub.s32 %s17, %s24
    %s111 = sor.u32 %s109, %s110
    %p112 = scmp.eq.s32.totalorder %s111, 0
    %s114 = sadd.s32 %s113, 1
    %s115 = scalar_select %p112, %s113, %s114
    %p118 = pneg %p112
    %p119 = scmp.eq.s32.totalorder %s9, 1
    %p120 = por %p118, %p119
    %p121 = scmp.ne.s32.totalorder %s113, %s116
    %p122 = scmp.eq.s32.totalorder %s9, 0
    %p123 = por %p121, %p122
    %p124 = scmp.ne.s32.totalorder %s113, %s116
    %p125 = scmp.eq.s32.totalorder %s14, 1
    %p126 = por %p124, %p125
    %p127 = scmp.ne.s32.totalorder %s116, %s117
    %p128 = scmp.eq.s32.totalorder %s14, 0
    %p129 = por %p127, %p128
    %p130 = scmp.ne.s32.totalorder %s116, %s117
    %p131 = scmp.eq.s32.totalorder %s15, 1
    %p132 = por %p130, %p131
    %p134 = scmp.ne.s32.totalorder %s117, %s133
    %p135 = scmp.eq.s32.totalorder %s15, 0
    %p136 = por %p134, %p135
    %p137 = scmp.le.s32.totalorder 1, %s9
    %p138 = scmp.lt.s32.totalorder %s9, 3
    %p139 = pnand %p137, %p138
    %p140 = pneg %p139
    // Predicated region
    $region9: #{conv_vae_forward.10} parent=5 // pred_check
      _
    $region10: #{conv_vae_forward.10} parent=5 // pred_check_branch
      %142 = sbr.rel (%p139) target = $region12
    $region11: #{conv_vae_forward.10} parent=5 // pred_region
      %s143 = ssub.s32 %s9, 1
      // Predicated region
      $region13: #{conv_vae_forward.10} parent=11 // pred_check
        %p144 = pneg %p75
      $region14: #{conv_vae_forward.10} parent=11 // pred_check_branch
        %146 = sbr.rel (%p144) target = $region16
      $region15: #{conv_vae_forward.10} parent=11 // pred_region
        %p147 = scmp.lt.s32.totalorder %s18, 0
        %s148 = scalar_select %p147, %s18, 0
        %s149 = smul.addr %s148, 32
        %s150 = smul.addr %s149, 8
        %s151 = scalar_lea.vmem %s1, %s150
      $region16: #{conv_vae_forward.10} parent=11 // pred_fallthru
        _
      // Predicated region
      $region17: #{conv_vae_forward.10} parent=11 // pred_check
        %p152 = pneg %p101
      $region18: #{conv_vae_forward.10} parent=11 // pred_check_branch
        %154 = sbr.rel (%p152) target = $region20
      $region19: #{conv_vae_forward.10} parent=11 // pred_region
        %p155 = scmp.lt.s32.totalorder %s18, 0
        %s156 = scalar_select %p155, %s18, 0
        %s157 = scalar_lea.vmem %s2, %s156
      $region20: #{conv_vae_forward.10} parent=11 // pred_fallthru
        _
    $region12: #{conv_vae_forward.10} parent=5 // pred_fallthru
      _
    %p158 = scmp.lt.s32.totalorder %s9, 2
    // Predicated region
    $region21: #{conv_vae_forward.10} parent=5 // pred_check
      %p159 = pneg %p158
    $region22: #{conv_vae_forward.10} parent=5 // pred_check_branch
      %161 = sbr.rel (%p159) target = $region24
    $region23: #{conv_vae_forward.10} parent=5 // pred_region
      // Predicated region
      $region25: #{conv_vae_forward.10} parent=23 // pred_check
        %p162 = pneg %p43
      $region26: #{conv_vae_forward.10} parent=23 // pred_check_branch
        %164 = sbr.rel (%p162) target = $region28
      $region27: #{conv_vae_forward.10} parent=23 // pred_region
        %p165 = scmp.lt.s32.totalorder %s16, 0
        %s166 = scalar_select %p165, %s16, 0
        %p167 = scmp.lt.s32.totalorder %s17, 1
        %s168 = scalar_select %p167, %s17, 1
        %s169 = smul.addr %s168, 4
        %s170 = smul.addr %s166, 8
        %s171 = sadd.s32 %s169, %s170
        %s172 = smul.addr %s171, 4
        %s173 = scalar_lea.vmem %s0, %s172
      $region28: #{conv_vae_forward.10} parent=23 // pred_fallthru
        _
    $region24: #{conv_vae_forward.10} parent=5 // pred_fallthru
      _
    %p174 = scmp.le.s32.totalorder 1, %s9
    %p175 = scmp.lt.s32.totalorder %s9, 3
    %p176 = pnand %p174, %p175
    %p177 = pneg %p176
    // Predicated region
    $region29: #{conv_vae_forward.10} parent=5 // pred_check
      _
    $region30: #{conv_vae_forward.10} parent=5 // pred_check_branch
      %179 = sbr.rel (%p176) target = $region32
    $region31: #{conv_vae_forward.10} parent=5 // pred_region
      %s180 = ssub.s32 %s9, 1
      %p181 = scmp.lt.s32.totalorder %s18, 0
      %s182 = scalar_select %p181, %s18, 0
      %p183 = scmp.lt.s32.totalorder %s19, 1
      %s184 = scalar_select %p183, %s19, 1
      %s185 = smul.addr %s184, 4
      %s186 = smul.addr %s182, 8
      %s187 = sadd.s32 %s185, %s186
      %s188 = smul.addr %s187, 4
      %s189 = scalar_lea.vmem %s0, %s188
      %p190 = pneg %p49
      %p191 = pneg %p46
      %p192 = scmp.lt.s32.totalorder %s18, 0
      %s193 = scalar_select %p192, %s18, 0
      %s194 = smul.addr %s193, 32
      %s195 = smul.addr %s194, 8
      %s196 = scalar_lea.vmem %s1, %s195
      %p197 = pneg %p75
      %p198 = pneg %p72
      %p199 = scmp.lt.s32.totalorder %s18, 0
      %s200 = scalar_select %p199, %s18, 0
      %s201 = scalar_lea.vmem %s2, %s200
      %p202 = pneg %p101
      %p203 = pneg %p98
      %p204 = pneg %p129
      %p205 = pneg %p126
      %p206 = scmp.lt.s32.totalorder %s18, 0
      %s207 = scalar_select %p206, %s18, 0
      %p208 = scmp.lt.s32.totalorder %s19, 1
      %s209 = scalar_select %p208, %s19, 1
      %s210 = smul.addr %s209, 2
      %s211 = smul.addr %s207, 4
      %s212 = sadd.s32 %s210, %s211
      %s213 = smul.addr %s212, 8
      %s214 = scalar_lea.vmem %s3, %s213
      %p215 = scmp.lt.s32.totalorder %s18, 0
      %s216 = scalar_select %p215, %s18, 0
      %p217 = scmp.lt.s32.totalorder %s19, 1
      %s218 = scalar_select %p217, %s19, 1
      %s219 = smul.addr %s218, 4
      %s220 = smul.addr %s216, 8
      %s221 = sadd.s32 %s219, %s220
      %s222 = smul.addr %s221, 4
      %s223 = scalar_lea.vmem %s0, %s222
      %p224 = scmp.lt.s32.totalorder %s18, 0
      %s225 = scalar_select %p224, %s18, 0
      %s226 = smul.addr %s225, 32
      %s227 = smul.addr %s226, 8
      %s228 = scalar_lea.vmem %s1, %s227
      %p229 = scmp.lt.s32.totalorder %s18, 0
      %s230 = scalar_select %p229, %s18, 0
      %s231 = scalar_lea.vmem %s2, %s230
      %p232 = scmp.lt.s32.totalorder %s18, 0
      %s233 = scalar_select %p232, %s18, 0
      %p234 = scmp.lt.s32.totalorder %s19, 1
      %s235 = scalar_select %p234, %s19, 1
      %s236 = smul.addr %s235, 2
      %s237 = smul.addr %s233, 4
      %s238 = sadd.s32 %s236, %s237
      %s239 = smul.addr %s238, 8
      %s240 = scalar_lea.vmem %s3, %s239
      %v241 = vld [vmem:[%s223] sm:$0x7]
      %vm242 = vcmask 518144
      %243 = vst.msk [vmem:[#allocation2] sm:$0x7] %vm242, %v241
      %v244 = vld [vmem:[%s223 + $0x1] sm:$0x7]
      %246 = vrot.lane.b32.xlu0 %v244, 64
      %v247 = vpop.permute.xlu0 %246
      %vm249 = vcmask 1042944
      %250 = vst.msk [vmem:[#allocation2] sm:$0x7] %vm249, %v247
      %s251 = scalar_lea.vmem %s223, 4
      %v252 = vld [vmem:[%s251] sm:$0x7]
      %253 = vst.msk [vmem:[#allocation2 + $0x8] sm:$0x7] %vm242, %v252
      %v254 = vld [vmem:[%s251 + $0x1] sm:$0x7]
      %256 = vrot.lane.b32.xlu0 %v254, 64
      %v257 = vpop.permute.xlu0 %256
      %259 = vst.msk [vmem:[#allocation2 + $0x8] sm:$0x7] %vm249, %v257
      %v260 = vld [vmem:[%s251] sm:$0x7]
      %v262 = vrot.slane %v260, 5
      %vm264 = vcmask 521219
      %265 = vst.msk [vmem:[#allocation2] sm:$0x38] %vm264, %v262
      %v266 = vld [vmem:[%s251 + $0x1] sm:$0x7]
      %v268 = vrot.slane %v266, 5
      %269 = vrot.lane.b32.xlu0 %v268, 64
      %v270 = vpop.permute.xlu0 %269
      %vm272 = vcmask 1046019
      %273 = vst.msk [vmem:[#allocation2] sm:$0x38] %vm272, %v270
      %s274 = scalar_lea.vmem %s223, 8
      %v275 = vld [vmem:[%s274] sm:$0x7]
      %v277 = vrot.slane %v275, 5
      %279 = vst.msk [vmem:[#allocation2 + $0x8] sm:$0x38] %vm264, %v277
      %v280 = vld [vmem:[%s274 + $0x1] sm:$0x7]
      %v282 = vrot.slane %v280, 5
      %283 = vrot.lane.b32.xlu0 %v282, 64
      %v284 = vpop.permute.xlu0 %283
      %286 = vst.msk [vmem:[#allocation2 + $0x8] sm:$0x38] %vm272, %v284
      %v287 = vld [vmem:[%s274] sm:$0x7]
      %v289 = vrot.slane %v287, 2
      %vm291 = vcmask 523270
      %292 = vst.msk [vmem:[#allocation2] sm:$0xc0] %vm291, %v289
      %vm293 = vcmask 516096
      %294 = vst.msk [vmem:[#allocation2 + $0x10] sm:$0x1] %vm293, %v289
      %v295 = vld [vmem:[%s274 + $0x1] sm:$0x7]
      %v297 = vrot.slane %v295, 2
      %298 = vrot.lane.b32.xlu0 %v297, 64
      %v299 = vpop.permute.xlu0 %298
      %vm301 = vcmask 1048070
      %302 = vst.msk [vmem:[#allocation2] sm:$0xc0] %vm301, %v299
      %vm303 = vcmask 1040896
      %304 = vst.msk [vmem:[#allocation2 + $0x10] sm:$0x1] %vm303, %v299
      %s305 = scalar_lea.vmem %s223, 12
      %v306 = vld [vmem:[%s305] sm:$0x7]
      %v308 = vrot.slane %v306, 2
      %310 = vst.msk [vmem:[#allocation2 + $0x8] sm:$0xc0] %vm291, %v308
      %311 = vst.msk [vmem:[#allocation2 + $0x18] sm:$0x1] %vm293, %v308
      %v312 = vld [vmem:[%s305 + $0x1] sm:$0x7]
      %v314 = vrot.slane %v312, 2
      %315 = vrot.lane.b32.xlu0 %v314, 64
      %v316 = vpop.permute.xlu0 %315
      %318 = vst.msk [vmem:[#allocation2 + $0x8] sm:$0xc0] %vm301, %v316
      %319 = vst.msk [vmem:[#allocation2 + $0x18] sm:$0x1] %vm303, %v316
      %v320 = vld [vmem:[#allocation2] sm:$0xff]
      %v321 = vld [vmem:[#allocation2 + $0x8] sm:$0xff]
      %v322 = vld [vmem:[#allocation2 + $0x10] sm:$0x1]
      %v323 = vld [vmem:[#allocation2 + $0x18] sm:$0x1]
      %v324 = vld [vmem:[%s228] sm:$0xff]
      %v325 = vld [vmem:[%s228 + $0x8] sm:$0xff]
      %v326 = vld [vmem:[%s228 + $0x10] sm:$0xff]
      %v327 = vld [vmem:[%s228 + $0x18] sm:$0xff]
      %v328 = vld [vmem:[%s228 + $0x20] sm:$0xff]
      %v329 = vld [vmem:[%s228 + $0x28] sm:$0xff]
      %v330 = vld [vmem:[%s228 + $0x30] sm:$0xff]
      %v331 = vld [vmem:[%s228 + $0x38] sm:$0xff]
      %v332 = vld [vmem:[%s228 + $0x40] sm:$0xff]
      %v333 = vld [vmem:[%s228 + $0x48] sm:$0xff]
      %v334 = vld [vmem:[%s228 + $0x50] sm:$0xff]
      %v335 = vld [vmem:[%s228 + $0x58] sm:$0xff]
      %v336 = vld [vmem:[%s228 + $0x60] sm:$0xff]
      %v337 = vld [vmem:[%s228 + $0x68] sm:$0xff]
      %v338 = vld [vmem:[%s228 + $0x70] sm:$0xff]
      %v339 = vld [vmem:[%s228 + $0x78] sm:$0xff]
      %v340 = vld [vmem:[%s228 + $0x80] sm:$0xff]
      %v341 = vld [vmem:[%s228 + $0x88] sm:$0xff]
      %v342 = vld [vmem:[%s228 + $0x90] sm:$0xff]
      %v343 = vld [vmem:[%s228 + $0x98] sm:$0xff]
      %v344 = vld [vmem:[%s228 + $0xa0] sm:$0xff]
      %v345 = vld [vmem:[%s228 + $0xa8] sm:$0xff]
      %v346 = vld [vmem:[%s228 + $0xb0] sm:$0xff]
      %v347 = vld [vmem:[%s228 + $0xb8] sm:$0xff]
      %v348 = vld [vmem:[%s228 + $0xc0] sm:$0xff]
      %v349 = vld [vmem:[%s228 + $0xc8] sm:$0xff]
      %v350 = vld [vmem:[%s228 + $0xd0] sm:$0xff]
      %v351 = vld [vmem:[%s228 + $0xd8] sm:$0xff]
      %v352 = vld [vmem:[%s228 + $0xe0] sm:$0xff]
      %v353 = vld [vmem:[%s228 + $0xe8] sm:$0xff]
      %v354 = vld [vmem:[%s228 + $0xf0] sm:$0xff]
      %v355 = vld [vmem:[%s228 + $0xf8] sm:$0xff]
      %v356 = vld [vmem:[%s231] sm:$0x1]
      %v358 = vlaneseq
      %v359 = vshrl.u32 %v358, 7
      %v360 = vsub.s32 0, %v359
      %v361 = vrot.slane %v356, %v360
      %363 = vmatprep.subr.mxu0 0.0
      %364 = vmatpush1.msra.mxu0 %v324
      %365 = vmatprep.subr.mxu0 0.0
      %366 = vmatpush1.msra.mxu0 %v325
      %367 = vmatprep.subr.mxu0 0.0
      %368 = vmatpush1.msra.mxu0 %v326
      %369 = vmatprep.subr.mxu0 0.0
      %370 = vmatpush1.msra.mxu0 %v327
      %371 = vmatprep.subr.mxu0 0.0
      %372 = vmatpush1.msra.mxu0 %v328
      %373 = vmatprep.subr.mxu0 0.0
      %374 = vmatpush1.msra.mxu0 %v329
      %375 = vmatprep.subr.mxu0 0.0
      %376 = vmatpush1.msra.mxu0 %v330
      %377 = vmatprep.subr.mxu0 0.0
      %378 = vmatpush1.msra.mxu0 %v331
      %379 = vmatprep.subr.mxu0 0.0
      %380 = vmatpush1.msra.mxu0 %v332
      %381 = vmatprep.subr.mxu0 0.0
      %382 = vmatpush1.msra.mxu0 %v333
      %383 = vmatprep.subr.mxu0 0.0
      %384 = vmatpush1.msra.mxu0 %v334
      %385 = vmatprep.subr.mxu0 0.0
      %386 = vmatpush1.msra.mxu0 %v335
      %387 = vmatprep.subr.mxu0 0.0
      %388 = vmatpush1.msra.mxu0 %v336
      %389 = vmatprep.subr.mxu0 0.0
      %390 = vmatpush1.msra.mxu0 %v337
      %391 = vmatprep.subr.mxu0 0.0
      %392 = vmatpush1.msra.mxu0 %v338
      %393 = vmatprep.subr.mxu0 0.0
      %394 = vmatpush1.msra.mxu0 %v339
      %395 = vmatprep.subr.mxu0 0.0
      %396 = vmatpush1.msra.mxu0 %v340
      %397 = vmatprep.subr.mxu0 0.0
      %398 = vmatpush1.msra.mxu0 %v341
      %399 = vmatprep.subr.mxu0 0.0
      %400 = vmatpush1.msra.mxu0 %v342
      %401 = vmatprep.subr.mxu0 0.0
      %402 = vmatpush1.msra.mxu0 %v343
      %403 = vmatprep.subr.mxu0 0.0
      %404 = vmatpush1.msra.mxu0 %v344
      %405 = vmatprep.subr.mxu0 0.0
      %406 = vmatpush1.msra.mxu0 %v345
      %407 = vmatprep.subr.mxu0 0.0
      %408 = vmatpush1.msra.mxu0 %v346
      %409 = vmatprep.subr.mxu0 0.0
      %410 = vmatpush1.msra.mxu0 %v347
      %411 = vmatprep.subr.mxu0 0.0
      %412 = vmatpush1.msra.mxu0 %v348
      %413 = vmatprep.subr.mxu0 0.0
      %414 = vmatpush1.msra.mxu0 %v349
      %415 = vmatprep.subr.mxu0 0.0
      %416 = vmatpush1.msra.mxu0 %v350
      %417 = vmatprep.subr.mxu0 0.0
      %418 = vmatpush1.msra.mxu0 %v351
      %419 = vmatprep.subr.mxu0 0.0
      %420 = vmatpush1.msra.mxu0 %v352
      %421 = vmatprep.subr.mxu0 0.0
      %422 = vmatpush1.msra.mxu0 %v353
      %423 = vmatprep.subr.mxu0 0.0
      %424 = vmatpush1.msra.mxu0 %v354
      %425 = vmatprep.subr.mxu0 0.0
      %426 = vmatpush1.msra.mxu0 %v355
      %427 = vmatprep.mubr.f32.mxu0 %v321
      %428 = vmatmul.mubr.f32.gmra.mrb[0].mxu0 %v320
      %v429 = vpop.f32.mrb[0].mxu0
      %v430 = vadd.f32 %v361, %v429
      %v431 = vpop.f32.mrb[0].mxu0
      %432 = vmatprep.mubr.f32.mxu0 %v323
      %433 = vmatmul.mubr.f32.gmra.mrb[0].mxu0 %v322
      %v434 = vpop.f32.mrb[0].mxu0
      %v435 = vadd.f32 %v361, %v434
      %v436 = vpop.f32.mrb[0].mxu0
      %437 = vdwg.mxu0
      %v438 = vmax.f32 %v430, 0.0
      %v439 = vmax.f32 %v435, 0.0
      %vm440 = vcmask 261120
      %441 = vst.msk [vmem:[%s240] sm:$0xff] %vm440, %v438
      %vm442 = vcmask 253952
      %443 = vst.msk [vmem:[%s240 + $0x8] sm:$0x1] %vm442, %v439
      %p444 = scmp.lt.s32.totalorder %s18, 0
      %s445 = scalar_select %p444, %s18, 0
      %p446 = scmp.lt.s32.totalorder %s19, 1
      %s447 = scalar_select %p446, %s19, 1
      %s448 = smul.addr %s447, 2
      %s449 = smul.addr %s445, 4
      %s450 = sadd.s32 %s448, %s449
      %s451 = smul.addr %s450, 8
      %s452 = scalar_lea.vmem %s3, %s451
      // Predicated region
      $region33: #{conv_vae_forward.10} parent=31 // pred_check
        %p453 = pneg %p126
      $region34: #{conv_vae_forward.10} parent=31 // pred_check_branch
        %455 = sbr.rel (%p453) target = $region36
      $region35: #{conv_vae_forward.10} parent=31 // pred_region
        _
      $region36: #{conv_vae_forward.10} parent=31 // pred_fallthru
        _
    $region32: #{conv_vae_forward.10} parent=5 // pred_fallthru
      _
    %p456 = scmp.le.s32.totalorder 2, %s9
    // Predicated region
    $region37: #{conv_vae_forward.10} parent=5 // pred_check
      %p457 = pneg %p456
    $region38: #{conv_vae_forward.10} parent=5 // pred_check_branch
      %459 = sbr.rel (%p457) target = $region40
    $region39: #{conv_vae_forward.10} parent=5 // pred_region
      %s460 = ssub.s32 %s9, 2
      // Predicated region
      $region41: #{conv_vae_forward.10} parent=39 // pred_check
        %p461 = pneg %p132
      $region42: #{conv_vae_forward.10} parent=39 // pred_check_branch
        %463 = sbr.rel (%p461) target = $region44
      $region43: #{conv_vae_forward.10} parent=39 // pred_region
        %p464 = scmp.lt.s32.totalorder %s20, 0
        %s465 = scalar_select %p464, %s20, 0
        %p466 = scmp.lt.s32.totalorder %s21, 1
        %s467 = scalar_select %p466, %s21, 1
        %s468 = smul.addr %s467, 2
        %s469 = smul.addr %s465, 4
        %s470 = sadd.s32 %s468, %s469
        %s471 = smul.addr %s470, 8
        %s472 = scalar_lea.vmem %s3, %s471
      $region44: #{conv_vae_forward.10} parent=39 // pred_fallthru
        _
    $region40: #{conv_vae_forward.10} parent=5 // pred_fallthru
      _
  $region6: #{conv_vae_forward.10} parent=0 // loop_footer
    %s13 = sadd.s32 1, %s9
  $region7: #{conv_vae_forward.10} parent=0 // loop_footer_branch
    %8 = sbr.rel target = $region3
  $region8: #{conv_vae_forward.10} parent=0 // loop_exit
    _

// kernel: conv_vae_forward.11
$region0: #{conv_vae_forward.11}
  #allocation0 [shape = 'u32[]', space=smem, size = 0x4, offset = 0x4, fixed_abs, tag = 'smem constant byte address 0x4 - core index']
  #allocation1 [shape = 'u32[144,128]{1,0:T(1,128)}', space=vmem, size = 0x12000, scoped, tag = 'internal scratch']
  #allocation2 [shape = 'f32[1,128]{1,0:T(1,128)}', space=vmem, size = 0x200, scoped, tag = 'scratch operand']
  %s0 = inlined_call_operand.vmem [shape: f32[1,2,1,1,128], index: 0, kind: input, shape index: {}]
  %s1 = inlined_call_operand.vmem [shape: f32[1,128,64], index: 1, kind: input, shape index: {}]
  %s2 = inlined_call_operand.vmem [shape: f32[1,1,64], index: 2, kind: input, shape index: {}]
  %s3 = inlined_call_operand.vmem [shape: f32[1,2,1,64], index: 3, kind: output, shape index: {}]
  %s4 = sld [smem:[#allocation0]]
  $region45: #{conv_vae_forward.11} parent=0
    _
  %s6 = ssub.s32 1, %s4
  %s7 = scalar_select 0, %s6, %s4
  loop: start=0, step=1, limit=4
  $region2: #{conv_vae_forward.11} parent=0 // loop_pre_header
    _
  $region3: #{conv_vae_forward.11} parent=0 // loop_header
    %s9 = sphi 0, %s13
    %p10 = scmp.ge.s32.totalorder %s9, 4
    %s16 = sphi 0, %s28
    %s17 = sphi 0, %s24
    %s18 = sphi 0, %s16
    %s19 = sphi 0, %s17
    %s20 = sphi 0, %s18
    %s21 = sphi 0, %s19
    %s33 = sphi 0, %s35
    %s36 = sphi 0, %s33
    %s37 = sphi 0, %s36
    %s53 = sphi 0, %s37
    %s59 = sphi 0, %s61
    %s62 = sphi 0, %s59
    %s63 = sphi 0, %s62
    %s79 = sphi 0, %s63
    %s85 = sphi 0, %s87
    %s88 = sphi 0, %s85
    %s89 = sphi 0, %s88
    %s105 = sphi 0, %s89
    %s113 = sphi 0, %s115
    %s116 = sphi 0, %s113
    %s117 = sphi 0, %s116
    %s133 = sphi 0, %s117
  $region4: #{conv_vae_forward.11} parent=0 // loop_header_branch
    %12 = sbr.rel (%p10) target = $region8
  $region5: #{conv_vae_forward.11} parent=0 // loop_body
    %s14 = ssub.s32 %s9, 1
    %s15 = ssub.s32 %s9, 2
    %s22 = sadd.s32 1, %s17
    %p23 = scmp.ge.s32.totalorder %s22, 2
    %s24 = scalar_select %p23, 0, %s22
    %s25 = sadd.s32 1, %s16
    %s26 = scalar_select %p23, %s25, %s16
    %p27 = scmp.ge.s32.totalorder %s26, 1
    %s28 = scalar_select %p27, 0, %s26
    %s29 = ssub.s32 %s16, %s28
    %s30 = ssub.s32 %s17, %s24
    %s31 = sor.u32 %s29, %s30
    %p32 = scmp.eq.s32.totalorder %s31, 0
    %s34 = sadd.s32 %s33, 1
    %s35 = scalar_select %p32, %s33, %s34
    %p38 = pneg %p32
    %p39 = scmp.eq.s32.totalorder %s9, 1
    %p40 = por %p38, %p39
    %p41 = scmp.ne.s32.totalorder %s33, %s36
    %p42 = scmp.eq.s32.totalorder %s9, 0
    %p43 = por %p41, %p42
    %p44 = scmp.ne.s32.totalorder %s33, %s36
    %p45 = scmp.eq.s32.totalorder %s14, 1
    %p46 = por %p44, %p45
    %p47 = scmp.ne.s32.totalorder %s36, %s37
    %p48 = scmp.eq.s32.totalorder %s14, 0
    %p49 = por %p47, %p48
    %p50 = scmp.ne.s32.totalorder %s36, %s37
    %p51 = scmp.eq.s32.totalorder %s15, 1
    %p52 = por %p50, %p51
    %p54 = scmp.ne.s32.totalorder %s37, %s53
    %p55 = scmp.eq.s32.totalorder %s15, 0
    %p56 = por %p54, %p55
    %s57 = ssub.s32 %s16, %s28
    %p58 = scmp.eq.s32.totalorder %s57, 0
    %s60 = sadd.s32 %s59, 1
    %s61 = scalar_select %p58, %s59, %s60
    %p64 = pneg %p58
    %p65 = scmp.eq.s32.totalorder %s9, 1
    %p66 = por %p64, %p65
    %p67 = scmp.ne.s32.totalorder %s59, %s62
    %p68 = scmp.eq.s32.totalorder %s9, 0
    %p69 = por %p67, %p68
    %p70 = scmp.ne.s32.totalorder %s59, %s62
    %p71 = scmp.eq.s32.totalorder %s14, 1
    %p72 = por %p70, %p71
    %p73 = scmp.ne.s32.totalorder %s62, %s63
    %p74 = scmp.eq.s32.totalorder %s14, 0
    %p75 = por %p73, %p74
    %p76 = scmp.ne.s32.totalorder %s62, %s63
    %p77 = scmp.eq.s32.totalorder %s15, 1
    %p78 = por %p76, %p77
    %p80 = scmp.ne.s32.totalorder %s63, %s79
    %p81 = scmp.eq.s32.totalorder %s15, 0
    %p82 = por %p80, %p81
    %s83 = ssub.s32 %s16, %s28
    %p84 = scmp.eq.s32.totalorder %s83, 0
    %s86 = sadd.s32 %s85, 1
    %s87 = scalar_select %p84, %s85, %s86
    %p90 = pneg %p84
    %p91 = scmp.eq.s32.totalorder %s9, 1
    %p92 = por %p90, %p91
    %p93 = scmp.ne.s32.totalorder %s85, %s88
    %p94 = scmp.eq.s32.totalorder %s9, 0
    %p95 = por %p93, %p94
    %p96 = scmp.ne.s32.totalorder %s85, %s88
    %p97 = scmp.eq.s32.totalorder %s14, 1
    %p98 = por %p96, %p97
    %p99 = scmp.ne.s32.totalorder %s88, %s89
    %p100 = scmp.eq.s32.totalorder %s14, 0
    %p101 = por %p99, %p100
    %p102 = scmp.ne.s32.totalorder %s88, %s89
    %p103 = scmp.eq.s32.totalorder %s15, 1
    %p104 = por %p102, %p103
    %p106 = scmp.ne.s32.totalorder %s89, %s105
    %p107 = scmp.eq.s32.totalorder %s15, 0
    %p108 = por %p106, %p107
    %s109 = ssub.s32 %s16, %s28
    %s110 = ssub.s32 %s17, %s24
    %s111 = sor.u32 %s109, %s110
    %p112 = scmp.eq.s32.totalorder %s111, 0
    %s114 = sadd.s32 %s113, 1
    %s115 = scalar_select %p112, %s113, %s114
    %p118 = pneg %p112
    %p119 = scmp.eq.s32.totalorder %s9, 1
    %p120 = por %p118, %p119
    %p121 = scmp.ne.s32.totalorder %s113, %s116
    %p122 = scmp.eq.s32.totalorder %s9, 0
    %p123 = por %p121, %p122
    %p124 = scmp.ne.s32.totalorder %s113, %s116
    %p125 = scmp.eq.s32.totalorder %s14, 1
    %p126 = por %p124, %p125
    %p127 = scmp.ne.s32.totalorder %s116, %s117
    %p128 = scmp.eq.s32.totalorder %s14, 0
    %p129 = por %p127, %p128
    %p130 = scmp.ne.s32.totalorder %s116, %s117
    %p131 = scmp.eq.s32.totalorder %s15, 1
    %p132 = por %p130, %p131
    %p134 = scmp.ne.s32.totalorder %s117, %s133
    %p135 = scmp.eq.s32.totalorder %s15, 0
    %p136 = por %p134, %p135
    %p137 = scmp.le.s32.totalorder 1, %s9
    %p138 = scmp.lt.s32.totalorder %s9, 3
    %p139 = pnand %p137, %p138
    %p140 = pneg %p139
    // Predicated region
    $region9: #{conv_vae_forward.11} parent=5 // pred_check
      _
    $region10: #{conv_vae_forward.11} parent=5 // pred_check_branch
      %142 = sbr.rel (%p139) target = $region12
    $region11: #{conv_vae_forward.11} parent=5 // pred_region
      %s143 = ssub.s32 %s9, 1
      // Predicated region
      $region13: #{conv_vae_forward.11} parent=11 // pred_check
        %p144 = pneg %p75
      $region14: #{conv_vae_forward.11} parent=11 // pred_check_branch
        %146 = sbr.rel (%p144) target = $region16
      $region15: #{conv_vae_forward.11} parent=11 // pred_region
        %p147 = scmp.lt.s32.totalorder %s18, 0
        %s148 = scalar_select %p147, %s18, 0
        %s149 = smul.addr %s148, 16
        %s150 = smul.addr %s149, 8
        %s151 = scalar_lea.vmem %s1, %s150
      $region16: #{conv_vae_forward.11} parent=11 // pred_fallthru
        _
      // Predicated region
      $region17: #{conv_vae_forward.11} parent=11 // pred_check
        %p152 = pneg %p101
      $region18: #{conv_vae_forward.11} parent=11 // pred_check_branch
        %154 = sbr.rel (%p152) target = $region20
      $region19: #{conv_vae_forward.11} parent=11 // pred_region
        %p155 = scmp.lt.s32.totalorder %s18, 0
        %s156 = scalar_select %p155, %s18, 0
        %s157 = scalar_lea.vmem %s2, %s156
      $region20: #{conv_vae_forward.11} parent=11 // pred_fallthru
        _
    $region12: #{conv_vae_forward.11} parent=5 // pred_fallthru
      _
    %p158 = scmp.lt.s32.totalorder %s9, 2
    // Predicated region
    $region21: #{conv_vae_forward.11} parent=5 // pred_check
      %p159 = pneg %p158
    $region22: #{conv_vae_forward.11} parent=5 // pred_check_branch
      %161 = sbr.rel (%p159) target = $region24
    $region23: #{conv_vae_forward.11} parent=5 // pred_region
      // Predicated region
      $region25: #{conv_vae_forward.11} parent=23 // pred_check
        %p162 = pneg %p43
      $region26: #{conv_vae_forward.11} parent=23 // pred_check_branch
        %164 = sbr.rel (%p162) target = $region28
      $region27: #{conv_vae_forward.11} parent=23 // pred_region
        %p165 = scmp.lt.s32.totalorder %s16, 0
        %s166 = scalar_select %p165, %s16, 0
        %p167 = scmp.lt.s32.totalorder %s17, 1
        %s168 = scalar_select %p167, %s17, 1
        %s169 = smul.addr %s166, 2
        %s170 = sadd.s32 %s168, %s169
        %s171 = scalar_lea.vmem %s0, %s170
      $region28: #{conv_vae_forward.11} parent=23 // pred_fallthru
        _
    $region24: #{conv_vae_forward.11} parent=5 // pred_fallthru
      _
    %p172 = scmp.le.s32.totalorder 1, %s9
    %p173 = scmp.lt.s32.totalorder %s9, 3
    %p174 = pnand %p172, %p173
    %p175 = pneg %p174
    // Predicated region
    $region29: #{conv_vae_forward.11} parent=5 // pred_check
      _
    $region30: #{conv_vae_forward.11} parent=5 // pred_check_branch
      %177 = sbr.rel (%p174) target = $region32
    $region31: #{conv_vae_forward.11} parent=5 // pred_region
      %s178 = ssub.s32 %s9, 1
      %p179 = scmp.lt.s32.totalorder %s18, 0
      %s180 = scalar_select %p179, %s18, 0
      %p181 = scmp.lt.s32.totalorder %s19, 1
      %s182 = scalar_select %p181, %s19, 1
      %s183 = smul.addr %s180, 2
      %s184 = sadd.s32 %s182, %s183
      %s185 = scalar_lea.vmem %s0, %s184
      %p186 = pneg %p49
      %p187 = pneg %p46
      %p188 = scmp.lt.s32.totalorder %s18, 0
      %s189 = scalar_select %p188, %s18, 0
      %s190 = smul.addr %s189, 16
      %s191 = smul.addr %s190, 8
      %s192 = scalar_lea.vmem %s1, %s191
      %p193 = pneg %p75
      %p194 = pneg %p72
      %p195 = scmp.lt.s32.totalorder %s18, 0
      %s196 = scalar_select %p195, %s18, 0
      %s197 = scalar_lea.vmem %s2, %s196
      %p198 = pneg %p101
      %p199 = pneg %p98
      %p200 = pneg %p129
      %p201 = pneg %p126
      %p202 = scmp.lt.s32.totalorder %s18, 0
      %s203 = scalar_select %p202, %s18, 0
      %p204 = scmp.lt.s32.totalorder %s19, 1
      %s205 = scalar_select %p204, %s19, 1
      %s206 = smul.addr %s203, 2
      %s207 = sadd.s32 %s205, %s206
      %s208 = scalar_lea.vmem %s3, %s207
      %p209 = scmp.lt.s32.totalorder %s18, 0
      %s210 = scalar_select %p209, %s18, 0
      %p211 = scmp.lt.s32.totalorder %s19, 1
      %s212 = scalar_select %p211, %s19, 1
      %s213 = smul.addr %s210, 2
      %s214 = sadd.s32 %s212, %s213
      %s215 = scalar_lea.vmem %s0, %s214
      %p216 = scmp.lt.s32.totalorder %s18, 0
      %s217 = scalar_select %p216, %s18, 0
      %s218 = smul.addr %s217, 16
      %s219 = smul.addr %s218, 8
      %s220 = scalar_lea.vmem %s1, %s219
      %p221 = scmp.lt.s32.totalorder %s18, 0
      %s222 = scalar_select %p221, %s18, 0
      %s223 = scalar_lea.vmem %s2, %s222
      %p224 = scmp.lt.s32.totalorder %s18, 0
      %s225 = scalar_select %p224, %s18, 0
      %p226 = scmp.lt.s32.totalorder %s19, 1
      %s227 = scalar_select %p226, %s19, 1
      %s228 = smul.addr %s225, 2
      %s229 = sadd.s32 %s227, %s228
      %s230 = scalar_lea.vmem %s3, %s229
      %v231 = vld [vmem:[%s215] sm:$0x1]
      %232 = vst [vmem:[#allocation2] sm:$0x1] %v231
      %v233 = vld [vmem:[#allocation2] sm:$0x1]
      %v234 = vld [vmem:[%s220] sm:$0xff]
      %v235 = vld [vmem:[%s220 + $0x8] sm:$0xff]
      %v236 = vld [vmem:[%s220 + $0x10] sm:$0xff]
      %v237 = vld [vmem:[%s220 + $0x18] sm:$0xff]
      %v238 = vld [vmem:[%s220 + $0x20] sm:$0xff]
      %v239 = vld [vmem:[%s220 + $0x28] sm:$0xff]
      %v240 = vld [vmem:[%s220 + $0x30] sm:$0xff]
      %v241 = vld [vmem:[%s220 + $0x38] sm:$0xff]
      %v242 = vld [vmem:[%s220 + $0x40] sm:$0xff]
      %v243 = vld [vmem:[%s220 + $0x48] sm:$0xff]
      %v244 = vld [vmem:[%s220 + $0x50] sm:$0xff]
      %v245 = vld [vmem:[%s220 + $0x58] sm:$0xff]
      %v246 = vld [vmem:[%s220 + $0x60] sm:$0xff]
      %v247 = vld [vmem:[%s220 + $0x68] sm:$0xff]
      %v248 = vld [vmem:[%s220 + $0x70] sm:$0xff]
      %v249 = vld [vmem:[%s220 + $0x78] sm:$0xff]
      %v250 = vld [vmem:[%s223] sm:$0x1]
      %251 = vmatprep.subr.mxu0 0.0
      %252 = vmatpush1.msra.mxu0 %v234
      %253 = vmatprep.subr.mxu0 0.0
      %254 = vmatpush1.msra.mxu0 %v235
      %255 = vmatprep.subr.mxu0 0.0
      %256 = vmatpush1.msra.mxu0 %v236
      %257 = vmatprep.subr.mxu0 0.0
      %258 = vmatpush1.msra.mxu0 %v237
      %259 = vmatprep.subr.mxu0 0.0
      %260 = vmatpush1.msra.mxu0 %v238
      %261 = vmatprep.subr.mxu0 0.0
      %262 = vmatpush1.msra.mxu0 %v239
      %263 = vmatprep.subr.mxu0 0.0
      %264 = vmatpush1.msra.mxu0 %v240
      %265 = vmatprep.subr.mxu0 0.0
      %266 = vmatpush1.msra.mxu0 %v241
      %267 = vmatprep.subr.mxu0 0.0
      %268 = vmatpush1.msra.mxu0 %v242
      %269 = vmatprep.subr.mxu0 0.0
      %270 = vmatpush1.msra.mxu0 %v243
      %271 = vmatprep.subr.mxu0 0.0
      %272 = vmatpush1.msra.mxu0 %v244
      %273 = vmatprep.subr.mxu0 0.0
      %274 = vmatpush1.msra.mxu0 %v245
      %275 = vmatprep.subr.mxu0 0.0
      %276 = vmatpush1.msra.mxu0 %v246
      %277 = vmatprep.subr.mxu0 0.0
      %278 = vmatpush1.msra.mxu0 %v247
      %279 = vmatprep.subr.mxu0 0.0
      %280 = vmatpush1.msra.mxu0 %v248
      %281 = vmatprep.subr.mxu0 0.0
      %282 = vmatpush1.msra.mxu0 %v249
      %283 = vmatprep.subr.mxu0 0.0
      %284 = vmatpush1.msra.mxu0 0.0
      %285 = vmatprep.subr.mxu0 0.0
      %286 = vmatpush1.msra.mxu0 0.0
      %287 = vmatprep.subr.mxu0 0.0
      %288 = vmatpush1.msra.mxu0 0.0
      %289 = vmatprep.subr.mxu0 0.0
      %290 = vmatpush1.msra.mxu0 0.0
      %291 = vmatprep.subr.mxu0 0.0
      %292 = vmatpush1.msra.mxu0 0.0
      %293 = vmatprep.subr.mxu0 0.0
      %294 = vmatpush1.msra.mxu0 0.0
      %295 = vmatprep.subr.mxu0 0.0
      %296 = vmatpush1.msra.mxu0 0.0
      %297 = vmatprep.subr.mxu0 0.0
      %298 = vmatpush1.msra.mxu0 0.0
      %299 = vmatprep.subr.mxu0 0.0
      %300 = vmatpush1.msra.mxu0 0.0
      %301 = vmatprep.subr.mxu0 0.0
      %302 = vmatpush1.msra.mxu0 0.0
      %303 = vmatprep.subr.mxu0 0.0
      %304 = vmatpush1.msra.mxu0 0.0
      %305 = vmatprep.subr.mxu0 0.0
      %306 = vmatpush1.msra.mxu0 0.0
      %307 = vmatprep.subr.mxu0 0.0
      %308 = vmatpush1.msra.mxu0 0.0
      %309 = vmatprep.subr.mxu0 0.0
      %310 = vmatpush1.msra.mxu0 0.0
      %311 = vmatprep.subr.mxu0 0.0
      %312 = vmatpush1.msra.mxu0 0.0
      %313 = vmatprep.subr.mxu0 0.0
      %314 = vmatpush1.msra.mxu0 0.0
      %315 = vmatprep.mubr.f32.mxu0 0.0
      %316 = vmatmul.mubr.f32.gmra.mrb[0].mxu0 %v233
      %v317 = vpop.f32.mrb[0].mxu0
      %v318 = vadd.f32 %v250, %v317
      %v319 = vpop.f32.mrb[0].mxu0
      %320 = vdwg.mxu0
      %v321 = vmax.f32 %v318, 0.0
      %vm322 = vcmask 516096
      %323 = vst.msk [vmem:[%s230] sm:$0x1] %vm322, %v321
      %p324 = scmp.lt.s32.totalorder %s18, 0
      %s325 = scalar_select %p324, %s18, 0
      %p326 = scmp.lt.s32.totalorder %s19, 1
      %s327 = scalar_select %p326, %s19, 1
      %s328 = smul.addr %s325, 2
      %s329 = sadd.s32 %s327, %s328
      %s330 = scalar_lea.vmem %s3, %s329
      // Predicated region
      $region33: #{conv_vae_forward.11} parent=31 // pred_check
        %p331 = pneg %p126
      $region34: #{conv_vae_forward.11} parent=31 // pred_check_branch
        %333 = sbr.rel (%p331) target = $region36
      $region35: #{conv_vae_forward.11} parent=31 // pred_region
        _
      $region36: #{conv_vae_forward.11} parent=31 // pred_fallthru
        _
    $region32: #{conv_vae_forward.11} parent=5 // pred_fallthru
      _
    %p334 = scmp.le.s32.totalorder 2, %s9
    // Predicated region
    $region37: #{conv_vae_forward.11} parent=5 // pred_check
      %p335 = pneg %p334
    $region38: #{conv_vae_forward.11} parent=5 // pred_check_branch
      %337 = sbr.rel (%p335) target = $region40
    $region39: #{conv_vae_forward.11} parent=5 // pred_region
      %s338 = ssub.s32 %s9, 2
      // Predicated region
      $region41: #{conv_vae_forward.11} parent=39 // pred_check
        %p339 = pneg %p132
      $region42: #{conv_vae_forward.11} parent=39 // pred_check_branch
        %341 = sbr.rel (%p339) target = $region44
      $region43: #{conv_vae_forward.11} parent=39 // pred_region
        %p342 = scmp.lt.s32.totalorder %s20, 0
        %s343 = scalar_select %p342, %s20, 0
        %p344 = scmp.lt.s32.totalorder %s21, 1
        %s345 = scalar_select %p344, %s21, 1
        %s346 = smul.addr %s343, 2
        %s347 = sadd.s32 %s345, %s346
        %s348 = scalar_lea.vmem %s3, %s347
      $region44: #{conv_vae_forward.11} parent=39 // pred_fallthru
        _
    $region40: #{conv_vae_forward.11} parent=5 // pred_fallthru
      _
  $region6: #{conv_vae_forward.11} parent=0 // loop_footer
    %s13 = sadd.s32 1, %s9
  $region7: #{conv_vae_forward.11} parent=0 // loop_footer_branch
    %8 = sbr.rel target = $region3
  $region8: #{conv_vae_forward.11} parent=0 // loop_exit
    _

// kernel: conv_vae_forward.12
$region0: #{conv_vae_forward.12}
  #allocation0 [shape = 'u32[]', space=smem, size = 0x4, offset = 0x4, fixed_abs, tag = 'smem constant byte address 0x4 - core index']
  #allocation1 [shape = 'u32[144,128]{1,0:T(1,128)}', space=vmem, size = 0x12000, scoped, tag = 'internal scratch']
  %s0 = inlined_call_operand.vmem [shape: f32[2,64], index: 0, kind: input, shape index: {}]
  %s1 = inlined_call_operand.vmem [shape: f32[2,16], index: 1, kind: input, shape index: {}]
  %s2 = inlined_call_operand.vmem [shape: f32[64,128], index: 2, kind: input, shape index: {}]
  %s3 = inlined_call_operand.vmem [shape: f32[1,128], index: 3, kind: input, shape index: {}]
  %s4 = inlined_call_operand.vmem [shape: f32[128,16], index: 4, kind: input, shape index: {}]
  %s5 = inlined_call_operand.vmem [shape: f32[1,16], index: 5, kind: input, shape index: {}]
  %s6 = inlined_call_operand.vmem [shape: f32[128,16], index: 6, kind: input, shape index: {}]
  %s7 = inlined_call_operand.vmem [shape: f32[1,16], index: 7, kind: input, shape index: {}]
  %s8 = inlined_call_operand.vmem [shape: f32[16,64], index: 8, kind: input, shape index: {}]
  %s9 = inlined_call_operand.vmem [shape: f32[1,64], index: 9, kind: input, shape index: {}]
  %s10 = inlined_call_operand.vmem [shape: f32[64,1024], index: 10, kind: input, shape index: {}]
  %s11 = inlined_call_operand.vmem [shape: f32[1,1024], index: 11, kind: input, shape index: {}]
  %s12 = inlined_call_operand.hbm [shape: f32[2,16], index: 12, kind: output, shape index: {0}]
  %s13 = inlined_call_operand.hbm [shape: f32[2,16], index: 13, kind: output, shape index: {1}]
  %s14 = inlined_call_operand.vmem [shape: f32[2,1024], index: 14, kind: output, shape index: {2}]
  %15 = xla_tuple %s12, %s13, %s14
  %s16 = sld [smem:[#allocation0]]
  $region74: #{conv_vae_forward.12} parent=0
    _
  %s18 = ssub.s32 1, %s16
  %s19 = scalar_select 0, %s18, %s16
  $region1: #{conv_vae_forward.12} parent=0
    #allocation2 [shape = 'u8[1024]{0}', space=vmem, size = 0x400, scoped, tag = 'output window, operand 0, single buffered']
    #allocation3 [shape = 's32[1]{0}', space=sflag, size = 0x4, scoped, tag = 'scoped memory for conv_vae_forward.12']
    #allocation4 [shape = 'u8[1024]{0}', space=vmem, size = 0x400, scoped, tag = 'output window, operand 1, single buffered']
    #allocation5 [shape = 's32[1]{0}', space=sflag, size = 0x4, scoped, tag = 'scoped memory for conv_vae_forward.12']
    %20 = vsyncpa [#allocation3], 0
    %21 = vsyncpa [#allocation5], 0
    // Predicated region
    $region2: #{conv_vae_forward.12} parent=1 // pred_check
      _
    $region3: #{conv_vae_forward.12} parent=1 // pred_check_branch
      %23 = sbr.rel (0) target = $region5
    $region4: #{conv_vae_forward.12} parent=1 // pred_region
      _
    $region5: #{conv_vae_forward.12} parent=1 // pred_fallthru
      _
    // Predicated region
    $region6: #{conv_vae_forward.12} parent=1 // pred_check
      _
    $region7: #{conv_vae_forward.12} parent=1 // pred_check_branch
      %25 = sbr.rel (0) target = $region9
    $region8: #{conv_vae_forward.12} parent=1 // pred_region
      _
    $region9: #{conv_vae_forward.12} parent=1 // pred_fallthru
      _
    // Predicated region
    $region10: #{conv_vae_forward.12} parent=1 // pred_check
      _
    $region11: #{conv_vae_forward.12} parent=1 // pred_check_branch
      %27 = sbr.rel (0) target = $region13
    $region12: #{conv_vae_forward.12} parent=1 // pred_region
      _
    $region13: #{conv_vae_forward.12} parent=1 // pred_fallthru
      _
    // Predicated region
    $region14: #{conv_vae_forward.12} parent=1 // pred_check
      _
    $region15: #{conv_vae_forward.12} parent=1 // pred_check_branch
      %29 = sbr.rel (0) target = $region17
    $region16: #{conv_vae_forward.12} parent=1 // pred_region
      _
    $region17: #{conv_vae_forward.12} parent=1 // pred_fallthru
      _
    // Predicated region
    $region18: #{conv_vae_forward.12} parent=1 // pred_check
      _
    $region19: #{conv_vae_forward.12} parent=1 // pred_check_branch
      %31 = sbr.rel (0) target = $region21
    $region20: #{conv_vae_forward.12} parent=1 // pred_region
      _
    $region21: #{conv_vae_forward.12} parent=1 // pred_fallthru
      _
    // Predicated region
    $region22: #{conv_vae_forward.12} parent=1 // pred_check
      _
    $region23: #{conv_vae_forward.12} parent=1 // pred_check_branch
      %33 = sbr.rel (0) target = $region25
    $region24: #{conv_vae_forward.12} parent=1 // pred_region
      _
    $region25: #{conv_vae_forward.12} parent=1 // pred_fallthru
      _
    // Predicated region
    $region26: #{conv_vae_forward.12} parent=1 // pred_check
      _
    $region27: #{conv_vae_forward.12} parent=1 // pred_check_branch
      %35 = sbr.rel (0) target = $region29
    $region28: #{conv_vae_forward.12} parent=1 // pred_region
      _
    $region29: #{conv_vae_forward.12} parent=1 // pred_fallthru
      _
    // Predicated region
    $region30: #{conv_vae_forward.12} parent=1 // pred_check
      _
    $region31: #{conv_vae_forward.12} parent=1 // pred_check_branch
      %37 = sbr.rel (0) target = $region33
    $region32: #{conv_vae_forward.12} parent=1 // pred_region
      _
    $region33: #{conv_vae_forward.12} parent=1 // pred_fallthru
      _
    // Predicated region
    $region34: #{conv_vae_forward.12} parent=1 // pred_check
      _
    $region35: #{conv_vae_forward.12} parent=1 // pred_check_branch
      %39 = sbr.rel (0) target = $region37
    $region36: #{conv_vae_forward.12} parent=1 // pred_region
      _
    $region37: #{conv_vae_forward.12} parent=1 // pred_fallthru
      _
    // Predicated region
    $region38: #{conv_vae_forward.12} parent=1 // pred_check
      _
    $region39: #{conv_vae_forward.12} parent=1 // pred_check_branch
      %41 = sbr.rel (0) target = $region41
    $region40: #{conv_vae_forward.12} parent=1 // pred_region
      _
    $region41: #{conv_vae_forward.12} parent=1 // pred_fallthru
      _
    // Predicated region
    $region42: #{conv_vae_forward.12} parent=1 // pred_check
      _
    $region43: #{conv_vae_forward.12} parent=1 // pred_check_branch
      %43 = sbr.rel (0) target = $region45
    $region44: #{conv_vae_forward.12} parent=1 // pred_region
      _
    $region45: #{conv_vae_forward.12} parent=1 // pred_fallthru
      _
    // Predicated region
    $region46: #{conv_vae_forward.12} parent=1 // pred_check
      _
    $region47: #{conv_vae_forward.12} parent=1 // pred_check_branch
      %45 = sbr.rel (0) target = $region49
    $region48: #{conv_vae_forward.12} parent=1 // pred_region
      _
    $region49: #{conv_vae_forward.12} parent=1 // pred_fallthru
      _
    %v46 = vld [vmem:[%s0] sm:$0x3]
    %v47 = vld [vmem:[%s2] sm:$0xff]
    %v48 = vld [vmem:[%s2 + $0x8] sm:$0xff]
    %v49 = vld [vmem:[%s2 + $0x10] sm:$0xff]
    %v50 = vld [vmem:[%s2 + $0x18] sm:$0xff]
    %v51 = vld [vmem:[%s2 + $0x20] sm:$0xff]
    %v52 = vld [vmem:[%s2 + $0x28] sm:$0xff]
    %v53 = vld [vmem:[%s2 + $0x30] sm:$0xff]
    %v54 = vld [vmem:[%s2 + $0x38] sm:$0xff]
    %v55 = vld [vmem:[%s3] sm:$0x1]
    %v57 = vlaneseq
    %v58 = vshrl.u32 %v57, 7
    %v59 = vsub.s32 0, %v58
    %v60 = vrot.slane %v55, %v59
    %vm62 = vcmask 523264
    %v64 = vsel %vm62, %v46, 0
    %66 = vmatprep.subr.mxu0 0.0
    %67 = vmatpush1.msra.mxu0 %v47
    %68 = vmatprep.subr.mxu0 0.0
    %69 = vmatpush1.msra.mxu0 %v48
    %70 = vmatprep.subr.mxu0 0.0
    %71 = vmatpush1.msra.mxu0 %v49
    %72 = vmatprep.subr.mxu0 0.0
    %73 = vmatpush1.msra.mxu0 %v50
    %74 = vmatprep.subr.mxu0 0.0
    %75 = vmatpush1.msra.mxu0 %v51
    %76 = vmatprep.subr.mxu0 0.0
    %77 = vmatpush1.msra.mxu0 %v52
    %78 = vmatprep.subr.mxu0 0.0
    %79 = vmatpush1.msra.mxu0 %v53
    %80 = vmatprep.subr.mxu0 0.0
    %81 = vmatpush1.msra.mxu0 %v54
    %82 = vmatprep.subr.mxu0 0.0
    %83 = vmatpush1.msra.mxu0 0.0
    %84 = vmatprep.subr.mxu0 0.0
    %85 = vmatpush1.msra.mxu0 0.0
    %86 = vmatprep.subr.mxu0 0.0
    %87 = vmatpush1.msra.mxu0 0.0
    %88 = vmatprep.subr.mxu0 0.0
    %89 = vmatpush1.msra.mxu0 0.0
    %90 = vmatprep.subr.mxu0 0.0
    %91 = vmatpush1.msra.mxu0 0.0
    %92 = vmatprep.subr.mxu0 0.0
    %93 = vmatpush1.msra.mxu0 0.0
    %94 = vmatprep.subr.mxu0 0.0
    %95 = vmatpush1.msra.mxu0 0.0
    %96 = vmatprep.subr.mxu0 0.0
    %97 = vmatpush1.msra.mxu0 0.0
    %98 = vmatprep.subr.mxu0 0.0
    %99 = vmatpush1.msra.mxu0 0.0
    %100 = vmatprep.subr.mxu0 0.0
    %101 = vmatpush1.msra.mxu0 0.0
    %102 = vmatprep.subr.mxu0 0.0
    %103 = vmatpush1.msra.mxu0 0.0
    %104 = vmatprep.subr.mxu0 0.0
    %105 = vmatpush1.msra.mxu0 0.0
    %106 = vmatprep.subr.mxu0 0.0
    %107 = vmatpush1.msra.mxu0 0.0
    %108 = vmatprep.subr.mxu0 0.0
    %109 = vmatpush1.msra.mxu0 0.0
    %110 = vmatprep.subr.mxu0 0.0
    %111 = vmatpush1.msra.mxu0 0.0
    %112 = vmatprep.subr.mxu0 0.0
    %113 = vmatpush1.msra.mxu0 0.0
    %114 = vmatprep.subr.mxu0 0.0
    %115 = vmatpush1.msra.mxu0 0.0
    %116 = vmatprep.subr.mxu0 0.0
    %117 = vmatpush1.msra.mxu0 0.0
    %118 = vmatprep.subr.mxu0 0.0
    %119 = vmatpush1.msra.mxu0 0.0
    %120 = vmatprep.subr.mxu0 0.0
    %121 = vmatpush1.msra.mxu0 0.0
    %122 = vmatprep.subr.mxu0 0.0
    %123 = vmatpush1.msra.mxu0 0.0
    %124 = vmatprep.subr.mxu0 0.0
    %125 = vmatpush1.msra.mxu0 0.0
    %126 = vmatprep.subr.mxu0 0.0
    %127 = vmatpush1.msra.mxu0 0.0
    %128 = vmatprep.subr.mxu0 0.0
    %129 = vmatpush1.msra.mxu0 0.0
    %130 = vmatprep.mubr.f32.mxu0 0.0
    %131 = vmatmul.mubr.f32.gmra.mrb[0].mxu0 %v64
    %v132 = vpop.f32.mrb[0].mxu0
    %v133 = vadd.f32 %v60, %v132
    %v134 = vpop.f32.mrb[0].mxu0
    %135 = vdwg.mxu0
    %v136 = vld [vmem:[%s4] sm:$0xff]
    %v137 = vld [vmem:[%s4 + $0x8] sm:$0xff]
    %v138 = vld [vmem:[%s4 + $0x10] sm:$0xff]
    %v139 = vld [vmem:[%s4 + $0x18] sm:$0xff]
    %v140 = vld [vmem:[%s4 + $0x20] sm:$0xff]
    %v141 = vld [vmem:[%s4 + $0x28] sm:$0xff]
    %v142 = vld [vmem:[%s4 + $0x30] sm:$0xff]
    %v143 = vld [vmem:[%s4 + $0x38] sm:$0xff]
    %v144 = vld [vmem:[%s4 + $0x40] sm:$0xff]
    %v145 = vld [vmem:[%s4 + $0x48] sm:$0xff]
    %v146 = vld [vmem:[%s4 + $0x50] sm:$0xff]
    %v147 = vld [vmem:[%s4 + $0x58] sm:$0xff]
    %v148 = vld [vmem:[%s4 + $0x60] sm:$0xff]
    %v149 = vld [vmem:[%s4 + $0x68] sm:$0xff]
    %v150 = vld [vmem:[%s4 + $0x70] sm:$0xff]
    %v151 = vld [vmem:[%s4 + $0x78] sm:$0xff]
    %v152 = vld [vmem:[%s5] sm:$0x1]
    %v154 = vlaneseq
    %v155 = vshrl.u32 %v154, 7
    %v156 = vsub.s32 0, %v155
    %v157 = vrot.slane %v152, %v156
    %159 = vmatprep.subr.mxu0 0.0
    %160 = vmatpush1.msra.mxu0 %v136
    %161 = vmatprep.subr.mxu0 0.0
    %162 = vmatpush1.msra.mxu0 %v137
    %163 = vmatprep.subr.mxu0 0.0
    %164 = vmatpush1.msra.mxu0 %v138
    %165 = vmatprep.subr.mxu0 0.0
    %166 = vmatpush1.msra.mxu0 %v139
    %167 = vmatprep.subr.mxu0 0.0
    %168 = vmatpush1.msra.mxu0 %v140
    %169 = vmatprep.subr.mxu0 0.0
    %170 = vmatpush1.msra.mxu0 %v141
    %171 = vmatprep.subr.mxu0 0.0
    %172 = vmatpush1.msra.mxu0 %v142
    %173 = vmatprep.subr.mxu0 0.0
    %174 = vmatpush1.msra.mxu0 %v143
    %175 = vmatprep.subr.mxu0 0.0
    %176 = vmatpush1.msra.mxu0 %v144
    %177 = vmatprep.subr.mxu0 0.0
    %178 = vmatpush1.msra.mxu0 %v145
    %179 = vmatprep.subr.mxu0 0.0
    %180 = vmatpush1.msra.mxu0 %v146
    %181 = vmatprep.subr.mxu0 0.0
    %182 = vmatpush1.msra.mxu0 %v147
    %183 = vmatprep.subr.mxu0 0.0
    %184 = vmatpush1.msra.mxu0 %v148
    %185 = vmatprep.subr.mxu0 0.0
    %186 = vmatpush1.msra.mxu0 %v149
    %187 = vmatprep.subr.mxu0 0.0
    %188 = vmatpush1.msra.mxu0 %v150
    %189 = vmatprep.subr.mxu0 0.0
    %190 = vmatpush1.msra.mxu0 %v151
    %191 = vmatprep.subr.mxu0 0.0
    %192 = vmatpush1.msra.mxu0 0.0
    %193 = vmatprep.subr.mxu0 0.0
    %194 = vmatpush1.msra.mxu0 0.0
    %195 = vmatprep.subr.mxu0 0.0
    %196 = vmatpush1.msra.mxu0 0.0
    %197 = vmatprep.subr.mxu0 0.0
    %198 = vmatpush1.msra.mxu0 0.0
    %199 = vmatprep.subr.mxu0 0.0
    %200 = vmatpush1.msra.mxu0 0.0
    %201 = vmatprep.subr.mxu0 0.0
    %202 = vmatpush1.msra.mxu0 0.0
    %203 = vmatprep.subr.mxu0 0.0
    %204 = vmatpush1.msra.mxu0 0.0
    %205 = vmatprep.subr.mxu0 0.0
    %206 = vmatpush1.msra.mxu0 0.0
    %207 = vmatprep.subr.mxu0 0.0
    %208 = vmatpush1.msra.mxu0 0.0
    %209 = vmatprep.subr.mxu0 0.0
    %210 = vmatpush1.msra.mxu0 0.0
    %211 = vmatprep.subr.mxu0 0.0
    %212 = vmatpush1.msra.mxu0 0.0
    %213 = vmatprep.subr.mxu0 0.0
    %214 = vmatpush1.msra.mxu0 0.0
    %215 = vmatprep.subr.mxu0 0.0
    %216 = vmatpush1.msra.mxu0 0.0
    %217 = vmatprep.subr.mxu0 0.0
    %218 = vmatpush1.msra.mxu0 0.0
    %219 = vmatprep.subr.mxu0 0.0
    %220 = vmatpush1.msra.mxu0 0.0
    %221 = vmatprep.subr.mxu0 0.0
    %222 = vmatpush1.msra.mxu0 0.0
    %223 = vmatprep.mubr.f32.mxu0 0.0
    %224 = vmatmul.mubr.f32.gmra.mrb[0].mxu0 %v133
    %v225 = vpop.f32.mrb[0].mxu0
    %v226 = vadd.f32 %v157, %v225
    %v227 = vpop.f32.mrb[0].mxu0
    %228 = vdwg.mxu0
    %v229 = vld [vmem:[%s6] sm:$0xff]
    %v230 = vld [vmem:[%s6 + $0x8] sm:$0xff]
    %v231 = vld [vmem:[%s6 + $0x10] sm:$0xff]
    %v232 = vld [vmem:[%s6 + $0x18] sm:$0xff]
    %v233 = vld [vmem:[%s6 + $0x20] sm:$0xff]
    %v234 = vld [vmem:[%s6 + $0x28] sm:$0xff]
    %v235 = vld [vmem:[%s6 + $0x30] sm:$0xff]
    %v236 = vld [vmem:[%s6 + $0x38] sm:$0xff]
    %v237 = vld [vmem:[%s6 + $0x40] sm:$0xff]
    %v238 = vld [vmem:[%s6 + $0x48] sm:$0xff]
    %v239 = vld [vmem:[%s6 + $0x50] sm:$0xff]
    %v240 = vld [vmem:[%s6 + $0x58] sm:$0xff]
    %v241 = vld [vmem:[%s6 + $0x60] sm:$0xff]
    %v242 = vld [vmem:[%s6 + $0x68] sm:$0xff]
    %v243 = vld [vmem:[%s6 + $0x70] sm:$0xff]
    %v244 = vld [vmem:[%s6 + $0x78] sm:$0xff]
    %v245 = vld [vmem:[%s7] sm:$0x1]
    %v247 = vlaneseq
    %v248 = vshrl.u32 %v247, 7
    %v249 = vsub.s32 0, %v248
    %v250 = vrot.slane %v245, %v249
    %252 = vmatprep.subr.mxu0 0.0
    %253 = vmatpush1.msra.mxu0 %v229
    %254 = vmatprep.subr.mxu0 0.0
    %255 = vmatpush1.msra.mxu0 %v230
    %256 = vmatprep.subr.mxu0 0.0
    %257 = vmatpush1.msra.mxu0 %v231
    %258 = vmatprep.subr.mxu0 0.0
    %259 = vmatpush1.msra.mxu0 %v232
    %260 = vmatprep.subr.mxu0 0.0
    %261 = vmatpush1.msra.mxu0 %v233
    %262 = vmatprep.subr.mxu0 0.0
    %263 = vmatpush1.msra.mxu0 %v234
    %264 = vmatprep.subr.mxu0 0.0
    %265 = vmatpush1.msra.mxu0 %v235
    %266 = vmatprep.subr.mxu0 0.0
    %267 = vmatpush1.msra.mxu0 %v236
    %268 = vmatprep.subr.mxu0 0.0
    %269 = vmatpush1.msra.mxu0 %v237
    %270 = vmatprep.subr.mxu0 0.0
    %271 = vmatpush1.msra.mxu0 %v238
    %272 = vmatprep.subr.mxu0 0.0
    %273 = vmatpush1.msra.mxu0 %v239
    %274 = vmatprep.subr.mxu0 0.0
    %275 = vmatpush1.msra.mxu0 %v240
    %276 = vmatprep.subr.mxu0 0.0
    %277 = vmatpush1.msra.mxu0 %v241
    %278 = vmatprep.subr.mxu0 0.0
    %279 = vmatpush1.msra.mxu0 %v242
    %280 = vmatprep.subr.mxu0 0.0
    %281 = vmatpush1.msra.mxu0 %v243
    %282 = vmatprep.subr.mxu0 0.0
    %283 = vmatpush1.msra.mxu0 %v244
    %284 = vmatprep.subr.mxu0 0.0
    %285 = vmatpush1.msra.mxu0 0.0
    %286 = vmatprep.subr.mxu0 0.0
    %287 = vmatpush1.msra.mxu0 0.0
    %288 = vmatprep.subr.mxu0 0.0
    %289 = vmatpush1.msra.mxu0 0.0
    %290 = vmatprep.subr.mxu0 0.0
    %291 = vmatpush1.msra.mxu0 0.0
    %292 = vmatprep.subr.mxu0 0.0
    %293 = vmatpush1.msra.mxu0 0.0
    %294 = vmatprep.subr.mxu0 0.0
    %295 = vmatpush1.msra.mxu0 0.0
    %296 = vmatprep.subr.mxu0 0.0
    %297 = vmatpush1.msra.mxu0 0.0
    %298 = vmatprep.subr.mxu0 0.0
    %299 = vmatpush1.msra.mxu0 0.0
    %300 = vmatprep.subr.mxu0 0.0
    %301 = vmatpush1.msra.mxu0 0.0
    %302 = vmatprep.subr.mxu0 0.0
    %303 = vmatpush1.msra.mxu0 0.0
    %304 = vmatprep.subr.mxu0 0.0
    %305 = vmatpush1.msra.mxu0 0.0
    %306 = vmatprep.subr.mxu0 0.0
    %307 = vmatpush1.msra.mxu0 0.0
    %308 = vmatprep.subr.mxu0 0.0
    %309 = vmatpush1.msra.mxu0 0.0
    %310 = vmatprep.subr.mxu0 0.0
    %311 = vmatpush1.msra.mxu0 0.0
    %312 = vmatprep.subr.mxu0 0.0
    %313 = vmatpush1.msra.mxu0 0.0
    %314 = vmatprep.subr.mxu0 0.0
    %315 = vmatpush1.msra.mxu0 0.0
    %316 = vmatprep.mubr.f32.mxu0 0.0
    %317 = vmatmul.mubr.f32.gmra.mrb[0].mxu0 %v133
    %v318 = vpop.f32.mrb[0].mxu0
    %v319 = vadd.f32 %v250, %v318
    %v320 = vpop.f32.mrb[0].mxu0
    %321 = vdwg.mxu0
    %v322 = vld [vmem:[%s1] sm:$0x3]
    %v323 = vmul.f32 %v319, 0.5
    %v324 = vmul.f32 %v323, 1.442695
    %v325 = vpow.pop %v324
    %v326 = vmul.f32 %v322, %v325
    %v327 = vadd.f32 %v226, %v326
    %v328 = vld [vmem:[%s8] sm:$0xff]
    %v329 = vld [vmem:[%s8 + $0x8] sm:$0xff]
    %v330 = vld [vmem:[%s9] sm:$0x1]
    %v332 = vlaneseq
    %v333 = vshrl.u32 %v332, 7
    %v334 = vsub.s32 0, %v333
    %v335 = vrot.slane %v330, %v334
    %vm337 = vcmask 130048
    %v339 = vsel %vm337, %v327, 0
    %341 = vmatprep.subr.mxu0 0.0
    %342 = vmatpush1.msra.mxu0 %v328
    %343 = vmatprep.subr.mxu0 0.0
    %344 = vmatpush1.msra.mxu0 %v329
    %345 = vmatprep.subr.mxu0 0.0
    %346 = vmatpush1.msra.mxu0 0.0
    %347 = vmatprep.subr.mxu0 0.0
    %348 = vmatpush1.msra.mxu0 0.0
    %349 = vmatprep.subr.mxu0 0.0
    %350 = vmatpush1.msra.mxu0 0.0
    %351 = vmatprep.subr.mxu0 0.0
    %352 = vmatpush1.msra.mxu0 0.0
    %353 = vmatprep.subr.mxu0 0.0
    %354 = vmatpush1.msra.mxu0 0.0
    %355 = vmatprep.subr.mxu0 0.0
    %356 = vmatpush1.msra.mxu0 0.0
    %357 = vmatprep.subr.mxu0 0.0
    %358 = vmatpush1.msra.mxu0 0.0
    %359 = vmatprep.subr.mxu0 0.0
    %360 = vmatpush1.msra.mxu0 0.0
    %361 = vmatprep.subr.mxu0 0.0
    %362 = vmatpush1.msra.mxu0 0.0
    %363 = vmatprep.subr.mxu0 0.0
    %364 = vmatpush1.msra.mxu0 0.0
    %365 = vmatprep.subr.mxu0 0.0
    %366 = vmatpush1.msra.mxu0 0.0
    %367 = vmatprep.subr.mxu0 0.0
    %368 = vmatpush1.msra.mxu0 0.0
    %369 = vmatprep.subr.mxu0 0.0
    %370 = vmatpush1.msra.mxu0 0.0
    %371 = vmatprep.subr.mxu0 0.0
    %372 = vmatpush1.msra.mxu0 0.0
    %373 = vmatprep.subr.mxu0 0.0
    %374 = vmatpush1.msra.mxu0 0.0
    %375 = vmatprep.subr.mxu0 0.0
    %376 = vmatpush1.msra.mxu0 0.0
    %377 = vmatprep.subr.mxu0 0.0
    %378 = vmatpush1.msra.mxu0 0.0
    %379 = vmatprep.subr.mxu0 0.0
    %380 = vmatpush1.msra.mxu0 0.0
    %381 = vmatprep.subr.mxu0 0.0
    %382 = vmatpush1.msra.mxu0 0.0
    %383 = vmatprep.subr.mxu0 0.0
    %384 = vmatpush1.msra.mxu0 0.0
    %385 = vmatprep.subr.mxu0 0.0
    %386 = vmatpush1.msra.mxu0 0.0
    %387 = vmatprep.subr.mxu0 0.0
    %388 = vmatpush1.msra.mxu0 0.0
    %389 = vmatprep.subr.mxu0 0.0
    %390 = vmatpush1.msra.mxu0 0.0
    %391 = vmatprep.subr.mxu0 0.0
    %392 = vmatpush1.msra.mxu0 0.0
    %393 = vmatprep.subr.mxu0 0.0
    %394 = vmatpush1.msra.mxu0 0.0
    %395 = vmatprep.subr.mxu0 0.0
    %396 = vmatpush1.msra.mxu0 0.0
    %397 = vmatprep.subr.mxu0 0.0
    %398 = vmatpush1.msra.mxu0 0.0
    %399 = vmatprep.subr.mxu0 0.0
    %400 = vmatpush1.msra.mxu0 0.0
    %401 = vmatprep.subr.mxu0 0.0
    %402 = vmatpush1.msra.mxu0 0.0
    %403 = vmatprep.subr.mxu0 0.0
    %404 = vmatpush1.msra.mxu0 0.0
    %405 = vmatprep.mubr.f32.mxu0 0.0
    %406 = vmatmul.mubr.f32.gmra.mrb[0].mxu0 %v339
    %v407 = vpop.f32.mrb[0].mxu0
    %v408 = vadd.f32 %v335, %v407
    %v409 = vpop.f32.mrb[0].mxu0
    %410 = vdwg.mxu0
    %v411 = vld [vmem:[%s10] sm:$0xff]
    %v412 = vld [vmem:[%s10 + $0x8] sm:$0xff]
    %v413 = vld [vmem:[%s10 + $0x10] sm:$0xff]
    %v414 = vld [vmem:[%s10 + $0x18] sm:$0xff]
    %v415 = vld [vmem:[%s10 + $0x20] sm:$0xff]
    %v416 = vld [vmem:[%s10 + $0x28] sm:$0xff]
    %v417 = vld [vmem:[%s10 + $0x30] sm:$0xff]
    %v418 = vld [vmem:[%s10 + $0x38] sm:$0xff]
    %v419 = vld [vmem:[%s10 + $0x40] sm:$0xff]
    %v420 = vld [vmem:[%s10 + $0x48] sm:$0xff]
    %v421 = vld [vmem:[%s10 + $0x50] sm:$0xff]
    %v422 = vld [vmem:[%s10 + $0x58] sm:$0xff]
    %v423 = vld [vmem:[%s10 + $0x60] sm:$0xff]
    %v424 = vld [vmem:[%s10 + $0x68] sm:$0xff]
    %v425 = vld [vmem:[%s10 + $0x70] sm:$0xff]
    %v426 = vld [vmem:[%s10 + $0x78] sm:$0xff]
    %v427 = vld [vmem:[%s10 + $0x80] sm:$0xff]
    %v428 = vld [vmem:[%s10 + $0x88] sm:$0xff]
    %v429 = vld [vmem:[%s10 + $0x90] sm:$0xff]
    %v430 = vld [vmem:[%s10 + $0x98] sm:$0xff]
    %v431 = vld [vmem:[%s10 + $0xa0] sm:$0xff]
    %v432 = vld [vmem:[%s10 + $0xa8] sm:$0xff]
    %v433 = vld [vmem:[%s10 + $0xb0] sm:$0xff]
    %v434 = vld [vmem:[%s10 + $0xb8] sm:$0xff]
    %v435 = vld [vmem:[%s10 + $0xc0] sm:$0xff]
    %v436 = vld [vmem:[%s10 + $0xc8] sm:$0xff]
    %v437 = vld [vmem:[%s10 + $0xd0] sm:$0xff]
    %v438 = vld [vmem:[%s10 + $0xd8] sm:$0xff]
    %v439 = vld [vmem:[%s10 + $0xe0] sm:$0xff]
    %v440 = vld [vmem:[%s10 + $0xe8] sm:$0xff]
    %v441 = vld [vmem:[%s10 + $0xf0] sm:$0xff]
    %v442 = vld [vmem:[%s10 + $0xf8] sm:$0xff]
    %v443 = vld [vmem:[%s10 + $0x100] sm:$0xff]
    %v444 = vld [vmem:[%s10 + $0x108] sm:$0xff]
    %v445 = vld [vmem:[%s10 + $0x110] sm:$0xff]
    %v446 = vld [vmem:[%s10 + $0x118] sm:$0xff]
    %v447 = vld [vmem:[%s10 + $0x120] sm:$0xff]
    %v448 = vld [vmem:[%s10 + $0x128] sm:$0xff]
    %v449 = vld [vmem:[%s10 + $0x130] sm:$0xff]
    %v450 = vld [vmem:[%s10 + $0x138] sm:$0xff]
    %v451 = vld [vmem:[%s10 + $0x140] sm:$0xff]
    %v452 = vld [vmem:[%s10 + $0x148] sm:$0xff]
    %v453 = vld [vmem:[%s10 + $0x150] sm:$0xff]
    %v454 = vld [vmem:[%s10 + $0x158] sm:$0xff]
    %v455 = vld [vmem:[%s10 + $0x160] sm:$0xff]
    %v456 = vld [vmem:[%s10 + $0x168] sm:$0xff]
    %v457 = vld [vmem:[%s10 + $0x170] sm:$0xff]
    %v458 = vld [vmem:[%s10 + $0x178] sm:$0xff]
    %v459 = vld [vmem:[%s10 + $0x180] sm:$0xff]
    %v460 = vld [vmem:[%s10 + $0x188] sm:$0xff]
    %v461 = vld [vmem:[%s10 + $0x190] sm:$0xff]
    %v462 = vld [vmem:[%s10 + $0x198] sm:$0xff]
    %v463 = vld [vmem:[%s10 + $0x1a0] sm:$0xff]
    %v464 = vld [vmem:[%s10 + $0x1a8] sm:$0xff]
    %v465 = vld [vmem:[%s10 + $0x1b0] sm:$0xff]
    %v466 = vld [vmem:[%s10 + $0x1b8] sm:$0xff]
    %v467 = vld [vmem:[%s10 + $0x1c0] sm:$0xff]
    %v468 = vld [vmem:[%s10 + $0x1c8] sm:$0xff]
    %v469 = vld [vmem:[%s10 + $0x1d0] sm:$0xff]
    %v470 = vld [vmem:[%s10 + $0x1d8] sm:$0xff]
    %v471 = vld [vmem:[%s10 + $0x1e0] sm:$0xff]
    %v472 = vld [vmem:[%s10 + $0x1e8] sm:$0xff]
    %v473 = vld [vmem:[%s10 + $0x1f0] sm:$0xff]
    %v474 = vld [vmem:[%s10 + $0x1f8] sm:$0xff]
    %v475 = vld [vmem:[%s11] sm:$0xff]
    %v477 = vlaneseq
    %v478 = vshrl.u32 %v477, 7
    %v479 = vsub.s32 0, %v478
    %v480 = vrot.slane %v475, %v479
    %v481 = vlaneseq
    %v482 = vshrl.u32 %v481, 7
    %v483 = vsub.s32 1, %v482
    %v484 = vrot.slane %v475, %v483
    %v485 = vlaneseq
    %v486 = vshrl.u32 %v485, 7
    %v487 = vsub.s32 2, %v486
    %v488 = vrot.slane %v475, %v487
    %v489 = vlaneseq
    %v490 = vshrl.u32 %v489, 7
    %v491 = vsub.s32 3, %v490
    %v492 = vrot.slane %v475, %v491
    %v493 = vlaneseq
    %v494 = vshrl.u32 %v493, 7
    %v495 = vsub.s32 4, %v494
    %v496 = vrot.slane %v475, %v495
    %v497 = vlaneseq
    %v498 = vshrl.u32 %v497, 7
    %v499 = vsub.s32 5, %v498
    %v500 = vrot.slane %v475, %v499
    %v501 = vlaneseq
    %v502 = vshrl.u32 %v501, 7
    %v503 = vsub.s32 6, %v502
    %v504 = vrot.slane %v475, %v503
    %v505 = vlaneseq
    %v506 = vshrl.u32 %v505, 7
    %v507 = vsub.s32 7, %v506
    %v508 = vrot.slane %v475, %v507
    %v518 = vsel %vm62, %v408, 0
    %520 = vmatprep.subr.mxu0 %v412
    %521 = vmatpush1.msra.mxu0 %v411
    %522 = vmatprep.subr.mxu0 %v420
    %523 = vmatpush1.msra.mxu0 %v419
    %524 = vmatprep.subr.mxu0 %v428
    %525 = vmatpush1.msra.mxu0 %v427
    %526 = vmatprep.subr.mxu0 %v436
    %527 = vmatpush1.msra.mxu0 %v435
    %528 = vmatprep.subr.mxu0 %v444
    %529 = vmatpush1.msra.mxu0 %v443
    %530 = vmatprep.subr.mxu0 %v452
    %531 = vmatpush1.msra.mxu0 %v451
    %532 = vmatprep.subr.mxu0 %v460
    %533 = vmatpush1.msra.mxu0 %v459
    %534 = vmatprep.subr.mxu0 %v468
    %535 = vmatpush1.msra.mxu0 %v467
    %536 = vmatprep.subr.mxu0 0.0
    %537 = vmatpush1.msra.mxu0 0.0
    %538 = vmatprep.subr.mxu0 0.0
    %539 = vmatpush1.msra.mxu0 0.0
    %540 = vmatprep.subr.mxu0 0.0
    %541 = vmatpush1.msra.mxu0 0.0
    %542 = vmatprep.subr.mxu0 0.0
    %543 = vmatpush1.msra.mxu0 0.0
    %544 = vmatprep.subr.mxu0 0.0
    %545 = vmatpush1.msra.mxu0 0.0
    %546 = vmatprep.subr.mxu0 0.0
    %547 = vmatpush1.msra.mxu0 0.0
    %548 = vmatprep.subr.mxu0 0.0
    %549 = vmatpush1.msra.mxu0 0.0
    %550 = vmatprep.subr.mxu0 0.0
    %551 = vmatpush1.msra.mxu0 0.0
    %552 = vmatprep.subr.mxu0 0.0
    %553 = vmatpush1.msra.mxu0 0.0
    %554 = vmatprep.subr.mxu0 0.0
    %555 = vmatpush1.msra.mxu0 0.0
    %556 = vmatprep.subr.mxu0 0.0
    %557 = vmatpush1.msra.mxu0 0.0
    %558 = vmatprep.subr.mxu0 0.0
    %559 = vmatpush1.msra.mxu0 0.0
    %560 = vmatprep.subr.mxu0 0.0
    %561 = vmatpush1.msra.mxu0 0.0
    %562 = vmatprep.subr.mxu0 0.0
    %563 = vmatpush1.msra.mxu0 0.0
    %564 = vmatprep.subr.mxu0 0.0
    %565 = vmatpush1.msra.mxu0 0.0
    %566 = vmatprep.subr.mxu0 0.0
    %567 = vmatpush1.msra.mxu0 0.0
    %568 = vmatprep.subr.mxu0 0.0
    %569 = vmatpush1.msra.mxu0 0.0
    %570 = vmatprep.subr.mxu0 0.0
    %571 = vmatpush1.msra.mxu0 0.0
    %572 = vmatprep.subr.mxu0 0.0
    %573 = vmatpush1.msra.mxu0 0.0
    %574 = vmatprep.subr.mxu0 0.0
    %575 = vmatpush1.msra.mxu0 0.0
    %576 = vmatprep.subr.mxu0 0.0
    %577 = vmatpush1.msra.mxu0 0.0
    %578 = vmatprep.subr.mxu0 0.0
    %579 = vmatpush1.msra.mxu0 0.0
    %580 = vmatprep.subr.mxu0 0.0
    %581 = vmatpush1.msra.mxu0 0.0
    %582 = vmatprep.subr.mxu0 0.0
    %583 = vmatpush1.msra.mxu0 0.0
    %584 = vmatprep.mubr.f32.mxu0 0.0
    %585 = vmatmul.mubr.f32.gmra.mrb[0].mxu0 %v518
    %v586 = vpop.f32.mrb[0].mxu0
    %v587 = vadd.f32 %v480, %v586
    %v588 = vpop.f32.mrb[0].mxu0
    %v589 = vadd.f32 %v484, %v588
    %590 = vdwg.mxu0
    %591 = vmatprep.subr.mxu0 %v414
    %592 = vmatpush1.msra.mxu0 %v413
    %593 = vmatprep.subr.mxu0 %v422
    %594 = vmatpush1.msra.mxu0 %v421
    %595 = vmatprep.subr.mxu0 %v430
    %596 = vmatpush1.msra.mxu0 %v429
    %597 = vmatprep.subr.mxu0 %v438
    %598 = vmatpush1.msra.mxu0 %v437
    %599 = vmatprep.subr.mxu0 %v446
    %600 = vmatpush1.msra.mxu0 %v445
    %601 = vmatprep.subr.mxu0 %v454
    %602 = vmatpush1.msra.mxu0 %v453
    %603 = vmatprep.subr.mxu0 %v462
    %604 = vmatpush1.msra.mxu0 %v461
    %605 = vmatprep.subr.mxu0 %v470
    %606 = vmatpush1.msra.mxu0 %v469
    %607 = vmatprep.subr.mxu0 0.0
    %608 = vmatpush1.msra.mxu0 0.0
    %609 = vmatprep.subr.mxu0 0.0
    %610 = vmatpush1.msra.mxu0 0.0
    %611 = vmatprep.subr.mxu0 0.0
    %612 = vmatpush1.msra.mxu0 0.0
    %613 = vmatprep.subr.mxu0 0.0
    %614 = vmatpush1.msra.mxu0 0.0
    %615 = vmatprep.subr.mxu0 0.0
    %616 = vmatpush1.msra.mxu0 0.0
    %617 = vmatprep.subr.mxu0 0.0
    %618 = vmatpush1.msra.mxu0 0.0
    %619 = vmatprep.subr.mxu0 0.0
    %620 = vmatpush1.msra.mxu0 0.0
    %621 = vmatprep.subr.mxu0 0.0
    %622 = vmatpush1.msra.mxu0 0.0
    %623 = vmatprep.subr.mxu0 0.0
    %624 = vmatpush1.msra.mxu0 0.0
    %625 = vmatprep.subr.mxu0 0.0
    %626 = vmatpush1.msra.mxu0 0.0
    %627 = vmatprep.subr.mxu0 0.0
    %628 = vmatpush1.msra.mxu0 0.0
    %629 = vmatprep.subr.mxu0 0.0
    %630 = vmatpush1.msra.mxu0 0.0
    %631 = vmatprep.subr.mxu0 0.0
    %632 = vmatpush1.msra.mxu0 0.0
    %633 = vmatprep.subr.mxu0 0.0
    %634 = vmatpush1.msra.mxu0 0.0
    %635 = vmatprep.subr.mxu0 0.0
    %636 = vmatpush1.msra.mxu0 0.0
    %637 = vmatprep.subr.mxu0 0.0
    %638 = vmatpush1.msra.mxu0 0.0
    %639 = vmatprep.subr.mxu0 0.0
    %640 = vmatpush1.msra.mxu0 0.0
    %641 = vmatprep.subr.mxu0 0.0
    %642 = vmatpush1.msra.mxu0 0.0
    %643 = vmatprep.subr.mxu0 0.0
    %644 = vmatpush1.msra.mxu0 0.0
    %645 = vmatprep.subr.mxu0 0.0
    %646 = vmatpush1.msra.mxu0 0.0
    %647 = vmatprep.subr.mxu0 0.0
    %648 = vmatpush1.msra.mxu0 0.0
    %649 = vmatprep.subr.mxu0 0.0
    %650 = vmatpush1.msra.mxu0 0.0
    %651 = vmatprep.subr.mxu0 0.0
    %652 = vmatpush1.msra.mxu0 0.0
    %653 = vmatprep.subr.mxu0 0.0
    %654 = vmatpush1.msra.mxu0 0.0
    %655 = vmatprep.mubr.f32.mxu0 0.0
    %656 = vmatmul.mubr.f32.gmra.mrb[0].mxu0 %v518
    %v657 = vpop.f32.mrb[0].mxu0
    %v658 = vadd.f32 %v488, %v657
    %v659 = vpop.f32.mrb[0].mxu0
    %v660 = vadd.f32 %v492, %v659
    %661 = vdwg.mxu0
    %662 = vmatprep.subr.mxu0 %v416
    %663 = vmatpush1.msra.mxu0 %v415
    %664 = vmatprep.subr.mxu0 %v424
    %665 = vmatpush1.msra.mxu0 %v423
    %666 = vmatprep.subr.mxu0 %v432
    %667 = vmatpush1.msra.mxu0 %v431
    %668 = vmatprep.subr.mxu0 %v440
    %669 = vmatpush1.msra.mxu0 %v439
    %670 = vmatprep.subr.mxu0 %v448
    %671 = vmatpush1.msra.mxu0 %v447
    %672 = vmatprep.subr.mxu0 %v456
    %673 = vmatpush1.msra.mxu0 %v455
    %674 = vmatprep.subr.mxu0 %v464
    %675 = vmatpush1.msra.mxu0 %v463
    %676 = vmatprep.subr.mxu0 %v472
    %677 = vmatpush1.msra.mxu0 %v471
    %678 = vmatprep.subr.mxu0 0.0
    %679 = vmatpush1.msra.mxu0 0.0
    %680 = vmatprep.subr.mxu0 0.0
    %681 = vmatpush1.msra.mxu0 0.0
    %682 = vmatprep.subr.mxu0 0.0
    %683 = vmatpush1.msra.mxu0 0.0
    %684 = vmatprep.subr.mxu0 0.0
    %685 = vmatpush1.msra.mxu0 0.0
    %686 = vmatprep.subr.mxu0 0.0
    %687 = vmatpush1.msra.mxu0 0.0
    %688 = vmatprep.subr.mxu0 0.0
    %689 = vmatpush1.msra.mxu0 0.0
    %690 = vmatprep.subr.mxu0 0.0
    %691 = vmatpush1.msra.mxu0 0.0
    %692 = vmatprep.subr.mxu0 0.0
    %693 = vmatpush1.msra.mxu0 0.0
    %694 = vmatprep.subr.mxu0 0.0
    %695 = vmatpush1.msra.mxu0 0.0
    %696 = vmatprep.subr.mxu0 0.0
    %697 = vmatpush1.msra.mxu0 0.0
    %698 = vmatprep.subr.mxu0 0.0
    %699 = vmatpush1.msra.mxu0 0.0
    %700 = vmatprep.subr.mxu0 0.0
    %701 = vmatpush1.msra.mxu0 0.0
    %702 = vmatprep.subr.mxu0 0.0
    %703 = vmatpush1.msra.mxu0 0.0
    %704 = vmatprep.subr.mxu0 0.0
    %705 = vmatpush1.msra.mxu0 0.0
    %706 = vmatprep.subr.mxu0 0.0
    %707 = vmatpush1.msra.mxu0 0.0
    %708 = vmatprep.subr.mxu0 0.0
    %709 = vmatpush1.msra.mxu0 0.0
    %710 = vmatprep.subr.mxu0 0.0
    %711 = vmatpush1.msra.mxu0 0.0
    %712 = vmatprep.subr.mxu0 0.0
    %713 = vmatpush1.msra.mxu0 0.0
    %714 = vmatprep.subr.mxu0 0.0
    %715 = vmatpush1.msra.mxu0 0.0
    %716 = vmatprep.subr.mxu0 0.0
    %717 = vmatpush1.msra.mxu0 0.0
    %718 = vmatprep.subr.mxu0 0.0
    %719 = vmatpush1.msra.mxu0 0.0
    %720 = vmatprep.subr.mxu0 0.0
    %721 = vmatpush1.msra.mxu0 0.0
    %722 = vmatprep.subr.mxu0 0.0
    %723 = vmatpush1.msra.mxu0 0.0
    %724 = vmatprep.subr.mxu0 0.0
    %725 = vmatpush1.msra.mxu0 0.0
    %726 = vmatprep.mubr.f32.mxu0 0.0
    %727 = vmatmul.mubr.f32.gmra.mrb[0].mxu0 %v518
    %v728 = vpop.f32.mrb[0].mxu0
    %v729 = vadd.f32 %v496, %v728
    %v730 = vpop.f32.mrb[0].mxu0
    %v731 = vadd.f32 %v500, %v730
    %732 = vdwg.mxu0
    %733 = vmatprep.subr.mxu0 %v418
    %734 = vmatpush1.msra.mxu0 %v417
    %735 = vmatprep.subr.mxu0 %v426
    %736 = vmatpush1.msra.mxu0 %v425
    %737 = vmatprep.subr.mxu0 %v434
    %738 = vmatpush1.msra.mxu0 %v433
    %739 = vmatprep.subr.mxu0 %v442
    %740 = vmatpush1.msra.mxu0 %v441
    %741 = vmatprep.subr.mxu0 %v450
    %742 = vmatpush1.msra.mxu0 %v449
    %743 = vmatprep.subr.mxu0 %v458
    %744 = vmatpush1.msra.mxu0 %v457
    %745 = vmatprep.subr.mxu0 %v466
    %746 = vmatpush1.msra.mxu0 %v465
    %747 = vmatprep.subr.mxu0 %v474
    %748 = vmatpush1.msra.mxu0 %v473
    %749 = vmatprep.subr.mxu0 0.0
    %750 = vmatpush1.msra.mxu0 0.0
    %751 = vmatprep.subr.mxu0 0.0
    %752 = vmatpush1.msra.mxu0 0.0
    %753 = vmatprep.subr.mxu0 0.0
    %754 = vmatpush1.msra.mxu0 0.0
    %755 = vmatprep.subr.mxu0 0.0
    %756 = vmatpush1.msra.mxu0 0.0
    %757 = vmatprep.subr.mxu0 0.0
    %758 = vmatpush1.msra.mxu0 0.0
    %759 = vmatprep.subr.mxu0 0.0
    %760 = vmatpush1.msra.mxu0 0.0
    %761 = vmatprep.subr.mxu0 0.0
    %762 = vmatpush1.msra.mxu0 0.0
    %763 = vmatprep.subr.mxu0 0.0
    %764 = vmatpush1.msra.mxu0 0.0
    %765 = vmatprep.subr.mxu0 0.0
    %766 = vmatpush1.msra.mxu0 0.0
    %767 = vmatprep.subr.mxu0 0.0
    %768 = vmatpush1.msra.mxu0 0.0
    %769 = vmatprep.subr.mxu0 0.0
    %770 = vmatpush1.msra.mxu0 0.0
    %771 = vmatprep.subr.mxu0 0.0
    %772 = vmatpush1.msra.mxu0 0.0
    %773 = vmatprep.subr.mxu0 0.0
    %774 = vmatpush1.msra.mxu0 0.0
    %775 = vmatprep.subr.mxu0 0.0
    %776 = vmatpush1.msra.mxu0 0.0
    %777 = vmatprep.subr.mxu0 0.0
    %778 = vmatpush1.msra.mxu0 0.0
    %779 = vmatprep.subr.mxu0 0.0
    %780 = vmatpush1.msra.mxu0 0.0
    %781 = vmatprep.subr.mxu0 0.0
    %782 = vmatpush1.msra.mxu0 0.0
    %783 = vmatprep.subr.mxu0 0.0
    %784 = vmatpush1.msra.mxu0 0.0
    %785 = vmatprep.subr.mxu0 0.0
    %786 = vmatpush1.msra.mxu0 0.0
    %787 = vmatprep.subr.mxu0 0.0
    %788 = vmatpush1.msra.mxu0 0.0
    %789 = vmatprep.subr.mxu0 0.0
    %790 = vmatpush1.msra.mxu0 0.0
    %791 = vmatprep.subr.mxu0 0.0
    %792 = vmatpush1.msra.mxu0 0.0
    %793 = vmatprep.subr.mxu0 0.0
    %794 = vmatpush1.msra.mxu0 0.0
    %795 = vmatprep.subr.mxu0 0.0
    %796 = vmatpush1.msra.mxu0 0.0
    %797 = vmatprep.mubr.f32.mxu0 0.0
    %798 = vmatmul.mubr.f32.gmra.mrb[0].mxu0 %v518
    %v799 = vpop.f32.mrb[0].mxu0
    %v800 = vadd.f32 %v504, %v799
    %v801 = vpop.f32.mrb[0].mxu0
    %v802 = vadd.f32 %v508, %v801
    %803 = vdwg.mxu0
    %vm804 = vcmask 123904
    %805 = vst.msk [vmem:[#allocation2] sm:$0x3] %vm804, %v226
    %806 = vst.msk [vmem:[#allocation4] sm:$0x3] %vm804, %v319
    %v807 = vmax.f32 %v587, 0.0
    %v808 = vmax.f32 %v589, 0.0
    %v809 = vmax.f32 %v658, 0.0
    %v810 = vmax.f32 %v660, 0.0
    %v811 = vmax.f32 %v729, 0.0
    %v812 = vmax.f32 %v731, 0.0
    %v813 = vmax.f32 %v800, 0.0
    %v814 = vmax.f32 %v802, 0.0
    %v823 = vcombine.low %v807, %v808
    %v824 = vcombine.low %v809, %v810
    %v826 = vunpack.c.l.s4 1983009808
    %v827 = vunpack.c.0.s8 %v826
    %v828 = vlaneseq
    %v829 = vshrl.u32 %v828, 7
    %v830 = vsub.s32 %v827, %v829
    %v831 = vrot.slane %v823, %v830
    %v833 = vunpack.c.l.s4 1983009808
    %v834 = vunpack.c.0.s8 %v833
    %v835 = vlaneseq
    %v836 = vshrl.u32 %v835, 7
    %v837 = vsub.s32 %v834, %v836
    %v838 = vrot.slane %v824, %v837
    %v839 = vcombine.low %v831, %v838
    %v840 = vcombine.low %v811, %v812
    %v841 = vcombine.low %v813, %v814
    %v843 = vunpack.c.l.s4 1983009808
    %v844 = vunpack.c.0.s8 %v843
    %v845 = vlaneseq
    %v846 = vshrl.u32 %v845, 7
    %v847 = vsub.s32 %v844, %v846
    %v848 = vrot.slane %v840, %v847
    %v850 = vunpack.c.l.s4 1983009808
    %v851 = vunpack.c.0.s8 %v850
    %v852 = vlaneseq
    %v853 = vshrl.u32 %v852, 7
    %v854 = vsub.s32 %v851, %v853
    %v855 = vrot.slane %v841, %v854
    %v856 = vcombine.low %v848, %v855
    %859 = vst [vmem:[%s14] sm:$0xff] %v839
    %860 = vst [vmem:[%s14 + $0x8] sm:$0xff] %v856
    // Predicated region
    $region50: #{conv_vae_forward.12} parent=1 // pred_check
      _
    $region51: #{conv_vae_forward.12} parent=1 // pred_check_branch
      %862 = sbr.rel (0) target = $region53
    $region52: #{conv_vae_forward.12} parent=1 // pred_region
      %s864 = ssub.s32 32, 32
      %865 = vsyncadd [#allocation3], %s864
      %s867 = sshll.u32 [#allocation2], 4
      %s868 = int_to_ptr.vmem [resolvable:$true] %s867
      %870 = dma.vmem_to_hbm [thread:$0]  %s868, 32, %s12, [#allocation3]
    $region53: #{conv_vae_forward.12} parent=1 // pred_fallthru
      _
    // Predicated region
    $region54: #{conv_vae_forward.12} parent=1 // pred_check
      _
    $region55: #{conv_vae_forward.12} parent=1 // pred_check_branch
      %872 = sbr.rel (0) target = $region57
    $region56: #{conv_vae_forward.12} parent=1 // pred_region
      %s874 = ssub.s32 32, 32
      %875 = vsyncadd [#allocation5], %s874
      %s877 = sshll.u32 [#allocation4], 4
      %s878 = int_to_ptr.vmem [resolvable:$true] %s877
      %880 = dma.vmem_to_hbm [thread:$0]  %s878, 32, %s13, [#allocation5]
    $region57: #{conv_vae_forward.12} parent=1 // pred_fallthru
      _
    // Predicated region
    $region58: #{conv_vae_forward.12} parent=1 // pred_check
      _
    $region59: #{conv_vae_forward.12} parent=1 // pred_check_branch
      %882 = sbr.rel (0) target = $region61
    $region60: #{conv_vae_forward.12} parent=1 // pred_region
      _
    $region61: #{conv_vae_forward.12} parent=1 // pred_fallthru
      _
    // Predicated region
    $region62: #{conv_vae_forward.12} parent=1 // pred_check
      _
    $region63: #{conv_vae_forward.12} parent=1 // pred_check_branch
      %884 = sbr.rel (0) target = $region65
    $region64: #{conv_vae_forward.12} parent=1 // pred_region
      %885 = dma.done [#allocation3], 32
    $region65: #{conv_vae_forward.12} parent=1 // pred_fallthru
      _
    // Predicated region
    $region66: #{conv_vae_forward.12} parent=1 // pred_check
      _
    $region67: #{conv_vae_forward.12} parent=1 // pred_check_branch
      %887 = sbr.rel (0) target = $region69
    $region68: #{conv_vae_forward.12} parent=1 // pred_region
      %888 = dma.done [#allocation5], 32
    $region69: #{conv_vae_forward.12} parent=1 // pred_fallthru
      _
    // Predicated region
    $region70: #{conv_vae_forward.12} parent=1 // pred_check
      _
    $region71: #{conv_vae_forward.12} parent=1 // pred_check_branch
      %890 = sbr.rel (0) target = $region73
    $region72: #{conv_vae_forward.12} parent=1 // pred_region
      _
    $region73: #{conv_vae_forward.12} parent=1 // pred_fallthru
      _
    %891 = vsyncpa [#allocation3], 1
    %892 = vsyncpa [#allocation5], 1

// kernel: conv_vae_forward.13
$region0: #{conv_vae_forward.13}
  #allocation0 [shape = 'u32[]', space=smem, size = 0x4, offset = 0x4, fixed_abs, tag = 'smem constant byte address 0x4 - core index']
  #allocation1 [shape = 'u32[144,128]{1,0:T(1,128)}', space=vmem, size = 0x12000, scoped, tag = 'internal scratch']
  #allocation2 [shape = 'f32[16,256]{1,0:T(8,128)}', space=vmem, size = 0x4000, scoped, tag = 'scratch operand']
  %s0 = inlined_call_operand.vmem [shape: f32[4,2,5,5,64], index: 0, kind: input, shape index: {}]
  %s1 = inlined_call_operand.vmem [shape: f32[4,256,32], index: 1, kind: input, shape index: {}]
  %s2 = inlined_call_operand.vmem [shape: f32[4,1,32], index: 2, kind: input, shape index: {}]
  %s3 = inlined_call_operand.vmem [shape: f32[4,2,16,32], index: 3, kind: output, shape index: {}]
  %s4 = sld [smem:[#allocation0]]
  $region45: #{conv_vae_forward.13} parent=0
    _
  %s6 = ssub.s32 1, %s4
  %s7 = scalar_select 0, %s6, %s4
  loop: start=0, step=1, limit=10
  $region2: #{conv_vae_forward.13} parent=0 // loop_pre_header
    _
  $region3: #{conv_vae_forward.13} parent=0 // loop_header
    %s9 = sphi 0, %s13
    %p10 = scmp.ge.s32.totalorder %s9, 10
    %s16 = sphi 0, %s28
    %s17 = sphi 0, %s24
    %s18 = sphi 0, %s16
    %s19 = sphi 0, %s17
    %s20 = sphi 0, %s18
    %s21 = sphi 0, %s19
    %s33 = sphi 0, %s35
    %s36 = sphi 0, %s33
    %s37 = sphi 0, %s36
    %s53 = sphi 0, %s37
    %s59 = sphi 0, %s61
    %s62 = sphi 0, %s59
    %s63 = sphi 0, %s62
    %s79 = sphi 0, %s63
    %s85 = sphi 0, %s87
    %s88 = sphi 0, %s85
    %s89 = sphi 0, %s88
    %s105 = sphi 0, %s89
    %s113 = sphi 0, %s115
    %s116 = sphi 0, %s113
    %s117 = sphi 0, %s116
    %s133 = sphi 0, %s117
  $region4: #{conv_vae_forward.13} parent=0 // loop_header_branch
    %12 = sbr.rel (%p10) target = $region8
  $region5: #{conv_vae_forward.13} parent=0 // loop_body
    %s14 = ssub.s32 %s9, 1
    %s15 = ssub.s32 %s9, 2
    %s22 = sadd.s32 1, %s17
    %p23 = scmp.ge.s32.totalorder %s22, 2
    %s24 = scalar_select %p23, 0, %s22
    %s25 = sadd.s32 1, %s16
    %s26 = scalar_select %p23, %s25, %s16
    %p27 = scmp.ge.s32.totalorder %s26, 4
    %s28 = scalar_select %p27, 0, %s26
    %s29 = ssub.s32 %s16, %s28
    %s30 = ssub.s32 %s17, %s24
    %s31 = sor.u32 %s29, %s30
    %p32 = scmp.eq.s32.totalorder %s31, 0
    %s34 = sadd.s32 %s33, 1
    %s35 = scalar_select %p32, %s33, %s34
    %p38 = pneg %p32
    %p39 = scmp.eq.s32.totalorder %s9, 7
    %p40 = por %p38, %p39
    %p41 = scmp.ne.s32.totalorder %s33, %s36
    %p42 = scmp.eq.s32.totalorder %s9, 0
    %p43 = por %p41, %p42
    %p44 = scmp.ne.s32.totalorder %s33, %s36
    %p45 = scmp.eq.s32.totalorder %s14, 7
    %p46 = por %p44, %p45
    %p47 = scmp.ne.s32.totalorder %s36, %s37
    %p48 = scmp.eq.s32.totalorder %s14, 0
    %p49 = por %p47, %p48
    %p50 = scmp.ne.s32.totalorder %s36, %s37
    %p51 = scmp.eq.s32.totalorder %s15, 7
    %p52 = por %p50, %p51
    %p54 = scmp.ne.s32.totalorder %s37, %s53
    %p55 = scmp.eq.s32.totalorder %s15, 0
    %p56 = por %p54, %p55
    %s57 = ssub.s32 %s16, %s28
    %p58 = scmp.eq.s32.totalorder %s57, 0
    %s60 = sadd.s32 %s59, 1
    %s61 = scalar_select %p58, %s59, %s60
    %p64 = pneg %p58
    %p65 = scmp.eq.s32.totalorder %s9, 7
    %p66 = por %p64, %p65
    %p67 = scmp.ne.s32.totalorder %s59, %s62
    %p68 = scmp.eq.s32.totalorder %s9, 0
    %p69 = por %p67, %p68
    %p70 = scmp.ne.s32.totalorder %s59, %s62
    %p71 = scmp.eq.s32.totalorder %s14, 7
    %p72 = por %p70, %p71
    %p73 = scmp.ne.s32.totalorder %s62, %s63
    %p74 = scmp.eq.s32.totalorder %s14, 0
    %p75 = por %p73, %p74
    %p76 = scmp.ne.s32.totalorder %s62, %s63
    %p77 = scmp.eq.s32.totalorder %s15, 7
    %p78 = por %p76, %p77
    %p80 = scmp.ne.s32.totalorder %s63, %s79
    %p81 = scmp.eq.s32.totalorder %s15, 0
    %p82 = por %p80, %p81
    %s83 = ssub.s32 %s16, %s28
    %p84 = scmp.eq.s32.totalorder %s83, 0
    %s86 = sadd.s32 %s85, 1
    %s87 = scalar_select %p84, %s85, %s86
    %p90 = pneg %p84
    %p91 = scmp.eq.s32.totalorder %s9, 7
    %p92 = por %p90, %p91
    %p93 = scmp.ne.s32.totalorder %s85, %s88
    %p94 = scmp.eq.s32.totalorder %s9, 0
    %p95 = por %p93, %p94
    %p96 = scmp.ne.s32.totalorder %s85, %s88
    %p97 = scmp.eq.s32.totalorder %s14, 7
    %p98 = por %p96, %p97
    %p99 = scmp.ne.s32.totalorder %s88, %s89
    %p100 = scmp.eq.s32.totalorder %s14, 0
    %p101 = por %p99, %p100
    %p102 = scmp.ne.s32.totalorder %s88, %s89
    %p103 = scmp.eq.s32.totalorder %s15, 7
    %p104 = por %p102, %p103
    %p106 = scmp.ne.s32.totalorder %s89, %s105
    %p107 = scmp.eq.s32.totalorder %s15, 0
    %p108 = por %p106, %p107
    %s109 = ssub.s32 %s16, %s28
    %s110 = ssub.s32 %s17, %s24
    %s111 = sor.u32 %s109, %s110
    %p112 = scmp.eq.s32.totalorder %s111, 0
    %s114 = sadd.s32 %s113, 1
    %s115 = scalar_select %p112, %s113, %s114
    %p118 = pneg %p112
    %p119 = scmp.eq.s32.totalorder %s9, 7
    %p120 = por %p118, %p119
    %p121 = scmp.ne.s32.totalorder %s113, %s116
    %p122 = scmp.eq.s32.totalorder %s9, 0
    %p123 = por %p121, %p122
    %p124 = scmp.ne.s32.totalorder %s113, %s116
    %p125 = scmp.eq.s32.totalorder %s14, 7
    %p126 = por %p124, %p125
    %p127 = scmp.ne.s32.totalorder %s116, %s117
    %p128 = scmp.eq.s32.totalorder %s14, 0
    %p129 = por %p127, %p128
    %p130 = scmp.ne.s32.totalorder %s116, %s117
    %p131 = scmp.eq.s32.totalorder %s15, 7
    %p132 = por %p130, %p131
    %p134 = scmp.ne.s32.totalorder %s117, %s133
    %p135 = scmp.eq.s32.totalorder %s15, 0
    %p136 = por %p134, %p135
    %p137 = scmp.le.s32.totalorder 1, %s9
    %p138 = scmp.lt.s32.totalorder %s9, 9
    %p139 = pnand %p137, %p138
    %p140 = pneg %p139
    // Predicated region
    $region9: #{conv_vae_forward.13} parent=5 // pred_check
      _
    $region10: #{conv_vae_forward.13} parent=5 // pred_check_branch
      %142 = sbr.rel (%p139) target = $region12
    $region11: #{conv_vae_forward.13} parent=5 // pred_region
      %s143 = ssub.s32 %s9, 1
    $region12: #{conv_vae_forward.13} parent=5 // pred_fallthru
      _
    %p144 = scmp.lt.s32.totalorder %s9, 8
    // Predicated region
    $region13: #{conv_vae_forward.13} parent=5 // pred_check
      %p145 = pneg %p144
    $region14: #{conv_vae_forward.13} parent=5 // pred_check_branch
      %147 = sbr.rel (%p145) target = $region16
    $region15: #{conv_vae_forward.13} parent=5 // pred_region
      // Predicated region
      $region17: #{conv_vae_forward.13} parent=15 // pred_check
        %p148 = pneg %p43
      $region18: #{conv_vae_forward.13} parent=15 // pred_check_branch
        %150 = sbr.rel (%p148) target = $region20
      $region19: #{conv_vae_forward.13} parent=15 // pred_region
        %p151 = scmp.lt.s32.totalorder %s16, 3
        %s152 = scalar_select %p151, %s16, 3
        %p153 = scmp.lt.s32.totalorder %s17, 1
        %s154 = scalar_select %p153, %s17, 1
        %s155 = smul.addr %s154, 5
        %s156 = smul.addr %s152, 10
        %s157 = sadd.s32 %s155, %s156
        %s158 = smul.addr %s157, 8
        %s159 = scalar_lea.vmem %s0, %s158
      $region20: #{conv_vae_forward.13} parent=15 // pred_fallthru
        _
      // Predicated region
      $region21: #{conv_vae_forward.13} parent=15 // pred_check
        %p160 = pneg %p69
      $region22: #{conv_vae_forward.13} parent=15 // pred_check_branch
        %162 = sbr.rel (%p160) target = $region24
      $region23: #{conv_vae_forward.13} parent=15 // pred_region
        %p163 = scmp.lt.s32.totalorder %s16, 3
        %s164 = scalar_select %p163, %s16, 3
        %s165 = smul.addr %s164, 32
        %s166 = smul.addr %s165, 8
        %s167 = scalar_lea.vmem %s1, %s166
      $region24: #{conv_vae_forward.13} parent=15 // pred_fallthru
        _
      // Predicated region
      $region25: #{conv_vae_forward.13} parent=15 // pred_check
        %p168 = pneg %p95
      $region26: #{conv_vae_forward.13} parent=15 // pred_check_branch
        %170 = sbr.rel (%p168) target = $region28
      $region27: #{conv_vae_forward.13} parent=15 // pred_region
        %p171 = scmp.lt.s32.totalorder %s16, 3
        %s172 = scalar_select %p171, %s16, 3
        %s173 = scalar_lea.vmem %s2, %s172
      $region28: #{conv_vae_forward.13} parent=15 // pred_fallthru
        _
    $region16: #{conv_vae_forward.13} parent=5 // pred_fallthru
      _
    %p174 = scmp.le.s32.totalorder 1, %s9
    %p175 = scmp.lt.s32.totalorder %s9, 9
    %p176 = pnand %p174, %p175
    %p177 = pneg %p176
    // Predicated region
    $region29: #{conv_vae_forward.13} parent=5 // pred_check
      _
    $region30: #{conv_vae_forward.13} parent=5 // pred_check_branch
      %179 = sbr.rel (%p176) target = $region32
    $region31: #{conv_vae_forward.13} parent=5 // pred_region
      %s180 = ssub.s32 %s9, 1
      %p181 = scmp.lt.s32.totalorder %s18, 3
      %s182 = scalar_select %p181, %s18, 3
      %p183 = scmp.lt.s32.totalorder %s19, 1
      %s184 = scalar_select %p183, %s19, 1
      %s185 = smul.addr %s184, 5
      %s186 = smul.addr %s182, 10
      %s187 = sadd.s32 %s185, %s186
      %s188 = smul.addr %s187, 8
      %s189 = scalar_lea.vmem %s0, %s188
      %p190 = pneg %p49
      %p191 = pneg %p46
      %p192 = scmp.lt.s32.totalorder %s18, 3
      %s193 = scalar_select %p192, %s18, 3
      %s194 = smul.addr %s193, 32
      %s195 = smul.addr %s194, 8
      %s196 = scalar_lea.vmem %s1, %s195
      %p197 = pneg %p75
      %p198 = pneg %p72
      %p199 = scmp.lt.s32.totalorder %s18, 3
      %s200 = scalar_select %p199, %s18, 3
      %s201 = scalar_lea.vmem %s2, %s200
      %p202 = pneg %p101
      %p203 = pneg %p98
      %p204 = pneg %p129
      %p205 = pneg %p126
      %p206 = scmp.lt.s32.totalorder %s18, 3
      %s207 = scalar_select %p206, %s18, 3
      %p208 = scmp.lt.s32.totalorder %s19, 1
      %s209 = scalar_select %p208, %s19, 1
      %s210 = smul.addr %s209, 2
      %s211 = smul.addr %s207, 4
      %s212 = sadd.s32 %s210, %s211
      %s213 = smul.addr %s212, 8
      %s214 = scalar_lea.vmem %s3, %s213
      %p215 = scmp.lt.s32.totalorder %s18, 3
      %s216 = scalar_select %p215, %s18, 3
      %p217 = scmp.lt.s32.totalorder %s19, 1
      %s218 = scalar_select %p217, %s19, 1
      %s219 = smul.addr %s218, 5
      %s220 = smul.addr %s216, 10
      %s221 = sadd.s32 %s219, %s220
      %s222 = smul.addr %s221, 8
      %s223 = scalar_lea.vmem %s0, %s222
      %p224 = scmp.lt.s32.totalorder %s18, 3
      %s225 = scalar_select %p224, %s18, 3
      %s226 = smul.addr %s225, 32
      %s227 = smul.addr %s226, 8
      %s228 = scalar_lea.vmem %s1, %s227
      %p229 = scmp.lt.s32.totalorder %s18, 3
      %s230 = scalar_select %p229, %s18, 3
      %s231 = scalar_lea.vmem %s2, %s230
      %p232 = scmp.lt.s32.totalorder %s18, 3
      %s233 = scalar_select %p232, %s18, 3
      %p234 = scmp.lt.s32.totalorder %s19, 1
      %s235 = scalar_select %p234, %s19, 1
      %s236 = smul.addr %s235, 2
      %s237 = smul.addr %s233, 4
      %s238 = sadd.s32 %s236, %s237
      %s239 = smul.addr %s238, 8
      %s240 = scalar_lea.vmem %s3, %s239
      %v241 = vld [vmem:[%s223] sm:$0xf]
      %vm242 = vcmask 519168
      %243 = vst.msk [vmem:[#allocation2] sm:$0xf] %vm242, %v241
      %v244 = vld [vmem:[%s223 + $0x1] sm:$0xf]
      %246 = vrot.lane.b32.xlu0 %v244, 64
      %v247 = vpop.permute.xlu0 %246
      %vm249 = vcmask 1043968
      %250 = vst.msk [vmem:[#allocation2] sm:$0xf] %vm249, %v247
      %s251 = scalar_lea.vmem %s223, 8
      %v252 = vld [vmem:[%s251] sm:$0xf]
      %253 = vst.msk [vmem:[#allocation2 + $0x8] sm:$0xf] %vm242, %v252
      %v254 = vld [vmem:[%s251 + $0x1] sm:$0xf]
      %256 = vrot.lane.b32.xlu0 %v254, 64
      %v257 = vpop.permute.xlu0 %256
      %259 = vst.msk [vmem:[#allocation2 + $0x8] sm:$0xf] %vm249, %v257
      %v260 = vld [vmem:[%s251] sm:$0xf]
      %v262 = vrot.slane %v260, 4
      %vm264 = vcmask 523268
      %265 = vst.msk [vmem:[#allocation2] sm:$0xf0] %vm264, %v262
      %v266 = vld [vmem:[%s251 + $0x1] sm:$0xf]
      %v268 = vrot.slane %v266, 4
      %269 = vrot.lane.b32.xlu0 %v268, 64
      %v270 = vpop.permute.xlu0 %269
      %vm272 = vcmask 1048068
      %273 = vst.msk [vmem:[#allocation2] sm:$0xf0] %vm272, %v270
      %s274 = scalar_lea.vmem %s223, 16
      %v275 = vld [vmem:[%s274] sm:$0xf]
      %v277 = vrot.slane %v275, 4
      %279 = vst.msk [vmem:[#allocation2 + $0x8] sm:$0xf0] %vm264, %v277
      %v280 = vld [vmem:[%s274 + $0x1] sm:$0xf]
      %v282 = vrot.slane %v280, 4
      %283 = vrot.lane.b32.xlu0 %v282, 64
      %v284 = vpop.permute.xlu0 %283
      %286 = vst.msk [vmem:[#allocation2 + $0x8] sm:$0xf0] %vm272, %v284
      %v287 = vld [vmem:[%s274] sm:$0xf]
      %288 = vst.msk [vmem:[#allocation2 + $0x10] sm:$0xf] %vm242, %v287
      %v289 = vld [vmem:[%s274 + $0x1] sm:$0xf]
      %291 = vrot.lane.b32.xlu0 %v289, 64
      %v292 = vpop.permute.xlu0 %291
      %294 = vst.msk [vmem:[#allocation2 + $0x10] sm:$0xf] %vm249, %v292
      %s295 = scalar_lea.vmem %s223, 24
      %v296 = vld [vmem:[%s295] sm:$0xf]
      %297 = vst.msk [vmem:[#allocation2 + $0x18] sm:$0xf] %vm242, %v296
      %v298 = vld [vmem:[%s295 + $0x1] sm:$0xf]
      %300 = vrot.lane.b32.xlu0 %v298, 64
      %v301 = vpop.permute.xlu0 %300
      %303 = vst.msk [vmem:[#allocation2 + $0x18] sm:$0xf] %vm249, %v301
      %v304 = vld [vmem:[%s295] sm:$0xf]
      %v306 = vrot.slane %v304, 4
      %308 = vst.msk [vmem:[#allocation2 + $0x10] sm:$0xf0] %vm264, %v306
      %v309 = vld [vmem:[%s295 + $0x1] sm:$0xf]
      %v311 = vrot.slane %v309, 4
      %312 = vrot.lane.b32.xlu0 %v311, 64
      %v313 = vpop.permute.xlu0 %312
      %315 = vst.msk [vmem:[#allocation2 + $0x10] sm:$0xf0] %vm272, %v313
      %s316 = scalar_lea.vmem %s223, 32
      %v317 = vld [vmem:[%s316] sm:$0xf]
      %v319 = vrot.slane %v317, 4
      %321 = vst.msk [vmem:[#allocation2 + $0x18] sm:$0xf0] %vm264, %v319
      %v322 = vld [vmem:[%s316 + $0x1] sm:$0xf]
      %v324 = vrot.slane %v322, 4
      %325 = vrot.lane.b32.xlu0 %v324, 64
      %v326 = vpop.permute.xlu0 %325
      %328 = vst.msk [vmem:[#allocation2 + $0x18] sm:$0xf0] %vm272, %v326
      %v329 = vld [vmem:[#allocation2] sm:$0xff]
      %v330 = vld [vmem:[#allocation2 + $0x8] sm:$0xff]
      %v331 = vld [vmem:[#allocation2 + $0x10] sm:$0xff]
      %v332 = vld [vmem:[#allocation2 + $0x18] sm:$0xff]
      %v333 = vld [vmem:[%s228] sm:$0xff]
      %v334 = vld [vmem:[%s228 + $0x8] sm:$0xff]
      %v335 = vld [vmem:[%s228 + $0x10] sm:$0xff]
      %v336 = vld [vmem:[%s228 + $0x18] sm:$0xff]
      %v337 = vld [vmem:[%s228 + $0x20] sm:$0xff]
      %v338 = vld [vmem:[%s228 + $0x28] sm:$0xff]
      %v339 = vld [vmem:[%s228 + $0x30] sm:$0xff]
      %v340 = vld [vmem:[%s228 + $0x38] sm:$0xff]
      %v341 = vld [vmem:[%s228 + $0x40] sm:$0xff]
      %v342 = vld [vmem:[%s228 + $0x48] sm:$0xff]
      %v343 = vld [vmem:[%s228 + $0x50] sm:$0xff]
      %v344 = vld [vmem:[%s228 + $0x58] sm:$0xff]
      %v345 = vld [vmem:[%s228 + $0x60] sm:$0xff]
      %v346 = vld [vmem:[%s228 + $0x68] sm:$0xff]
      %v347 = vld [vmem:[%s228 + $0x70] sm:$0xff]
      %v348 = vld [vmem:[%s228 + $0x78] sm:$0xff]
      %v349 = vld [vmem:[%s228 + $0x80] sm:$0xff]
      %v350 = vld [vmem:[%s228 + $0x88] sm:$0xff]
      %v351 = vld [vmem:[%s228 + $0x90] sm:$0xff]
      %v352 = vld [vmem:[%s228 + $0x98] sm:$0xff]
      %v353 = vld [vmem:[%s228 + $0xa0] sm:$0xff]
      %v354 = vld [vmem:[%s228 + $0xa8] sm:$0xff]
      %v355 = vld [vmem:[%s228 + $0xb0] sm:$0xff]
      %v356 = vld [vmem:[%s228 + $0xb8] sm:$0xff]
      %v357 = vld [vmem:[%s228 + $0xc0] sm:$0xff]
      %v358 = vld [vmem:[%s228 + $0xc8] sm:$0xff]
      %v359 = vld [vmem:[%s228 + $0xd0] sm:$0xff]
      %v360 = vld [vmem:[%s228 + $0xd8] sm:$0xff]
      %v361 = vld [vmem:[%s228 + $0xe0] sm:$0xff]
      %v362 = vld [vmem:[%s228 + $0xe8] sm:$0xff]
      %v363 = vld [vmem:[%s228 + $0xf0] sm:$0xff]
      %v364 = vld [vmem:[%s228 + $0xf8] sm:$0xff]
      %v365 = vld [vmem:[%s231] sm:$0x1]
      %v367 = vlaneseq
      %v368 = vshrl.u32 %v367, 7
      %v369 = vsub.s32 0, %v368
      %v370 = vrot.slane %v365, %v369
      %372 = vmatprep.subr.mxu0 0.0
      %373 = vmatpush1.msra.mxu0 %v333
      %374 = vmatprep.subr.mxu0 0.0
      %375 = vmatpush1.msra.mxu0 %v334
      %376 = vmatprep.subr.mxu0 0.0
      %377 = vmatpush1.msra.mxu0 %v335
      %378 = vmatprep.subr.mxu0 0.0
      %379 = vmatpush1.msra.mxu0 %v336
      %380 = vmatprep.subr.mxu0 0.0
      %381 = vmatpush1.msra.mxu0 %v337
      %382 = vmatprep.subr.mxu0 0.0
      %383 = vmatpush1.msra.mxu0 %v338
      %384 = vmatprep.subr.mxu0 0.0
      %385 = vmatpush1.msra.mxu0 %v339
      %386 = vmatprep.subr.mxu0 0.0
      %387 = vmatpush1.msra.mxu0 %v340
      %388 = vmatprep.subr.mxu0 0.0
      %389 = vmatpush1.msra.mxu0 %v341
      %390 = vmatprep.subr.mxu0 0.0
      %391 = vmatpush1.msra.mxu0 %v342
      %392 = vmatprep.subr.mxu0 0.0
      %393 = vmatpush1.msra.mxu0 %v343
      %394 = vmatprep.subr.mxu0 0.0
      %395 = vmatpush1.msra.mxu0 %v344
      %396 = vmatprep.subr.mxu0 0.0
      %397 = vmatpush1.msra.mxu0 %v345
      %398 = vmatprep.subr.mxu0 0.0
      %399 = vmatpush1.msra.mxu0 %v346
      %400 = vmatprep.subr.mxu0 0.0
      %401 = vmatpush1.msra.mxu0 %v347
      %402 = vmatprep.subr.mxu0 0.0
      %403 = vmatpush1.msra.mxu0 %v348
      %404 = vmatprep.subr.mxu0 0.0
      %405 = vmatpush1.msra.mxu0 %v349
      %406 = vmatprep.subr.mxu0 0.0
      %407 = vmatpush1.msra.mxu0 %v350
      %408 = vmatprep.subr.mxu0 0.0
      %409 = vmatpush1.msra.mxu0 %v351
      %410 = vmatprep.subr.mxu0 0.0
      %411 = vmatpush1.msra.mxu0 %v352
      %412 = vmatprep.subr.mxu0 0.0
      %413 = vmatpush1.msra.mxu0 %v353
      %414 = vmatprep.subr.mxu0 0.0
      %415 = vmatpush1.msra.mxu0 %v354
      %416 = vmatprep.subr.mxu0 0.0
      %417 = vmatpush1.msra.mxu0 %v355
      %418 = vmatprep.subr.mxu0 0.0
      %419 = vmatpush1.msra.mxu0 %v356
      %420 = vmatprep.subr.mxu0 0.0
      %421 = vmatpush1.msra.mxu0 %v357
      %422 = vmatprep.subr.mxu0 0.0
      %423 = vmatpush1.msra.mxu0 %v358
      %424 = vmatprep.subr.mxu0 0.0
      %425 = vmatpush1.msra.mxu0 %v359
      %426 = vmatprep.subr.mxu0 0.0
      %427 = vmatpush1.msra.mxu0 %v360
      %428 = vmatprep.subr.mxu0 0.0
      %429 = vmatpush1.msra.mxu0 %v361
      %430 = vmatprep.subr.mxu0 0.0
      %431 = vmatpush1.msra.mxu0 %v362
      %432 = vmatprep.subr.mxu0 0.0
      %433 = vmatpush1.msra.mxu0 %v363
      %434 = vmatprep.subr.mxu0 0.0
      %435 = vmatpush1.msra.mxu0 %v364
      %436 = vmatprep.mubr.f32.mxu0 %v330
      %437 = vmatmul.mubr.f32.gmra.mrb[0].mxu0 %v329
      %v438 = vpop.f32.mrb[0].mxu0
      %v439 = vadd.f32 %v370, %v438
      %v440 = vpop.f32.mrb[0].mxu0
      %441 = vmatprep.mubr.f32.mxu0 %v332
      %442 = vmatmul.mubr.f32.gmra.mrb[0].mxu0 %v331
      %v443 = vpop.f32.mrb[0].mxu0
      %v444 = vadd.f32 %v370, %v443
      %v445 = vpop.f32.mrb[0].mxu0
      %446 = vdwg.mxu0
      %v447 = vmax.f32 %v439, 0.0
      %v448 = vmax.f32 %v444, 0.0
      %vm449 = vcmask 261120
      %450 = vst.msk [vmem:[%s240] sm:$0xff] %vm449, %v447
      %451 = vst.msk [vmem:[%s240 + $0x8] sm:$0xff] %vm449, %v448
      %p452 = scmp.lt.s32.totalorder %s18, 3
      %s453 = scalar_select %p452, %s18, 3
      %p454 = scmp.lt.s32.totalorder %s19, 1
      %s455 = scalar_select %p454, %s19, 1
      %s456 = smul.addr %s455, 2
      %s457 = smul.addr %s453, 4
      %s458 = sadd.s32 %s456, %s457
      %s459 = smul.addr %s458, 8
      %s460 = scalar_lea.vmem %s3, %s459
      // Predicated region
      $region33: #{conv_vae_forward.13} parent=31 // pred_check
        %p461 = pneg %p126
      $region34: #{conv_vae_forward.13} parent=31 // pred_check_branch
        %463 = sbr.rel (%p461) target = $region36
      $region35: #{conv_vae_forward.13} parent=31 // pred_region
        _
      $region36: #{conv_vae_forward.13} parent=31 // pred_fallthru
        _
    $region32: #{conv_vae_forward.13} parent=5 // pred_fallthru
      _
    %p464 = scmp.le.s32.totalorder 2, %s9
    // Predicated region
    $region37: #{conv_vae_forward.13} parent=5 // pred_check
      %p465 = pneg %p464
    $region38: #{conv_vae_forward.13} parent=5 // pred_check_branch
      %467 = sbr.rel (%p465) target = $region40
    $region39: #{conv_vae_forward.13} parent=5 // pred_region
      %s468 = ssub.s32 %s9, 2
      // Predicated region
      $region41: #{conv_vae_forward.13} parent=39 // pred_check
        %p469 = pneg %p132
      $region42: #{conv_vae_forward.13} parent=39 // pred_check_branch
        %471 = sbr.rel (%p469) target = $region44
      $region43: #{conv_vae_forward.13} parent=39 // pred_region
        %p472 = scmp.lt.s32.totalorder %s20, 3
        %s473 = scalar_select %p472, %s20, 3
        %p474 = scmp.lt.s32.totalorder %s21, 1
        %s475 = scalar_select %p474, %s21, 1
        %s476 = smul.addr %s475, 2
        %s477 = smul.addr %s473, 4
        %s478 = sadd.s32 %s476, %s477
        %s479 = smul.addr %s478, 8
        %s480 = scalar_lea.vmem %s3, %s479
      $region44: #{conv_vae_forward.13} parent=39 // pred_fallthru
        _
    $region40: #{conv_vae_forward.13} parent=5 // pred_fallthru
      _
  $region6: #{conv_vae_forward.13} parent=0 // loop_footer
    %s13 = sadd.s32 1, %s9
  $region7: #{conv_vae_forward.13} parent=0 // loop_footer_branch
    %8 = sbr.rel target = $region3
  $region8: #{conv_vae_forward.13} parent=0 // loop_exit
    _

// kernel: conv_vae_forward.14
$region0: #{conv_vae_forward.14}
  #allocation0 [shape = 'u32[]', space=smem, size = 0x4, offset = 0x4, fixed_abs, tag = 'smem constant byte address 0x4 - core index']
  #allocation1 [shape = 'u32[144,128]{1,0:T(1,128)}', space=vmem, size = 0x12000, scoped, tag = 'internal scratch']
  #allocation2 [shape = 'f32[64,128]{1,0:T(8,128)}', space=vmem, size = 0x8000, scoped, tag = 'scratch operand']
  %s0 = inlined_call_operand.vmem [shape: f32[4,2,9,9,32], index: 0, kind: input, shape index: {}]
  %s1 = inlined_call_operand.vmem [shape: f32[4,128,16], index: 1, kind: input, shape index: {}]
  %s2 = inlined_call_operand.vmem [shape: f32[4,1,16], index: 2, kind: input, shape index: {}]
  %s3 = inlined_call_operand.vmem [shape: f32[4,2,64,16], index: 3, kind: output, shape index: {}]
  %s4 = sld [smem:[#allocation0]]
  $region45: #{conv_vae_forward.14} parent=0
    _
  %s6 = ssub.s32 1, %s4
  %s7 = scalar_select 0, %s6, %s4
  loop: start=0, step=1, limit=10
  $region2: #{conv_vae_forward.14} parent=0 // loop_pre_header
    _
  $region3: #{conv_vae_forward.14} parent=0 // loop_header
    %s9 = sphi 0, %s13
    %p10 = scmp.ge.s32.totalorder %s9, 10
    %s16 = sphi 0, %s28
    %s17 = sphi 0, %s24
    %s18 = sphi 0, %s16
    %s19 = sphi 0, %s17
    %s20 = sphi 0, %s18
    %s21 = sphi 0, %s19
    %s33 = sphi 0, %s35
    %s36 = sphi 0, %s33
    %s37 = sphi 0, %s36
    %s53 = sphi 0, %s37
    %s59 = sphi 0, %s61
    %s62 = sphi 0, %s59
    %s63 = sphi 0, %s62
    %s79 = sphi 0, %s63
    %s85 = sphi 0, %s87
    %s88 = sphi 0, %s85
    %s89 = sphi 0, %s88
    %s105 = sphi 0, %s89
    %s113 = sphi 0, %s115
    %s116 = sphi 0, %s113
    %s117 = sphi 0, %s116
    %s133 = sphi 0, %s117
  $region4: #{conv_vae_forward.14} parent=0 // loop_header_branch
    %12 = sbr.rel (%p10) target = $region8
  $region5: #{conv_vae_forward.14} parent=0 // loop_body
    %s14 = ssub.s32 %s9, 1
    %s15 = ssub.s32 %s9, 2
    %s22 = sadd.s32 1, %s17
    %p23 = scmp.ge.s32.totalorder %s22, 2
    %s24 = scalar_select %p23, 0, %s22
    %s25 = sadd.s32 1, %s16
    %s26 = scalar_select %p23, %s25, %s16
    %p27 = scmp.ge.s32.totalorder %s26, 4
    %s28 = scalar_select %p27, 0, %s26
    %s29 = ssub.s32 %s16, %s28
    %s30 = ssub.s32 %s17, %s24
    %s31 = sor.u32 %s29, %s30
    %p32 = scmp.eq.s32.totalorder %s31, 0
    %s34 = sadd.s32 %s33, 1
    %s35 = scalar_select %p32, %s33, %s34
    %p38 = pneg %p32
    %p39 = scmp.eq.s32.totalorder %s9, 7
    %p40 = por %p38, %p39
    %p41 = scmp.ne.s32.totalorder %s33, %s36
    %p42 = scmp.eq.s32.totalorder %s9, 0
    %p43 = por %p41, %p42
    %p44 = scmp.ne.s32.totalorder %s33, %s36
    %p45 = scmp.eq.s32.totalorder %s14, 7
    %p46 = por %p44, %p45
    %p47 = scmp.ne.s32.totalorder %s36, %s37
    %p48 = scmp.eq.s32.totalorder %s14, 0
    %p49 = por %p47, %p48
    %p50 = scmp.ne.s32.totalorder %s36, %s37
    %p51 = scmp.eq.s32.totalorder %s15, 7
    %p52 = por %p50, %p51
    %p54 = scmp.ne.s32.totalorder %s37, %s53
    %p55 = scmp.eq.s32.totalorder %s15, 0
    %p56 = por %p54, %p55
    %s57 = ssub.s32 %s16, %s28
    %p58 = scmp.eq.s32.totalorder %s57, 0
    %s60 = sadd.s32 %s59, 1
    %s61 = scalar_select %p58, %s59, %s60
    %p64 = pneg %p58
    %p65 = scmp.eq.s32.totalorder %s9, 7
    %p66 = por %p64, %p65
    %p67 = scmp.ne.s32.totalorder %s59, %s62
    %p68 = scmp.eq.s32.totalorder %s9, 0
    %p69 = por %p67, %p68
    %p70 = scmp.ne.s32.totalorder %s59, %s62
    %p71 = scmp.eq.s32.totalorder %s14, 7
    %p72 = por %p70, %p71
    %p73 = scmp.ne.s32.totalorder %s62, %s63
    %p74 = scmp.eq.s32.totalorder %s14, 0
    %p75 = por %p73, %p74
    %p76 = scmp.ne.s32.totalorder %s62, %s63
    %p77 = scmp.eq.s32.totalorder %s15, 7
    %p78 = por %p76, %p77
    %p80 = scmp.ne.s32.totalorder %s63, %s79
    %p81 = scmp.eq.s32.totalorder %s15, 0
    %p82 = por %p80, %p81
    %s83 = ssub.s32 %s16, %s28
    %p84 = scmp.eq.s32.totalorder %s83, 0
    %s86 = sadd.s32 %s85, 1
    %s87 = scalar_select %p84, %s85, %s86
    %p90 = pneg %p84
    %p91 = scmp.eq.s32.totalorder %s9, 7
    %p92 = por %p90, %p91
    %p93 = scmp.ne.s32.totalorder %s85, %s88
    %p94 = scmp.eq.s32.totalorder %s9, 0
    %p95 = por %p93, %p94
    %p96 = scmp.ne.s32.totalorder %s85, %s88
    %p97 = scmp.eq.s32.totalorder %s14, 7
    %p98 = por %p96, %p97
    %p99 = scmp.ne.s32.totalorder %s88, %s89
    %p100 = scmp.eq.s32.totalorder %s14, 0
    %p101 = por %p99, %p100
    %p102 = scmp.ne.s32.totalorder %s88, %s89
    %p103 = scmp.eq.s32.totalorder %s15, 7
    %p104 = por %p102, %p103
    %p106 = scmp.ne.s32.totalorder %s89, %s105
    %p107 = scmp.eq.s32.totalorder %s15, 0
    %p108 = por %p106, %p107
    %s109 = ssub.s32 %s16, %s28
    %s110 = ssub.s32 %s17, %s24
    %s111 = sor.u32 %s109, %s110
    %p112 = scmp.eq.s32.totalorder %s111, 0
    %s114 = sadd.s32 %s113, 1
    %s115 = scalar_select %p112, %s113, %s114
    %p118 = pneg %p112
    %p119 = scmp.eq.s32.totalorder %s9, 7
    %p120 = por %p118, %p119
    %p121 = scmp.ne.s32.totalorder %s113, %s116
    %p122 = scmp.eq.s32.totalorder %s9, 0
    %p123 = por %p121, %p122
    %p124 = scmp.ne.s32.totalorder %s113, %s116
    %p125 = scmp.eq.s32.totalorder %s14, 7
    %p126 = por %p124, %p125
    %p127 = scmp.ne.s32.totalorder %s116, %s117
    %p128 = scmp.eq.s32.totalorder %s14, 0
    %p129 = por %p127, %p128
    %p130 = scmp.ne.s32.totalorder %s116, %s117
    %p131 = scmp.eq.s32.totalorder %s15, 7
    %p132 = por %p130, %p131
    %p134 = scmp.ne.s32.totalorder %s117, %s133
    %p135 = scmp.eq.s32.totalorder %s15, 0
    %p136 = por %p134, %p135
    %p137 = scmp.le.s32.totalorder 1, %s9
    %p138 = scmp.lt.s32.totalorder %s9, 9
    %p139 = pnand %p137, %p138
    %p140 = pneg %p139
    // Predicated region
    $region9: #{conv_vae_forward.14} parent=5 // pred_check
      _
    $region10: #{conv_vae_forward.14} parent=5 // pred_check_branch
      %142 = sbr.rel (%p139) target = $region12
    $region11: #{conv_vae_forward.14} parent=5 // pred_region
      %s143 = ssub.s32 %s9, 1
    $region12: #{conv_vae_forward.14} parent=5 // pred_fallthru
      _
    %p144 = scmp.lt.s32.totalorder %s9, 8
    // Predicated region
    $region13: #{conv_vae_forward.14} parent=5 // pred_check
      %p145 = pneg %p144
    $region14: #{conv_vae_forward.14} parent=5 // pred_check_branch
      %147 = sbr.rel (%p145) target = $region16
    $region15: #{conv_vae_forward.14} parent=5 // pred_region
      // Predicated region
      $region17: #{conv_vae_forward.14} parent=15 // pred_check
        %p148 = pneg %p43
      $region18: #{conv_vae_forward.14} parent=15 // pred_check_branch
        %150 = sbr.rel (%p148) target = $region20
      $region19: #{conv_vae_forward.14} parent=15 // pred_region
        %p151 = scmp.lt.s32.totalorder %s16, 3
        %s152 = scalar_select %p151, %s16, 3
        %p153 = scmp.lt.s32.totalorder %s17, 1
        %s154 = scalar_select %p153, %s17, 1
        %s155 = smul.addr %s154, 18
        %s156 = smul.addr %s152, 36
        %s157 = sadd.s32 %s155, %s156
        %s158 = smul.addr %s157, 8
        %s159 = scalar_lea.vmem %s0, %s158
      $region20: #{conv_vae_forward.14} parent=15 // pred_fallthru
        _
      // Predicated region
      $region21: #{conv_vae_forward.14} parent=15 // pred_check
        %p160 = pneg %p69
      $region22: #{conv_vae_forward.14} parent=15 // pred_check_branch
        %162 = sbr.rel (%p160) target = $region24
      $region23: #{conv_vae_forward.14} parent=15 // pred_region
        %p163 = scmp.lt.s32.totalorder %s16, 3
        %s164 = scalar_select %p163, %s16, 3
        %s165 = smul.addr %s164, 16
        %s166 = smul.addr %s165, 8
        %s167 = scalar_lea.vmem %s1, %s166
      $region24: #{conv_vae_forward.14} parent=15 // pred_fallthru
        _
      // Predicated region
      $region25: #{conv_vae_forward.14} parent=15 // pred_check
        %p168 = pneg %p95
      $region26: #{conv_vae_forward.14} parent=15 // pred_check_branch
        %170 = sbr.rel (%p168) target = $region28
      $region27: #{conv_vae_forward.14} parent=15 // pred_region
        %p171 = scmp.lt.s32.totalorder %s16, 3
        %s172 = scalar_select %p171, %s16, 3
        %s173 = scalar_lea.vmem %s2, %s172
      $region28: #{conv_vae_forward.14} parent=15 // pred_fallthru
        _
    $region16: #{conv_vae_forward.14} parent=5 // pred_fallthru
      _
    %p174 = scmp.le.s32.totalorder 1, %s9
    %p175 = scmp.lt.s32.totalorder %s9, 9
    %p176 = pnand %p174, %p175
    %p177 = pneg %p176
    // Predicated region
    $region29: #{conv_vae_forward.14} parent=5 // pred_check
      _
    $region30: #{conv_vae_forward.14} parent=5 // pred_check_branch
      %179 = sbr.rel (%p176) target = $region32
    $region31: #{conv_vae_forward.14} parent=5 // pred_region
      %s180 = ssub.s32 %s9, 1
      %p181 = scmp.lt.s32.totalorder %s18, 3
      %s182 = scalar_select %p181, %s18, 3
      %p183 = scmp.lt.s32.totalorder %s19, 1
      %s184 = scalar_select %p183, %s19, 1
      %s185 = smul.addr %s184, 18
      %s186 = smul.addr %s182, 36
      %s187 = sadd.s32 %s185, %s186
      %s188 = smul.addr %s187, 8
      %s189 = scalar_lea.vmem %s0, %s188
      %p190 = pneg %p49
      %p191 = pneg %p46
      %p192 = scmp.lt.s32.totalorder %s18, 3
      %s193 = scalar_select %p192, %s18, 3
      %s194 = smul.addr %s193, 16
      %s195 = smul.addr %s194, 8
      %s196 = scalar_lea.vmem %s1, %s195
      %p197 = pneg %p75
      %p198 = pneg %p72
      %p199 = scmp.lt.s32.totalorder %s18, 3
      %s200 = scalar_select %p199, %s18, 3
      %s201 = scalar_lea.vmem %s2, %s200
      %p202 = pneg %p101
      %p203 = pneg %p98
      %p204 = pneg %p129
      %p205 = pneg %p126
      %p206 = scmp.lt.s32.totalorder %s18, 3
      %s207 = scalar_select %p206, %s18, 3
      %p208 = scmp.lt.s32.totalorder %s19, 1
      %s209 = scalar_select %p208, %s19, 1
      %s210 = smul.addr %s209, 8
      %s211 = smul.addr %s207, 16
      %s212 = sadd.s32 %s210, %s211
      %s213 = smul.addr %s212, 8
      %s214 = scalar_lea.vmem %s3, %s213
      %p215 = scmp.lt.s32.totalorder %s18, 3
      %s216 = scalar_select %p215, %s18, 3
      %p217 = scmp.lt.s32.totalorder %s19, 1
      %s218 = scalar_select %p217, %s19, 1
      %s219 = smul.addr %s218, 18
      %s220 = smul.addr %s216, 36
      %s221 = sadd.s32 %s219, %s220
      %s222 = smul.addr %s221, 8
      %s223 = scalar_lea.vmem %s0, %s222
      %p224 = scmp.lt.s32.totalorder %s18, 3
      %s225 = scalar_select %p224, %s18, 3
      %s226 = smul.addr %s225, 16
      %s227 = smul.addr %s226, 8
      %s228 = scalar_lea.vmem %s1, %s227
      %p229 = scmp.lt.s32.totalorder %s18, 3
      %s230 = scalar_select %p229, %s18, 3
      %s231 = scalar_lea.vmem %s2, %s230
      %p232 = scmp.lt.s32.totalorder %s18, 3
      %s233 = scalar_select %p232, %s18, 3
      %p234 = scmp.lt.s32.totalorder %s19, 1
      %s235 = scalar_select %p234, %s19, 1
      %s236 = smul.addr %s235, 8
      %s237 = smul.addr %s233, 16
      %s238 = sadd.s32 %s236, %s237
      %s239 = smul.addr %s238, 8
      %s240 = scalar_lea.vmem %s3, %s239
      %v241 = vld [vmem:[%s223] sm:$0xff]
      %vm242 = vcmask 261120
      %243 = vst.msk [vmem:[#allocation2] sm:$0xff] %vm242, %v241
      %v244 = vld [vmem:[%s223 + $0x1] sm:$0xff]
      %246 = vrot.lane.b32.xlu0 %v244, 32
      %v247 = vpop.permute.xlu0 %246
      %vm249 = vcmask 523520
      %250 = vst.msk [vmem:[#allocation2] sm:$0xff] %vm249, %v247
      %s251 = scalar_lea.vmem %s223, 16
      %v252 = vld [vmem:[%s251] sm:$0xff]
      %254 = vrot.lane.b32.xlu0 %v252, 64
      %v255 = vpop.permute.xlu0 %254
      %vm257 = vcmask 785920
      %258 = vst.msk [vmem:[#allocation2] sm:$0xff] %vm257, %v255
      %v259 = vld [vmem:[%s251 + $0x1] sm:$0xff]
      %261 = vrot.lane.b32.xlu0 %v259, 96
      %v262 = vpop.permute.xlu0 %261
      %vm264 = vcmask 1048320
      %265 = vst.msk [vmem:[#allocation2] sm:$0xff] %vm264, %v262
      %v266 = vld [vmem:[%s251] sm:$0xff]
      %267 = vst.msk [vmem:[#allocation2 + $0x8] sm:$0xff] %vm242, %v266
      %v268 = vld [vmem:[%s251 + $0x1] sm:$0xff]
      %270 = vrot.lane.b32.xlu0 %v268, 32
      %v271 = vpop.permute.xlu0 %270
      %273 = vst.msk [vmem:[#allocation2 + $0x8] sm:$0xff] %vm249, %v271
      %s274 = scalar_lea.vmem %s223, 32
      %v275 = vld [vmem:[%s274] sm:$0xff]
      %277 = vrot.lane.b32.xlu0 %v275, 64
      %v278 = vpop.permute.xlu0 %277
      %280 = vst.msk [vmem:[#allocation2 + $0x8] sm:$0xff] %vm257, %v278
      %v281 = vld [vmem:[%s274 + $0x1] sm:$0xff]
      %283 = vrot.lane.b32.xlu0 %v281, 96
      %v284 = vpop.permute.xlu0 %283
      %286 = vst.msk [vmem:[#allocation2 + $0x8] sm:$0xff] %vm264, %v284
      %v287 = vld [vmem:[%s274] sm:$0xff]
      %288 = vst.msk [vmem:[#allocation2 + $0x10] sm:$0xff] %vm242, %v287
      %v289 = vld [vmem:[%s274 + $0x1] sm:$0xff]
      %291 = vrot.lane.b32.xlu0 %v289, 32
      %v292 = vpop.permute.xlu0 %291
      %294 = vst.msk [vmem:[#allocation2 + $0x10] sm:$0xff] %vm249, %v292
      %s295 = scalar_lea.vmem %s223, 48
      %v296 = vld [vmem:[%s295] sm:$0xff]
      %298 = vrot.lane.b32.xlu0 %v296, 64
      %v299 = vpop.permute.xlu0 %298
      %301 = vst.msk [vmem:[#allocation2 + $0x10] sm:$0xff] %vm257, %v299
      %v302 = vld [vmem:[%s295 + $0x1] sm:$0xff]
      %304 = vrot.lane.b32.xlu0 %v302, 96
      %v305 = vpop.permute.xlu0 %304
      %307 = vst.msk [vmem:[#allocation2 + $0x10] sm:$0xff] %vm264, %v305
      %v308 = vld [vmem:[%s295] sm:$0xff]
      %309 = vst.msk [vmem:[#allocation2 + $0x18] sm:$0xff] %vm242, %v308
      %v310 = vld [vmem:[%s295 + $0x1] sm:$0xff]
      %312 = vrot.lane.b32.xlu0 %v310, 32
      %v313 = vpop.permute.xlu0 %312
      %315 = vst.msk [vmem:[#allocation2 + $0x18] sm:$0xff] %vm249, %v313
      %s316 = scalar_lea.vmem %s223, 64
      %v317 = vld [vmem:[%s316] sm:$0xff]
      %319 = vrot.lane.b32.xlu0 %v317, 64
      %v320 = vpop.permute.xlu0 %319
      %322 = vst.msk [vmem:[#allocation2 + $0x18] sm:$0xff] %vm257, %v320
      %v323 = vld [vmem:[%s316 + $0x1] sm:$0xff]
      %325 = vrot.lane.b32.xlu0 %v323, 96
      %v326 = vpop.permute.xlu0 %325
      %328 = vst.msk [vmem:[#allocation2 + $0x18] sm:$0xff] %vm264, %v326
      %v329 = vld [vmem:[%s316] sm:$0xff]
      %330 = vst.msk [vmem:[#allocation2 + $0x20] sm:$0xff] %vm242, %v329
      %v331 = vld [vmem:[%s316 + $0x1] sm:$0xff]
      %333 = vrot.lane.b32.xlu0 %v331, 32
      %v334 = vpop.permute.xlu0 %333
      %336 = vst.msk [vmem:[#allocation2 + $0x20] sm:$0xff] %vm249, %v334
      %s337 = scalar_lea.vmem %s223, 80
      %v338 = vld [vmem:[%s337] sm:$0xff]
      %340 = vrot.lane.b32.xlu0 %v338, 64
      %v341 = vpop.permute.xlu0 %340
      %343 = vst.msk [vmem:[#allocation2 + $0x20] sm:$0xff] %vm257, %v341
      %v344 = vld [vmem:[%s337 + $0x1] sm:$0xff]
      %346 = vrot.lane.b32.xlu0 %v344, 96
      %v347 = vpop.permute.xlu0 %346
      %349 = vst.msk [vmem:[#allocation2 + $0x20] sm:$0xff] %vm264, %v347
      %v350 = vld [vmem:[%s337] sm:$0xff]
      %351 = vst.msk [vmem:[#allocation2 + $0x28] sm:$0xff] %vm242, %v350
      %v352 = vld [vmem:[%s337 + $0x1] sm:$0xff]
      %354 = vrot.lane.b32.xlu0 %v352, 32
      %v355 = vpop.permute.xlu0 %354
      %357 = vst.msk [vmem:[#allocation2 + $0x28] sm:$0xff] %vm249, %v355
      %s358 = scalar_lea.vmem %s223, 96
      %v359 = vld [vmem:[%s358] sm:$0xff]
      %361 = vrot.lane.b32.xlu0 %v359, 64
      %v362 = vpop.permute.xlu0 %361
      %364 = vst.msk [vmem:[#allocation2 + $0x28] sm:$0xff] %vm257, %v362
      %v365 = vld [vmem:[%s358 + $0x1] sm:$0xff]
      %367 = vrot.lane.b32.xlu0 %v365, 96
      %v368 = vpop.permute.xlu0 %367
      %370 = vst.msk [vmem:[#allocation2 + $0x28] sm:$0xff] %vm264, %v368
      %v371 = vld [vmem:[%s358] sm:$0xff]
      %372 = vst.msk [vmem:[#allocation2 + $0x30] sm:$0xff] %vm242, %v371
      %v373 = vld [vmem:[%s358 + $0x1] sm:$0xff]
      %375 = vrot.lane.b32.xlu0 %v373, 32
      %v376 = vpop.permute.xlu0 %375
      %378 = vst.msk [vmem:[#allocation2 + $0x30] sm:$0xff] %vm249, %v376
      %s379 = scalar_lea.vmem %s223, 112
      %v380 = vld [vmem:[%s379] sm:$0xff]
      %382 = vrot.lane.b32.xlu0 %v380, 64
      %v383 = vpop.permute.xlu0 %382
      %385 = vst.msk [vmem:[#allocation2 + $0x30] sm:$0xff] %vm257, %v383
      %v386 = vld [vmem:[%s379 + $0x1] sm:$0xff]
      %388 = vrot.lane.b32.xlu0 %v386, 96
      %v389 = vpop.permute.xlu0 %388
      %391 = vst.msk [vmem:[#allocation2 + $0x30] sm:$0xff] %vm264, %v389
      %v392 = vld [vmem:[%s379] sm:$0xff]
      %393 = vst.msk [vmem:[#allocation2 + $0x38] sm:$0xff] %vm242, %v392
      %v394 = vld [vmem:[%s379 + $0x1] sm:$0xff]
      %396 = vrot.lane.b32.xlu0 %v394, 32
      %v397 = vpop.permute.xlu0 %396
      %399 = vst.msk [vmem:[#allocation2 + $0x38] sm:$0xff] %vm249, %v397
      %s400 = scalar_lea.vmem %s223, 128
      %v401 = vld [vmem:[%s400] sm:$0xff]
      %403 = vrot.lane.b32.xlu0 %v401, 64
      %v404 = vpop.permute.xlu0 %403
      %406 = vst.msk [vmem:[#allocation2 + $0x38] sm:$0xff] %vm257, %v404
      %v407 = vld [vmem:[%s400 + $0x1] sm:$0xff]
      %409 = vrot.lane.b32.xlu0 %v407, 96
      %v410 = vpop.permute.xlu0 %409
      %412 = vst.msk [vmem:[#allocation2 + $0x38] sm:$0xff] %vm264, %v410
      %v413 = vld [vmem:[#allocation2] sm:$0xff]
      %v414 = vld [vmem:[#allocation2 + $0x8] sm:$0xff]
      %v415 = vld [vmem:[#allocation2 + $0x10] sm:$0xff]
      %v416 = vld [vmem:[#allocation2 + $0x18] sm:$0xff]
      %v417 = vld [vmem:[#allocation2 + $0x20] sm:$0xff]
      %v418 = vld [vmem:[#allocation2 + $0x28] sm:$0xff]
      %v419 = vld [vmem:[#allocation2 + $0x30] sm:$0xff]
      %v420 = vld [vmem:[#allocation2 + $0x38] sm:$0xff]
      %v421 = vld [vmem:[%s228] sm:$0xff]
      %v422 = vld [vmem:[%s228 + $0x8] sm:$0xff]
      %v423 = vld [vmem:[%s228 + $0x10] sm:$0xff]
      %v424 = vld [vmem:[%s228 + $0x18] sm:$0xff]
      %v425 = vld [vmem:[%s228 + $0x20] sm:$0xff]
      %v426 = vld [vmem:[%s228 + $0x28] sm:$0xff]
      %v427 = vld [vmem:[%s228 + $0x30] sm:$0xff]
      %v428 = vld [vmem:[%s228 + $0x38] sm:$0xff]
      %v429 = vld [vmem:[%s228 + $0x40] sm:$0xff]
      %v430 = vld [vmem:[%s228 + $0x48] sm:$0xff]
      %v431 = vld [vmem:[%s228 + $0x50] sm:$0xff]
      %v432 = vld [vmem:[%s228 + $0x58] sm:$0xff]
      %v433 = vld [vmem:[%s228 + $0x60] sm:$0xff]
      %v434 = vld [vmem:[%s228 + $0x68] sm:$0xff]
      %v435 = vld [vmem:[%s228 + $0x70] sm:$0xff]
      %v436 = vld [vmem:[%s228 + $0x78] sm:$0xff]
      %v437 = vld [vmem:[%s231] sm:$0x1]
      %v439 = vlaneseq
      %v440 = vshrl.u32 %v439, 7
      %v441 = vsub.s32 0, %v440
      %v442 = vrot.slane %v437, %v441
      %444 = vmatprep.subr.mxu0 0.0
      %445 = vmatpush1.msra.mxu0 %v421
      %446 = vmatprep.subr.mxu0 0.0
      %447 = vmatpush1.msra.mxu0 %v422
      %448 = vmatprep.subr.mxu0 0.0
      %449 = vmatpush1.msra.mxu0 %v423
      %450 = vmatprep.subr.mxu0 0.0
      %451 = vmatpush1.msra.mxu0 %v424
      %452 = vmatprep.subr.mxu0 0.0
      %453 = vmatpush1.msra.mxu0 %v425
      %454 = vmatprep.subr.mxu0 0.0
      %455 = vmatpush1.msra.mxu0 %v426
      %456 = vmatprep.subr.mxu0 0.0
      %457 = vmatpush1.msra.mxu0 %v427
      %458 = vmatprep.subr.mxu0 0.0
      %459 = vmatpush1.msra.mxu0 %v428
      %460 = vmatprep.subr.mxu0 0.0
      %461 = vmatpush1.msra.mxu0 %v429
      %462 = vmatprep.subr.mxu0 0.0
      %463 = vmatpush1.msra.mxu0 %v430
      %464 = vmatprep.subr.mxu0 0.0
      %465 = vmatpush1.msra.mxu0 %v431
      %466 = vmatprep.subr.mxu0 0.0
      %467 = vmatpush1.msra.mxu0 %v432
      %468 = vmatprep.subr.mxu0 0.0
      %469 = vmatpush1.msra.mxu0 %v433
      %470 = vmatprep.subr.mxu0 0.0
      %471 = vmatpush1.msra.mxu0 %v434
      %472 = vmatprep.subr.mxu0 0.0
      %473 = vmatpush1.msra.mxu0 %v435
      %474 = vmatprep.subr.mxu0 0.0
      %475 = vmatpush1.msra.mxu0 %v436
      %476 = vmatprep.subr.mxu0 0.0
      %477 = vmatpush1.msra.mxu0 0.0
      %478 = vmatprep.subr.mxu0 0.0
      %479 = vmatpush1.msra.mxu0 0.0
      %480 = vmatprep.subr.mxu0 0.0
      %481 = vmatpush1.msra.mxu0 0.0
      %482 = vmatprep.subr.mxu0 0.0
      %483 = vmatpush1.msra.mxu0 0.0
      %484 = vmatprep.subr.mxu0 0.0
      %485 = vmatpush1.msra.mxu0 0.0
      %486 = vmatprep.subr.mxu0 0.0
      %487 = vmatpush1.msra.mxu0 0.0
      %488 = vmatprep.subr.mxu0 0.0
      %489 = vmatpush1.msra.mxu0 0.0
      %490 = vmatprep.subr.mxu0 0.0
      %491 = vmatpush1.msra.mxu0 0.0
      %492 = vmatprep.subr.mxu0 0.0
      %493 = vmatpush1.msra.mxu0 0.0
      %494 = vmatprep.subr.mxu0 0.0
      %495 = vmatpush1.msra.mxu0 0.0
      %496 = vmatprep.subr.mxu0 0.0
      %497 = vmatpush1.msra.mxu0 0.0
      %498 = vmatprep.subr.mxu0 0.0
      %499 = vmatpush1.msra.mxu0 0.0
      %500 = vmatprep.subr.mxu0 0.0
      %501 = vmatpush1.msra.mxu0 0.0
      %502 = vmatprep.subr.mxu0 0.0
      %503 = vmatpush1.msra.mxu0 0.0
      %504 = vmatprep.subr.mxu0 0.0
      %505 = vmatpush1.msra.mxu0 0.0
      %506 = vmatprep.subr.mxu0 0.0
      %507 = vmatpush1.msra.mxu0 0.0
      %508 = vmatprep.mubr.f32.mxu0 0.0
      %509 = vmatmul.mubr.f32.gmra.mrb[0].mxu0 %v413
      %v510 = vpop.f32.mrb[0].mxu0
      %v511 = vadd.f32 %v442, %v510
      %v512 = vpop.f32.mrb[0].mxu0
      %513 = vmatprep.mubr.f32.mxu0 0.0
      %514 = vmatmul.mubr.f32.gmra.mrb[0].mxu0 %v414
      %v515 = vpop.f32.mrb[0].mxu0
      %v516 = vadd.f32 %v442, %v515
      %v517 = vpop.f32.mrb[0].mxu0
      %518 = vmatprep.mubr.f32.mxu0 0.0
      %519 = vmatmul.mubr.f32.gmra.mrb[0].mxu0 %v415
      %v520 = vpop.f32.mrb[0].mxu0
      %v521 = vadd.f32 %v442, %v520
      %v522 = vpop.f32.mrb[0].mxu0
      %523 = vmatprep.mubr.f32.mxu0 0.0
      %524 = vmatmul.mubr.f32.gmra.mrb[0].mxu0 %v416
      %v525 = vpop.f32.mrb[0].mxu0
      %v526 = vadd.f32 %v442, %v525
      %v527 = vpop.f32.mrb[0].mxu0
      %528 = vmatprep.mubr.f32.mxu0 0.0
      %529 = vmatmul.mubr.f32.gmra.mrb[0].mxu0 %v417
      %v530 = vpop.f32.mrb[0].mxu0
      %v531 = vadd.f32 %v442, %v530
      %v532 = vpop.f32.mrb[0].mxu0
      %533 = vmatprep.mubr.f32.mxu0 0.0
      %534 = vmatmul.mubr.f32.gmra.mrb[0].mxu0 %v418
      %v535 = vpop.f32.mrb[0].mxu0
      %v536 = vadd.f32 %v442, %v535
      %v537 = vpop.f32.mrb[0].mxu0
      %538 = vmatprep.mubr.f32.mxu0 0.0
      %539 = vmatmul.mubr.f32.gmra.mrb[0].mxu0 %v419
      %v540 = vpop.f32.mrb[0].mxu0
      %v541 = vadd.f32 %v442, %v540
      %v542 = vpop.f32.mrb[0].mxu0
      %543 = vmatprep.mubr.f32.mxu0 0.0
      %544 = vmatmul.mubr.f32.gmra.mrb[0].mxu0 %v420
      %v545 = vpop.f32.mrb[0].mxu0
      %v546 = vadd.f32 %v442, %v545
      %v547 = vpop.f32.mrb[0].mxu0
      %548 = vdwg.mxu0
      %v549 = vmax.f32 %v511, 0.0
      %v550 = vmax.f32 %v516, 0.0
      %v551 = vmax.f32 %v521, 0.0
      %v552 = vmax.f32 %v526, 0.0
      %v553 = vmax.f32 %v531, 0.0
      %v554 = vmax.f32 %v536, 0.0
      %v555 = vmax.f32 %v541, 0.0
      %v556 = vmax.f32 %v546, 0.0
      %vm557 = vcmask 130048
      %558 = vst.msk [vmem:[%s240] sm:$0xff] %vm557, %v549
      %559 = vst.msk [vmem:[%s240 + $0x8] sm:$0xff] %vm557, %v550
      %560 = vst.msk [vmem:[%s240 + $0x10] sm:$0xff] %vm557, %v551
      %561 = vst.msk [vmem:[%s240 + $0x18] sm:$0xff] %vm557, %v552
      %562 = vst.msk [vmem:[%s240 + $0x20] sm:$0xff] %vm557, %v553
      %563 = vst.msk [vmem:[%s240 + $0x28] sm:$0xff] %vm557, %v554
      %564 = vst.msk [vmem:[%s240 + $0x30] sm:$0xff] %vm557, %v555
      %565 = vst.msk [vmem:[%s240 + $0x38] sm:$0xff] %vm557, %v556
      %p566 = scmp.lt.s32.totalorder %s18, 3
      %s567 = scalar_select %p566, %s18, 3
      %p568 = scmp.lt.s32.totalorder %s19, 1
      %s569 = scalar_select %p568, %s19, 1
      %s570 = smul.addr %s569, 8
      %s571 = smul.addr %s567, 16
      %s572 = sadd.s32 %s570, %s571
      %s573 = smul.addr %s572, 8
      %s574 = scalar_lea.vmem %s3, %s573
      // Predicated region
      $region33: #{conv_vae_forward.14} parent=31 // pred_check
        %p575 = pneg %p126
      $region34: #{conv_vae_forward.14} parent=31 // pred_check_branch
        %577 = sbr.rel (%p575) target = $region36
      $region35: #{conv_vae_forward.14} parent=31 // pred_region
        _
      $region36: #{conv_vae_forward.14} parent=31 // pred_fallthru
        _
    $region32: #{conv_vae_forward.14} parent=5 // pred_fallthru
      _
    %p578 = scmp.le.s32.totalorder 2, %s9
    // Predicated region
    $region37: #{conv_vae_forward.14} parent=5 // pred_check
      %p579 = pneg %p578
    $region38: #{conv_vae_forward.14} parent=5 // pred_check_branch
      %581 = sbr.rel (%p579) target = $region40
    $region39: #{conv_vae_forward.14} parent=5 // pred_region
      %s582 = ssub.s32 %s9, 2
      // Predicated region
      $region41: #{conv_vae_forward.14} parent=39 // pred_check
        %p583 = pneg %p132
      $region42: #{conv_vae_forward.14} parent=39 // pred_check_branch
        %585 = sbr.rel (%p583) target = $region44
      $region43: #{conv_vae_forward.14} parent=39 // pred_region
        %p586 = scmp.lt.s32.totalorder %s20, 3
        %s587 = scalar_select %p586, %s20, 3
        %p588 = scmp.lt.s32.totalorder %s21, 1
        %s589 = scalar_select %p588, %s21, 1
        %s590 = smul.addr %s589, 8
        %s591 = smul.addr %s587, 16
        %s592 = sadd.s32 %s590, %s591
        %s593 = smul.addr %s592, 8
        %s594 = scalar_lea.vmem %s3, %s593
      $region44: #{conv_vae_forward.14} parent=39 // pred_fallthru
        _
    $region40: #{conv_vae_forward.14} parent=5 // pred_fallthru
      _
  $region6: #{conv_vae_forward.14} parent=0 // loop_footer
    %s13 = sadd.s32 1, %s9
  $region7: #{conv_vae_forward.14} parent=0 // loop_footer_branch
    %8 = sbr.rel target = $region3
  $region8: #{conv_vae_forward.14} parent=0 // loop_exit
    _

// kernel: conv_vae_forward.15
$region0: #{conv_vae_forward.15}
  #allocation0 [shape = 'u32[]', space=smem, size = 0x4, offset = 0x4, fixed_abs, tag = 'smem constant byte address 0x4 - core index']
  #allocation1 [shape = 'u32[144,128]{1,0:T(1,128)}', space=vmem, size = 0x12000, scoped, tag = 'internal scratch']
  #allocation2 [shape = 'f32[196,64]{1,0:T(8,128)}', space=vmem, size = 0x19000, scoped, tag = 'scratch operand']
  %s0 = inlined_call_operand.vmem [shape: f32[4,2,15,15,16], index: 0, kind: input, shape index: {}]
  %s1 = inlined_call_operand.vmem [shape: f32[4,64,3], index: 1, kind: input, shape index: {}]
  %s2 = inlined_call_operand.vmem [shape: f32[4,1,3], index: 2, kind: input, shape index: {}]
  %s3 = inlined_call_operand.vmem [shape: f32[4,2,196,3], index: 3, kind: output, shape index: {}]
  %s4 = sld [smem:[#allocation0]]
  $region45: #{conv_vae_forward.15} parent=0
    _
  %s6 = ssub.s32 1, %s4
  %s7 = scalar_select 0, %s6, %s4
  loop: start=0, step=1, limit=10
  $region2: #{conv_vae_forward.15} parent=0 // loop_pre_header
    _
  $region3: #{conv_vae_forward.15} parent=0 // loop_header
    %s9 = sphi 0, %s13
    %p10 = scmp.ge.s32.totalorder %s9, 10
    %s16 = sphi 0, %s28
    %s17 = sphi 0, %s24
    %s18 = sphi 0, %s16
    %s19 = sphi 0, %s17
    %s20 = sphi 0, %s18
    %s21 = sphi 0, %s19
    %s33 = sphi 0, %s35
    %s36 = sphi 0, %s33
    %s37 = sphi 0, %s36
    %s53 = sphi 0, %s37
    %s59 = sphi 0, %s61
    %s62 = sphi 0, %s59
    %s63 = sphi 0, %s62
    %s79 = sphi 0, %s63
    %s85 = sphi 0, %s87
    %s88 = sphi 0, %s85
    %s89 = sphi 0, %s88
    %s105 = sphi 0, %s89
    %s113 = sphi 0, %s115
    %s116 = sphi 0, %s113
    %s117 = sphi 0, %s116
    %s133 = sphi 0, %s117
  $region4: #{conv_vae_forward.15} parent=0 // loop_header_branch
    %12 = sbr.rel (%p10) target = $region8
  $region5: #{conv_vae_forward.15} parent=0 // loop_body
    %s14 = ssub.s32 %s9, 1
    %s15 = ssub.s32 %s9, 2
    %s22 = sadd.s32 1, %s17
    %p23 = scmp.ge.s32.totalorder %s22, 2
    %s24 = scalar_select %p23, 0, %s22
    %s25 = sadd.s32 1, %s16
    %s26 = scalar_select %p23, %s25, %s16
    %p27 = scmp.ge.s32.totalorder %s26, 4
    %s28 = scalar_select %p27, 0, %s26
    %s29 = ssub.s32 %s16, %s28
    %s30 = ssub.s32 %s17, %s24
    %s31 = sor.u32 %s29, %s30
    %p32 = scmp.eq.s32.totalorder %s31, 0
    %s34 = sadd.s32 %s33, 1
    %s35 = scalar_select %p32, %s33, %s34
    %p38 = pneg %p32
    %p39 = scmp.eq.s32.totalorder %s9, 7
    %p40 = por %p38, %p39
    %p41 = scmp.ne.s32.totalorder %s33, %s36
    %p42 = scmp.eq.s32.totalorder %s9, 0
    %p43 = por %p41, %p42
    %p44 = scmp.ne.s32.totalorder %s33, %s36
    %p45 = scmp.eq.s32.totalorder %s14, 7
    %p46 = por %p44, %p45
    %p47 = scmp.ne.s32.totalorder %s36, %s37
    %p48 = scmp.eq.s32.totalorder %s14, 0
    %p49 = por %p47, %p48
    %p50 = scmp.ne.s32.totalorder %s36, %s37
    %p51 = scmp.eq.s32.totalorder %s15, 7
    %p52 = por %p50, %p51
    %p54 = scmp.ne.s32.totalorder %s37, %s53
    %p55 = scmp.eq.s32.totalorder %s15, 0
    %p56 = por %p54, %p55
    %s57 = ssub.s32 %s16, %s28
    %p58 = scmp.eq.s32.totalorder %s57, 0
    %s60 = sadd.s32 %s59, 1
    %s61 = scalar_select %p58, %s59, %s60
    %p64 = pneg %p58
    %p65 = scmp.eq.s32.totalorder %s9, 7
    %p66 = por %p64, %p65
    %p67 = scmp.ne.s32.totalorder %s59, %s62
    %p68 = scmp.eq.s32.totalorder %s9, 0
    %p69 = por %p67, %p68
    %p70 = scmp.ne.s32.totalorder %s59, %s62
    %p71 = scmp.eq.s32.totalorder %s14, 7
    %p72 = por %p70, %p71
    %p73 = scmp.ne.s32.totalorder %s62, %s63
    %p74 = scmp.eq.s32.totalorder %s14, 0
    %p75 = por %p73, %p74
    %p76 = scmp.ne.s32.totalorder %s62, %s63
    %p77 = scmp.eq.s32.totalorder %s15, 7
    %p78 = por %p76, %p77
    %p80 = scmp.ne.s32.totalorder %s63, %s79
    %p81 = scmp.eq.s32.totalorder %s15, 0
    %p82 = por %p80, %p81
    %s83 = ssub.s32 %s16, %s28
    %p84 = scmp.eq.s32.totalorder %s83, 0
    %s86 = sadd.s32 %s85, 1
    %s87 = scalar_select %p84, %s85, %s86
    %p90 = pneg %p84
    %p91 = scmp.eq.s32.totalorder %s9, 7
    %p92 = por %p90, %p91
    %p93 = scmp.ne.s32.totalorder %s85, %s88
    %p94 = scmp.eq.s32.totalorder %s9, 0
    %p95 = por %p93, %p94
    %p96 = scmp.ne.s32.totalorder %s85, %s88
    %p97 = scmp.eq.s32.totalorder %s14, 7
    %p98 = por %p96, %p97
    %p99 = scmp.ne.s32.totalorder %s88, %s89
    %p100 = scmp.eq.s32.totalorder %s14, 0
    %p101 = por %p99, %p100
    %p102 = scmp.ne.s32.totalorder %s88, %s89
    %p103 = scmp.eq.s32.totalorder %s15, 7
    %p104 = por %p102, %p103
    %p106 = scmp.ne.s32.totalorder %s89, %s105
    %p107 = scmp.eq.s32.totalorder %s15, 0
    %p108 = por %p106, %p107
    %s109 = ssub.s32 %s16, %s28
    %s110 = ssub.s32 %s17, %s24
    %s111 = sor.u32 %s109, %s110
    %p112 = scmp.eq.s32.totalorder %s111, 0
    %s114 = sadd.s32 %s113, 1
    %s115 = scalar_select %p112, %s113, %s114
    %p118 = pneg %p112
    %p119 = scmp.eq.s32.totalorder %s9, 7
    %p120 = por %p118, %p119
    %p121 = scmp.ne.s32.totalorder %s113, %s116
    %p122 = scmp.eq.s32.totalorder %s9, 0
    %p123 = por %p121, %p122
    %p124 = scmp.ne.s32.totalorder %s113, %s116
    %p125 = scmp.eq.s32.totalorder %s14, 7
    %p126 = por %p124, %p125
    %p127 = scmp.ne.s32.totalorder %s116, %s117
    %p128 = scmp.eq.s32.totalorder %s14, 0
    %p129 = por %p127, %p128
    %p130 = scmp.ne.s32.totalorder %s116, %s117
    %p131 = scmp.eq.s32.totalorder %s15, 7
    %p132 = por %p130, %p131
    %p134 = scmp.ne.s32.totalorder %s117, %s133
    %p135 = scmp.eq.s32.totalorder %s15, 0
    %p136 = por %p134, %p135
    %p137 = scmp.le.s32.totalorder 1, %s9
    %p138 = scmp.lt.s32.totalorder %s9, 9
    %p139 = pnand %p137, %p138
    %p140 = pneg %p139
    // Predicated region
    $region9: #{conv_vae_forward.15} parent=5 // pred_check
      _
    $region10: #{conv_vae_forward.15} parent=5 // pred_check_branch
      %142 = sbr.rel (%p139) target = $region12
    $region11: #{conv_vae_forward.15} parent=5 // pred_region
      %s143 = ssub.s32 %s9, 1
    $region12: #{conv_vae_forward.15} parent=5 // pred_fallthru
      _
    %p144 = scmp.lt.s32.totalorder %s9, 8
    // Predicated region
    $region13: #{conv_vae_forward.15} parent=5 // pred_check
      %p145 = pneg %p144
    $region14: #{conv_vae_forward.15} parent=5 // pred_check_branch
      %147 = sbr.rel (%p145) target = $region16
    $region15: #{conv_vae_forward.15} parent=5 // pred_region
      // Predicated region
      $region17: #{conv_vae_forward.15} parent=15 // pred_check
        %p148 = pneg %p43
      $region18: #{conv_vae_forward.15} parent=15 // pred_check_branch
        %150 = sbr.rel (%p148) target = $region20
      $region19: #{conv_vae_forward.15} parent=15 // pred_region
        %p151 = scmp.lt.s32.totalorder %s16, 3
        %s152 = scalar_select %p151, %s16, 3
        %p153 = scmp.lt.s32.totalorder %s17, 1
        %s154 = scalar_select %p153, %s17, 1
        %s155 = smul.addr %s154, 30
        %s156 = smul.addr %s152, 60
        %s157 = sadd.s32 %s155, %s156
        %s158 = smul.addr %s157, 8
        %s159 = scalar_lea.vmem %s0, %s158
      $region20: #{conv_vae_forward.15} parent=15 // pred_fallthru
        _
      // Predicated region
      $region21: #{conv_vae_forward.15} parent=15 // pred_check
        %p160 = pneg %p69
      $region22: #{conv_vae_forward.15} parent=15 // pred_check_branch
        %162 = sbr.rel (%p160) target = $region24
      $region23: #{conv_vae_forward.15} parent=15 // pred_region
        %p163 = scmp.lt.s32.totalorder %s16, 3
        %s164 = scalar_select %p163, %s16, 3
        %s165 = smul.addr %s164, 8
        %s166 = smul.addr %s165, 8
        %s167 = scalar_lea.vmem %s1, %s166
      $region24: #{conv_vae_forward.15} parent=15 // pred_fallthru
        _
      // Predicated region
      $region25: #{conv_vae_forward.15} parent=15 // pred_check
        %p168 = pneg %p95
      $region26: #{conv_vae_forward.15} parent=15 // pred_check_branch
        %170 = sbr.rel (%p168) target = $region28
      $region27: #{conv_vae_forward.15} parent=15 // pred_region
        %p171 = scmp.lt.s32.totalorder %s16, 3
        %s172 = scalar_select %p171, %s16, 3
        %s173 = scalar_lea.vmem %s2, %s172
      $region28: #{conv_vae_forward.15} parent=15 // pred_fallthru
        _
    $region16: #{conv_vae_forward.15} parent=5 // pred_fallthru
      _
    %p174 = scmp.le.s32.totalorder 1, %s9
    %p175 = scmp.lt.s32.totalorder %s9, 9
    %p176 = pnand %p174, %p175
    %p177 = pneg %p176
    // Predicated region
    $region29: #{conv_vae_forward.15} parent=5 // pred_check
      _
    $region30: #{conv_vae_forward.15} parent=5 // pred_check_branch
      %179 = sbr.rel (%p176) target = $region32
    $region31: #{conv_vae_forward.15} parent=5 // pred_region
      %s180 = ssub.s32 %s9, 1
      %p181 = scmp.lt.s32.totalorder %s18, 3
      %s182 = scalar_select %p181, %s18, 3
      %p183 = scmp.lt.s32.totalorder %s19, 1
      %s184 = scalar_select %p183, %s19, 1
      %s185 = smul.addr %s184, 30
      %s186 = smul.addr %s182, 60
      %s187 = sadd.s32 %s185, %s186
      %s188 = smul.addr %s187, 8
      %s189 = scalar_lea.vmem %s0, %s188
      %p190 = pneg %p49
      %p191 = pneg %p46
      %p192 = scmp.lt.s32.totalorder %s18, 3
      %s193 = scalar_select %p192, %s18, 3
      %s194 = smul.addr %s193, 8
      %s195 = smul.addr %s194, 8
      %s196 = scalar_lea.vmem %s1, %s195
      %p197 = pneg %p75
      %p198 = pneg %p72
      %p199 = scmp.lt.s32.totalorder %s18, 3
      %s200 = scalar_select %p199, %s18, 3
      %s201 = scalar_lea.vmem %s2, %s200
      %p202 = pneg %p101
      %p203 = pneg %p98
      %p204 = pneg %p129
      %p205 = pneg %p126
      %p206 = scmp.lt.s32.totalorder %s18, 3
      %s207 = scalar_select %p206, %s18, 3
      %p208 = scmp.lt.s32.totalorder %s19, 1
      %s209 = scalar_select %p208, %s19, 1
      %s210 = smul.addr %s209, 25
      %s211 = smul.addr %s207, 50
      %s212 = sadd.s32 %s210, %s211
      %s213 = smul.addr %s212, 8
      %s214 = scalar_lea.vmem %s3, %s213
      %p215 = scmp.lt.s32.totalorder %s18, 3
      %s216 = scalar_select %p215, %s18, 3
      %p217 = scmp.lt.s32.totalorder %s19, 1
      %s218 = scalar_select %p217, %s19, 1
      %s219 = smul.addr %s218, 30
      %s220 = smul.addr %s216, 60
      %s221 = sadd.s32 %s219, %s220
      %s222 = smul.addr %s221, 8
      %s223 = scalar_lea.vmem %s0, %s222
      %p224 = scmp.lt.s32.totalorder %s18, 3
      %s225 = scalar_select %p224, %s18, 3
      %s226 = smul.addr %s225, 8
      %s227 = smul.addr %s226, 8
      %s228 = scalar_lea.vmem %s1, %s227
      %p229 = scmp.lt.s32.totalorder %s18, 3
      %s230 = scalar_select %p229, %s18, 3
      %s231 = scalar_lea.vmem %s2, %s230
      %p232 = scmp.lt.s32.totalorder %s18, 3
      %s233 = scalar_select %p232, %s18, 3
      %p234 = scmp.lt.s32.totalorder %s19, 1
      %s235 = scalar_select %p234, %s19, 1
      %s236 = smul.addr %s235, 25
      %s237 = smul.addr %s233, 50
      %s238 = sadd.s32 %s236, %s237
      %s239 = smul.addr %s238, 8
      %s240 = scalar_lea.vmem %s3, %s239
      %v241 = vld [vmem:[%s223] sm:$0xff]
      %v242 = vld [vmem:[%s223 + $0x8] sm:$0x3f]
      %vm243 = vcmask 130048
      %244 = vst.msk [vmem:[#allocation2] sm:$0xff] %vm243, %v241
      %vm245 = vcmask 128000
      %246 = vst.msk [vmem:[#allocation2 + $0x8] sm:$0x3f] %vm245, %v242
      %v247 = vld [vmem:[%s223 + $0x1] sm:$0xff]
      %v248 = vld [vmem:[%s223 + $0x9] sm:$0x3f]
      %251 = vrot.lane.b32.xlu0 %v247, 16
      %v252 = vpop.permute.xlu0 %251
      %253 = vrot.lane.b32.xlu0 %v248, 16
      %v254 = vpop.permute.xlu0 %253
      %vm257 = vcmask 261248
      %258 = vst.msk [vmem:[#allocation2] sm:$0xff] %vm257, %v252
      %vm259 = vcmask 259200
      %260 = vst.msk [vmem:[#allocation2 + $0x8] sm:$0x3f] %vm259, %v254
      %s261 = scalar_lea.vmem %s223, 16
      %v262 = vld [vmem:[%s261] sm:$0xff]
      %v263 = vld [vmem:[%s261 + $0x8] sm:$0x3f]
      %266 = vrot.lane.b32.xlu0 %v262, 32
      %v267 = vpop.permute.xlu0 %266
      %268 = vrot.lane.b32.xlu0 %v263, 32
      %v269 = vpop.permute.xlu0 %268
      %vm272 = vcmask 392448
      %273 = vst.msk [vmem:[#allocation2] sm:$0xff] %vm272, %v267
      %vm274 = vcmask 390400
      %275 = vst.msk [vmem:[#allocation2 + $0x8] sm:$0x3f] %vm274, %v269
      %v276 = vld [vmem:[%s261 + $0x1] sm:$0xff]
      %v277 = vld [vmem:[%s261 + $0x9] sm:$0x3f]
      %280 = vrot.lane.b32.xlu0 %v276, 48
      %v281 = vpop.permute.xlu0 %280
      %282 = vrot.lane.b32.xlu0 %v277, 48
      %v283 = vpop.permute.xlu0 %282
      %vm286 = vcmask 523648
      %287 = vst.msk [vmem:[#allocation2] sm:$0xff] %vm286, %v281
      %vm288 = vcmask 521600
      %289 = vst.msk [vmem:[#allocation2 + $0x8] sm:$0x3f] %vm288, %v283
      %v290 = vld [vmem:[%s261] sm:$0xff]
      %v291 = vld [vmem:[%s261 + $0x8] sm:$0x3f]
      %292 = vst.msk [vmem:[#allocation2 + $0xe] sm:$0xff] %vm243, %v290
      %293 = vst.msk [vmem:[#allocation2 + $0x16] sm:$0x3f] %vm245, %v291
      %v294 = vld [vmem:[%s261 + $0x1] sm:$0xff]
      %v295 = vld [vmem:[%s261 + $0x9] sm:$0x3f]
      %298 = vrot.lane.b32.xlu0 %v294, 16
      %v299 = vpop.permute.xlu0 %298
      %300 = vrot.lane.b32.xlu0 %v295, 16
      %v301 = vpop.permute.xlu0 %300
      %304 = vst.msk [vmem:[#allocation2 + $0xe] sm:$0xff] %vm257, %v299
      %305 = vst.msk [vmem:[#allocation2 + $0x16] sm:$0x3f] %vm259, %v301
      %s306 = scalar_lea.vmem %s223, 32
      %v307 = vld [vmem:[%s306] sm:$0xff]
      %v308 = vld [vmem:[%s306 + $0x8] sm:$0x3f]
      %311 = vrot.lane.b32.xlu0 %v307, 32
      %v312 = vpop.permute.xlu0 %311
      %313 = vrot.lane.b32.xlu0 %v308, 32
      %v314 = vpop.permute.xlu0 %313
      %317 = vst.msk [vmem:[#allocation2 + $0xe] sm:$0xff] %vm272, %v312
      %318 = vst.msk [vmem:[#allocation2 + $0x16] sm:$0x3f] %vm274, %v314
      %v319 = vld [vmem:[%s306 + $0x1] sm:$0xff]
      %v320 = vld [vmem:[%s306 + $0x9] sm:$0x3f]
      %323 = vrot.lane.b32.xlu0 %v319, 48
      %v324 = vpop.permute.xlu0 %323
      %325 = vrot.lane.b32.xlu0 %v320, 48
      %v326 = vpop.permute.xlu0 %325
      %329 = vst.msk [vmem:[#allocation2 + $0xe] sm:$0xff] %vm286, %v324
      %330 = vst.msk [vmem:[#allocation2 + $0x16] sm:$0x3f] %vm288, %v326
      %v331 = vld [vmem:[%s306] sm:$0xff]
      %v332 = vld [vmem:[%s306 + $0x8] sm:$0x3f]
      %333 = vst.msk [vmem:[#allocation2 + $0x1c] sm:$0xff] %vm243, %v331
      %334 = vst.msk [vmem:[#allocation2 + $0x24] sm:$0x3f] %vm245, %v332
      %v335 = vld [vmem:[%s306 + $0x1] sm:$0xff]
      %v336 = vld [vmem:[%s306 + $0x9] sm:$0x3f]
      %339 = vrot.lane.b32.xlu0 %v335, 16
      %v340 = vpop.permute.xlu0 %339
      %341 = vrot.lane.b32.xlu0 %v336, 16
      %v342 = vpop.permute.xlu0 %341
      %345 = vst.msk [vmem:[#allocation2 + $0x1c] sm:$0xff] %vm257, %v340
      %346 = vst.msk [vmem:[#allocation2 + $0x24] sm:$0x3f] %vm259, %v342
      %s347 = scalar_lea.vmem %s223, 48
      %v348 = vld [vmem:[%s347] sm:$0xff]
      %v349 = vld [vmem:[%s347 + $0x8] sm:$0x3f]
      %352 = vrot.lane.b32.xlu0 %v348, 32
      %v353 = vpop.permute.xlu0 %352
      %354 = vrot.lane.b32.xlu0 %v349, 32
      %v355 = vpop.permute.xlu0 %354
      %358 = vst.msk [vmem:[#allocation2 + $0x1c] sm:$0xff] %vm272, %v353
      %359 = vst.msk [vmem:[#allocation2 + $0x24] sm:$0x3f] %vm274, %v355
      %v360 = vld [vmem:[%s347 + $0x1] sm:$0xff]
      %v361 = vld [vmem:[%s347 + $0x9] sm:$0x3f]
      %364 = vrot.lane.b32.xlu0 %v360, 48
      %v365 = vpop.permute.xlu0 %364
      %366 = vrot.lane.b32.xlu0 %v361, 48
      %v367 = vpop.permute.xlu0 %366
      %370 = vst.msk [vmem:[#allocation2 + $0x1c] sm:$0xff] %vm286, %v365
      %371 = vst.msk [vmem:[#allocation2 + $0x24] sm:$0x3f] %vm288, %v367
      %v372 = vld [vmem:[%s347] sm:$0xff]
      %v373 = vld [vmem:[%s347 + $0x8] sm:$0x3f]
      %374 = vst.msk [vmem:[#allocation2 + $0x2a] sm:$0xff] %vm243, %v372
      %375 = vst.msk [vmem:[#allocation2 + $0x32] sm:$0x3f] %vm245, %v373
      %v376 = vld [vmem:[%s347 + $0x1] sm:$0xff]
      %v377 = vld [vmem:[%s347 + $0x9] sm:$0x3f]
      %380 = vrot.lane.b32.xlu0 %v376, 16
      %v381 = vpop.permute.xlu0 %380
      %382 = vrot.lane.b32.xlu0 %v377, 16
      %v383 = vpop.permute.xlu0 %382
      %386 = vst.msk [vmem:[#allocation2 + $0x2a] sm:$0xff] %vm257, %v381
      %387 = vst.msk [vmem:[#allocation2 + $0x32] sm:$0x3f] %vm259, %v383
      %s388 = scalar_lea.vmem %s223, 64
      %v389 = vld [vmem:[%s388] sm:$0xff]
      %v390 = vld [vmem:[%s388 + $0x8] sm:$0x3f]
      %393 = vrot.lane.b32.xlu0 %v389, 32
      %v394 = vpop.permute.xlu0 %393
      %395 = vrot.lane.b32.xlu0 %v390, 32
      %v396 = vpop.permute.xlu0 %395
      %399 = vst.msk [vmem:[#allocation2 + $0x2a] sm:$0xff] %vm272, %v394
      %400 = vst.msk [vmem:[#allocation2 + $0x32] sm:$0x3f] %vm274, %v396
      %v401 = vld [vmem:[%s388 + $0x1] sm:$0xff]
      %v402 = vld [vmem:[%s388 + $0x9] sm:$0x3f]
      %405 = vrot.lane.b32.xlu0 %v401, 48
      %v406 = vpop.permute.xlu0 %405
      %407 = vrot.lane.b32.xlu0 %v402, 48
      %v408 = vpop.permute.xlu0 %407
      %411 = vst.msk [vmem:[#allocation2 + $0x2a] sm:$0xff] %vm286, %v406
      %412 = vst.msk [vmem:[#allocation2 + $0x32] sm:$0x3f] %vm288, %v408
      %v413 = vld [vmem:[%s388] sm:$0xff]
      %v414 = vld [vmem:[%s388 + $0x8] sm:$0x3f]
      %415 = vst.msk [vmem:[#allocation2 + $0x38] sm:$0xff] %vm243, %v413
      %416 = vst.msk [vmem:[#allocation2 + $0x40] sm:$0x3f] %vm245, %v414
      %v417 = vld [vmem:[%s388 + $0x1] sm:$0xff]
      %v418 = vld [vmem:[%s388 + $0x9] sm:$0x3f]
      %421 = vrot.lane.b32.xlu0 %v417, 16
      %v422 = vpop.permute.xlu0 %421
      %423 = vrot.lane.b32.xlu0 %v418, 16
      %v424 = vpop.permute.xlu0 %423
      %427 = vst.msk [vmem:[#allocation2 + $0x38] sm:$0xff] %vm257, %v422
      %428 = vst.msk [vmem:[#allocation2 + $0x40] sm:$0x3f] %vm259, %v424
      %s429 = scalar_lea.vmem %s223, 80
      %v430 = vld [vmem:[%s429] sm:$0xff]
      %v431 = vld [vmem:[%s429 + $0x8] sm:$0x3f]
      %434 = vrot.lane.b32.xlu0 %v430, 32
      %v435 = vpop.permute.xlu0 %434
      %436 = vrot.lane.b32.xlu0 %v431, 32
      %v437 = vpop.permute.xlu0 %436
      %440 = vst.msk [vmem:[#allocation2 + $0x38] sm:$0xff] %vm272, %v435
      %441 = vst.msk [vmem:[#allocation2 + $0x40] sm:$0x3f] %vm274, %v437
      %v442 = vld [vmem:[%s429 + $0x1] sm:$0xff]
      %v443 = vld [vmem:[%s429 + $0x9] sm:$0x3f]
      %446 = vrot.lane.b32.xlu0 %v442, 48
      %v447 = vpop.permute.xlu0 %446
      %448 = vrot.lane.b32.xlu0 %v443, 48
      %v449 = vpop.permute.xlu0 %448
      %452 = vst.msk [vmem:[#allocation2 + $0x38] sm:$0xff] %vm286, %v447
      %453 = vst.msk [vmem:[#allocation2 + $0x40] sm:$0x3f] %vm288, %v449
      %v454 = vld [vmem:[%s429] sm:$0xff]
      %v455 = vld [vmem:[%s429 + $0x8] sm:$0x3f]
      %456 = vst.msk [vmem:[#allocation2 + $0x46] sm:$0xff] %vm243, %v454
      %457 = vst.msk [vmem:[#allocation2 + $0x4e] sm:$0x3f] %vm245, %v455
      %v458 = vld [vmem:[%s429 + $0x1] sm:$0xff]
      %v459 = vld [vmem:[%s429 + $0x9] sm:$0x3f]
      %462 = vrot.lane.b32.xlu0 %v458, 16
      %v463 = vpop.permute.xlu0 %462
      %464 = vrot.lane.b32.xlu0 %v459, 16
      %v465 = vpop.permute.xlu0 %464
      %468 = vst.msk [vmem:[#allocation2 + $0x46] sm:$0xff] %vm257, %v463
      %469 = vst.msk [vmem:[#allocation2 + $0x4e] sm:$0x3f] %vm259, %v465
      %s470 = scalar_lea.vmem %s223, 96
      %v471 = vld [vmem:[%s470] sm:$0xff]
      %v472 = vld [vmem:[%s470 + $0x8] sm:$0x3f]
      %475 = vrot.lane.b32.xlu0 %v471, 32
      %v476 = vpop.permute.xlu0 %475
      %477 = vrot.lane.b32.xlu0 %v472, 32
      %v478 = vpop.permute.xlu0 %477
      %481 = vst.msk [vmem:[#allocation2 + $0x46] sm:$0xff] %vm272, %v476
      %482 = vst.msk [vmem:[#allocation2 + $0x4e] sm:$0x3f] %vm274, %v478
      %v483 = vld [vmem:[%s470 + $0x1] sm:$0xff]
      %v484 = vld [vmem:[%s470 + $0x9] sm:$0x3f]
      %487 = vrot.lane.b32.xlu0 %v483, 48
      %v488 = vpop.permute.xlu0 %487
      %489 = vrot.lane.b32.xlu0 %v484, 48
      %v490 = vpop.permute.xlu0 %489
      %493 = vst.msk [vmem:[#allocation2 + $0x46] sm:$0xff] %vm286, %v488
      %494 = vst.msk [vmem:[#allocation2 + $0x4e] sm:$0x3f] %vm288, %v490
      %v495 = vld [vmem:[%s470] sm:$0xff]
      %v496 = vld [vmem:[%s470 + $0x8] sm:$0x3f]
      %497 = vst.msk [vmem:[#allocation2 + $0x54] sm:$0xff] %vm243, %v495
      %498 = vst.msk [vmem:[#allocation2 + $0x5c] sm:$0x3f] %vm245, %v496
      %v499 = vld [vmem:[%s470 + $0x1] sm:$0xff]
      %v500 = vld [vmem:[%s470 + $0x9] sm:$0x3f]
      %503 = vrot.lane.b32.xlu0 %v499, 16
      %v504 = vpop.permute.xlu0 %503
      %505 = vrot.lane.b32.xlu0 %v500, 16
      %v506 = vpop.permute.xlu0 %505
      %509 = vst.msk [vmem:[#allocation2 + $0x54] sm:$0xff] %vm257, %v504
      %510 = vst.msk [vmem:[#allocation2 + $0x5c] sm:$0x3f] %vm259, %v506
      %s511 = scalar_lea.vmem %s223, 112
      %v512 = vld [vmem:[%s511] sm:$0xff]
      %v513 = vld [vmem:[%s511 + $0x8] sm:$0x3f]
      %516 = vrot.lane.b32.xlu0 %v512, 32
      %v517 = vpop.permute.xlu0 %516
      %518 = vrot.lane.b32.xlu0 %v513, 32
      %v519 = vpop.permute.xlu0 %518
      %522 = vst.msk [vmem:[#allocation2 + $0x54] sm:$0xff] %vm272, %v517
      %523 = vst.msk [vmem:[#allocation2 + $0x5c] sm:$0x3f] %vm274, %v519
      %v524 = vld [vmem:[%s511 + $0x1] sm:$0xff]
      %v525 = vld [vmem:[%s511 + $0x9] sm:$0x3f]
      %528 = vrot.lane.b32.xlu0 %v524, 48
      %v529 = vpop.permute.xlu0 %528
      %530 = vrot.lane.b32.xlu0 %v525, 48
      %v531 = vpop.permute.xlu0 %530
      %534 = vst.msk [vmem:[#allocation2 + $0x54] sm:$0xff] %vm286, %v529
      %535 = vst.msk [vmem:[#allocation2 + $0x5c] sm:$0x3f] %vm288, %v531
      %v536 = vld [vmem:[%s511] sm:$0xff]
      %v537 = vld [vmem:[%s511 + $0x8] sm:$0x3f]
      %538 = vst.msk [vmem:[#allocation2 + $0x62] sm:$0xff] %vm243, %v536
      %539 = vst.msk [vmem:[#allocation2 + $0x6a] sm:$0x3f] %vm245, %v537
      %v540 = vld [vmem:[%s511 + $0x1] sm:$0xff]
      %v541 = vld [vmem:[%s511 + $0x9] sm:$0x3f]
      %544 = vrot.lane.b32.xlu0 %v540, 16
      %v545 = vpop.permute.xlu0 %544
      %546 = vrot.lane.b32.xlu0 %v541, 16
      %v547 = vpop.permute.xlu0 %546
      %550 = vst.msk [vmem:[#allocation2 + $0x62] sm:$0xff] %vm257, %v545
      %551 = vst.msk [vmem:[#allocation2 + $0x6a] sm:$0x3f] %vm259, %v547
      %s552 = scalar_lea.vmem %s223, 128
      %v553 = vld [vmem:[%s552] sm:$0xff]
      %v554 = vld [vmem:[%s552 + $0x8] sm:$0x3f]
      %557 = vrot.lane.b32.xlu0 %v553, 32
      %v558 = vpop.permute.xlu0 %557
      %559 = vrot.lane.b32.xlu0 %v554, 32
      %v560 = vpop.permute.xlu0 %559
      %563 = vst.msk [vmem:[#allocation2 + $0x62] sm:$0xff] %vm272, %v558
      %564 = vst.msk [vmem:[#allocation2 + $0x6a] sm:$0x3f] %vm274, %v560
      %v565 = vld [vmem:[%s552 + $0x1] sm:$0xff]
      %v566 = vld [vmem:[%s552 + $0x9] sm:$0x3f]
      %569 = vrot.lane.b32.xlu0 %v565, 48
      %v570 = vpop.permute.xlu0 %569
      %571 = vrot.lane.b32.xlu0 %v566, 48
      %v572 = vpop.permute.xlu0 %571
      %575 = vst.msk [vmem:[#allocation2 + $0x62] sm:$0xff] %vm286, %v570
      %576 = vst.msk [vmem:[#allocation2 + $0x6a] sm:$0x3f] %vm288, %v572
      %v577 = vld [vmem:[%s552] sm:$0xff]
      %v578 = vld [vmem:[%s552 + $0x8] sm:$0x3f]
      %579 = vst.msk [vmem:[#allocation2 + $0x70] sm:$0xff] %vm243, %v577
      %580 = vst.msk [vmem:[#allocation2 + $0x78] sm:$0x3f] %vm245, %v578
      %v581 = vld [vmem:[%s552 + $0x1] sm:$0xff]
      %v582 = vld [vmem:[%s552 + $0x9] sm:$0x3f]
      %585 = vrot.lane.b32.xlu0 %v581, 16
      %v586 = vpop.permute.xlu0 %585
      %587 = vrot.lane.b32.xlu0 %v582, 16
      %v588 = vpop.permute.xlu0 %587
      %591 = vst.msk [vmem:[#allocation2 + $0x70] sm:$0xff] %vm257, %v586
      %592 = vst.msk [vmem:[#allocation2 + $0x78] sm:$0x3f] %vm259, %v588
      %s593 = scalar_lea.vmem %s223, 144
      %v594 = vld [vmem:[%s593] sm:$0xff]
      %v595 = vld [vmem:[%s593 + $0x8] sm:$0x3f]
      %598 = vrot.lane.b32.xlu0 %v594, 32
      %v599 = vpop.permute.xlu0 %598
      %600 = vrot.lane.b32.xlu0 %v595, 32
      %v601 = vpop.permute.xlu0 %600
      %604 = vst.msk [vmem:[#allocation2 + $0x70] sm:$0xff] %vm272, %v599
      %605 = vst.msk [vmem:[#allocation2 + $0x78] sm:$0x3f] %vm274, %v601
      %v606 = vld [vmem:[%s593 + $0x1] sm:$0xff]
      %v607 = vld [vmem:[%s593 + $0x9] sm:$0x3f]
      %610 = vrot.lane.b32.xlu0 %v606, 48
      %v611 = vpop.permute.xlu0 %610
      %612 = vrot.lane.b32.xlu0 %v607, 48
      %v613 = vpop.permute.xlu0 %612
      %616 = vst.msk [vmem:[#allocation2 + $0x70] sm:$0xff] %vm286, %v611
      %617 = vst.msk [vmem:[#allocation2 + $0x78] sm:$0x3f] %vm288, %v613
      %v618 = vld [vmem:[%s593] sm:$0xff]
      %v619 = vld [vmem:[%s593 + $0x8] sm:$0x3f]
      %620 = vst.msk [vmem:[#allocation2 + $0x7e] sm:$0xff] %vm243, %v618
      %621 = vst.msk [vmem:[#allocation2 + $0x86] sm:$0x3f] %vm245, %v619
      %v622 = vld [vmem:[%s593 + $0x1] sm:$0xff]
      %v623 = vld [vmem:[%s593 + $0x9] sm:$0x3f]
      %626 = vrot.lane.b32.xlu0 %v622, 16
      %v627 = vpop.permute.xlu0 %626
      %628 = vrot.lane.b32.xlu0 %v623, 16
      %v629 = vpop.permute.xlu0 %628
      %632 = vst.msk [vmem:[#allocation2 + $0x7e] sm:$0xff] %vm257, %v627
      %633 = vst.msk [vmem:[#allocation2 + $0x86] sm:$0x3f] %vm259, %v629
      %s634 = scalar_lea.vmem %s223, 160
      %v635 = vld [vmem:[%s634] sm:$0xff]
      %v636 = vld [vmem:[%s634 + $0x8] sm:$0x3f]
      %639 = vrot.lane.b32.xlu0 %v635, 32
      %v640 = vpop.permute.xlu0 %639
      %641 = vrot.lane.b32.xlu0 %v636, 32
      %v642 = vpop.permute.xlu0 %641
      %645 = vst.msk [vmem:[#allocation2 + $0x7e] sm:$0xff] %vm272, %v640
      %646 = vst.msk [vmem:[#allocation2 + $0x86] sm:$0x3f] %vm274, %v642
      %v647 = vld [vmem:[%s634 + $0x1] sm:$0xff]
      %v648 = vld [vmem:[%s634 + $0x9] sm:$0x3f]
      %651 = vrot.lane.b32.xlu0 %v647, 48
      %v652 = vpop.permute.xlu0 %651
      %653 = vrot.lane.b32.xlu0 %v648, 48
      %v654 = vpop.permute.xlu0 %653
      %657 = vst.msk [vmem:[#allocation2 + $0x7e] sm:$0xff] %vm286, %v652
      %658 = vst.msk [vmem:[#allocation2 + $0x86] sm:$0x3f] %vm288, %v654
      %v659 = vld [vmem:[%s634] sm:$0xff]
      %v660 = vld [vmem:[%s634 + $0x8] sm:$0x3f]
      %661 = vst.msk [vmem:[#allocation2 + $0x8c] sm:$0xff] %vm243, %v659
      %662 = vst.msk [vmem:[#allocation2 + $0x94] sm:$0x3f] %vm245, %v660
      %v663 = vld [vmem:[%s634 + $0x1] sm:$0xff]
      %v664 = vld [vmem:[%s634 + $0x9] sm:$0x3f]
      %667 = vrot.lane.b32.xlu0 %v663, 16
      %v668 = vpop.permute.xlu0 %667
      %669 = vrot.lane.b32.xlu0 %v664, 16
      %v670 = vpop.permute.xlu0 %669
      %673 = vst.msk [vmem:[#allocation2 + $0x8c] sm:$0xff] %vm257, %v668
      %674 = vst.msk [vmem:[#allocation2 + $0x94] sm:$0x3f] %vm259, %v670
      %s675 = scalar_lea.vmem %s223, 176
      %v676 = vld [vmem:[%s675] sm:$0xff]
      %v677 = vld [vmem:[%s675 + $0x8] sm:$0x3f]
      %680 = vrot.lane.b32.xlu0 %v676, 32
      %v681 = vpop.permute.xlu0 %680
      %682 = vrot.lane.b32.xlu0 %v677, 32
      %v683 = vpop.permute.xlu0 %682
      %686 = vst.msk [vmem:[#allocation2 + $0x8c] sm:$0xff] %vm272, %v681
      %687 = vst.msk [vmem:[#allocation2 + $0x94] sm:$0x3f] %vm274, %v683
      %v688 = vld [vmem:[%s675 + $0x1] sm:$0xff]
      %v689 = vld [vmem:[%s675 + $0x9] sm:$0x3f]
      %692 = vrot.lane.b32.xlu0 %v688, 48
      %v693 = vpop.permute.xlu0 %692
      %694 = vrot.lane.b32.xlu0 %v689, 48
      %v695 = vpop.permute.xlu0 %694
      %698 = vst.msk [vmem:[#allocation2 + $0x8c] sm:$0xff] %vm286, %v693
      %699 = vst.msk [vmem:[#allocation2 + $0x94] sm:$0x3f] %vm288, %v695
      %v700 = vld [vmem:[%s675] sm:$0xff]
      %v701 = vld [vmem:[%s675 + $0x8] sm:$0x3f]
      %702 = vst.msk [vmem:[#allocation2 + $0x9a] sm:$0xff] %vm243, %v700
      %703 = vst.msk [vmem:[#allocation2 + $0xa2] sm:$0x3f] %vm245, %v701
      %v704 = vld [vmem:[%s675 + $0x1] sm:$0xff]
      %v705 = vld [vmem:[%s675 + $0x9] sm:$0x3f]
      %708 = vrot.lane.b32.xlu0 %v704, 16
      %v709 = vpop.permute.xlu0 %708
      %710 = vrot.lane.b32.xlu0 %v705, 16
      %v711 = vpop.permute.xlu0 %710
      %714 = vst.msk [vmem:[#allocation2 + $0x9a] sm:$0xff] %vm257, %v709
      %715 = vst.msk [vmem:[#allocation2 + $0xa2] sm:$0x3f] %vm259, %v711
      %s716 = scalar_lea.vmem %s223, 192
      %v717 = vld [vmem:[%s716] sm:$0xff]
      %v718 = vld [vmem:[%s716 + $0x8] sm:$0x3f]
      %721 = vrot.lane.b32.xlu0 %v717, 32
      %v722 = vpop.permute.xlu0 %721
      %723 = vrot.lane.b32.xlu0 %v718, 32
      %v724 = vpop.permute.xlu0 %723
      %727 = vst.msk [vmem:[#allocation2 + $0x9a] sm:$0xff] %vm272, %v722
      %728 = vst.msk [vmem:[#allocation2 + $0xa2] sm:$0x3f] %vm274, %v724
      %v729 = vld [vmem:[%s716 + $0x1] sm:$0xff]
      %v730 = vld [vmem:[%s716 + $0x9] sm:$0x3f]
      %733 = vrot.lane.b32.xlu0 %v729, 48
      %v734 = vpop.permute.xlu0 %733
      %735 = vrot.lane.b32.xlu0 %v730, 48
      %v736 = vpop.permute.xlu0 %735
      %739 = vst.msk [vmem:[#allocation2 + $0x9a] sm:$0xff] %vm286, %v734
      %740 = vst.msk [vmem:[#allocation2 + $0xa2] sm:$0x3f] %vm288, %v736
      %v741 = vld [vmem:[%s716] sm:$0xff]
      %v742 = vld [vmem:[%s716 + $0x8] sm:$0x3f]
      %743 = vst.msk [vmem:[#allocation2 + $0xa8] sm:$0xff] %vm243, %v741
      %744 = vst.msk [vmem:[#allocation2 + $0xb0] sm:$0x3f] %vm245, %v742
      %v745 = vld [vmem:[%s716 + $0x1] sm:$0xff]
      %v746 = vld [vmem:[%s716 + $0x9] sm:$0x3f]
      %749 = vrot.lane.b32.xlu0 %v745, 16
      %v750 = vpop.permute.xlu0 %749
      %751 = vrot.lane.b32.xlu0 %v746, 16
      %v752 = vpop.permute.xlu0 %751
      %755 = vst.msk [vmem:[#allocation2 + $0xa8] sm:$0xff] %vm257, %v750
      %756 = vst.msk [vmem:[#allocation2 + $0xb0] sm:$0x3f] %vm259, %v752
      %s757 = scalar_lea.vmem %s223, 208
      %v758 = vld [vmem:[%s757] sm:$0xff]
      %v759 = vld [vmem:[%s757 + $0x8] sm:$0x3f]
      %762 = vrot.lane.b32.xlu0 %v758, 32
      %v763 = vpop.permute.xlu0 %762
      %764 = vrot.lane.b32.xlu0 %v759, 32
      %v765 = vpop.permute.xlu0 %764
      %768 = vst.msk [vmem:[#allocation2 + $0xa8] sm:$0xff] %vm272, %v763
      %769 = vst.msk [vmem:[#allocation2 + $0xb0] sm:$0x3f] %vm274, %v765
      %v770 = vld [vmem:[%s757 + $0x1] sm:$0xff]
      %v771 = vld [vmem:[%s757 + $0x9] sm:$0x3f]
      %774 = vrot.lane.b32.xlu0 %v770, 48
      %v775 = vpop.permute.xlu0 %774
      %776 = vrot.lane.b32.xlu0 %v771, 48
      %v777 = vpop.permute.xlu0 %776
      %780 = vst.msk [vmem:[#allocation2 + $0xa8] sm:$0xff] %vm286, %v775
      %781 = vst.msk [vmem:[#allocation2 + $0xb0] sm:$0x3f] %vm288, %v777
      %v782 = vld [vmem:[%s757] sm:$0xff]
      %v783 = vld [vmem:[%s757 + $0x8] sm:$0x3f]
      %784 = vst.msk [vmem:[#allocation2 + $0xb6] sm:$0xff] %vm243, %v782
      %785 = vst.msk [vmem:[#allocation2 + $0xbe] sm:$0x3f] %vm245, %v783
      %v786 = vld [vmem:[%s757 + $0x1] sm:$0xff]
      %v787 = vld [vmem:[%s757 + $0x9] sm:$0x3f]
      %790 = vrot.lane.b32.xlu0 %v786, 16
      %v791 = vpop.permute.xlu0 %790
      %792 = vrot.lane.b32.xlu0 %v787, 16
      %v793 = vpop.permute.xlu0 %792
      %796 = vst.msk [vmem:[#allocation2 + $0xb6] sm:$0xff] %vm257, %v791
      %797 = vst.msk [vmem:[#allocation2 + $0xbe] sm:$0x3f] %vm259, %v793
      %s798 = scalar_lea.vmem %s223, 224
      %v799 = vld [vmem:[%s798] sm:$0xff]
      %v800 = vld [vmem:[%s798 + $0x8] sm:$0x3f]
      %803 = vrot.lane.b32.xlu0 %v799, 32
      %v804 = vpop.permute.xlu0 %803
      %805 = vrot.lane.b32.xlu0 %v800, 32
      %v806 = vpop.permute.xlu0 %805
      %809 = vst.msk [vmem:[#allocation2 + $0xb6] sm:$0xff] %vm272, %v804
      %810 = vst.msk [vmem:[#allocation2 + $0xbe] sm:$0x3f] %vm274, %v806
      %v811 = vld [vmem:[%s798 + $0x1] sm:$0xff]
      %v812 = vld [vmem:[%s798 + $0x9] sm:$0x3f]
      %815 = vrot.lane.b32.xlu0 %v811, 48
      %v816 = vpop.permute.xlu0 %815
      %817 = vrot.lane.b32.xlu0 %v812, 48
      %v818 = vpop.permute.xlu0 %817
      %821 = vst.msk [vmem:[#allocation2 + $0xb6] sm:$0xff] %vm286, %v816
      %822 = vst.msk [vmem:[#allocation2 + $0xbe] sm:$0x3f] %vm288, %v818
      %v823 = vld [vmem:[#allocation2] sm:$0xff]
      %v824 = vld [vmem:[#allocation2 + $0x8] sm:$0xff]
      %v825 = vld [vmem:[#allocation2 + $0x10] sm:$0xff]
      %v826 = vld [vmem:[#allocation2 + $0x18] sm:$0xff]
      %v827 = vld [vmem:[#allocation2 + $0x20] sm:$0xff]
      %v828 = vld [vmem:[#allocation2 + $0x28] sm:$0xff]
      %v829 = vld [vmem:[#allocation2 + $0x30] sm:$0xff]
      %v830 = vld [vmem:[#allocation2 + $0x38] sm:$0xff]
      %v831 = vld [vmem:[#allocation2 + $0x40] sm:$0xff]
      %v832 = vld [vmem:[#allocation2 + $0x48] sm:$0xff]
      %v833 = vld [vmem:[#allocation2 + $0x50] sm:$0xff]
      %v834 = vld [vmem:[#allocation2 + $0x58] sm:$0xff]
      %v835 = vld [vmem:[#allocation2 + $0x60] sm:$0xff]
      %v836 = vld [vmem:[#allocation2 + $0x68] sm:$0xff]
      %v837 = vld [vmem:[#allocation2 + $0x70] sm:$0xff]
      %v838 = vld [vmem:[#allocation2 + $0x78] sm:$0xff]
      %v839 = vld [vmem:[#allocation2 + $0x80] sm:$0xff]
      %v840 = vld [vmem:[#allocation2 + $0x88] sm:$0xff]
      %v841 = vld [vmem:[#allocation2 + $0x90] sm:$0xff]
      %v842 = vld [vmem:[#allocation2 + $0x98] sm:$0xff]
      %v843 = vld [vmem:[#allocation2 + $0xa0] sm:$0xff]
      %v844 = vld [vmem:[#allocation2 + $0xa8] sm:$0xff]
      %v845 = vld [vmem:[#allocation2 + $0xb0] sm:$0xff]
      %v846 = vld [vmem:[#allocation2 + $0xb8] sm:$0xff]
      %v847 = vld [vmem:[#allocation2 + $0xc0] sm:$0xf]
      %v848 = vld [vmem:[%s228] sm:$0xff]
      %v849 = vld [vmem:[%s228 + $0x8] sm:$0xff]
      %v850 = vld [vmem:[%s228 + $0x10] sm:$0xff]
      %v851 = vld [vmem:[%s228 + $0x18] sm:$0xff]
      %v852 = vld [vmem:[%s228 + $0x20] sm:$0xff]
      %v853 = vld [vmem:[%s228 + $0x28] sm:$0xff]
      %v854 = vld [vmem:[%s228 + $0x30] sm:$0xff]
      %v855 = vld [vmem:[%s228 + $0x38] sm:$0xff]
      %v856 = vld [vmem:[%s231] sm:$0x1]
      %v858 = vlaneseq
      %v859 = vshrl.u32 %v858, 7
      %v860 = vsub.s32 0, %v859
      %v861 = vrot.slane %v856, %v860
      %vm863 = vcmask 523264
      %v865 = vsel %vm863, %v823, 0
      %v868 = vsel %vm863, %v824, 0
      %v871 = vsel %vm863, %v825, 0
      %v874 = vsel %vm863, %v826, 0
      %v877 = vsel %vm863, %v827, 0
      %v880 = vsel %vm863, %v828, 0
      %v883 = vsel %vm863, %v829, 0
      %v886 = vsel %vm863, %v830, 0
      %v889 = vsel %vm863, %v831, 0
      %v892 = vsel %vm863, %v832, 0
      %v895 = vsel %vm863, %v833, 0
      %v898 = vsel %vm863, %v834, 0
      %v901 = vsel %vm863, %v835, 0
      %v904 = vsel %vm863, %v836, 0
      %v907 = vsel %vm863, %v837, 0
      %v910 = vsel %vm863, %v838, 0
      %v913 = vsel %vm863, %v839, 0
      %v916 = vsel %vm863, %v840, 0
      %v919 = vsel %vm863, %v841, 0
      %v922 = vsel %vm863, %v842, 0
      %v925 = vsel %vm863, %v843, 0
      %v928 = vsel %vm863, %v844, 0
      %v931 = vsel %vm863, %v845, 0
      %v934 = vsel %vm863, %v846, 0
      %v937 = vsel %vm863, %v847, 0
      %939 = vmatprep.subr.mxu0 0.0
      %940 = vmatpush1.msra.mxu0 %v848
      %941 = vmatprep.subr.mxu0 0.0
      %942 = vmatpush1.msra.mxu0 %v849
      %943 = vmatprep.subr.mxu0 0.0
      %944 = vmatpush1.msra.mxu0 %v850
      %945 = vmatprep.subr.mxu0 0.0
      %946 = vmatpush1.msra.mxu0 %v851
      %947 = vmatprep.subr.mxu0 0.0
      %948 = vmatpush1.msra.mxu0 %v852
      %949 = vmatprep.subr.mxu0 0.0
      %950 = vmatpush1.msra.mxu0 %v853
      %951 = vmatprep.subr.mxu0 0.0
      %952 = vmatpush1.msra.mxu0 %v854
      %953 = vmatprep.subr.mxu0 0.0
      %954 = vmatpush1.msra.mxu0 %v855
      %955 = vmatprep.subr.mxu0 0.0
      %956 = vmatpush1.msra.mxu0 0.0
      %957 = vmatprep.subr.mxu0 0.0
      %958 = vmatpush1.msra.mxu0 0.0
      %959 = vmatprep.subr.mxu0 0.0
      %960 = vmatpush1.msra.mxu0 0.0
      %961 = vmatprep.subr.mxu0 0.0
      %962 = vmatpush1.msra.mxu0 0.0
      %963 = vmatprep.subr.mxu0 0.0
      %964 = vmatpush1.msra.mxu0 0.0
      %965 = vmatprep.subr.mxu0 0.0
      %966 = vmatpush1.msra.mxu0 0.0
      %967 = vmatprep.subr.mxu0 0.0
      %968 = vmatpush1.msra.mxu0 0.0
      %969 = vmatprep.subr.mxu0 0.0
      %970 = vmatpush1.msra.mxu0 0.0
      %971 = vmatprep.subr.mxu0 0.0
      %972 = vmatpush1.msra.mxu0 0.0
      %973 = vmatprep.subr.mxu0 0.0
      %974 = vmatpush1.msra.mxu0 0.0
      %975 = vmatprep.subr.mxu0 0.0
      %976 = vmatpush1.msra.mxu0 0.0
      %977 = vmatprep.subr.mxu0 0.0
      %978 = vmatpush1.msra.mxu0 0.0
      %979 = vmatprep.subr.mxu0 0.0
      %980 = vmatpush1.msra.mxu0 0.0
      %981 = vmatprep.subr.mxu0 0.0
      %982 = vmatpush1.msra.mxu0 0.0
      %983 = vmatprep.subr.mxu0 0.0
      %984 = vmatpush1.msra.mxu0 0.0
      %985 = vmatprep.subr.mxu0 0.0
      %986 = vmatpush1.msra.mxu0 0.0
      %987 = vmatprep.subr.mxu0 0.0
      %988 = vmatpush1.msra.mxu0 0.0
      %989 = vmatprep.subr.mxu0 0.0
      %990 = vmatpush1.msra.mxu0 0.0
      %991 = vmatprep.subr.mxu0 0.0
      %992 = vmatpush1.msra.mxu0 0.0
      %993 = vmatprep.subr.mxu0 0.0
      %994 = vmatpush1.msra.mxu0 0.0
      %995 = vmatprep.subr.mxu0 0.0
      %996 = vmatpush1.msra.mxu0 0.0
      %997 = vmatprep.subr.mxu0 0.0
      %998 = vmatpush1.msra.mxu0 0.0
      %999 = vmatprep.subr.mxu0 0.0
      %1000 = vmatpush1.msra.mxu0 0.0
      %1001 = vmatprep.subr.mxu0 0.0
      %1002 = vmatpush1.msra.mxu0 0.0
      %1003 = vmatprep.mubr.f32.mxu0 0.0
      %1004 = vmatmul.mubr.f32.gmra.mrb[0].mxu0 %v865
      %v1005 = vpop.f32.mrb[0].mxu0
      %v1006 = vadd.f32 %v861, %v1005
      %v1007 = vpop.f32.mrb[0].mxu0
      %1008 = vmatprep.mubr.f32.mxu0 0.0
      %1009 = vmatmul.mubr.f32.gmra.mrb[0].mxu0 %v868
      %v1010 = vpop.f32.mrb[0].mxu0
      %v1011 = vadd.f32 %v861, %v1010
      %v1012 = vpop.f32.mrb[0].mxu0
      %1013 = vmatprep.mubr.f32.mxu0 0.0
      %1014 = vmatmul.mubr.f32.gmra.mrb[0].mxu0 %v871
      %v1015 = vpop.f32.mrb[0].mxu0
      %v1016 = vadd.f32 %v861, %v1015
      %v1017 = vpop.f32.mrb[0].mxu0
      %1018 = vmatprep.mubr.f32.mxu0 0.0
      %1019 = vmatmul.mubr.f32.gmra.mrb[0].mxu0 %v874
      %v1020 = vpop.f32.mrb[0].mxu0
      %v1021 = vadd.f32 %v861, %v1020
      %v1022 = vpop.f32.mrb[0].mxu0
      %1023 = vmatprep.mubr.f32.mxu0 0.0
      %1024 = vmatmul.mubr.f32.gmra.mrb[0].mxu0 %v877
      %v1025 = vpop.f32.mrb[0].mxu0
      %v1026 = vadd.f32 %v861, %v1025
      %v1027 = vpop.f32.mrb[0].mxu0
      %1028 = vmatprep.mubr.f32.mxu0 0.0
      %1029 = vmatmul.mubr.f32.gmra.mrb[0].mxu0 %v880
      %v1030 = vpop.f32.mrb[0].mxu0
      %v1031 = vadd.f32 %v861, %v1030
      %v1032 = vpop.f32.mrb[0].mxu0
      %1033 = vmatprep.mubr.f32.mxu0 0.0
      %1034 = vmatmul.mubr.f32.gmra.mrb[0].mxu0 %v883
      %v1035 = vpop.f32.mrb[0].mxu0
      %v1036 = vadd.f32 %v861, %v1035
      %v1037 = vpop.f32.mrb[0].mxu0
      %1038 = vmatprep.mubr.f32.mxu0 0.0
      %1039 = vmatmul.mubr.f32.gmra.mrb[0].mxu0 %v886
      %v1040 = vpop.f32.mrb[0].mxu0
      %v1041 = vadd.f32 %v861, %v1040
      %v1042 = vpop.f32.mrb[0].mxu0
      %1043 = vmatprep.mubr.f32.mxu0 0.0
      %1044 = vmatmul.mubr.f32.gmra.mrb[0].mxu0 %v889
      %v1045 = vpop.f32.mrb[0].mxu0
      %v1046 = vadd.f32 %v861, %v1045
      %v1047 = vpop.f32.mrb[0].mxu0
      %1048 = vmatprep.mubr.f32.mxu0 0.0
      %1049 = vmatmul.mubr.f32.gmra.mrb[0].mxu0 %v892
      %v1050 = vpop.f32.mrb[0].mxu0
      %v1051 = vadd.f32 %v861, %v1050
      %v1052 = vpop.f32.mrb[0].mxu0
      %1053 = vmatprep.mubr.f32.mxu0 0.0
      %1054 = vmatmul.mubr.f32.gmra.mrb[0].mxu0 %v895
      %v1055 = vpop.f32.mrb[0].mxu0
      %v1056 = vadd.f32 %v861, %v1055
      %v1057 = vpop.f32.mrb[0].mxu0
      %1058 = vmatprep.mubr.f32.mxu0 0.0
      %1059 = vmatmul.mubr.f32.gmra.mrb[0].mxu0 %v898
      %v1060 = vpop.f32.mrb[0].mxu0
      %v1061 = vadd.f32 %v861, %v1060
      %v1062 = vpop.f32.mrb[0].mxu0
      %1063 = vmatprep.mubr.f32.mxu0 0.0
      %1064 = vmatmul.mubr.f32.gmra.mrb[0].mxu0 %v901
      %v1065 = vpop.f32.mrb[0].mxu0
      %v1066 = vadd.f32 %v861, %v1065
      %v1067 = vpop.f32.mrb[0].mxu0
      %1068 = vmatprep.mubr.f32.mxu0 0.0
      %1069 = vmatmul.mubr.f32.gmra.mrb[0].mxu0 %v904
      %v1070 = vpop.f32.mrb[0].mxu0
      %v1071 = vadd.f32 %v861, %v1070
      %v1072 = vpop.f32.mrb[0].mxu0
      %1073 = vmatprep.mubr.f32.mxu0 0.0
      %1074 = vmatmul.mubr.f32.gmra.mrb[0].mxu0 %v907
      %v1075 = vpop.f32.mrb[0].mxu0
      %v1076 = vadd.f32 %v861, %v1075
      %v1077 = vpop.f32.mrb[0].mxu0
      %1078 = vmatprep.mubr.f32.mxu0 0.0
      %1079 = vmatmul.mubr.f32.gmra.mrb[0].mxu0 %v910
      %v1080 = vpop.f32.mrb[0].mxu0
      %v1081 = vadd.f32 %v861, %v1080
      %v1082 = vpop.f32.mrb[0].mxu0
      %1083 = vmatprep.mubr.f32.mxu0 0.0
      %1084 = vmatmul.mubr.f32.gmra.mrb[0].mxu0 %v913
      %v1085 = vpop.f32.mrb[0].mxu0
      %v1086 = vadd.f32 %v861, %v1085
      %v1087 = vpop.f32.mrb[0].mxu0
      %1088 = vmatprep.mubr.f32.mxu0 0.0
      %1089 = vmatmul.mubr.f32.gmra.mrb[0].mxu0 %v916
      %v1090 = vpop.f32.mrb[0].mxu0
      %v1091 = vadd.f32 %v861, %v1090
      %v1092 = vpop.f32.mrb[0].mxu0
      %1093 = vmatprep.mubr.f32.mxu0 0.0
      %1094 = vmatmul.mubr.f32.gmra.mrb[0].mxu0 %v919
      %v1095 = vpop.f32.mrb[0].mxu0
      %v1096 = vadd.f32 %v861, %v1095
      %v1097 = vpop.f32.mrb[0].mxu0
      %1098 = vmatprep.mubr.f32.mxu0 0.0
      %1099 = vmatmul.mubr.f32.gmra.mrb[0].mxu0 %v922
      %v1100 = vpop.f32.mrb[0].mxu0
      %v1101 = vadd.f32 %v861, %v1100
      %v1102 = vpop.f32.mrb[0].mxu0
      %1103 = vmatprep.mubr.f32.mxu0 0.0
      %1104 = vmatmul.mubr.f32.gmra.mrb[0].mxu0 %v925
      %v1105 = vpop.f32.mrb[0].mxu0
      %v1106 = vadd.f32 %v861, %v1105
      %v1107 = vpop.f32.mrb[0].mxu0
      %1108 = vmatprep.mubr.f32.mxu0 0.0
      %1109 = vmatmul.mubr.f32.gmra.mrb[0].mxu0 %v928
      %v1110 = vpop.f32.mrb[0].mxu0
      %v1111 = vadd.f32 %v861, %v1110
      %v1112 = vpop.f32.mrb[0].mxu0
      %1113 = vmatprep.mubr.f32.mxu0 0.0
      %1114 = vmatmul.mubr.f32.gmra.mrb[0].mxu0 %v931
      %v1115 = vpop.f32.mrb[0].mxu0
      %v1116 = vadd.f32 %v861, %v1115
      %v1117 = vpop.f32.mrb[0].mxu0
      %1118 = vmatprep.mubr.f32.mxu0 0.0
      %1119 = vmatmul.mubr.f32.gmra.mrb[0].mxu0 %v934
      %v1120 = vpop.f32.mrb[0].mxu0
      %v1121 = vadd.f32 %v861, %v1120
      %v1122 = vpop.f32.mrb[0].mxu0
      %1123 = vmatprep.mubr.f32.mxu0 0.0
      %1124 = vmatmul.mubr.f32.gmra.mrb[0].mxu0 %v937
      %v1125 = vpop.f32.mrb[0].mxu0
      %v1126 = vadd.f32 %v861, %v1125
      %v1127 = vpop.f32.mrb[0].mxu0
      %1128 = vdwg.mxu0
      %v1129 = vsub.f32 0.0, %v1006
      %v1130 = vsub.f32 0.0, %v1011
      %v1131 = vsub.f32 0.0, %v1016
      %v1132 = vsub.f32 0.0, %v1021
      %v1133 = vsub.f32 0.0, %v1026
      %v1134 = vsub.f32 0.0, %v1031
      %v1135 = vsub.f32 0.0, %v1036
      %v1136 = vsub.f32 0.0, %v1041
      %v1137 = vsub.f32 0.0, %v1046
      %v1138 = vsub.f32 0.0, %v1051
      %v1139 = vsub.f32 0.0, %v1056
      %v1140 = vsub.f32 0.0, %v1061
      %v1141 = vsub.f32 0.0, %v1066
      %v1142 = vsub.f32 0.0, %v1071
      %v1143 = vsub.f32 0.0, %v1076
      %v1144 = vsub.f32 0.0, %v1081
      %v1145 = vsub.f32 0.0, %v1086
      %v1146 = vsub.f32 0.0, %v1091
      %v1147 = vsub.f32 0.0, %v1096
      %v1148 = vsub.f32 0.0, %v1101
      %v1149 = vsub.f32 0.0, %v1106
      %v1150 = vsub.f32 0.0, %v1111
      %v1151 = vsub.f32 0.0, %v1116
      %v1152 = vsub.f32 0.0, %v1121
      %v1153 = vsub.f32 0.0, %v1126
      %v1154 = vmul.f32 %v1129, 1.442695
      %v1155 = vpow.pop %v1154
      %v1156 = vmul.f32 %v1130, 1.442695
      %v1157 = vpow.pop %v1156
      %v1158 = vmul.f32 %v1131, 1.442695
      %v1159 = vpow.pop %v1158
      %v1160 = vmul.f32 %v1132, 1.442695
      %v1161 = vpow.pop %v1160
      %v1162 = vmul.f32 %v1133, 1.442695
      %v1163 = vpow.pop %v1162
      %v1164 = vmul.f32 %v1134, 1.442695
      %v1165 = vpow.pop %v1164
      %v1166 = vmul.f32 %v1135, 1.442695
      %v1167 = vpow.pop %v1166
      %v1168 = vmul.f32 %v1136, 1.442695
      %v1169 = vpow.pop %v1168
      %v1170 = vmul.f32 %v1137, 1.442695
      %v1171 = vpow.pop %v1170
      %v1172 = vmul.f32 %v1138, 1.442695
      %v1173 = vpow.pop %v1172
      %v1174 = vmul.f32 %v1139, 1.442695
      %v1175 = vpow.pop %v1174
      %v1176 = vmul.f32 %v1140, 1.442695
      %v1177 = vpow.pop %v1176
      %v1178 = vmul.f32 %v1141, 1.442695
      %v1179 = vpow.pop %v1178
      %v1180 = vmul.f32 %v1142, 1.442695
      %v1181 = vpow.pop %v1180
      %v1182 = vmul.f32 %v1143, 1.442695
      %v1183 = vpow.pop %v1182
      %v1184 = vmul.f32 %v1144, 1.442695
      %v1185 = vpow.pop %v1184
      %v1186 = vmul.f32 %v1145, 1.442695
      %v1187 = vpow.pop %v1186
      %v1188 = vmul.f32 %v1146, 1.442695
      %v1189 = vpow.pop %v1188
      %v1190 = vmul.f32 %v1147, 1.442695
      %v1191 = vpow.pop %v1190
      %v1192 = vmul.f32 %v1148, 1.442695
      %v1193 = vpow.pop %v1192
      %v1194 = vmul.f32 %v1149, 1.442695
      %v1195 = vpow.pop %v1194
      %v1196 = vmul.f32 %v1150, 1.442695
      %v1197 = vpow.pop %v1196
      %v1198 = vmul.f32 %v1151, 1.442695
      %v1199 = vpow.pop %v1198
      %v1200 = vmul.f32 %v1152, 1.442695
      %v1201 = vpow.pop %v1200
      %v1202 = vmul.f32 %v1153, 1.442695
      %v1203 = vpow.pop %v1202
      %v1204 = vadd.f32 %v1155, 1.0
      %v1205 = vadd.f32 %v1157, 1.0
      %v1206 = vadd.f32 %v1159, 1.0
      %v1207 = vadd.f32 %v1161, 1.0
      %v1208 = vadd.f32 %v1163, 1.0
      %v1209 = vadd.f32 %v1165, 1.0
      %v1210 = vadd.f32 %v1167, 1.0
      %v1211 = vadd.f32 %v1169, 1.0
      %v1212 = vadd.f32 %v1171, 1.0
      %v1213 = vadd.f32 %v1173, 1.0
      %v1214 = vadd.f32 %v1175, 1.0
      %v1215 = vadd.f32 %v1177, 1.0
      %v1216 = vadd.f32 %v1179, 1.0
      %v1217 = vadd.f32 %v1181, 1.0
      %v1218 = vadd.f32 %v1183, 1.0
      %v1219 = vadd.f32 %v1185, 1.0
      %v1220 = vadd.f32 %v1187, 1.0
      %v1221 = vadd.f32 %v1189, 1.0
      %v1222 = vadd.f32 %v1191, 1.0
      %v1223 = vadd.f32 %v1193, 1.0
      %v1224 = vadd.f32 %v1195, 1.0
      %v1225 = vadd.f32 %v1197, 1.0
      %v1226 = vadd.f32 %v1199, 1.0
      %v1227 = vadd.f32 %v1201, 1.0
      %v1228 = vadd.f32 %v1203, 1.0
      %v1229 = vrcp.pop %v1204
      %v1230 = vmul.f32 1.0, %v1229
      %v1231 = vrcp.pop %v1205
      %v1232 = vmul.f32 1.0, %v1231
      %v1233 = vrcp.pop %v1206
      %v1234 = vmul.f32 1.0, %v1233
      %v1235 = vrcp.pop %v1207
      %v1236 = vmul.f32 1.0, %v1235
      %v1237 = vrcp.pop %v1208
      %v1238 = vmul.f32 1.0, %v1237
      %v1239 = vrcp.pop %v1209
      %v1240 = vmul.f32 1.0, %v1239
      %v1241 = vrcp.pop %v1210
      %v1242 = vmul.f32 1.0, %v1241
      %v1243 = vrcp.pop %v1211
      %v1244 = vmul.f32 1.0, %v1243
      %v1245 = vrcp.pop %v1212
      %v1246 = vmul.f32 1.0, %v1245
      %v1247 = vrcp.pop %v1213
      %v1248 = vmul.f32 1.0, %v1247
      %v1249 = vrcp.pop %v1214
      %v1250 = vmul.f32 1.0, %v1249
      %v1251 = vrcp.pop %v1215
      %v1252 = vmul.f32 1.0, %v1251
      %v1253 = vrcp.pop %v1216
      %v1254 = vmul.f32 1.0, %v1253
      %v1255 = vrcp.pop %v1217
      %v1256 = vmul.f32 1.0, %v1255
      %v1257 = vrcp.pop %v1218
      %v1258 = vmul.f32 1.0, %v1257
      %v1259 = vrcp.pop %v1219
      %v1260 = vmul.f32 1.0, %v1259
      %v1261 = vrcp.pop %v1220
      %v1262 = vmul.f32 1.0, %v1261
      %v1263 = vrcp.pop %v1221
      %v1264 = vmul.f32 1.0, %v1263
      %v1265 = vrcp.pop %v1222
      %v1266 = vmul.f32 1.0, %v1265
      %v1267 = vrcp.pop %v1223
      %v1268 = vmul.f32 1.0, %v1267
      %v1269 = vrcp.pop %v1224
      %v1270 = vmul.f32 1.0, %v1269
      %v1271 = vrcp.pop %v1225
      %v1272 = vmul.f32 1.0, %v1271
      %v1273 = vrcp.pop %v1226
      %v1274 = vmul.f32 1.0, %v1273
      %v1275 = vrcp.pop %v1227
      %v1276 = vmul.f32 1.0, %v1275
      %v1277 = vrcp.pop %v1228
      %v1278 = vmul.f32 1.0, %v1277
      %vm1279 = vcmask 23552
      %1280 = vst.msk [vmem:[%s240] sm:$0xff] %vm1279, %v1230
      %1281 = vst.msk [vmem:[%s240 + $0x8] sm:$0xff] %vm1279, %v1232
      %1282 = vst.msk [vmem:[%s240 + $0x10] sm:$0xff] %vm1279, %v1234
      %1283 = vst.msk [vmem:[%s240 + $0x18] sm:$0xff] %vm1279, %v1236
      %1284 = vst.msk [vmem:[%s240 + $0x20] sm:$0xff] %vm1279, %v1238
      %1285 = vst.msk [vmem:[%s240 + $0x28] sm:$0xff] %vm1279, %v1240
      %1286 = vst.msk [vmem:[%s240 + $0x30] sm:$0xff] %vm1279, %v1242
      %1287 = vst.msk [vmem:[%s240 + $0x38] sm:$0xff] %vm1279, %v1244
      %1288 = vst.msk [vmem:[%s240 + $0x40] sm:$0xff] %vm1279, %v1246
      %1289 = vst.msk [vmem:[%s240 + $0x48] sm:$0xff] %vm1279, %v1248
      %1290 = vst.msk [vmem:[%s240 + $0x50] sm:$0xff] %vm1279, %v1250
      %1291 = vst.msk [vmem:[%s240 + $0x58] sm:$0xff] %vm1279, %v1252
      %1292 = vst.msk [vmem:[%s240 + $0x60] sm:$0xff] %vm1279, %v1254
      %1293 = vst.msk [vmem:[%s240 + $0x68] sm:$0xff] %vm1279, %v1256
      %1294 = vst.msk [vmem:[%s240 + $0x70] sm:$0xff] %vm1279, %v1258
      %1295 = vst.msk [vmem:[%s240 + $0x78] sm:$0xff] %vm1279, %v1260
      %1296 = vst.msk [vmem:[%s240 + $0x80] sm:$0xff] %vm1279, %v1262
      %1297 = vst.msk [vmem:[%s240 + $0x88] sm:$0xff] %vm1279, %v1264
      %1298 = vst.msk [vmem:[%s240 + $0x90] sm:$0xff] %vm1279, %v1266
      %1299 = vst.msk [vmem:[%s240 + $0x98] sm:$0xff] %vm1279, %v1268
      %1300 = vst.msk [vmem:[%s240 + $0xa0] sm:$0xff] %vm1279, %v1270
      %1301 = vst.msk [vmem:[%s240 + $0xa8] sm:$0xff] %vm1279, %v1272
      %1302 = vst.msk [vmem:[%s240 + $0xb0] sm:$0xff] %vm1279, %v1274
      %1303 = vst.msk [vmem:[%s240 + $0xb8] sm:$0xff] %vm1279, %v1276
      %vm1304 = vcmask 19456
      %1305 = vst.msk [vmem:[%s240 + $0xc0] sm:$0xf] %vm1304, %v1278
      %p1306 = scmp.lt.s32.totalorder %s18, 3
      %s1307 = scalar_select %p1306, %s18, 3
      %p1308 = scmp.lt.s32.totalorder %s19, 1
      %s1309 = scalar_select %p1308, %s19, 1
      %s1310 = smul.addr %s1309, 25
      %s1311 = smul.addr %s1307, 50
      %s1312 = sadd.s32 %s1310, %s1311
      %s1313 = smul.addr %s1312, 8
      %s1314 = scalar_lea.vmem %s3, %s1313
      // Predicated region
      $region33: #{conv_vae_forward.15} parent=31 // pred_check
        %p1315 = pneg %p126
      $region34: #{conv_vae_forward.15} parent=31 // pred_check_branch
        %1317 = sbr.rel (%p1315) target = $region36
      $region35: #{conv_vae_forward.15} parent=31 // pred_region
        _
      $region36: #{conv_vae_forward.15} parent=31 // pred_fallthru
        _
    $region32: #{conv_vae_forward.15} parent=5 // pred_fallthru
      _
    %p1318 = scmp.le.s32.totalorder 2, %s9
    // Predicated region
    $region37: #{conv_vae_forward.15} parent=5 // pred_check
      %p1319 = pneg %p1318
    $region38: #{conv_vae_forward.15} parent=5 // pred_check_branch
      %1321 = sbr.rel (%p1319) target = $region40
    $region39: #{conv_vae_forward.15} parent=5 // pred_region
      %s1322 = ssub.s32 %s9, 2
      // Predicated region
      $region41: #{conv_vae_forward.15} parent=39 // pred_check
        %p1323 = pneg %p132
      $region42: #{conv_vae_forward.15} parent=39 // pred_check_branch
        %1325 = sbr.rel (%p1323) target = $region44
      $region43: #{conv_vae_forward.15} parent=39 // pred_region
        %p1326 = scmp.lt.s32.totalorder %s20, 3
        %s1327 = scalar_select %p1326, %s20, 3
        %p1328 = scmp.lt.s32.totalorder %s21, 1
        %s1329 = scalar_select %p1328, %s21, 1
        %s1330 = smul.addr %s1329, 25
        %s1331 = smul.addr %s1327, 50
        %s1332 = sadd.s32 %s1330, %s1331
        %s1333 = smul.addr %s1332, 8
        %s1334 = scalar_lea.vmem %s3, %s1333
      $region44: #{conv_vae_forward.15} parent=39 // pred_fallthru
        _
    $region40: #{conv_vae_forward.15} parent=5 // pred_fallthru
      _
  $region6: #{conv_vae_forward.15} parent=0 // loop_footer
    %s13 = sadd.s32 1, %s9
  $region7: #{conv_vae_forward.15} parent=0 // loop_footer_branch
    %8 = sbr.rel target = $region3
  $region8: #{conv_vae_forward.15} parent=0 // loop_exit
    _

</llo_original>
